<compile_context>
chip_gen: v7x
topology: tpu7x:2x2x1
jax: 0.10.0
libtpu: 0.0.40
codegen_flags: <defaults>
</compile_context>

<pallas_src>
import numpy as np
import jax
import jax.numpy as jnp
from jax.experimental import pallas as pl
from jax.experimental.pallas import tpu as pltpu

EPS = 1e-5  # PyTorch BatchNorm2d default eps

CIN_PAD = 8              # conv1 input channels padded to 8 sublanes
C1_PAD, C2_PAD, C3_PAD, C4_PAD = 16, 24, 24, 24   # conv1..conv4 output pads


# --------------------- host-side 0/1 gather-matrix builders ------------------

def _pool_decim_matrix(N, w_in, blk, h_p, w_p, pad_out):
    """After the two shift-max passes, pick lane n*blk + (2r)*w_in + 2c into
    compact lane n*(h_p*w_p) + r*w_p + c. Trailing pad_out columns are zero."""
    rows = N * blk - w_in - 1            # width of the hmax tensor
    cols = N * h_p * w_p + pad_out
    S = np.zeros((rows, cols), np.float32)
    for n in range(N):
        for r in range(h_p):
            for c in range(w_p):
                S[n * blk + 2 * r * w_in + 2 * c,
                  n * h_p * w_p + r * w_p + c] = 1.0
    return S


def _compact_matrix(N, w_in, blk, h_out, w_out, pad_out):
    """Drop the garbage conv lanes: gather lane n*blk + r*w_in + c into
    n*(h_out*w_out) + r*w_out + c. Trailing pad_out columns are zero."""
    S = np.zeros((N * blk, N * h_out * w_out + pad_out), np.float32)
    for n in range(N):
        for r in range(h_out):
            for c in range(w_out):
                S[n * blk + r * w_in + c,
                  n * h_out * w_out + r * w_out + c] = 1.0
    return S


def _flatten_constants(N, c_pad):
    """Constants for the fc1 flatten: flat[s*c_pad + c, n] = a4[c, n*9 + s]
    computed as (tile(a4, 9) * fm) @ fo."""
    fm = np.zeros((9 * c_pad, N * 9), np.float32)
    for s in range(9):
        fm[s * c_pad:(s + 1) * c_pad, s::9] = 1.0
    fo = np.zeros((N * 9, N), np.float32)
    for n in range(N):
        fo[n * 9:(n + 1) * 9, n] = 1.0
    return fm, fo


# ------------------------------ fused kernel --------------------------------

def _make_kernel(N):
    F32 = jnp.float32

    def kernel(x_ref, sel1_ref, sel2_ref, sel3_ref, sel4_ref, fm_ref, fo_ref,
               w1_ref, b1_ref, g1_ref, be1_ref,
               w2_ref, b2_ref, g2_ref, be2_ref,
               w3_ref, b3_ref, g3_ref, be3_ref,
               w4_ref, b4_ref, g4_ref, be4_ref,
               fw1_ref, fb1_ref, fw2_ref, fb2_ref,
               o_ref):

        def dot(a, b):
            return jnp.dot(a, b, preferred_element_type=F32)

        def relu(v):
            return jnp.maximum(v, 0.0)

        def conv3x3(x, w_r, b_col, w_in, blk):
            # x: (cin_p, N*blk + pad), pad >= 2*w_in + 2 trailing (finite) lanes.
            # One stacked-taps matmul; output lane n*blk + h*w_in + j is valid
            # iff h < h_in-2 and j < w_in-2 (garbage lanes are dropped/never
            # selected downstream).
            L = N * blk
            taps = jnp.concatenate(
                [x[:, kh * w_in + kw: kh * w_in + kw + L]
                 for kh in range(3) for kw in range(3)], axis=0)
            return dot(w_r, taps) + b_col

        def pool2(y, w_in, blk):
            # 2x2 / stride-2 max pool as two shift-max passes (pure VPU); the
            # even-(row,col) lanes are picked afterwards by one decimation dot.
            Lv = N * blk - w_in
            v = jnp.maximum(y[:, :Lv], y[:, w_in:w_in + Lv])
            Lh = Lv - 1
            return jnp.maximum(v[:, :Lh], v[:, 1:1 + Lh])

        def bn(y, g, b, count):
            # Training-mode BN with batch statistics, single pass.  Trailing
            # pad lanes of y are exactly zero, so unmasked sums divided by the
            # valid-lane count are exact.
            inv = 1.0 / count
            mean = jnp.sum(y, axis=1, keepdims=True) * inv
            var = jnp.sum(y * y, axis=1, keepdims=True) * inv - mean * mean
            scale = g * jax.lax.rsqrt(var + EPS)
            return y * scale + (b - mean * scale)

        x = x_ref[...]

        # --- stage 1: conv1 -> maxpool(2) -> relu -> bn1 ---------------------
        c1 = conv3x3(x, w1_ref[...], b1_ref[...], 28, 784)        # (16, N*784)
        p1 = dot(pool2(c1, 28, 784), sel1_ref[...])               # (16, N*169+28)
        a1 = bn(relu(p1), g1_ref[...], be1_ref[...], float(N * 169))

        # --- stage 2: conv2 -> relu -> bn2 -----------------------------------
        c2 = conv3x3(a1, w2_ref[...], b2_ref[...], 13, 169)       # (24, N*169)
        a2 = bn(relu(dot(c2, sel2_ref[...])), g2_ref[...], be2_ref[...],
                float(N * 121))                                   # (24, N*121+24)

        # --- stage 3: conv3 -> relu -> bn3 -----------------------------------
        c3 = conv3x3(a2, w3_ref[...], b3_ref[...], 11, 121)       # (24, N*121)
        a3 = bn(relu(dot(c3, sel3_ref[...])), g3_ref[...], be3_ref[...],
                float(N * 81))                                    # (24, N*81+20)

        # --- stage 4: conv4 -> maxpool(2) -> relu -> bn4 ----------------------
        c4 = conv3x3(a3, w4_ref[...], b4_ref[...], 9, 81)         # (24, N*81)
        p4 = dot(pool2(c4, 9, 81), sel4_ref[...])                 # (24, N*9)
        a4 = bn(relu(p4), g4_ref[...], be4_ref[...], float(N * 9))

        # --- head: flatten (c,p,q) -> fc1 -> relu -> fc2 -> log_softmax ------
        tiled = jnp.concatenate([a4] * 9, axis=0)                 # (216, N*9)
        flat = dot(tiled * fm_ref[...], fo_ref[...])              # (216, N)
        h = relu(dot(fw1_ref[...], flat) + fb1_ref[...])          # (50, N)
        z = dot(fw2_ref[...], h) + fb2_ref[...]                   # (10, N)
        zs = z - jnp.max(z, axis=0, keepdims=True)
        o_ref[...] = zs - jnp.log(jnp.sum(jnp.exp(zs), axis=0, keepdims=True))

    return kernel


# ------------------------------ host wrapper ---------------------------------

@jax.jit
def batch_norm_net_forward(x_nchw, params):
    x = x_nchw.astype(jnp.float32)
    N, CIN, H, W = x.shape
    assert (H, W) == (28, 28), "fc1(180) implies 28x28 spatial input"
    assert CIN <= CIN_PAD

    # Input as (channels, N*H*W) with channels padded to 8 sublanes and
    # 2*W+2 trailing zero lanes so the stacked-tap slices stay in bounds.
    x2 = jnp.transpose(x, (1, 0, 2, 3)).reshape(CIN, N * H * W)
    x2 = jnp.pad(x2, ((0, CIN_PAD - CIN), (0, 2 * W + 2)))

    def prep_conv(name, cin_p, cout_p):
        w, b = params[name]                         # (cout, cin, 3, 3), (cout,)
        cout, cin = w.shape[0], w.shape[1]
        w_r = jnp.transpose(w, (0, 2, 3, 1)).reshape(cout, 9, cin)   # [o, t, c]
        wp = jnp.zeros((cout_p, 9, cin_p), jnp.float32)
        wp = wp.at[:cout, :, :cin].set(w_r.astype(jnp.float32))
        bp = jnp.zeros((cout_p, 1), jnp.float32).at[:cout, 0].set(
            b.astype(jnp.float32))
        return wp.reshape(cout_p, 9 * cin_p), bp

    def prep_bn(name, c_p):
        g, b = params[name]
        c = g.shape[0]
        gp = jnp.ones((c_p, 1), jnp.float32).at[:c, 0].set(g.astype(jnp.float32))
        bp = jnp.zeros((c_p, 1), jnp.float32).at[:c, 0].set(b.astype(jnp.float32))
        return gp, bp

    w1, b1 = prep_conv('conv1', CIN_PAD, C1_PAD); g1, be1 = prep_bn('bn1', C1_PAD)
    w2, b2 = prep_conv('conv2', C1_PAD, C2_PAD); g2, be2 = prep_bn('bn2', C2_PAD)
    w3, b3 = prep_conv('conv3', C2_PAD, C3_PAD); g3, be3 = prep_bn('bn3', C3_PAD)
    w4, b4 = prep_conv('conv4', C3_PAD, C4_PAD); g4, be4 = prep_bn('bn4', C4_PAD)

    # fc1 consumes PyTorch's x.view(-1, 180) order (c, p, q); regroup columns
    # to (s = p*3+q, c) with the channel axis padded to C4_PAD so they match
    # the in-kernel flatten (tile + mask + gather matmul).
    fw1, fb1 = params['fc1']                        # (50, 180), (50,)
    fw1 = jnp.transpose(fw1.reshape(50, 20, 9), (0, 2, 1)).astype(jnp.float32)
    fw1p = jnp.zeros((50, 9, C4_PAD), jnp.float32).at[:, :, :20].set(fw1)
    fw1p = fw1p.reshape(50, 9 * C4_PAD)
    fb1 = fb1.reshape(50, 1).astype(jnp.float32)
    fw2, fb2 = params['fc2']
    fw2 = fw2.astype(jnp.float32)
    fb2 = fb2.reshape(10, 1).astype(jnp.float32)

    # Precomputed (trace-time, numpy) 0/1 gather matrices.
    sel1 = jnp.asarray(_pool_decim_matrix(N, 28, 784, 13, 13, 2 * 13 + 2))
    sel2 = jnp.asarray(_compact_matrix(N, 13, 169, 11, 11, 2 * 11 + 2))
    sel3 = jnp.asarray(_compact_matrix(N, 11, 121, 9, 9, 2 * 9 + 2))
    sel4 = jnp.asarray(_pool_decim_matrix(N, 9, 81, 3, 3, 0))
    fm, fo = _flatten_constants(N, C4_PAD)
    fm = jnp.asarray(fm)
    fo = jnp.asarray(fo)

    args = [x2, sel1, sel2, sel3, sel4, fm, fo,
            w1, b1, g1, be1, w2, b2, g2, be2,
            w3, b3, g3, be3, w4, b4, g4, be4,
            fw1p, fb1, fw2, fb2]

    out = pl.pallas_call(
        _make_kernel(N),
        grid=(1,),
        in_specs=[pl.BlockSpec(a.shape, lambda i: (0, 0)) for a in args],
        out_specs=pl.BlockSpec((10, N), lambda i: (0, 0)),
        out_shape=jax.ShapeDtypeStruct((10, N), jnp.float32),
        compiler_params=pltpu.CompilerParams(
            dimension_semantics=("arbitrary",),
            vmem_limit_bytes=32 * 1024 * 1024),
    )(*args)
    # Kernel writes per-image log-probs as columns; transpose to (N, 10).
    return out.T


# ----------------------- pure-JAX reference (for checking) -------------------

def _reference_forward(x, params):
    def conv(h, w, b):
        y = jax.lax.conv_general_dilated(
            h, w, (1, 1), 'VALID', dimension_numbers=('NCHW', 'OIHW', 'NCHW'))
        return y + b.reshape(1, -1, 1, 1)

    def bn(h, g, b):
        mean = jnp.mean(h, axis=(0, 2, 3), keepdims=True)
        var = jnp.mean((h - mean) ** 2, axis=(0, 2, 3), keepdims=True)
        return ((h - mean) * jax.lax.rsqrt(var + EPS) * g.reshape(1, -1, 1, 1)
                + b.reshape(1, -1, 1, 1))

    def pool(h):
        return jax.lax.reduce_window(h, -jnp.inf, jax.lax.max,
                                     (1, 1, 2, 2), (1, 1, 2, 2), 'VALID')

    h = x.astype(jnp.float32)
    h = conv(h, *params['conv1']); h = jnp.maximum(pool(h), 0.0); h = bn(h, *params['bn1'])
    h = jnp.maximum(conv(h, *params['conv2']), 0.0); h = bn(h, *params['bn2'])
    h = jnp.maximum(conv(h, *params['conv3']), 0.0); h = bn(h, *params['bn3'])
    h = conv(h, *params['conv4']); h = jnp.maximum(pool(h), 0.0); h = bn(h, *params['bn4'])
    h = h.reshape(h.shape[0], -1)
    w1, b1 = params['fc1']; w2, b2 = params['fc2']
    h = jnp.maximum(h @ w1.T + b1, 0.0)
    z = h @ w2.T + b2
    return jax.nn.log_softmax(z, axis=-1)


# ------------------------------ params (synthetic) ---------------------------

def init_params(key, ch):
    def conv_init(k, cout, cin, ksz=3):
        fan_in = cin * ksz * ksz
        bound = 1.0 / (fan_in ** 0.5)
        k1, k2 = jax.random.split(k)
        return (jax.random.uniform(k1, (cout, cin, ksz, ksz), jnp.float32, -bound, bound),
                jax.random.uniform(k2, (cout,), jnp.float32, -bound, bound))

    def linear_init(k, cout, cin):
        bound = 1.0 / (cin ** 0.5)
        k1, k2 = jax.random.split(k)
        return (jax.random.uniform(k1, (cout, cin), jnp.float32, -bound, bound),
                jax.random.uniform(k2, (cout,), jnp.float32, -bound, bound))

    keys = jax.random.split(key, 6)
    return {
        'conv1': conv_init(keys[0], 15, ch),
        'conv2': conv_init(keys[1], 20, 15),
        'conv3': conv_init(keys[2], 20, 20),
        'conv4': conv_init(keys[3], 20, 20),
        'fc1': linear_init(keys[4], 50, 180),
        'fc2': linear_init(keys[5], 10, 50),
        # PyTorch BatchNorm2d default init: weight=1, bias=0
        'bn1': (jnp.ones((15,), jnp.float32), jnp.zeros((15,), jnp.float32)),
        'bn2': (jnp.ones((20,), jnp.float32), jnp.zeros((20,), jnp.float32)),
        'bn3': (jnp.ones((20,), jnp.float32), jnp.zeros((20,), jnp.float32)),
        'bn4': (jnp.ones((20,), jnp.float32), jnp.zeros((20,), jnp.float32)),
    }


if __name__ == "__main__":
    # Input geometry implied by the module: fc1 expects 180 = 20*3*3 features,
    # which requires 28x28 spatial input (MNIST-like). Use batch=2, ch=1.
    key = jax.random.PRNGKey(0)
    k_params, k_x = jax.random.split(key)
    ch = 1
    params = init_params(k_params, ch)
    x = jax.random.normal(k_x, (2, ch, 28, 28), jnp.float32)  # NCHW like PyTorch

    out = batch_norm_net_forward(x, params)
    out = jax.block_until_ready(out)
    assert out.shape == (2, 10) and out.dtype == jnp.float32

    ref = _reference_forward(x, params)
    if not bool(jnp.allclose(out, ref, atol=2e-3, rtol=2e-3)):
        max_err = float(jnp.max(jnp.abs(out - ref)))
        raise AssertionError(f"kernel/reference mismatch, max abs err = {max_err}")

    print("KERNEL_OK")
</pallas_src>

<mosaic_0001>
module attributes {stable_mosaic.version = 11 : i64} {
  func.func @kernel(%arg0: i32, %arg1: memref<8x1626xf32, #tpu.memory_space<vmem>>, %arg2: memref<1539x366xf32, #tpu.memory_space<vmem>>, %arg3: memref<338x266xf32, #tpu.memory_space<vmem>>, %arg4: memref<242x182xf32, #tpu.memory_space<vmem>>, %arg5: memref<152x18xf32, #tpu.memory_space<vmem>>, %arg6: memref<216x18xf32, #tpu.memory_space<vmem>>, %arg7: memref<18x2xf32, #tpu.memory_space<vmem>>, %arg8: memref<16x72xf32, #tpu.memory_space<vmem>>, %arg9: memref<16x1xf32, #tpu.memory_space<vmem>>, %arg10: memref<16x1xf32, #tpu.memory_space<vmem>>, %arg11: memref<16x1xf32, #tpu.memory_space<vmem>>, %arg12: memref<24x144xf32, #tpu.memory_space<vmem>>, %arg13: memref<24x1xf32, #tpu.memory_space<vmem>>, %arg14: memref<24x1xf32, #tpu.memory_space<vmem>>, %arg15: memref<24x1xf32, #tpu.memory_space<vmem>>, %arg16: memref<24x216xf32, #tpu.memory_space<vmem>>, %arg17: memref<24x1xf32, #tpu.memory_space<vmem>>, %arg18: memref<24x1xf32, #tpu.memory_space<vmem>>, %arg19: memref<24x1xf32, #tpu.memory_space<vmem>>, %arg20: memref<24x216xf32, #tpu.memory_space<vmem>>, %arg21: memref<24x1xf32, #tpu.memory_space<vmem>>, %arg22: memref<24x1xf32, #tpu.memory_space<vmem>>, %arg23: memref<24x1xf32, #tpu.memory_space<vmem>>, %arg24: memref<50x216xf32, #tpu.memory_space<vmem>>, %arg25: memref<50x1xf32, #tpu.memory_space<vmem>>, %arg26: memref<10x50xf32, #tpu.memory_space<vmem>>, %arg27: memref<10x1xf32, #tpu.memory_space<vmem>>, %arg28: memref<10x2xf32, #tpu.memory_space<vmem>>) attributes {dimension_semantics = [#tpu.dimension_semantics<arbitrary>], iteration_bounds = array<i64: 1>, scalar_prefetch = 0 : i64, scratch_operands = 0 : i64, tpu.core_type = #tpu.core_type<tc>, window_params = [{pipeline_mode = #tpu.pipeline_mode<synchronous>, transform_indices = @transform_0, window_bounds = array<i64: 8, 1626>}, {pipeline_mode = #tpu.pipeline_mode<synchronous>, transform_indices = @transform_1, window_bounds = array<i64: 1539, 366>}, {pipeline_mode = #tpu.pipeline_mode<synchronous>, transform_indices = @transform_2, window_bounds = array<i64: 338, 266>}, {pipeline_mode = #tpu.pipeline_mode<synchronous>, transform_indices = @transform_3, window_bounds = array<i64: 242, 182>}, {pipeline_mode = #tpu.pipeline_mode<synchronous>, transform_indices = @transform_4, window_bounds = array<i64: 152, 18>}, {pipeline_mode = #tpu.pipeline_mode<synchronous>, transform_indices = @transform_5, window_bounds = array<i64: 216, 18>}, {pipeline_mode = #tpu.pipeline_mode<synchronous>, transform_indices = @transform_6, window_bounds = array<i64: 18, 2>}, {pipeline_mode = #tpu.pipeline_mode<synchronous>, transform_indices = @transform_7, window_bounds = array<i64: 16, 72>}, {pipeline_mode = #tpu.pipeline_mode<synchronous>, transform_indices = @transform_8, window_bounds = array<i64: 16, 1>}, {pipeline_mode = #tpu.pipeline_mode<synchronous>, transform_indices = @transform_9, window_bounds = array<i64: 16, 1>}, {pipeline_mode = #tpu.pipeline_mode<synchronous>, transform_indices = @transform_10, window_bounds = array<i64: 16, 1>}, {pipeline_mode = #tpu.pipeline_mode<synchronous>, transform_indices = @transform_11, window_bounds = array<i64: 24, 144>}, {pipeline_mode = #tpu.pipeline_mode<synchronous>, transform_indices = @transform_12, window_bounds = array<i64: 24, 1>}, {pipeline_mode = #tpu.pipeline_mode<synchronous>, transform_indices = @transform_13, window_bounds = array<i64: 24, 1>}, {pipeline_mode = #tpu.pipeline_mode<synchronous>, transform_indices = @transform_14, window_bounds = array<i64: 24, 1>}, {pipeline_mode = #tpu.pipeline_mode<synchronous>, transform_indices = @transform_15, window_bounds = array<i64: 24, 216>}, {pipeline_mode = #tpu.pipeline_mode<synchronous>, transform_indices = @transform_16, window_bounds = array<i64: 24, 1>}, {pipeline_mode = #tpu.pipeline_mode<synchronous>, transform_indices = @transform_17, window_bounds = array<i64: 24, 1>}, {pipeline_mode = #tpu.pipeline_mode<synchronous>, transform_indices = @transform_18, window_bounds = array<i64: 24, 1>}, {pipeline_mode = #tpu.pipeline_mode<synchronous>, transform_indices = @transform_19, window_bounds = array<i64: 24, 216>}, {pipeline_mode = #tpu.pipeline_mode<synchronous>, transform_indices = @transform_20, window_bounds = array<i64: 24, 1>}, {pipeline_mode = #tpu.pipeline_mode<synchronous>, transform_indices = @transform_21, window_bounds = array<i64: 24, 1>}, {pipeline_mode = #tpu.pipeline_mode<synchronous>, transform_indices = @transform_22, window_bounds = array<i64: 24, 1>}, {pipeline_mode = #tpu.pipeline_mode<synchronous>, transform_indices = @transform_23, window_bounds = array<i64: 50, 216>}, {pipeline_mode = #tpu.pipeline_mode<synchronous>, transform_indices = @transform_24, window_bounds = array<i64: 50, 1>}, {pipeline_mode = #tpu.pipeline_mode<synchronous>, transform_indices = @transform_25, window_bounds = array<i64: 10, 50>}, {pipeline_mode = #tpu.pipeline_mode<synchronous>, transform_indices = @transform_26, window_bounds = array<i64: 10, 1>}, {pipeline_mode = #tpu.pipeline_mode<synchronous>, transform_indices = @transform_27, window_bounds = array<i64: 10, 2>}]} {
    %c0 = arith.constant 0 : index
    %c0_0 = arith.constant 0 : index
    %0 = vector.load %arg1[%c0, %c0_0] : memref<8x1626xf32, #tpu.memory_space<vmem>>, vector<8x1626xf32>
    %c0_1 = arith.constant 0 : index
    %c0_2 = arith.constant 0 : index
    %1 = vector.load %arg8[%c0_1, %c0_2] : memref<16x72xf32, #tpu.memory_space<vmem>>, vector<16x72xf32>
    %c0_3 = arith.constant 0 : index
    %c0_4 = arith.constant 0 : index
    %2 = vector.load %arg9[%c0_3, %c0_4] : memref<16x1xf32, #tpu.memory_space<vmem>>, vector<16x1xf32>
    %3 = vector.extract_strided_slice %0 {offsets = [0, 0], sizes = [8, 1568], strides = [1, 1]} : vector<8x1626xf32> to vector<8x1568xf32>
    %4 = vector.extract_strided_slice %0 {offsets = [0, 1], sizes = [8, 1568], strides = [1, 1]} : vector<8x1626xf32> to vector<8x1568xf32>
    %5 = vector.extract_strided_slice %0 {offsets = [0, 2], sizes = [8, 1568], strides = [1, 1]} : vector<8x1626xf32> to vector<8x1568xf32>
    %6 = vector.extract_strided_slice %0 {offsets = [0, 28], sizes = [8, 1568], strides = [1, 1]} : vector<8x1626xf32> to vector<8x1568xf32>
    %7 = vector.extract_strided_slice %0 {offsets = [0, 29], sizes = [8, 1568], strides = [1, 1]} : vector<8x1626xf32> to vector<8x1568xf32>
    %8 = vector.extract_strided_slice %0 {offsets = [0, 30], sizes = [8, 1568], strides = [1, 1]} : vector<8x1626xf32> to vector<8x1568xf32>
    %9 = vector.extract_strided_slice %0 {offsets = [0, 56], sizes = [8, 1568], strides = [1, 1]} : vector<8x1626xf32> to vector<8x1568xf32>
    %10 = vector.extract_strided_slice %0 {offsets = [0, 57], sizes = [8, 1568], strides = [1, 1]} : vector<8x1626xf32> to vector<8x1568xf32>
    %11 = vector.extract_strided_slice %0 {offsets = [0, 58], sizes = [8, 1568], strides = [1, 1]} : vector<8x1626xf32> to vector<8x1568xf32>
    %12 = tpu.concatenate %3, %4, %5, %6, %7, %8, %9, %10, %11 in 0 : vector<8x1568xf32>, vector<8x1568xf32>, vector<8x1568xf32>, vector<8x1568xf32>, vector<8x1568xf32>, vector<8x1568xf32>, vector<8x1568xf32>, vector<8x1568xf32>, vector<8x1568xf32> -> vector<72x1568xf32>
    %cst = arith.constant dense<0.000000e+00> : vector<16x1568xf32>
    %13 = tpu.matmul %1, %12, %cst {dimension_numbers = #tpu.dot_dimension_numbers<[1], [0], [0], [1], [0, 0, 1, 1], [], []>} : vector<16x72xf32>, vector<72x1568xf32>, vector<16x1568xf32> -> vector<16x1568xf32>
    %14 = vector.broadcast %2 : vector<16x1xf32> to vector<16x1568xf32>
    %15 = arith.addf %13, %14 : vector<16x1568xf32>
    %16 = vector.extract_strided_slice %15 {offsets = [0, 0], sizes = [16, 1540], strides = [1, 1]} : vector<16x1568xf32> to vector<16x1540xf32>
    %17 = vector.extract_strided_slice %15 {offsets = [0, 28], sizes = [16, 1540], strides = [1, 1]} : vector<16x1568xf32> to vector<16x1540xf32>
    %18 = arith.maximumf %16, %17 : vector<16x1540xf32>
    %19 = vector.extract_strided_slice %18 {offsets = [0, 0], sizes = [16, 1539], strides = [1, 1]} : vector<16x1540xf32> to vector<16x1539xf32>
    %20 = vector.extract_strided_slice %18 {offsets = [0, 1], sizes = [16, 1539], strides = [1, 1]} : vector<16x1540xf32> to vector<16x1539xf32>
    %21 = arith.maximumf %19, %20 : vector<16x1539xf32>
    %c0_5 = arith.constant 0 : index
    %c0_6 = arith.constant 0 : index
    %22 = vector.load %arg2[%c0_5, %c0_6] : memref<1539x366xf32, #tpu.memory_space<vmem>>, vector<1539x366xf32>
    %cst_7 = arith.constant dense<0.000000e+00> : vector<16x366xf32>
    %23 = tpu.matmul %21, %22, %cst_7 {dimension_numbers = #tpu.dot_dimension_numbers<[1], [0], [0], [1], [0, 0, 1, 1], [], []>} : vector<16x1539xf32>, vector<1539x366xf32>, vector<16x366xf32> -> vector<16x366xf32>
    %cst_8 = arith.constant 0.000000e+00 : f32
    %24 = vector.broadcast %cst_8 : f32 to vector<16x366xf32>
    %25 = arith.maximumf %23, %24 : vector<16x366xf32>
    %c0_9 = arith.constant 0 : index
    %c0_10 = arith.constant 0 : index
    %26 = vector.load %arg10[%c0_9, %c0_10] : memref<16x1xf32, #tpu.memory_space<vmem>>, vector<16x1xf32>
    %c0_11 = arith.constant 0 : index
    %c0_12 = arith.constant 0 : index
    %27 = vector.load %arg11[%c0_11, %c0_12] : memref<16x1xf32, #tpu.memory_space<vmem>>, vector<16x1xf32>
    %cst_13 = arith.constant dense<0.000000e+00> : vector<16xf32>
    %28 = vector.multi_reduction <add>, %25, %cst_13 [1] : vector<16x366xf32> to vector<16xf32>
    %29 = vector.shape_cast %28 : vector<16xf32> to vector<16x1xf32>
    %cst_14 = arith.constant 2.958580e-03 : f32
    %30 = vector.broadcast %cst_14 : f32 to vector<16x1xf32>
    %31 = arith.mulf %29, %30 : vector<16x1xf32>
    %32 = arith.mulf %25, %25 : vector<16x366xf32>
    %cst_15 = arith.constant dense<0.000000e+00> : vector<16xf32>
    %33 = vector.multi_reduction <add>, %32, %cst_15 [1] : vector<16x366xf32> to vector<16xf32>
    %34 = vector.shape_cast %33 : vector<16xf32> to vector<16x1xf32>
    %cst_16 = arith.constant 2.958580e-03 : f32
    %35 = vector.broadcast %cst_16 : f32 to vector<16x1xf32>
    %36 = arith.mulf %34, %35 : vector<16x1xf32>
    %37 = arith.mulf %31, %31 : vector<16x1xf32>
    %38 = arith.subf %36, %37 : vector<16x1xf32>
    %cst_17 = arith.constant 9.99999974E-6 : f32
    %39 = vector.broadcast %cst_17 : f32 to vector<16x1xf32>
    %40 = arith.addf %38, %39 : vector<16x1xf32>
    %41 = math.rsqrt %40 : vector<16x1xf32>
    %42 = arith.mulf %26, %41 : vector<16x1xf32>
    %43 = vector.broadcast %42 : vector<16x1xf32> to vector<16x366xf32>
    %44 = arith.mulf %25, %43 : vector<16x366xf32>
    %45 = arith.mulf %31, %42 : vector<16x1xf32>
    %46 = arith.subf %27, %45 : vector<16x1xf32>
    %47 = vector.broadcast %46 : vector<16x1xf32> to vector<16x366xf32>
    %48 = arith.addf %44, %47 : vector<16x366xf32>
    %c0_18 = arith.constant 0 : index
    %c0_19 = arith.constant 0 : index
    %49 = vector.load %arg12[%c0_18, %c0_19] : memref<24x144xf32, #tpu.memory_space<vmem>>, vector<24x144xf32>
    %c0_20 = arith.constant 0 : index
    %c0_21 = arith.constant 0 : index
    %50 = vector.load %arg13[%c0_20, %c0_21] : memref<24x1xf32, #tpu.memory_space<vmem>>, vector<24x1xf32>
    %51 = vector.extract_strided_slice %48 {offsets = [0, 0], sizes = [16, 338], strides = [1, 1]} : vector<16x366xf32> to vector<16x338xf32>
    %52 = vector.extract_strided_slice %48 {offsets = [0, 1], sizes = [16, 338], strides = [1, 1]} : vector<16x366xf32> to vector<16x338xf32>
    %53 = vector.extract_strided_slice %48 {offsets = [0, 2], sizes = [16, 338], strides = [1, 1]} : vector<16x366xf32> to vector<16x338xf32>
    %54 = vector.extract_strided_slice %48 {offsets = [0, 13], sizes = [16, 338], strides = [1, 1]} : vector<16x366xf32> to vector<16x338xf32>
    %55 = vector.extract_strided_slice %48 {offsets = [0, 14], sizes = [16, 338], strides = [1, 1]} : vector<16x366xf32> to vector<16x338xf32>
    %56 = vector.extract_strided_slice %48 {offsets = [0, 15], sizes = [16, 338], strides = [1, 1]} : vector<16x366xf32> to vector<16x338xf32>
    %57 = vector.extract_strided_slice %48 {offsets = [0, 26], sizes = [16, 338], strides = [1, 1]} : vector<16x366xf32> to vector<16x338xf32>
    %58 = vector.extract_strided_slice %48 {offsets = [0, 27], sizes = [16, 338], strides = [1, 1]} : vector<16x366xf32> to vector<16x338xf32>
    %59 = vector.extract_strided_slice %48 {offsets = [0, 28], sizes = [16, 338], strides = [1, 1]} : vector<16x366xf32> to vector<16x338xf32>
    %60 = tpu.concatenate %51, %52, %53, %54, %55, %56, %57, %58, %59 in 0 : vector<16x338xf32>, vector<16x338xf32>, vector<16x338xf32>, vector<16x338xf32>, vector<16x338xf32>, vector<16x338xf32>, vector<16x338xf32>, vector<16x338xf32>, vector<16x338xf32> -> vector<144x338xf32>
    %cst_22 = arith.constant dense<0.000000e+00> : vector<24x338xf32>
    %61 = tpu.matmul %49, %60, %cst_22 {dimension_numbers = #tpu.dot_dimension_numbers<[1], [0], [0], [1], [0, 0, 1, 1], [], []>} : vector<24x144xf32>, vector<144x338xf32>, vector<24x338xf32> -> vector<24x338xf32>
    %62 = vector.broadcast %50 : vector<24x1xf32> to vector<24x338xf32>
    %63 = arith.addf %61, %62 : vector<24x338xf32>
    %c0_23 = arith.constant 0 : index
    %c0_24 = arith.constant 0 : index
    %64 = vector.load %arg3[%c0_23, %c0_24] : memref<338x266xf32, #tpu.memory_space<vmem>>, vector<338x266xf32>
    %cst_25 = arith.constant dense<0.000000e+00> : vector<24x266xf32>
    %65 = tpu.matmul %63, %64, %cst_25 {dimension_numbers = #tpu.dot_dimension_numbers<[1], [0], [0], [1], [0, 0, 1, 1], [], []>} : vector<24x338xf32>, vector<338x266xf32>, vector<24x266xf32> -> vector<24x266xf32>
    %cst_26 = arith.constant 0.000000e+00 : f32
    %66 = vector.broadcast %cst_26 : f32 to vector<24x266xf32>
    %67 = arith.maximumf %65, %66 : vector<24x266xf32>
    %c0_27 = arith.constant 0 : index
    %c0_28 = arith.constant 0 : index
    %68 = vector.load %arg14[%c0_27, %c0_28] : memref<24x1xf32, #tpu.memory_space<vmem>>, vector<24x1xf32>
    %c0_29 = arith.constant 0 : index
    %c0_30 = arith.constant 0 : index
    %69 = vector.load %arg15[%c0_29, %c0_30] : memref<24x1xf32, #tpu.memory_space<vmem>>, vector<24x1xf32>
    %cst_31 = arith.constant dense<0.000000e+00> : vector<24xf32>
    %70 = vector.multi_reduction <add>, %67, %cst_31 [1] : vector<24x266xf32> to vector<24xf32>
    %71 = vector.shape_cast %70 : vector<24xf32> to vector<24x1xf32>
    %cst_32 = arith.constant 0.00413223123 : f32
    %72 = vector.broadcast %cst_32 : f32 to vector<24x1xf32>
    %73 = arith.mulf %71, %72 : vector<24x1xf32>
    %74 = arith.mulf %67, %67 : vector<24x266xf32>
    %cst_33 = arith.constant dense<0.000000e+00> : vector<24xf32>
    %75 = vector.multi_reduction <add>, %74, %cst_33 [1] : vector<24x266xf32> to vector<24xf32>
    %76 = vector.shape_cast %75 : vector<24xf32> to vector<24x1xf32>
    %cst_34 = arith.constant 0.00413223123 : f32
    %77 = vector.broadcast %cst_34 : f32 to vector<24x1xf32>
    %78 = arith.mulf %76, %77 : vector<24x1xf32>
    %79 = arith.mulf %73, %73 : vector<24x1xf32>
    %80 = arith.subf %78, %79 : vector<24x1xf32>
    %cst_35 = arith.constant 9.99999974E-6 : f32
    %81 = vector.broadcast %cst_35 : f32 to vector<24x1xf32>
    %82 = arith.addf %80, %81 : vector<24x1xf32>
    %83 = math.rsqrt %82 : vector<24x1xf32>
    %84 = arith.mulf %68, %83 : vector<24x1xf32>
    %85 = vector.broadcast %84 : vector<24x1xf32> to vector<24x266xf32>
    %86 = arith.mulf %67, %85 : vector<24x266xf32>
    %87 = arith.mulf %73, %84 : vector<24x1xf32>
    %88 = arith.subf %69, %87 : vector<24x1xf32>
    %89 = vector.broadcast %88 : vector<24x1xf32> to vector<24x266xf32>
    %90 = arith.addf %86, %89 : vector<24x266xf32>
    %c0_36 = arith.constant 0 : index
    %c0_37 = arith.constant 0 : index
    %91 = vector.load %arg16[%c0_36, %c0_37] : memref<24x216xf32, #tpu.memory_space<vmem>>, vector<24x216xf32>
    %c0_38 = arith.constant 0 : index
    %c0_39 = arith.constant 0 : index
    %92 = vector.load %arg17[%c0_38, %c0_39] : memref<24x1xf32, #tpu.memory_space<vmem>>, vector<24x1xf32>
    %93 = vector.extract_strided_slice %90 {offsets = [0, 0], sizes = [24, 242], strides = [1, 1]} : vector<24x266xf32> to vector<24x242xf32>
    %94 = vector.extract_strided_slice %90 {offsets = [0, 1], sizes = [24, 242], strides = [1, 1]} : vector<24x266xf32> to vector<24x242xf32>
    %95 = vector.extract_strided_slice %90 {offsets = [0, 2], sizes = [24, 242], strides = [1, 1]} : vector<24x266xf32> to vector<24x242xf32>
    %96 = vector.extract_strided_slice %90 {offsets = [0, 11], sizes = [24, 242], strides = [1, 1]} : vector<24x266xf32> to vector<24x242xf32>
    %97 = vector.extract_strided_slice %90 {offsets = [0, 12], sizes = [24, 242], strides = [1, 1]} : vector<24x266xf32> to vector<24x242xf32>
    %98 = vector.extract_strided_slice %90 {offsets = [0, 13], sizes = [24, 242], strides = [1, 1]} : vector<24x266xf32> to vector<24x242xf32>
    %99 = vector.extract_strided_slice %90 {offsets = [0, 22], sizes = [24, 242], strides = [1, 1]} : vector<24x266xf32> to vector<24x242xf32>
    %100 = vector.extract_strided_slice %90 {offsets = [0, 23], sizes = [24, 242], strides = [1, 1]} : vector<24x266xf32> to vector<24x242xf32>
    %101 = vector.extract_strided_slice %90 {offsets = [0, 24], sizes = [24, 242], strides = [1, 1]} : vector<24x266xf32> to vector<24x242xf32>
    %102 = tpu.concatenate %93, %94, %95, %96, %97, %98, %99, %100, %101 in 0 : vector<24x242xf32>, vector<24x242xf32>, vector<24x242xf32>, vector<24x242xf32>, vector<24x242xf32>, vector<24x242xf32>, vector<24x242xf32>, vector<24x242xf32>, vector<24x242xf32> -> vector<216x242xf32>
    %cst_40 = arith.constant dense<0.000000e+00> : vector<24x242xf32>
    %103 = tpu.matmul %91, %102, %cst_40 {dimension_numbers = #tpu.dot_dimension_numbers<[1], [0], [0], [1], [0, 0, 1, 1], [], []>} : vector<24x216xf32>, vector<216x242xf32>, vector<24x242xf32> -> vector<24x242xf32>
    %104 = vector.broadcast %92 : vector<24x1xf32> to vector<24x242xf32>
    %105 = arith.addf %103, %104 : vector<24x242xf32>
    %c0_41 = arith.constant 0 : index
    %c0_42 = arith.constant 0 : index
    %106 = vector.load %arg4[%c0_41, %c0_42] : memref<242x182xf32, #tpu.memory_space<vmem>>, vector<242x182xf32>
    %cst_43 = arith.constant dense<0.000000e+00> : vector<24x182xf32>
    %107 = tpu.matmul %105, %106, %cst_43 {dimension_numbers = #tpu.dot_dimension_numbers<[1], [0], [0], [1], [0, 0, 1, 1], [], []>} : vector<24x242xf32>, vector<242x182xf32>, vector<24x182xf32> -> vector<24x182xf32>
    %cst_44 = arith.constant 0.000000e+00 : f32
    %108 = vector.broadcast %cst_44 : f32 to vector<24x182xf32>
    %109 = arith.maximumf %107, %108 : vector<24x182xf32>
    %c0_45 = arith.constant 0 : index
    %c0_46 = arith.constant 0 : index
    %110 = vector.load %arg18[%c0_45, %c0_46] : memref<24x1xf32, #tpu.memory_space<vmem>>, vector<24x1xf32>
    %c0_47 = arith.constant 0 : index
    %c0_48 = arith.constant 0 : index
    %111 = vector.load %arg19[%c0_47, %c0_48] : memref<24x1xf32, #tpu.memory_space<vmem>>, vector<24x1xf32>
    %cst_49 = arith.constant dense<0.000000e+00> : vector<24xf32>
    %112 = vector.multi_reduction <add>, %109, %cst_49 [1] : vector<24x182xf32> to vector<24xf32>
    %113 = vector.shape_cast %112 : vector<24xf32> to vector<24x1xf32>
    %cst_50 = arith.constant 0.00617283955 : f32
    %114 = vector.broadcast %cst_50 : f32 to vector<24x1xf32>
    %115 = arith.mulf %113, %114 : vector<24x1xf32>
    %116 = arith.mulf %109, %109 : vector<24x182xf32>
    %cst_51 = arith.constant dense<0.000000e+00> : vector<24xf32>
    %117 = vector.multi_reduction <add>, %116, %cst_51 [1] : vector<24x182xf32> to vector<24xf32>
    %118 = vector.shape_cast %117 : vector<24xf32> to vector<24x1xf32>
    %cst_52 = arith.constant 0.00617283955 : f32
    %119 = vector.broadcast %cst_52 : f32 to vector<24x1xf32>
    %120 = arith.mulf %118, %119 : vector<24x1xf32>
    %121 = arith.mulf %115, %115 : vector<24x1xf32>
    %122 = arith.subf %120, %121 : vector<24x1xf32>
    %cst_53 = arith.constant 9.99999974E-6 : f32
    %123 = vector.broadcast %cst_53 : f32 to vector<24x1xf32>
    %124 = arith.addf %122, %123 : vector<24x1xf32>
    %125 = math.rsqrt %124 : vector<24x1xf32>
    %126 = arith.mulf %110, %125 : vector<24x1xf32>
    %127 = vector.broadcast %126 : vector<24x1xf32> to vector<24x182xf32>
    %128 = arith.mulf %109, %127 : vector<24x182xf32>
    %129 = arith.mulf %115, %126 : vector<24x1xf32>
    %130 = arith.subf %111, %129 : vector<24x1xf32>
    %131 = vector.broadcast %130 : vector<24x1xf32> to vector<24x182xf32>
    %132 = arith.addf %128, %131 : vector<24x182xf32>
    %c0_54 = arith.constant 0 : index
    %c0_55 = arith.constant 0 : index
    %133 = vector.load %arg20[%c0_54, %c0_55] : memref<24x216xf32, #tpu.memory_space<vmem>>, vector<24x216xf32>
    %c0_56 = arith.constant 0 : index
    %c0_57 = arith.constant 0 : index
    %134 = vector.load %arg21[%c0_56, %c0_57] : memref<24x1xf32, #tpu.memory_space<vmem>>, vector<24x1xf32>
    %135 = vector.extract_strided_slice %132 {offsets = [0, 0], sizes = [24, 162], strides = [1, 1]} : vector<24x182xf32> to vector<24x162xf32>
    %136 = vector.extract_strided_slice %132 {offsets = [0, 1], sizes = [24, 162], strides = [1, 1]} : vector<24x182xf32> to vector<24x162xf32>
    %137 = vector.extract_strided_slice %132 {offsets = [0, 2], sizes = [24, 162], strides = [1, 1]} : vector<24x182xf32> to vector<24x162xf32>
    %138 = vector.extract_strided_slice %132 {offsets = [0, 9], sizes = [24, 162], strides = [1, 1]} : vector<24x182xf32> to vector<24x162xf32>
    %139 = vector.extract_strided_slice %132 {offsets = [0, 10], sizes = [24, 162], strides = [1, 1]} : vector<24x182xf32> to vector<24x162xf32>
    %140 = vector.extract_strided_slice %132 {offsets = [0, 11], sizes = [24, 162], strides = [1, 1]} : vector<24x182xf32> to vector<24x162xf32>
    %141 = vector.extract_strided_slice %132 {offsets = [0, 18], sizes = [24, 162], strides = [1, 1]} : vector<24x182xf32> to vector<24x162xf32>
    %142 = vector.extract_strided_slice %132 {offsets = [0, 19], sizes = [24, 162], strides = [1, 1]} : vector<24x182xf32> to vector<24x162xf32>
    %143 = vector.extract_strided_slice %132 {offsets = [0, 20], sizes = [24, 162], strides = [1, 1]} : vector<24x182xf32> to vector<24x162xf32>
    %144 = tpu.concatenate %135, %136, %137, %138, %139, %140, %141, %142, %143 in 0 : vector<24x162xf32>, vector<24x162xf32>, vector<24x162xf32>, vector<24x162xf32>, vector<24x162xf32>, vector<24x162xf32>, vector<24x162xf32>, vector<24x162xf32>, vector<24x162xf32> -> vector<216x162xf32>
    %cst_58 = arith.constant dense<0.000000e+00> : vector<24x162xf32>
    %145 = tpu.matmul %133, %144, %cst_58 {dimension_numbers = #tpu.dot_dimension_numbers<[1], [0], [0], [1], [0, 0, 1, 1], [], []>} : vector<24x216xf32>, vector<216x162xf32>, vector<24x162xf32> -> vector<24x162xf32>
    %146 = vector.broadcast %134 : vector<24x1xf32> to vector<24x162xf32>
    %147 = arith.addf %145, %146 : vector<24x162xf32>
    %148 = vector.extract_strided_slice %147 {offsets = [0, 0], sizes = [24, 153], strides = [1, 1]} : vector<24x162xf32> to vector<24x153xf32>
    %149 = vector.extract_strided_slice %147 {offsets = [0, 9], sizes = [24, 153], strides = [1, 1]} : vector<24x162xf32> to vector<24x153xf32>
    %150 = arith.maximumf %148, %149 : vector<24x153xf32>
    %151 = vector.extract_strided_slice %150 {offsets = [0, 0], sizes = [24, 152], strides = [1, 1]} : vector<24x153xf32> to vector<24x152xf32>
    %152 = vector.extract_strided_slice %150 {offsets = [0, 1], sizes = [24, 152], strides = [1, 1]} : vector<24x153xf32> to vector<24x152xf32>
    %153 = arith.maximumf %151, %152 : vector<24x152xf32>
    %c0_59 = arith.constant 0 : index
    %c0_60 = arith.constant 0 : index
    %154 = vector.load %arg5[%c0_59, %c0_60] : memref<152x18xf32, #tpu.memory_space<vmem>>, vector<152x18xf32>
    %cst_61 = arith.constant dense<0.000000e+00> : vector<24x18xf32>
    %155 = tpu.matmul %153, %154, %cst_61 {dimension_numbers = #tpu.dot_dimension_numbers<[1], [0], [0], [1], [0, 0, 1, 1], [], []>} : vector<24x152xf32>, vector<152x18xf32>, vector<24x18xf32> -> vector<24x18xf32>
    %cst_62 = arith.constant 0.000000e+00 : f32
    %156 = vector.broadcast %cst_62 : f32 to vector<24x18xf32>
    %157 = arith.maximumf %155, %156 : vector<24x18xf32>
    %c0_63 = arith.constant 0 : index
    %c0_64 = arith.constant 0 : index
    %158 = vector.load %arg22[%c0_63, %c0_64] : memref<24x1xf32, #tpu.memory_space<vmem>>, vector<24x1xf32>
    %c0_65 = arith.constant 0 : index
    %c0_66 = arith.constant 0 : index
    %159 = vector.load %arg23[%c0_65, %c0_66] : memref<24x1xf32, #tpu.memory_space<vmem>>, vector<24x1xf32>
    %cst_67 = arith.constant dense<0.000000e+00> : vector<24xf32>
    %160 = vector.multi_reduction <add>, %157, %cst_67 [1] : vector<24x18xf32> to vector<24xf32>
    %161 = vector.shape_cast %160 : vector<24xf32> to vector<24x1xf32>
    %cst_68 = arith.constant 0.055555556 : f32
    %162 = vector.broadcast %cst_68 : f32 to vector<24x1xf32>
    %163 = arith.mulf %161, %162 : vector<24x1xf32>
    %164 = arith.mulf %157, %157 : vector<24x18xf32>
    %cst_69 = arith.constant dense<0.000000e+00> : vector<24xf32>
    %165 = vector.multi_reduction <add>, %164, %cst_69 [1] : vector<24x18xf32> to vector<24xf32>
    %166 = vector.shape_cast %165 : vector<24xf32> to vector<24x1xf32>
    %cst_70 = arith.constant 0.055555556 : f32
    %167 = vector.broadcast %cst_70 : f32 to vector<24x1xf32>
    %168 = arith.mulf %166, %167 : vector<24x1xf32>
    %169 = arith.mulf %163, %163 : vector<24x1xf32>
    %170 = arith.subf %168, %169 : vector<24x1xf32>
    %cst_71 = arith.constant 9.99999974E-6 : f32
    %171 = vector.broadcast %cst_71 : f32 to vector<24x1xf32>
    %172 = arith.addf %170, %171 : vector<24x1xf32>
    %173 = math.rsqrt %172 : vector<24x1xf32>
    %174 = arith.mulf %158, %173 : vector<24x1xf32>
    %175 = vector.broadcast %174 : vector<24x1xf32> to vector<24x18xf32>
    %176 = arith.mulf %157, %175 : vector<24x18xf32>
    %177 = arith.mulf %163, %174 : vector<24x1xf32>
    %178 = arith.subf %159, %177 : vector<24x1xf32>
    %179 = vector.broadcast %178 : vector<24x1xf32> to vector<24x18xf32>
    %180 = arith.addf %176, %179 : vector<24x18xf32>
    %181 = tpu.concatenate %180, %180, %180, %180, %180, %180, %180, %180, %180 in 0 : vector<24x18xf32>, vector<24x18xf32>, vector<24x18xf32>, vector<24x18xf32>, vector<24x18xf32>, vector<24x18xf32>, vector<24x18xf32>, vector<24x18xf32>, vector<24x18xf32> -> vector<216x18xf32>
    %c0_72 = arith.constant 0 : index
    %c0_73 = arith.constant 0 : index
    %182 = vector.load %arg6[%c0_72, %c0_73] : memref<216x18xf32, #tpu.memory_space<vmem>>, vector<216x18xf32>
    %183 = arith.mulf %181, %182 : vector<216x18xf32>
    %c0_74 = arith.constant 0 : index
    %c0_75 = arith.constant 0 : index
    %184 = vector.load %arg7[%c0_74, %c0_75] : memref<18x2xf32, #tpu.memory_space<vmem>>, vector<18x2xf32>
    %cst_76 = arith.constant dense<0.000000e+00> : vector<216x2xf32>
    %185 = tpu.matmul %183, %184, %cst_76 {dimension_numbers = #tpu.dot_dimension_numbers<[1], [0], [0], [1], [0, 0, 1, 1], [], []>} : vector<216x18xf32>, vector<18x2xf32>, vector<216x2xf32> -> vector<216x2xf32>
    %c0_77 = arith.constant 0 : index
    %c0_78 = arith.constant 0 : index
    %186 = vector.load %arg24[%c0_77, %c0_78] : memref<50x216xf32, #tpu.memory_space<vmem>>, vector<50x216xf32>
    %cst_79 = arith.constant dense<0.000000e+00> : vector<50x2xf32>
    %187 = tpu.matmul %186, %185, %cst_79 {dimension_numbers = #tpu.dot_dimension_numbers<[1], [0], [0], [1], [0, 0, 1, 1], [], []>} : vector<50x216xf32>, vector<216x2xf32>, vector<50x2xf32> -> vector<50x2xf32>
    %c0_80 = arith.constant 0 : index
    %c0_81 = arith.constant 0 : index
    %188 = vector.load %arg25[%c0_80, %c0_81] : memref<50x1xf32, #tpu.memory_space<vmem>>, vector<50x1xf32>
    %189 = vector.broadcast %188 : vector<50x1xf32> to vector<50x2xf32>
    %190 = arith.addf %187, %189 : vector<50x2xf32>
    %cst_82 = arith.constant 0.000000e+00 : f32
    %191 = vector.broadcast %cst_82 : f32 to vector<50x2xf32>
    %192 = arith.maximumf %190, %191 : vector<50x2xf32>
    %c0_83 = arith.constant 0 : index
    %c0_84 = arith.constant 0 : index
    %193 = vector.load %arg26[%c0_83, %c0_84] : memref<10x50xf32, #tpu.memory_space<vmem>>, vector<10x50xf32>
    %cst_85 = arith.constant dense<0.000000e+00> : vector<10x2xf32>
    %194 = tpu.matmul %193, %192, %cst_85 {dimension_numbers = #tpu.dot_dimension_numbers<[1], [0], [0], [1], [0, 0, 1, 1], [], []>} : vector<10x50xf32>, vector<50x2xf32>, vector<10x2xf32> -> vector<10x2xf32>
    %c0_86 = arith.constant 0 : index
    %c0_87 = arith.constant 0 : index
    %195 = vector.load %arg27[%c0_86, %c0_87] : memref<10x1xf32, #tpu.memory_space<vmem>>, vector<10x1xf32>
    %196 = vector.broadcast %195 : vector<10x1xf32> to vector<10x2xf32>
    %197 = arith.addf %194, %196 : vector<10x2xf32>
    %cst_88 = arith.constant dense<0xFF800000> : vector<2xf32>
    %198 = vector.multi_reduction <maximumf>, %197, %cst_88 [0] : vector<10x2xf32> to vector<2xf32>
    %199 = vector.shape_cast %198 : vector<2xf32> to vector<1x2xf32>
    %200 = vector.broadcast %199 : vector<1x2xf32> to vector<10x2xf32>
    %201 = arith.subf %197, %200 : vector<10x2xf32>
    %202 = math.exp %201 : vector<10x2xf32>
    %cst_89 = arith.constant dense<0.000000e+00> : vector<2xf32>
    %203 = vector.multi_reduction <add>, %202, %cst_89 [0] : vector<10x2xf32> to vector<2xf32>
    %204 = vector.shape_cast %203 : vector<2xf32> to vector<1x2xf32>
    %205 = math.log %204 : vector<1x2xf32>
    %206 = vector.broadcast %205 : vector<1x2xf32> to vector<10x2xf32>
    %207 = arith.subf %201, %206 : vector<10x2xf32>
    %c0_90 = arith.constant 0 : index
    %c0_91 = arith.constant 0 : index
    %208 = vector.load %arg28[%c0_90, %c0_91] : memref<10x2xf32, #tpu.memory_space<vmem>>, vector<10x2xf32>
    tpu.vector_store %arg28[%c0_90, %c0_91], %207 {strides = array<i32>} : memref<10x2xf32, #tpu.memory_space<vmem>>, vector<10x2xf32>,
    return
  }
  func.func @transform_0(%arg0: i32) -> (i32, i32) {
    %c0_i32 = arith.constant 0 : i32
    %c0_i32_0 = arith.constant 0 : i32
    %c0_i32_1 = arith.constant 0 : i32
    return %c0_i32, %c0_i32_0 : i32, i32
  }
  func.func @transform_1(%arg0: i32) -> (i32, i32) {
    %c0_i32 = arith.constant 0 : i32
    %c0_i32_0 = arith.constant 0 : i32
    %c0_i32_1 = arith.constant 0 : i32
    return %c0_i32, %c0_i32_0 : i32, i32
  }
  func.func @transform_2(%arg0: i32) -> (i32, i32) {
    %c0_i32 = arith.constant 0 : i32
    %c0_i32_0 = arith.constant 0 : i32
    %c0_i32_1 = arith.constant 0 : i32
    return %c0_i32, %c0_i32_0 : i32, i32
  }
  func.func @transform_3(%arg0: i32) -> (i32, i32) {
    %c0_i32 = arith.constant 0 : i32
    %c0_i32_0 = arith.constant 0 : i32
    %c0_i32_1 = arith.constant 0 : i32
    return %c0_i32, %c0_i32_0 : i32, i32
  }
  func.func @transform_4(%arg0: i32) -> (i32, i32) {
    %c0_i32 = arith.constant 0 : i32
    %c0_i32_0 = arith.constant 0 : i32
    %c0_i32_1 = arith.constant 0 : i32
    return %c0_i32, %c0_i32_0 : i32, i32
  }
  func.func @transform_5(%arg0: i32) -> (i32, i32) {
    %c0_i32 = arith.constant 0 : i32
    %c0_i32_0 = arith.constant 0 : i32
    %c0_i32_1 = arith.constant 0 : i32
    return %c0_i32, %c0_i32_0 : i32, i32
  }
  func.func @transform_6(%arg0: i32) -> (i32, i32) {
    %c0_i32 = arith.constant 0 : i32
    %c0_i32_0 = arith.constant 0 : i32
    %c0_i32_1 = arith.constant 0 : i32
    return %c0_i32, %c0_i32_0 : i32, i32
  }
  func.func @transform_7(%arg0: i32) -> (i32, i32) {
    %c0_i32 = arith.constant 0 : i32
    %c0_i32_0 = arith.constant 0 : i32
    %c0_i32_1 = arith.constant 0 : i32
    return %c0_i32, %c0_i32_0 : i32, i32
  }
  func.func @transform_8(%arg0: i32) -> (i32, i32) {
    %c0_i32 = arith.constant 0 : i32
    %c0_i32_0 = arith.constant 0 : i32
    %c0_i32_1 = arith.constant 0 : i32
    return %c0_i32, %c0_i32_0 : i32, i32
  }
  func.func @transform_9(%arg0: i32) -> (i32, i32) {
    %c0_i32 = arith.constant 0 : i32
    %c0_i32_0 = arith.constant 0 : i32
    %c0_i32_1 = arith.constant 0 : i32
    return %c0_i32, %c0_i32_0 : i32, i32
  }
  func.func @transform_10(%arg0: i32) -> (i32, i32) {
    %c0_i32 = arith.constant 0 : i32
    %c0_i32_0 = arith.constant 0 : i32
    %c0_i32_1 = arith.constant 0 : i32
    return %c0_i32, %c0_i32_0 : i32, i32
  }
  func.func @transform_11(%arg0: i32) -> (i32, i32) {
    %c0_i32 = arith.constant 0 : i32
    %c0_i32_0 = arith.constant 0 : i32
    %c0_i32_1 = arith.constant 0 : i32
    return %c0_i32, %c0_i32_0 : i32, i32
  }
  func.func @transform_12(%arg0: i32) -> (i32, i32) {
    %c0_i32 = arith.constant 0 : i32
    %c0_i32_0 = arith.constant 0 : i32
    %c0_i32_1 = arith.constant 0 : i32
    return %c0_i32, %c0_i32_0 : i32, i32
  }
  func.func @transform_13(%arg0: i32) -> (i32, i32) {
    %c0_i32 = arith.constant 0 : i32
    %c0_i32_0 = arith.constant 0 : i32
    %c0_i32_1 = arith.constant 0 : i32
    return %c0_i32, %c0_i32_0 : i32, i32
  }
  func.func @transform_14(%arg0: i32) -> (i32, i32) {
    %c0_i32 = arith.constant 0 : i32
    %c0_i32_0 = arith.constant 0 : i32
    %c0_i32_1 = arith.constant 0 : i32
    return %c0_i32, %c0_i32_0 : i32, i32
  }
  func.func @transform_15(%arg0: i32) -> (i32, i32) {
    %c0_i32 = arith.constant 0 : i32
    %c0_i32_0 = arith.constant 0 : i32
    %c0_i32_1 = arith.constant 0 : i32
    return %c0_i32, %c0_i32_0 : i32, i32
  }
  func.func @transform_16(%arg0: i32) -> (i32, i32) {
    %c0_i32 = arith.constant 0 : i32
    %c0_i32_0 = arith.constant 0 : i32
    %c0_i32_1 = arith.constant 0 : i32
    return %c0_i32, %c0_i32_0 : i32, i32
  }
  func.func @transform_17(%arg0: i32) -> (i32, i32) {
    %c0_i32 = arith.constant 0 : i32
    %c0_i32_0 = arith.constant 0 : i32
    %c0_i32_1 = arith.constant 0 : i32
    return %c0_i32, %c0_i32_0 : i32, i32
  }
  func.func @transform_18(%arg0: i32) -> (i32, i32) {
    %c0_i32 = arith.constant 0 : i32
    %c0_i32_0 = arith.constant 0 : i32
    %c0_i32_1 = arith.constant 0 : i32
    return %c0_i32, %c0_i32_0 : i32, i32
  }
  func.func @transform_19(%arg0: i32) -> (i32, i32) {
    %c0_i32 = arith.constant 0 : i32
    %c0_i32_0 = arith.constant 0 : i32
    %c0_i32_1 = arith.constant 0 : i32
    return %c0_i32, %c0_i32_0 : i32, i32
  }
  func.func @transform_20(%arg0: i32) -> (i32, i32) {
    %c0_i32 = arith.constant 0 : i32
    %c0_i32_0 = arith.constant 0 : i32
    %c0_i32_1 = arith.constant 0 : i32
    return %c0_i32, %c0_i32_0 : i32, i32
  }
  func.func @transform_21(%arg0: i32) -> (i32, i32) {
    %c0_i32 = arith.constant 0 : i32
    %c0_i32_0 = arith.constant 0 : i32
    %c0_i32_1 = arith.constant 0 : i32
    return %c0_i32, %c0_i32_0 : i32, i32
  }
  func.func @transform_22(%arg0: i32) -> (i32, i32) {
    %c0_i32 = arith.constant 0 : i32
    %c0_i32_0 = arith.constant 0 : i32
    %c0_i32_1 = arith.constant 0 : i32
    return %c0_i32, %c0_i32_0 : i32, i32
  }
  func.func @transform_23(%arg0: i32) -> (i32, i32) {
    %c0_i32 = arith.constant 0 : i32
    %c0_i32_0 = arith.constant 0 : i32
    %c0_i32_1 = arith.constant 0 : i32
    return %c0_i32, %c0_i32_0 : i32, i32
  }
  func.func @transform_24(%arg0: i32) -> (i32, i32) {
    %c0_i32 = arith.constant 0 : i32
    %c0_i32_0 = arith.constant 0 : i32
    %c0_i32_1 = arith.constant 0 : i32
    return %c0_i32, %c0_i32_0 : i32, i32
  }
  func.func @transform_25(%arg0: i32) -> (i32, i32) {
    %c0_i32 = arith.constant 0 : i32
    %c0_i32_0 = arith.constant 0 : i32
    %c0_i32_1 = arith.constant 0 : i32
    return %c0_i32, %c0_i32_0 : i32, i32
  }
  func.func @transform_26(%arg0: i32) -> (i32, i32) {
    %c0_i32 = arith.constant 0 : i32
    %c0_i32_0 = arith.constant 0 : i32
    %c0_i32_1 = arith.constant 0 : i32
    return %c0_i32, %c0_i32_0 : i32, i32
  }
  func.func @transform_27(%arg0: i32) -> (i32, i32) {
    %c0_i32 = arith.constant 0 : i32
    %c0_i32_0 = arith.constant 0 : i32
    %c0_i32_1 = arith.constant 0 : i32
    return %c0_i32, %c0_i32_0 : i32, i32
  }
}

</mosaic_0001>

<llo_original>
// kernel: batch_norm_net_forward.1
$region0: #{batch_norm_net_forward.1}
  #allocation0 [shape = 'u32[]', space=smem, size = 0x4, offset = 0x4, fixed_abs, tag = 'smem constant byte address 0x4 - core index']
  #allocation1 [shape = 'u32[144,128]{1,0:T(1,128)}', space=vmem, size = 0x12000, scoped, tag = 'internal scratch']
  %s0 = inlined_call_operand.vmem [shape: f32[8,1626], index: 0, kind: input, shape index: {}]
  %s1 = inlined_call_operand.vmem [shape: f32[1539,366], index: 1, kind: input, shape index: {}]
  %s2 = inlined_call_operand.vmem [shape: f32[338,266], index: 2, kind: input, shape index: {}]
  %s3 = inlined_call_operand.vmem [shape: f32[242,182], index: 3, kind: input, shape index: {}]
  %s4 = inlined_call_operand.hbm [shape: f32[152,18], index: 4, kind: input, shape index: {}]
  %s5 = inlined_call_operand.vmem [shape: f32[216,18], index: 5, kind: input, shape index: {}]
  %s6 = inlined_call_operand.hbm [shape: f32[18,2], index: 6, kind: input, shape index: {}]
  %s7 = inlined_call_operand.vmem [shape: f32[16,72], index: 7, kind: input, shape index: {}]
  %s8 = inlined_call_operand.vmem [shape: f32[16,1], index: 8, kind: input, shape index: {}]
  %s9 = inlined_call_operand.vmem [shape: f32[16,1], index: 9, kind: input, shape index: {}]
  %s10 = inlined_call_operand.vmem [shape: f32[16,1], index: 10, kind: input, shape index: {}]
  %s11 = inlined_call_operand.vmem [shape: f32[24,144], index: 11, kind: input, shape index: {}]
  %s12 = inlined_call_operand.vmem [shape: f32[24,1], index: 12, kind: input, shape index: {}]
  %s13 = inlined_call_operand.vmem [shape: f32[24,1], index: 13, kind: input, shape index: {}]
  %s14 = inlined_call_operand.vmem [shape: f32[24,1], index: 14, kind: input, shape index: {}]
  %s15 = inlined_call_operand.vmem [shape: f32[24,216], index: 15, kind: input, shape index: {}]
  %s16 = inlined_call_operand.vmem [shape: f32[24,1], index: 16, kind: input, shape index: {}]
  %s17 = inlined_call_operand.vmem [shape: f32[24,1], index: 17, kind: input, shape index: {}]
  %s18 = inlined_call_operand.vmem [shape: f32[24,1], index: 18, kind: input, shape index: {}]
  %s19 = inlined_call_operand.vmem [shape: f32[24,216], index: 19, kind: input, shape index: {}]
  %s20 = inlined_call_operand.vmem [shape: f32[24,1], index: 20, kind: input, shape index: {}]
  %s21 = inlined_call_operand.vmem [shape: f32[24,1], index: 21, kind: input, shape index: {}]
  %s22 = inlined_call_operand.vmem [shape: f32[24,1], index: 22, kind: input, shape index: {}]
  %s23 = inlined_call_operand.vmem [shape: f32[50,216], index: 23, kind: input, shape index: {}]
  %s24 = inlined_call_operand.vmem [shape: f32[50,1], index: 24, kind: input, shape index: {}]
  %s25 = inlined_call_operand.vmem [shape: f32[10,50], index: 25, kind: input, shape index: {}]
  %s26 = inlined_call_operand.vmem [shape: f32[10,1], index: 26, kind: input, shape index: {}]
  %s27 = inlined_call_operand.vmem [shape: f32[10,2], index: 27, kind: output, shape index: {}]
  %s28 = sld [smem:[#allocation0]]
  $region126: #{batch_norm_net_forward.1} parent=0
    _
  %s30 = ssub.s32 1, %s28
  %s31 = scalar_select 0, %s30, %s28
  $region1: #{batch_norm_net_forward.1} parent=0
    #allocation2 [shape = 'u8[77824]{0}', space=vmem, size = 0x13000, scoped, tag = 'input window, operand 4, single buffered']
    #allocation3 [shape = 's32[1]{0}', space=sflag, size = 0x4, scoped, tag = 'scoped memory for batch_norm_net_forward.1']
    #allocation4 [shape = 'u8[12288]{0}', space=vmem, size = 0x3000, scoped, tag = 'input window, operand 6, single buffered']
    #allocation5 [shape = 's32[1]{0}', space=sflag, size = 0x4, scoped, tag = 'scoped memory for batch_norm_net_forward.1']
    %32 = vsyncpa [#allocation3], 0
    %33 = vsyncpa [#allocation5], 0
    // Predicated region
    $region2: #{batch_norm_net_forward.1} parent=1 // pred_check
      _
    $region3: #{batch_norm_net_forward.1} parent=1 // pred_check_branch
      %35 = sbr.rel (0) target = $region5
    $region4: #{batch_norm_net_forward.1} parent=1 // pred_region
      _
    $region5: #{batch_norm_net_forward.1} parent=1 // pred_fallthru
      _
    // Predicated region
    $region6: #{batch_norm_net_forward.1} parent=1 // pred_check
      _
    $region7: #{batch_norm_net_forward.1} parent=1 // pred_check_branch
      %37 = sbr.rel (0) target = $region9
    $region8: #{batch_norm_net_forward.1} parent=1 // pred_region
      _
    $region9: #{batch_norm_net_forward.1} parent=1 // pred_fallthru
      _
    // Predicated region
    $region10: #{batch_norm_net_forward.1} parent=1 // pred_check
      _
    $region11: #{batch_norm_net_forward.1} parent=1 // pred_check_branch
      %39 = sbr.rel (0) target = $region13
    $region12: #{batch_norm_net_forward.1} parent=1 // pred_region
      _
    $region13: #{batch_norm_net_forward.1} parent=1 // pred_fallthru
      _
    // Predicated region
    $region14: #{batch_norm_net_forward.1} parent=1 // pred_check
      _
    $region15: #{batch_norm_net_forward.1} parent=1 // pred_check_branch
      %41 = sbr.rel (0) target = $region17
    $region16: #{batch_norm_net_forward.1} parent=1 // pred_region
      _
    $region17: #{batch_norm_net_forward.1} parent=1 // pred_fallthru
      _
    // Predicated region
    $region18: #{batch_norm_net_forward.1} parent=1 // pred_check
      _
    $region19: #{batch_norm_net_forward.1} parent=1 // pred_check_branch
      %43 = sbr.rel (0) target = $region21
    $region20: #{batch_norm_net_forward.1} parent=1 // pred_region
      %s45 = ssub.s32 2432, 2432
      %46 = vsyncadd [#allocation3], %s45
      %s47 = sshll.u32 [#allocation2], 4
      %s48 = int_to_ptr.vmem [resolvable:$true] %s47
      %53 = dma.hbm_to_vmem [thread:$0]  %s4, 2432, %s48, [#allocation3], 128, 128, 8
    $region21: #{batch_norm_net_forward.1} parent=1 // pred_fallthru
      _
    // Predicated region
    $region22: #{batch_norm_net_forward.1} parent=1 // pred_check
      _
    $region23: #{batch_norm_net_forward.1} parent=1 // pred_check_branch
      %55 = sbr.rel (0) target = $region25
    $region24: #{batch_norm_net_forward.1} parent=1 // pred_region
      _
    $region25: #{batch_norm_net_forward.1} parent=1 // pred_fallthru
      _
    // Predicated region
    $region26: #{batch_norm_net_forward.1} parent=1 // pred_check
      _
    $region27: #{batch_norm_net_forward.1} parent=1 // pred_check_branch
      %57 = sbr.rel (0) target = $region29
    $region28: #{batch_norm_net_forward.1} parent=1 // pred_region
      %s59 = ssub.s32 384, 384
      %60 = vsyncadd [#allocation5], %s59
      %s61 = sshll.u32 [#allocation4], 4
      %s62 = int_to_ptr.vmem [resolvable:$true] %s61
      %67 = dma.hbm_to_vmem [thread:$0]  %s6, 384, %s62, [#allocation5], 128, 128, 8
    $region29: #{batch_norm_net_forward.1} parent=1 // pred_fallthru
      _
    // Predicated region
    $region30: #{batch_norm_net_forward.1} parent=1 // pred_check
      _
    $region31: #{batch_norm_net_forward.1} parent=1 // pred_check_branch
      %69 = sbr.rel (0) target = $region33
    $region32: #{batch_norm_net_forward.1} parent=1 // pred_region
      _
    $region33: #{batch_norm_net_forward.1} parent=1 // pred_fallthru
      _
    // Predicated region
    $region34: #{batch_norm_net_forward.1} parent=1 // pred_check
      _
    $region35: #{batch_norm_net_forward.1} parent=1 // pred_check_branch
      %71 = sbr.rel (0) target = $region37
    $region36: #{batch_norm_net_forward.1} parent=1 // pred_region
      _
    $region37: #{batch_norm_net_forward.1} parent=1 // pred_fallthru
      _
    // Predicated region
    $region38: #{batch_norm_net_forward.1} parent=1 // pred_check
      _
    $region39: #{batch_norm_net_forward.1} parent=1 // pred_check_branch
      %73 = sbr.rel (0) target = $region41
    $region40: #{batch_norm_net_forward.1} parent=1 // pred_region
      _
    $region41: #{batch_norm_net_forward.1} parent=1 // pred_fallthru
      _
    // Predicated region
    $region42: #{batch_norm_net_forward.1} parent=1 // pred_check
      _
    $region43: #{batch_norm_net_forward.1} parent=1 // pred_check_branch
      %75 = sbr.rel (0) target = $region45
    $region44: #{batch_norm_net_forward.1} parent=1 // pred_region
      _
    $region45: #{batch_norm_net_forward.1} parent=1 // pred_fallthru
      _
    // Predicated region
    $region46: #{batch_norm_net_forward.1} parent=1 // pred_check
      _
    $region47: #{batch_norm_net_forward.1} parent=1 // pred_check_branch
      %77 = sbr.rel (0) target = $region49
    $region48: #{batch_norm_net_forward.1} parent=1 // pred_region
      _
    $region49: #{batch_norm_net_forward.1} parent=1 // pred_fallthru
      _
    // Predicated region
    $region50: #{batch_norm_net_forward.1} parent=1 // pred_check
      _
    $region51: #{batch_norm_net_forward.1} parent=1 // pred_check_branch
      %79 = sbr.rel (0) target = $region53
    $region52: #{batch_norm_net_forward.1} parent=1 // pred_region
      _
    $region53: #{batch_norm_net_forward.1} parent=1 // pred_fallthru
      _
    // Predicated region
    $region54: #{batch_norm_net_forward.1} parent=1 // pred_check
      _
    $region55: #{batch_norm_net_forward.1} parent=1 // pred_check_branch
      %81 = sbr.rel (0) target = $region57
    $region56: #{batch_norm_net_forward.1} parent=1 // pred_region
      _
    $region57: #{batch_norm_net_forward.1} parent=1 // pred_fallthru
      _
    // Predicated region
    $region58: #{batch_norm_net_forward.1} parent=1 // pred_check
      _
    $region59: #{batch_norm_net_forward.1} parent=1 // pred_check_branch
      %83 = sbr.rel (0) target = $region61
    $region60: #{batch_norm_net_forward.1} parent=1 // pred_region
      _
    $region61: #{batch_norm_net_forward.1} parent=1 // pred_fallthru
      _
    // Predicated region
    $region62: #{batch_norm_net_forward.1} parent=1 // pred_check
      _
    $region63: #{batch_norm_net_forward.1} parent=1 // pred_check_branch
      %85 = sbr.rel (0) target = $region65
    $region64: #{batch_norm_net_forward.1} parent=1 // pred_region
      _
    $region65: #{batch_norm_net_forward.1} parent=1 // pred_fallthru
      _
    // Predicated region
    $region66: #{batch_norm_net_forward.1} parent=1 // pred_check
      _
    $region67: #{batch_norm_net_forward.1} parent=1 // pred_check_branch
      %87 = sbr.rel (0) target = $region69
    $region68: #{batch_norm_net_forward.1} parent=1 // pred_region
      _
    $region69: #{batch_norm_net_forward.1} parent=1 // pred_fallthru
      _
    // Predicated region
    $region70: #{batch_norm_net_forward.1} parent=1 // pred_check
      _
    $region71: #{batch_norm_net_forward.1} parent=1 // pred_check_branch
      %89 = sbr.rel (0) target = $region73
    $region72: #{batch_norm_net_forward.1} parent=1 // pred_region
      _
    $region73: #{batch_norm_net_forward.1} parent=1 // pred_fallthru
      _
    // Predicated region
    $region74: #{batch_norm_net_forward.1} parent=1 // pred_check
      _
    $region75: #{batch_norm_net_forward.1} parent=1 // pred_check_branch
      %91 = sbr.rel (0) target = $region77
    $region76: #{batch_norm_net_forward.1} parent=1 // pred_region
      _
    $region77: #{batch_norm_net_forward.1} parent=1 // pred_fallthru
      _
    // Predicated region
    $region78: #{batch_norm_net_forward.1} parent=1 // pred_check
      _
    $region79: #{batch_norm_net_forward.1} parent=1 // pred_check_branch
      %93 = sbr.rel (0) target = $region81
    $region80: #{batch_norm_net_forward.1} parent=1 // pred_region
      _
    $region81: #{batch_norm_net_forward.1} parent=1 // pred_fallthru
      _
    // Predicated region
    $region82: #{batch_norm_net_forward.1} parent=1 // pred_check
      _
    $region83: #{batch_norm_net_forward.1} parent=1 // pred_check_branch
      %95 = sbr.rel (0) target = $region85
    $region84: #{batch_norm_net_forward.1} parent=1 // pred_region
      _
    $region85: #{batch_norm_net_forward.1} parent=1 // pred_fallthru
      _
    // Predicated region
    $region86: #{batch_norm_net_forward.1} parent=1 // pred_check
      _
    $region87: #{batch_norm_net_forward.1} parent=1 // pred_check_branch
      %97 = sbr.rel (0) target = $region89
    $region88: #{batch_norm_net_forward.1} parent=1 // pred_region
      _
    $region89: #{batch_norm_net_forward.1} parent=1 // pred_fallthru
      _
    // Predicated region
    $region90: #{batch_norm_net_forward.1} parent=1 // pred_check
      _
    $region91: #{batch_norm_net_forward.1} parent=1 // pred_check_branch
      %99 = sbr.rel (0) target = $region93
    $region92: #{batch_norm_net_forward.1} parent=1 // pred_region
      _
    $region93: #{batch_norm_net_forward.1} parent=1 // pred_fallthru
      _
    // Predicated region
    $region94: #{batch_norm_net_forward.1} parent=1 // pred_check
      _
    $region95: #{batch_norm_net_forward.1} parent=1 // pred_check_branch
      %101 = sbr.rel (0) target = $region97
    $region96: #{batch_norm_net_forward.1} parent=1 // pred_region
      _
    $region97: #{batch_norm_net_forward.1} parent=1 // pred_fallthru
      _
    // Predicated region
    $region98: #{batch_norm_net_forward.1} parent=1 // pred_check
      _
    $region99: #{batch_norm_net_forward.1} parent=1 // pred_check_branch
      %103 = sbr.rel (0) target = $region101
    $region100: #{batch_norm_net_forward.1} parent=1 // pred_region
      _
    $region101: #{batch_norm_net_forward.1} parent=1 // pred_fallthru
      _
    // Predicated region
    $region102: #{batch_norm_net_forward.1} parent=1 // pred_check
      _
    $region103: #{batch_norm_net_forward.1} parent=1 // pred_check_branch
      %105 = sbr.rel (0) target = $region105
    $region104: #{batch_norm_net_forward.1} parent=1 // pred_region
      _
    $region105: #{batch_norm_net_forward.1} parent=1 // pred_fallthru
      _
    // Predicated region
    $region106: #{batch_norm_net_forward.1} parent=1 // pred_check
      _
    $region107: #{batch_norm_net_forward.1} parent=1 // pred_check_branch
      %107 = sbr.rel (0) target = $region109
    $region108: #{batch_norm_net_forward.1} parent=1 // pred_region
      _
    $region109: #{batch_norm_net_forward.1} parent=1 // pred_fallthru
      _
    // Predicated region
    $region110: #{batch_norm_net_forward.1} parent=1 // pred_check
      _
    $region111: #{batch_norm_net_forward.1} parent=1 // pred_check_branch
      %109 = sbr.rel (0) target = $region113
    $region112: #{batch_norm_net_forward.1} parent=1 // pred_region
      %110 = dma.done [#allocation3], 2432
    $region113: #{batch_norm_net_forward.1} parent=1 // pred_fallthru
      _
    // Predicated region
    $region114: #{batch_norm_net_forward.1} parent=1 // pred_check
      _
    $region115: #{batch_norm_net_forward.1} parent=1 // pred_check_branch
      %112 = sbr.rel (0) target = $region117
    $region116: #{batch_norm_net_forward.1} parent=1 // pred_region
      %113 = dma.done [#allocation5], 384
    $region117: #{batch_norm_net_forward.1} parent=1 // pred_fallthru
      _
    %v114 = vld [vmem:[%s0] sm:$0xff]
    %v115 = vld [vmem:[%s0 + $0x8] sm:$0xff]
    %v116 = vld [vmem:[%s0 + $0x10] sm:$0xff]
    %v117 = vld [vmem:[%s0 + $0x18] sm:$0xff]
    %v118 = vld [vmem:[%s0 + $0x20] sm:$0xff]
    %v119 = vld [vmem:[%s0 + $0x28] sm:$0xff]
    %v120 = vld [vmem:[%s0 + $0x30] sm:$0xff]
    %v121 = vld [vmem:[%s0 + $0x38] sm:$0xff]
    %v122 = vld [vmem:[%s0 + $0x40] sm:$0xff]
    %v123 = vld [vmem:[%s0 + $0x48] sm:$0xff]
    %v124 = vld [vmem:[%s0 + $0x50] sm:$0xff]
    %v125 = vld [vmem:[%s0 + $0x58] sm:$0xff]
    %v126 = vld [vmem:[%s0 + $0x60] sm:$0xff]
    %v127 = vld [vmem:[%s7] sm:$0xff]
    %v128 = vld [vmem:[%s7 + $0x8] sm:$0xff]
    %v129 = vld [vmem:[%s8] sm:$0xff]
    %v130 = vld [vmem:[%s8 + $0x8] sm:$0xff]
    %144 = vrot.lane.b32.xlu0 %v114, 127
    %v145 = vpop.permute.xlu0 %144
    %146 = vrot.lane.b32.xlu0 %v115, 127
    %v147 = vpop.permute.xlu0 %146
    %148 = vrot.lane.b32.xlu0 %v116, 127
    %v149 = vpop.permute.xlu0 %148
    %150 = vrot.lane.b32.xlu0 %v117, 127
    %v151 = vpop.permute.xlu0 %150
    %152 = vrot.lane.b32.xlu0 %v118, 127
    %v153 = vpop.permute.xlu0 %152
    %154 = vrot.lane.b32.xlu0 %v119, 127
    %v155 = vpop.permute.xlu0 %154
    %156 = vrot.lane.b32.xlu0 %v120, 127
    %v157 = vpop.permute.xlu0 %156
    %158 = vrot.lane.b32.xlu0 %v121, 127
    %v159 = vpop.permute.xlu0 %158
    %160 = vrot.lane.b32.xlu0 %v122, 127
    %v161 = vpop.permute.xlu0 %160
    %162 = vrot.lane.b32.xlu0 %v123, 127
    %v163 = vpop.permute.xlu0 %162
    %164 = vrot.lane.b32.xlu0 %v124, 127
    %v165 = vpop.permute.xlu0 %164
    %166 = vrot.lane.b32.xlu0 %v125, 127
    %v167 = vpop.permute.xlu0 %166
    %168 = vrot.lane.b32.xlu0 %v126, 127
    %v169 = vpop.permute.xlu0 %168
    %vm170 = vcmask 1039360
    %v171 = vsel %vm170, %v145, %v147
    %v172 = vsel %vm170, %v147, %v149
    %v173 = vsel %vm170, %v149, %v151
    %v174 = vsel %vm170, %v151, %v153
    %v175 = vsel %vm170, %v153, %v155
    %v176 = vsel %vm170, %v155, %v157
    %v177 = vsel %vm170, %v157, %v159
    %v178 = vsel %vm170, %v159, %v161
    %v179 = vsel %vm170, %v161, %v163
    %v180 = vsel %vm170, %v163, %v165
    %v181 = vsel %vm170, %v165, %v167
    %v182 = vsel %vm170, %v167, %v169
    %196 = vrot.lane.b32.xlu0 %v114, 126
    %v197 = vpop.permute.xlu0 %196
    %198 = vrot.lane.b32.xlu0 %v115, 126
    %v199 = vpop.permute.xlu0 %198
    %200 = vrot.lane.b32.xlu0 %v116, 126
    %v201 = vpop.permute.xlu0 %200
    %202 = vrot.lane.b32.xlu0 %v117, 126
    %v203 = vpop.permute.xlu0 %202
    %204 = vrot.lane.b32.xlu0 %v118, 126
    %v205 = vpop.permute.xlu0 %204
    %206 = vrot.lane.b32.xlu0 %v119, 126
    %v207 = vpop.permute.xlu0 %206
    %208 = vrot.lane.b32.xlu0 %v120, 126
    %v209 = vpop.permute.xlu0 %208
    %210 = vrot.lane.b32.xlu0 %v121, 126
    %v211 = vpop.permute.xlu0 %210
    %212 = vrot.lane.b32.xlu0 %v122, 126
    %v213 = vpop.permute.xlu0 %212
    %214 = vrot.lane.b32.xlu0 %v123, 126
    %v215 = vpop.permute.xlu0 %214
    %216 = vrot.lane.b32.xlu0 %v124, 126
    %v217 = vpop.permute.xlu0 %216
    %218 = vrot.lane.b32.xlu0 %v125, 126
    %v219 = vpop.permute.xlu0 %218
    %220 = vrot.lane.b32.xlu0 %v126, 126
    %v221 = vpop.permute.xlu0 %220
    %vm222 = vcmask 1031168
    %v223 = vsel %vm222, %v197, %v199
    %v224 = vsel %vm222, %v199, %v201
    %v225 = vsel %vm222, %v201, %v203
    %v226 = vsel %vm222, %v203, %v205
    %v227 = vsel %vm222, %v205, %v207
    %v228 = vsel %vm222, %v207, %v209
    %v229 = vsel %vm222, %v209, %v211
    %v230 = vsel %vm222, %v211, %v213
    %v231 = vsel %vm222, %v213, %v215
    %v232 = vsel %vm222, %v215, %v217
    %v233 = vsel %vm222, %v217, %v219
    %v234 = vsel %vm222, %v219, %v221
    %248 = vrot.lane.b32.xlu0 %v114, 100
    %v249 = vpop.permute.xlu0 %248
    %250 = vrot.lane.b32.xlu0 %v115, 100
    %v251 = vpop.permute.xlu0 %250
    %252 = vrot.lane.b32.xlu0 %v116, 100
    %v253 = vpop.permute.xlu0 %252
    %254 = vrot.lane.b32.xlu0 %v117, 100
    %v255 = vpop.permute.xlu0 %254
    %256 = vrot.lane.b32.xlu0 %v118, 100
    %v257 = vpop.permute.xlu0 %256
    %258 = vrot.lane.b32.xlu0 %v119, 100
    %v259 = vpop.permute.xlu0 %258
    %260 = vrot.lane.b32.xlu0 %v120, 100
    %v261 = vpop.permute.xlu0 %260
    %262 = vrot.lane.b32.xlu0 %v121, 100
    %v263 = vpop.permute.xlu0 %262
    %264 = vrot.lane.b32.xlu0 %v122, 100
    %v265 = vpop.permute.xlu0 %264
    %266 = vrot.lane.b32.xlu0 %v123, 100
    %v267 = vpop.permute.xlu0 %266
    %268 = vrot.lane.b32.xlu0 %v124, 100
    %v269 = vpop.permute.xlu0 %268
    %270 = vrot.lane.b32.xlu0 %v125, 100
    %v271 = vpop.permute.xlu0 %270
    %272 = vrot.lane.b32.xlu0 %v126, 100
    %v273 = vpop.permute.xlu0 %272
    %vm274 = vcmask 818176
    %v275 = vsel %vm274, %v249, %v251
    %v276 = vsel %vm274, %v251, %v253
    %v277 = vsel %vm274, %v253, %v255
    %v278 = vsel %vm274, %v255, %v257
    %v279 = vsel %vm274, %v257, %v259
    %v280 = vsel %vm274, %v259, %v261
    %v281 = vsel %vm274, %v261, %v263
    %v282 = vsel %vm274, %v263, %v265
    %v283 = vsel %vm274, %v265, %v267
    %v284 = vsel %vm274, %v267, %v269
    %v285 = vsel %vm274, %v269, %v271
    %v286 = vsel %vm274, %v271, %v273
    %300 = vrot.lane.b32.xlu0 %v114, 99
    %v301 = vpop.permute.xlu0 %300
    %302 = vrot.lane.b32.xlu0 %v115, 99
    %v303 = vpop.permute.xlu0 %302
    %304 = vrot.lane.b32.xlu0 %v116, 99
    %v305 = vpop.permute.xlu0 %304
    %306 = vrot.lane.b32.xlu0 %v117, 99
    %v307 = vpop.permute.xlu0 %306
    %308 = vrot.lane.b32.xlu0 %v118, 99
    %v309 = vpop.permute.xlu0 %308
    %310 = vrot.lane.b32.xlu0 %v119, 99
    %v311 = vpop.permute.xlu0 %310
    %312 = vrot.lane.b32.xlu0 %v120, 99
    %v313 = vpop.permute.xlu0 %312
    %314 = vrot.lane.b32.xlu0 %v121, 99
    %v315 = vpop.permute.xlu0 %314
    %316 = vrot.lane.b32.xlu0 %v122, 99
    %v317 = vpop.permute.xlu0 %316
    %318 = vrot.lane.b32.xlu0 %v123, 99
    %v319 = vpop.permute.xlu0 %318
    %320 = vrot.lane.b32.xlu0 %v124, 99
    %v321 = vpop.permute.xlu0 %320
    %322 = vrot.lane.b32.xlu0 %v125, 99
    %v323 = vpop.permute.xlu0 %322
    %324 = vrot.lane.b32.xlu0 %v126, 99
    %v325 = vpop.permute.xlu0 %324
    %vm326 = vcmask 809984
    %v327 = vsel %vm326, %v301, %v303
    %v328 = vsel %vm326, %v303, %v305
    %v329 = vsel %vm326, %v305, %v307
    %v330 = vsel %vm326, %v307, %v309
    %v331 = vsel %vm326, %v309, %v311
    %v332 = vsel %vm326, %v311, %v313
    %v333 = vsel %vm326, %v313, %v315
    %v334 = vsel %vm326, %v315, %v317
    %v335 = vsel %vm326, %v317, %v319
    %v336 = vsel %vm326, %v319, %v321
    %v337 = vsel %vm326, %v321, %v323
    %v338 = vsel %vm326, %v323, %v325
    %352 = vrot.lane.b32.xlu0 %v114, 98
    %v353 = vpop.permute.xlu0 %352
    %354 = vrot.lane.b32.xlu0 %v115, 98
    %v355 = vpop.permute.xlu0 %354
    %356 = vrot.lane.b32.xlu0 %v116, 98
    %v357 = vpop.permute.xlu0 %356
    %358 = vrot.lane.b32.xlu0 %v117, 98
    %v359 = vpop.permute.xlu0 %358
    %360 = vrot.lane.b32.xlu0 %v118, 98
    %v361 = vpop.permute.xlu0 %360
    %362 = vrot.lane.b32.xlu0 %v119, 98
    %v363 = vpop.permute.xlu0 %362
    %364 = vrot.lane.b32.xlu0 %v120, 98
    %v365 = vpop.permute.xlu0 %364
    %366 = vrot.lane.b32.xlu0 %v121, 98
    %v367 = vpop.permute.xlu0 %366
    %368 = vrot.lane.b32.xlu0 %v122, 98
    %v369 = vpop.permute.xlu0 %368
    %370 = vrot.lane.b32.xlu0 %v123, 98
    %v371 = vpop.permute.xlu0 %370
    %372 = vrot.lane.b32.xlu0 %v124, 98
    %v373 = vpop.permute.xlu0 %372
    %374 = vrot.lane.b32.xlu0 %v125, 98
    %v375 = vpop.permute.xlu0 %374
    %376 = vrot.lane.b32.xlu0 %v126, 98
    %v377 = vpop.permute.xlu0 %376
    %vm378 = vcmask 801792
    %v379 = vsel %vm378, %v353, %v355
    %v380 = vsel %vm378, %v355, %v357
    %v381 = vsel %vm378, %v357, %v359
    %v382 = vsel %vm378, %v359, %v361
    %v383 = vsel %vm378, %v361, %v363
    %v384 = vsel %vm378, %v363, %v365
    %v385 = vsel %vm378, %v365, %v367
    %v386 = vsel %vm378, %v367, %v369
    %v387 = vsel %vm378, %v369, %v371
    %v388 = vsel %vm378, %v371, %v373
    %v389 = vsel %vm378, %v373, %v375
    %v390 = vsel %vm378, %v375, %v377
    %404 = vrot.lane.b32.xlu0 %v114, 72
    %v405 = vpop.permute.xlu0 %404
    %406 = vrot.lane.b32.xlu0 %v115, 72
    %v407 = vpop.permute.xlu0 %406
    %408 = vrot.lane.b32.xlu0 %v116, 72
    %v409 = vpop.permute.xlu0 %408
    %410 = vrot.lane.b32.xlu0 %v117, 72
    %v411 = vpop.permute.xlu0 %410
    %412 = vrot.lane.b32.xlu0 %v118, 72
    %v413 = vpop.permute.xlu0 %412
    %414 = vrot.lane.b32.xlu0 %v119, 72
    %v415 = vpop.permute.xlu0 %414
    %416 = vrot.lane.b32.xlu0 %v120, 72
    %v417 = vpop.permute.xlu0 %416
    %418 = vrot.lane.b32.xlu0 %v121, 72
    %v419 = vpop.permute.xlu0 %418
    %420 = vrot.lane.b32.xlu0 %v122, 72
    %v421 = vpop.permute.xlu0 %420
    %422 = vrot.lane.b32.xlu0 %v123, 72
    %v423 = vpop.permute.xlu0 %422
    %424 = vrot.lane.b32.xlu0 %v124, 72
    %v425 = vpop.permute.xlu0 %424
    %426 = vrot.lane.b32.xlu0 %v125, 72
    %v427 = vpop.permute.xlu0 %426
    %428 = vrot.lane.b32.xlu0 %v126, 72
    %v429 = vpop.permute.xlu0 %428
    %vm430 = vcmask 588800
    %v431 = vsel %vm430, %v405, %v407
    %v432 = vsel %vm430, %v407, %v409
    %v433 = vsel %vm430, %v409, %v411
    %v434 = vsel %vm430, %v411, %v413
    %v435 = vsel %vm430, %v413, %v415
    %v436 = vsel %vm430, %v415, %v417
    %v437 = vsel %vm430, %v417, %v419
    %v438 = vsel %vm430, %v419, %v421
    %v439 = vsel %vm430, %v421, %v423
    %v440 = vsel %vm430, %v423, %v425
    %v441 = vsel %vm430, %v425, %v427
    %v442 = vsel %vm430, %v427, %v429
    %456 = vrot.lane.b32.xlu0 %v114, 71
    %v457 = vpop.permute.xlu0 %456
    %458 = vrot.lane.b32.xlu0 %v115, 71
    %v459 = vpop.permute.xlu0 %458
    %460 = vrot.lane.b32.xlu0 %v116, 71
    %v461 = vpop.permute.xlu0 %460
    %462 = vrot.lane.b32.xlu0 %v117, 71
    %v463 = vpop.permute.xlu0 %462
    %464 = vrot.lane.b32.xlu0 %v118, 71
    %v465 = vpop.permute.xlu0 %464
    %466 = vrot.lane.b32.xlu0 %v119, 71
    %v467 = vpop.permute.xlu0 %466
    %468 = vrot.lane.b32.xlu0 %v120, 71
    %v469 = vpop.permute.xlu0 %468
    %470 = vrot.lane.b32.xlu0 %v121, 71
    %v471 = vpop.permute.xlu0 %470
    %472 = vrot.lane.b32.xlu0 %v122, 71
    %v473 = vpop.permute.xlu0 %472
    %474 = vrot.lane.b32.xlu0 %v123, 71
    %v475 = vpop.permute.xlu0 %474
    %476 = vrot.lane.b32.xlu0 %v124, 71
    %v477 = vpop.permute.xlu0 %476
    %478 = vrot.lane.b32.xlu0 %v125, 71
    %v479 = vpop.permute.xlu0 %478
    %480 = vrot.lane.b32.xlu0 %v126, 71
    %v481 = vpop.permute.xlu0 %480
    %vm482 = vcmask 580608
    %v483 = vsel %vm482, %v457, %v459
    %v484 = vsel %vm482, %v459, %v461
    %v485 = vsel %vm482, %v461, %v463
    %v486 = vsel %vm482, %v463, %v465
    %v487 = vsel %vm482, %v465, %v467
    %v488 = vsel %vm482, %v467, %v469
    %v489 = vsel %vm482, %v469, %v471
    %v490 = vsel %vm482, %v471, %v473
    %v491 = vsel %vm482, %v473, %v475
    %v492 = vsel %vm482, %v475, %v477
    %v493 = vsel %vm482, %v477, %v479
    %v494 = vsel %vm482, %v479, %v481
    %508 = vrot.lane.b32.xlu0 %v114, 70
    %v509 = vpop.permute.xlu0 %508
    %510 = vrot.lane.b32.xlu0 %v115, 70
    %v511 = vpop.permute.xlu0 %510
    %512 = vrot.lane.b32.xlu0 %v116, 70
    %v513 = vpop.permute.xlu0 %512
    %514 = vrot.lane.b32.xlu0 %v117, 70
    %v515 = vpop.permute.xlu0 %514
    %516 = vrot.lane.b32.xlu0 %v118, 70
    %v517 = vpop.permute.xlu0 %516
    %518 = vrot.lane.b32.xlu0 %v119, 70
    %v519 = vpop.permute.xlu0 %518
    %520 = vrot.lane.b32.xlu0 %v120, 70
    %v521 = vpop.permute.xlu0 %520
    %522 = vrot.lane.b32.xlu0 %v121, 70
    %v523 = vpop.permute.xlu0 %522
    %524 = vrot.lane.b32.xlu0 %v122, 70
    %v525 = vpop.permute.xlu0 %524
    %526 = vrot.lane.b32.xlu0 %v123, 70
    %v527 = vpop.permute.xlu0 %526
    %528 = vrot.lane.b32.xlu0 %v124, 70
    %v529 = vpop.permute.xlu0 %528
    %530 = vrot.lane.b32.xlu0 %v125, 70
    %v531 = vpop.permute.xlu0 %530
    %532 = vrot.lane.b32.xlu0 %v126, 70
    %v533 = vpop.permute.xlu0 %532
    %vm534 = vcmask 572416
    %v535 = vsel %vm534, %v509, %v511
    %v536 = vsel %vm534, %v511, %v513
    %v537 = vsel %vm534, %v513, %v515
    %v538 = vsel %vm534, %v515, %v517
    %v539 = vsel %vm534, %v517, %v519
    %v540 = vsel %vm534, %v519, %v521
    %v541 = vsel %vm534, %v521, %v523
    %v542 = vsel %vm534, %v523, %v525
    %v543 = vsel %vm534, %v525, %v527
    %v544 = vsel %vm534, %v527, %v529
    %v545 = vsel %vm534, %v529, %v531
    %v546 = vsel %vm534, %v531, %v533
    %561 = vset.pattern.permute.xlu0 0
    %562 = vperm.xlu0 %561, %v129
    %v563 = vpop.permute.xlu0 %562
    %566 = vset.pattern.permute.xlu0 0
    %567 = vperm.xlu0 %566, %v130
    %v568 = vpop.permute.xlu0 %567
    %v571 = vsel %vm430, %v127, 0
    %v574 = vsel %vm430, %v128, 0
    %576 = vmatprep.subr.mxu0 %v115
    %577 = vmatpush1.msra.mxu0 %v114
    %578 = vmatprep.subr.mxu0 %v172
    %579 = vmatpush1.msra.mxu0 %v171
    %580 = vmatprep.subr.mxu0 %v224
    %581 = vmatpush1.msra.mxu0 %v223
    %582 = vmatprep.subr.mxu0 %v276
    %583 = vmatpush1.msra.mxu0 %v275
    %584 = vmatprep.subr.mxu0 %v328
    %585 = vmatpush1.msra.mxu0 %v327
    %586 = vmatprep.subr.mxu0 %v380
    %587 = vmatpush1.msra.mxu0 %v379
    %588 = vmatprep.subr.mxu0 %v432
    %589 = vmatpush1.msra.mxu0 %v431
    %590 = vmatprep.subr.mxu0 %v484
    %591 = vmatpush1.msra.mxu0 %v483
    %592 = vmatprep.subr.mxu0 %v536
    %593 = vmatpush1.msra.mxu0 %v535
    %594 = vmatprep.subr.mxu0 0.0
    %595 = vmatpush1.msra.mxu0 0.0
    %596 = vmatprep.subr.mxu0 0.0
    %597 = vmatpush1.msra.mxu0 0.0
    %598 = vmatprep.subr.mxu0 0.0
    %599 = vmatpush1.msra.mxu0 0.0
    %600 = vmatprep.subr.mxu0 0.0
    %601 = vmatpush1.msra.mxu0 0.0
    %602 = vmatprep.subr.mxu0 0.0
    %603 = vmatpush1.msra.mxu0 0.0
    %604 = vmatprep.subr.mxu0 0.0
    %605 = vmatpush1.msra.mxu0 0.0
    %606 = vmatprep.subr.mxu0 0.0
    %607 = vmatpush1.msra.mxu0 0.0
    %608 = vmatprep.subr.mxu0 0.0
    %609 = vmatpush1.msra.mxu0 0.0
    %610 = vmatprep.subr.mxu0 0.0
    %611 = vmatpush1.msra.mxu0 0.0
    %612 = vmatprep.subr.mxu0 0.0
    %613 = vmatpush1.msra.mxu0 0.0
    %614 = vmatprep.subr.mxu0 0.0
    %615 = vmatpush1.msra.mxu0 0.0
    %616 = vmatprep.subr.mxu0 0.0
    %617 = vmatpush1.msra.mxu0 0.0
    %618 = vmatprep.subr.mxu0 0.0
    %619 = vmatpush1.msra.mxu0 0.0
    %620 = vmatprep.subr.mxu0 0.0
    %621 = vmatpush1.msra.mxu0 0.0
    %622 = vmatprep.subr.mxu0 0.0
    %623 = vmatpush1.msra.mxu0 0.0
    %624 = vmatprep.subr.mxu0 0.0
    %625 = vmatpush1.msra.mxu0 0.0
    %626 = vmatprep.subr.mxu0 0.0
    %627 = vmatpush1.msra.mxu0 0.0
    %628 = vmatprep.subr.mxu0 0.0
    %629 = vmatpush1.msra.mxu0 0.0
    %630 = vmatprep.subr.mxu0 0.0
    %631 = vmatpush1.msra.mxu0 0.0
    %632 = vmatprep.subr.mxu0 0.0
    %633 = vmatpush1.msra.mxu0 0.0
    %634 = vmatprep.subr.mxu0 0.0
    %635 = vmatpush1.msra.mxu0 0.0
    %636 = vmatprep.subr.mxu0 0.0
    %637 = vmatpush1.msra.mxu0 0.0
    %638 = vmatprep.subr.mxu0 0.0
    %639 = vmatpush1.msra.mxu0 0.0
    %640 = vmatprep.mubr.f32.mxu0 0.0
    %641 = vmatmul.mubr.f32.gmra.mrb[0].mxu0 %v571
    %v642 = vpop.f32.mrb[0].mxu0
    %v643 = vadd.f32 %v563, %v642
    %v644 = vpop.f32.mrb[0].mxu0
    %v645 = vadd.f32 %v563, %v644
    %646 = vmatprep.mubr.f32.mxu0 0.0
    %647 = vmatmul.mubr.f32.gmra.mrb[0].mxu0 %v574
    %v648 = vpop.f32.mrb[0].mxu0
    %v649 = vadd.f32 %v568, %v648
    %v650 = vpop.f32.mrb[0].mxu0
    %v651 = vadd.f32 %v568, %v650
    %652 = vdwg.mxu0
    %653 = vmatprep.subr.mxu0 %v117
    %654 = vmatpush1.msra.mxu0 %v116
    %655 = vmatprep.subr.mxu0 %v174
    %656 = vmatpush1.msra.mxu0 %v173
    %657 = vmatprep.subr.mxu0 %v226
    %658 = vmatpush1.msra.mxu0 %v225
    %659 = vmatprep.subr.mxu0 %v278
    %660 = vmatpush1.msra.mxu0 %v277
    %661 = vmatprep.subr.mxu0 %v330
    %662 = vmatpush1.msra.mxu0 %v329
    %663 = vmatprep.subr.mxu0 %v382
    %664 = vmatpush1.msra.mxu0 %v381
    %665 = vmatprep.subr.mxu0 %v434
    %666 = vmatpush1.msra.mxu0 %v433
    %667 = vmatprep.subr.mxu0 %v486
    %668 = vmatpush1.msra.mxu0 %v485
    %669 = vmatprep.subr.mxu0 %v538
    %670 = vmatpush1.msra.mxu0 %v537
    %671 = vmatprep.subr.mxu0 0.0
    %672 = vmatpush1.msra.mxu0 0.0
    %673 = vmatprep.subr.mxu0 0.0
    %674 = vmatpush1.msra.mxu0 0.0
    %675 = vmatprep.subr.mxu0 0.0
    %676 = vmatpush1.msra.mxu0 0.0
    %677 = vmatprep.subr.mxu0 0.0
    %678 = vmatpush1.msra.mxu0 0.0
    %679 = vmatprep.subr.mxu0 0.0
    %680 = vmatpush1.msra.mxu0 0.0
    %681 = vmatprep.subr.mxu0 0.0
    %682 = vmatpush1.msra.mxu0 0.0
    %683 = vmatprep.subr.mxu0 0.0
    %684 = vmatpush1.msra.mxu0 0.0
    %685 = vmatprep.subr.mxu0 0.0
    %686 = vmatpush1.msra.mxu0 0.0
    %687 = vmatprep.subr.mxu0 0.0
    %688 = vmatpush1.msra.mxu0 0.0
    %689 = vmatprep.subr.mxu0 0.0
    %690 = vmatpush1.msra.mxu0 0.0
    %691 = vmatprep.subr.mxu0 0.0
    %692 = vmatpush1.msra.mxu0 0.0
    %693 = vmatprep.subr.mxu0 0.0
    %694 = vmatpush1.msra.mxu0 0.0
    %695 = vmatprep.subr.mxu0 0.0
    %696 = vmatpush1.msra.mxu0 0.0
    %697 = vmatprep.subr.mxu0 0.0
    %698 = vmatpush1.msra.mxu0 0.0
    %699 = vmatprep.subr.mxu0 0.0
    %700 = vmatpush1.msra.mxu0 0.0
    %701 = vmatprep.subr.mxu0 0.0
    %702 = vmatpush1.msra.mxu0 0.0
    %703 = vmatprep.subr.mxu0 0.0
    %704 = vmatpush1.msra.mxu0 0.0
    %705 = vmatprep.subr.mxu0 0.0
    %706 = vmatpush1.msra.mxu0 0.0
    %707 = vmatprep.subr.mxu0 0.0
    %708 = vmatpush1.msra.mxu0 0.0
    %709 = vmatprep.subr.mxu0 0.0
    %710 = vmatpush1.msra.mxu0 0.0
    %711 = vmatprep.subr.mxu0 0.0
    %712 = vmatpush1.msra.mxu0 0.0
    %713 = vmatprep.subr.mxu0 0.0
    %714 = vmatpush1.msra.mxu0 0.0
    %715 = vmatprep.subr.mxu0 0.0
    %716 = vmatpush1.msra.mxu0 0.0
    %717 = vmatprep.mubr.f32.mxu0 0.0
    %718 = vmatmul.mubr.f32.gmra.mrb[0].mxu0 %v571
    %v719 = vpop.f32.mrb[0].mxu0
    %v720 = vadd.f32 %v563, %v719
    %v721 = vpop.f32.mrb[0].mxu0
    %v722 = vadd.f32 %v563, %v721
    %723 = vmatprep.mubr.f32.mxu0 0.0
    %724 = vmatmul.mubr.f32.gmra.mrb[0].mxu0 %v574
    %v725 = vpop.f32.mrb[0].mxu0
    %v726 = vadd.f32 %v568, %v725
    %v727 = vpop.f32.mrb[0].mxu0
    %v728 = vadd.f32 %v568, %v727
    %729 = vdwg.mxu0
    %730 = vmatprep.subr.mxu0 %v119
    %731 = vmatpush1.msra.mxu0 %v118
    %732 = vmatprep.subr.mxu0 %v176
    %733 = vmatpush1.msra.mxu0 %v175
    %734 = vmatprep.subr.mxu0 %v228
    %735 = vmatpush1.msra.mxu0 %v227
    %736 = vmatprep.subr.mxu0 %v280
    %737 = vmatpush1.msra.mxu0 %v279
    %738 = vmatprep.subr.mxu0 %v332
    %739 = vmatpush1.msra.mxu0 %v331
    %740 = vmatprep.subr.mxu0 %v384
    %741 = vmatpush1.msra.mxu0 %v383
    %742 = vmatprep.subr.mxu0 %v436
    %743 = vmatpush1.msra.mxu0 %v435
    %744 = vmatprep.subr.mxu0 %v488
    %745 = vmatpush1.msra.mxu0 %v487
    %746 = vmatprep.subr.mxu0 %v540
    %747 = vmatpush1.msra.mxu0 %v539
    %748 = vmatprep.subr.mxu0 0.0
    %749 = vmatpush1.msra.mxu0 0.0
    %750 = vmatprep.subr.mxu0 0.0
    %751 = vmatpush1.msra.mxu0 0.0
    %752 = vmatprep.subr.mxu0 0.0
    %753 = vmatpush1.msra.mxu0 0.0
    %754 = vmatprep.subr.mxu0 0.0
    %755 = vmatpush1.msra.mxu0 0.0
    %756 = vmatprep.subr.mxu0 0.0
    %757 = vmatpush1.msra.mxu0 0.0
    %758 = vmatprep.subr.mxu0 0.0
    %759 = vmatpush1.msra.mxu0 0.0
    %760 = vmatprep.subr.mxu0 0.0
    %761 = vmatpush1.msra.mxu0 0.0
    %762 = vmatprep.subr.mxu0 0.0
    %763 = vmatpush1.msra.mxu0 0.0
    %764 = vmatprep.subr.mxu0 0.0
    %765 = vmatpush1.msra.mxu0 0.0
    %766 = vmatprep.subr.mxu0 0.0
    %767 = vmatpush1.msra.mxu0 0.0
    %768 = vmatprep.subr.mxu0 0.0
    %769 = vmatpush1.msra.mxu0 0.0
    %770 = vmatprep.subr.mxu0 0.0
    %771 = vmatpush1.msra.mxu0 0.0
    %772 = vmatprep.subr.mxu0 0.0
    %773 = vmatpush1.msra.mxu0 0.0
    %774 = vmatprep.subr.mxu0 0.0
    %775 = vmatpush1.msra.mxu0 0.0
    %776 = vmatprep.subr.mxu0 0.0
    %777 = vmatpush1.msra.mxu0 0.0
    %778 = vmatprep.subr.mxu0 0.0
    %779 = vmatpush1.msra.mxu0 0.0
    %780 = vmatprep.subr.mxu0 0.0
    %781 = vmatpush1.msra.mxu0 0.0
    %782 = vmatprep.subr.mxu0 0.0
    %783 = vmatpush1.msra.mxu0 0.0
    %784 = vmatprep.subr.mxu0 0.0
    %785 = vmatpush1.msra.mxu0 0.0
    %786 = vmatprep.subr.mxu0 0.0
    %787 = vmatpush1.msra.mxu0 0.0
    %788 = vmatprep.subr.mxu0 0.0
    %789 = vmatpush1.msra.mxu0 0.0
    %790 = vmatprep.subr.mxu0 0.0
    %791 = vmatpush1.msra.mxu0 0.0
    %792 = vmatprep.subr.mxu0 0.0
    %793 = vmatpush1.msra.mxu0 0.0
    %794 = vmatprep.mubr.f32.mxu0 0.0
    %795 = vmatmul.mubr.f32.gmra.mrb[0].mxu0 %v571
    %v796 = vpop.f32.mrb[0].mxu0
    %v797 = vadd.f32 %v563, %v796
    %v798 = vpop.f32.mrb[0].mxu0
    %v799 = vadd.f32 %v563, %v798
    %800 = vmatprep.mubr.f32.mxu0 0.0
    %801 = vmatmul.mubr.f32.gmra.mrb[0].mxu0 %v574
    %v802 = vpop.f32.mrb[0].mxu0
    %v803 = vadd.f32 %v568, %v802
    %v804 = vpop.f32.mrb[0].mxu0
    %v805 = vadd.f32 %v568, %v804
    %806 = vdwg.mxu0
    %807 = vmatprep.subr.mxu0 %v121
    %808 = vmatpush1.msra.mxu0 %v120
    %809 = vmatprep.subr.mxu0 %v178
    %810 = vmatpush1.msra.mxu0 %v177
    %811 = vmatprep.subr.mxu0 %v230
    %812 = vmatpush1.msra.mxu0 %v229
    %813 = vmatprep.subr.mxu0 %v282
    %814 = vmatpush1.msra.mxu0 %v281
    %815 = vmatprep.subr.mxu0 %v334
    %816 = vmatpush1.msra.mxu0 %v333
    %817 = vmatprep.subr.mxu0 %v386
    %818 = vmatpush1.msra.mxu0 %v385
    %819 = vmatprep.subr.mxu0 %v438
    %820 = vmatpush1.msra.mxu0 %v437
    %821 = vmatprep.subr.mxu0 %v490
    %822 = vmatpush1.msra.mxu0 %v489
    %823 = vmatprep.subr.mxu0 %v542
    %824 = vmatpush1.msra.mxu0 %v541
    %825 = vmatprep.subr.mxu0 0.0
    %826 = vmatpush1.msra.mxu0 0.0
    %827 = vmatprep.subr.mxu0 0.0
    %828 = vmatpush1.msra.mxu0 0.0
    %829 = vmatprep.subr.mxu0 0.0
    %830 = vmatpush1.msra.mxu0 0.0
    %831 = vmatprep.subr.mxu0 0.0
    %832 = vmatpush1.msra.mxu0 0.0
    %833 = vmatprep.subr.mxu0 0.0
    %834 = vmatpush1.msra.mxu0 0.0
    %835 = vmatprep.subr.mxu0 0.0
    %836 = vmatpush1.msra.mxu0 0.0
    %837 = vmatprep.subr.mxu0 0.0
    %838 = vmatpush1.msra.mxu0 0.0
    %839 = vmatprep.subr.mxu0 0.0
    %840 = vmatpush1.msra.mxu0 0.0
    %841 = vmatprep.subr.mxu0 0.0
    %842 = vmatpush1.msra.mxu0 0.0
    %843 = vmatprep.subr.mxu0 0.0
    %844 = vmatpush1.msra.mxu0 0.0
    %845 = vmatprep.subr.mxu0 0.0
    %846 = vmatpush1.msra.mxu0 0.0
    %847 = vmatprep.subr.mxu0 0.0
    %848 = vmatpush1.msra.mxu0 0.0
    %849 = vmatprep.subr.mxu0 0.0
    %850 = vmatpush1.msra.mxu0 0.0
    %851 = vmatprep.subr.mxu0 0.0
    %852 = vmatpush1.msra.mxu0 0.0
    %853 = vmatprep.subr.mxu0 0.0
    %854 = vmatpush1.msra.mxu0 0.0
    %855 = vmatprep.subr.mxu0 0.0
    %856 = vmatpush1.msra.mxu0 0.0
    %857 = vmatprep.subr.mxu0 0.0
    %858 = vmatpush1.msra.mxu0 0.0
    %859 = vmatprep.subr.mxu0 0.0
    %860 = vmatpush1.msra.mxu0 0.0
    %861 = vmatprep.subr.mxu0 0.0
    %862 = vmatpush1.msra.mxu0 0.0
    %863 = vmatprep.subr.mxu0 0.0
    %864 = vmatpush1.msra.mxu0 0.0
    %865 = vmatprep.subr.mxu0 0.0
    %866 = vmatpush1.msra.mxu0 0.0
    %867 = vmatprep.subr.mxu0 0.0
    %868 = vmatpush1.msra.mxu0 0.0
    %869 = vmatprep.subr.mxu0 0.0
    %870 = vmatpush1.msra.mxu0 0.0
    %871 = vmatprep.mubr.f32.mxu0 0.0
    %872 = vmatmul.mubr.f32.gmra.mrb[0].mxu0 %v571
    %v873 = vpop.f32.mrb[0].mxu0
    %v874 = vadd.f32 %v563, %v873
    %v875 = vpop.f32.mrb[0].mxu0
    %v876 = vadd.f32 %v563, %v875
    %877 = vmatprep.mubr.f32.mxu0 0.0
    %878 = vmatmul.mubr.f32.gmra.mrb[0].mxu0 %v574
    %v879 = vpop.f32.mrb[0].mxu0
    %v880 = vadd.f32 %v568, %v879
    %v881 = vpop.f32.mrb[0].mxu0
    %v882 = vadd.f32 %v568, %v881
    %883 = vdwg.mxu0
    %884 = vmatprep.subr.mxu0 %v123
    %885 = vmatpush1.msra.mxu0 %v122
    %886 = vmatprep.subr.mxu0 %v180
    %887 = vmatpush1.msra.mxu0 %v179
    %888 = vmatprep.subr.mxu0 %v232
    %889 = vmatpush1.msra.mxu0 %v231
    %890 = vmatprep.subr.mxu0 %v284
    %891 = vmatpush1.msra.mxu0 %v283
    %892 = vmatprep.subr.mxu0 %v336
    %893 = vmatpush1.msra.mxu0 %v335
    %894 = vmatprep.subr.mxu0 %v388
    %895 = vmatpush1.msra.mxu0 %v387
    %896 = vmatprep.subr.mxu0 %v440
    %897 = vmatpush1.msra.mxu0 %v439
    %898 = vmatprep.subr.mxu0 %v492
    %899 = vmatpush1.msra.mxu0 %v491
    %900 = vmatprep.subr.mxu0 %v544
    %901 = vmatpush1.msra.mxu0 %v543
    %902 = vmatprep.subr.mxu0 0.0
    %903 = vmatpush1.msra.mxu0 0.0
    %904 = vmatprep.subr.mxu0 0.0
    %905 = vmatpush1.msra.mxu0 0.0
    %906 = vmatprep.subr.mxu0 0.0
    %907 = vmatpush1.msra.mxu0 0.0
    %908 = vmatprep.subr.mxu0 0.0
    %909 = vmatpush1.msra.mxu0 0.0
    %910 = vmatprep.subr.mxu0 0.0
    %911 = vmatpush1.msra.mxu0 0.0
    %912 = vmatprep.subr.mxu0 0.0
    %913 = vmatpush1.msra.mxu0 0.0
    %914 = vmatprep.subr.mxu0 0.0
    %915 = vmatpush1.msra.mxu0 0.0
    %916 = vmatprep.subr.mxu0 0.0
    %917 = vmatpush1.msra.mxu0 0.0
    %918 = vmatprep.subr.mxu0 0.0
    %919 = vmatpush1.msra.mxu0 0.0
    %920 = vmatprep.subr.mxu0 0.0
    %921 = vmatpush1.msra.mxu0 0.0
    %922 = vmatprep.subr.mxu0 0.0
    %923 = vmatpush1.msra.mxu0 0.0
    %924 = vmatprep.subr.mxu0 0.0
    %925 = vmatpush1.msra.mxu0 0.0
    %926 = vmatprep.subr.mxu0 0.0
    %927 = vmatpush1.msra.mxu0 0.0
    %928 = vmatprep.subr.mxu0 0.0
    %929 = vmatpush1.msra.mxu0 0.0
    %930 = vmatprep.subr.mxu0 0.0
    %931 = vmatpush1.msra.mxu0 0.0
    %932 = vmatprep.subr.mxu0 0.0
    %933 = vmatpush1.msra.mxu0 0.0
    %934 = vmatprep.subr.mxu0 0.0
    %935 = vmatpush1.msra.mxu0 0.0
    %936 = vmatprep.subr.mxu0 0.0
    %937 = vmatpush1.msra.mxu0 0.0
    %938 = vmatprep.subr.mxu0 0.0
    %939 = vmatpush1.msra.mxu0 0.0
    %940 = vmatprep.subr.mxu0 0.0
    %941 = vmatpush1.msra.mxu0 0.0
    %942 = vmatprep.subr.mxu0 0.0
    %943 = vmatpush1.msra.mxu0 0.0
    %944 = vmatprep.subr.mxu0 0.0
    %945 = vmatpush1.msra.mxu0 0.0
    %946 = vmatprep.subr.mxu0 0.0
    %947 = vmatpush1.msra.mxu0 0.0
    %948 = vmatprep.mubr.f32.mxu0 0.0
    %949 = vmatmul.mubr.f32.gmra.mrb[0].mxu0 %v571
    %v950 = vpop.f32.mrb[0].mxu0
    %v951 = vadd.f32 %v563, %v950
    %v952 = vpop.f32.mrb[0].mxu0
    %v953 = vadd.f32 %v563, %v952
    %954 = vmatprep.mubr.f32.mxu0 0.0
    %955 = vmatmul.mubr.f32.gmra.mrb[0].mxu0 %v574
    %v956 = vpop.f32.mrb[0].mxu0
    %v957 = vadd.f32 %v568, %v956
    %v958 = vpop.f32.mrb[0].mxu0
    %v959 = vadd.f32 %v568, %v958
    %960 = vdwg.mxu0
    %961 = vmatprep.subr.mxu0 %v125
    %962 = vmatpush1.msra.mxu0 %v124
    %963 = vmatprep.subr.mxu0 %v182
    %964 = vmatpush1.msra.mxu0 %v181
    %965 = vmatprep.subr.mxu0 %v234
    %966 = vmatpush1.msra.mxu0 %v233
    %967 = vmatprep.subr.mxu0 %v286
    %968 = vmatpush1.msra.mxu0 %v285
    %969 = vmatprep.subr.mxu0 %v338
    %970 = vmatpush1.msra.mxu0 %v337
    %971 = vmatprep.subr.mxu0 %v390
    %972 = vmatpush1.msra.mxu0 %v389
    %973 = vmatprep.subr.mxu0 %v442
    %974 = vmatpush1.msra.mxu0 %v441
    %975 = vmatprep.subr.mxu0 %v494
    %976 = vmatpush1.msra.mxu0 %v493
    %977 = vmatprep.subr.mxu0 %v546
    %978 = vmatpush1.msra.mxu0 %v545
    %979 = vmatprep.subr.mxu0 0.0
    %980 = vmatpush1.msra.mxu0 0.0
    %981 = vmatprep.subr.mxu0 0.0
    %982 = vmatpush1.msra.mxu0 0.0
    %983 = vmatprep.subr.mxu0 0.0
    %984 = vmatpush1.msra.mxu0 0.0
    %985 = vmatprep.subr.mxu0 0.0
    %986 = vmatpush1.msra.mxu0 0.0
    %987 = vmatprep.subr.mxu0 0.0
    %988 = vmatpush1.msra.mxu0 0.0
    %989 = vmatprep.subr.mxu0 0.0
    %990 = vmatpush1.msra.mxu0 0.0
    %991 = vmatprep.subr.mxu0 0.0
    %992 = vmatpush1.msra.mxu0 0.0
    %993 = vmatprep.subr.mxu0 0.0
    %994 = vmatpush1.msra.mxu0 0.0
    %995 = vmatprep.subr.mxu0 0.0
    %996 = vmatpush1.msra.mxu0 0.0
    %997 = vmatprep.subr.mxu0 0.0
    %998 = vmatpush1.msra.mxu0 0.0
    %999 = vmatprep.subr.mxu0 0.0
    %1000 = vmatpush1.msra.mxu0 0.0
    %1001 = vmatprep.subr.mxu0 0.0
    %1002 = vmatpush1.msra.mxu0 0.0
    %1003 = vmatprep.subr.mxu0 0.0
    %1004 = vmatpush1.msra.mxu0 0.0
    %1005 = vmatprep.subr.mxu0 0.0
    %1006 = vmatpush1.msra.mxu0 0.0
    %1007 = vmatprep.subr.mxu0 0.0
    %1008 = vmatpush1.msra.mxu0 0.0
    %1009 = vmatprep.subr.mxu0 0.0
    %1010 = vmatpush1.msra.mxu0 0.0
    %1011 = vmatprep.subr.mxu0 0.0
    %1012 = vmatpush1.msra.mxu0 0.0
    %1013 = vmatprep.subr.mxu0 0.0
    %1014 = vmatpush1.msra.mxu0 0.0
    %1015 = vmatprep.subr.mxu0 0.0
    %1016 = vmatpush1.msra.mxu0 0.0
    %1017 = vmatprep.subr.mxu0 0.0
    %1018 = vmatpush1.msra.mxu0 0.0
    %1019 = vmatprep.subr.mxu0 0.0
    %1020 = vmatpush1.msra.mxu0 0.0
    %1021 = vmatprep.subr.mxu0 0.0
    %1022 = vmatpush1.msra.mxu0 0.0
    %1023 = vmatprep.subr.mxu0 0.0
    %1024 = vmatpush1.msra.mxu0 0.0
    %1025 = vmatprep.mubr.f32.mxu0 0.0
    %1026 = vmatmul.mubr.f32.gmra.mrb[0].mxu0 %v571
    %v1027 = vpop.f32.mrb[0].mxu0
    %v1028 = vadd.f32 %v563, %v1027
    %v1029 = vpop.f32.mrb[0].mxu0
    %v1030 = vadd.f32 %v563, %v1029
    %1031 = vmatprep.mubr.f32.mxu0 0.0
    %1032 = vmatmul.mubr.f32.gmra.mrb[0].mxu0 %v574
    %v1033 = vpop.f32.mrb[0].mxu0
    %v1034 = vadd.f32 %v568, %v1033
    %v1035 = vpop.f32.mrb[0].mxu0
    %v1036 = vadd.f32 %v568, %v1035
    %1037 = vdwg.mxu0
    %1038 = vmatprep.subr.mxu0 0.0
    %1039 = vmatpush1.msra.mxu0 %v126
    %1040 = vmatprep.subr.mxu0 0.0
    %1041 = vmatpush1.msra.mxu0 %v169
    %1042 = vmatprep.subr.mxu0 0.0
    %1043 = vmatpush1.msra.mxu0 %v221
    %1044 = vmatprep.subr.mxu0 0.0
    %1045 = vmatpush1.msra.mxu0 %v273
    %1046 = vmatprep.subr.mxu0 0.0
    %1047 = vmatpush1.msra.mxu0 %v325
    %1048 = vmatprep.subr.mxu0 0.0
    %1049 = vmatpush1.msra.mxu0 %v377
    %1050 = vmatprep.subr.mxu0 0.0
    %1051 = vmatpush1.msra.mxu0 %v429
    %1052 = vmatprep.subr.mxu0 0.0
    %1053 = vmatpush1.msra.mxu0 %v481
    %1054 = vmatprep.subr.mxu0 0.0
    %1055 = vmatpush1.msra.mxu0 %v533
    %1056 = vmatprep.subr.mxu0 0.0
    %1057 = vmatpush1.msra.mxu0 0.0
    %1058 = vmatprep.subr.mxu0 0.0
    %1059 = vmatpush1.msra.mxu0 0.0
    %1060 = vmatprep.subr.mxu0 0.0
    %1061 = vmatpush1.msra.mxu0 0.0
    %1062 = vmatprep.subr.mxu0 0.0
    %1063 = vmatpush1.msra.mxu0 0.0
    %1064 = vmatprep.subr.mxu0 0.0
    %1065 = vmatpush1.msra.mxu0 0.0
    %1066 = vmatprep.subr.mxu0 0.0
    %1067 = vmatpush1.msra.mxu0 0.0
    %1068 = vmatprep.subr.mxu0 0.0
    %1069 = vmatpush1.msra.mxu0 0.0
    %1070 = vmatprep.subr.mxu0 0.0
    %1071 = vmatpush1.msra.mxu0 0.0
    %1072 = vmatprep.subr.mxu0 0.0
    %1073 = vmatpush1.msra.mxu0 0.0
    %1074 = vmatprep.subr.mxu0 0.0
    %1075 = vmatpush1.msra.mxu0 0.0
    %1076 = vmatprep.subr.mxu0 0.0
    %1077 = vmatpush1.msra.mxu0 0.0
    %1078 = vmatprep.subr.mxu0 0.0
    %1079 = vmatpush1.msra.mxu0 0.0
    %1080 = vmatprep.subr.mxu0 0.0
    %1081 = vmatpush1.msra.mxu0 0.0
    %1082 = vmatprep.subr.mxu0 0.0
    %1083 = vmatpush1.msra.mxu0 0.0
    %1084 = vmatprep.subr.mxu0 0.0
    %1085 = vmatpush1.msra.mxu0 0.0
    %1086 = vmatprep.subr.mxu0 0.0
    %1087 = vmatpush1.msra.mxu0 0.0
    %1088 = vmatprep.subr.mxu0 0.0
    %1089 = vmatpush1.msra.mxu0 0.0
    %1090 = vmatprep.subr.mxu0 0.0
    %1091 = vmatpush1.msra.mxu0 0.0
    %1092 = vmatprep.subr.mxu0 0.0
    %1093 = vmatpush1.msra.mxu0 0.0
    %1094 = vmatprep.subr.mxu0 0.0
    %1095 = vmatpush1.msra.mxu0 0.0
    %1096 = vmatprep.subr.mxu0 0.0
    %1097 = vmatpush1.msra.mxu0 0.0
    %1098 = vmatprep.subr.mxu0 0.0
    %1099 = vmatpush1.msra.mxu0 0.0
    %1100 = vmatprep.subr.mxu0 0.0
    %1101 = vmatpush1.msra.mxu0 0.0
    %1102 = vmatprep.mubr.f32.mxu0 0.0
    %1103 = vmatmul.mubr.f32.gmra.mrb[0].mxu0 %v571
    %v1104 = vpop.f32.mrb[0].mxu0
    %v1105 = vadd.f32 %v563, %v1104
    %v1106 = vpop.f32.mrb[0].mxu0
    %1107 = vmatprep.mubr.f32.mxu0 0.0
    %1108 = vmatmul.mubr.f32.gmra.mrb[0].mxu0 %v574
    %v1109 = vpop.f32.mrb[0].mxu0
    %v1110 = vadd.f32 %v568, %v1109
    %v1111 = vpop.f32.mrb[0].mxu0
    %1112 = vdwg.mxu0
    %1139 = vrot.lane.b32.xlu0 %v643, 100
    %v1140 = vpop.permute.xlu0 %1139
    %1141 = vrot.lane.b32.xlu0 %v645, 100
    %v1142 = vpop.permute.xlu0 %1141
    %1143 = vrot.lane.b32.xlu0 %v720, 100
    %v1144 = vpop.permute.xlu0 %1143
    %1145 = vrot.lane.b32.xlu0 %v722, 100
    %v1146 = vpop.permute.xlu0 %1145
    %1147 = vrot.lane.b32.xlu0 %v797, 100
    %v1148 = vpop.permute.xlu0 %1147
    %1149 = vrot.lane.b32.xlu0 %v799, 100
    %v1150 = vpop.permute.xlu0 %1149
    %1151 = vrot.lane.b32.xlu0 %v874, 100
    %v1152 = vpop.permute.xlu0 %1151
    %1153 = vrot.lane.b32.xlu0 %v876, 100
    %v1154 = vpop.permute.xlu0 %1153
    %1155 = vrot.lane.b32.xlu0 %v951, 100
    %v1156 = vpop.permute.xlu0 %1155
    %1157 = vrot.lane.b32.xlu0 %v953, 100
    %v1158 = vpop.permute.xlu0 %1157
    %1159 = vrot.lane.b32.xlu0 %v1028, 100
    %v1160 = vpop.permute.xlu0 %1159
    %1161 = vrot.lane.b32.xlu0 %v1030, 100
    %v1162 = vpop.permute.xlu0 %1161
    %1163 = vrot.lane.b32.xlu0 %v1105, 100
    %v1164 = vpop.permute.xlu0 %1163
    %1165 = vrot.lane.b32.xlu0 %v649, 100
    %v1166 = vpop.permute.xlu0 %1165
    %1167 = vrot.lane.b32.xlu0 %v651, 100
    %v1168 = vpop.permute.xlu0 %1167
    %1169 = vrot.lane.b32.xlu0 %v726, 100
    %v1170 = vpop.permute.xlu0 %1169
    %1171 = vrot.lane.b32.xlu0 %v728, 100
    %v1172 = vpop.permute.xlu0 %1171
    %1173 = vrot.lane.b32.xlu0 %v803, 100
    %v1174 = vpop.permute.xlu0 %1173
    %1175 = vrot.lane.b32.xlu0 %v805, 100
    %v1176 = vpop.permute.xlu0 %1175
    %1177 = vrot.lane.b32.xlu0 %v880, 100
    %v1178 = vpop.permute.xlu0 %1177
    %1179 = vrot.lane.b32.xlu0 %v882, 100
    %v1180 = vpop.permute.xlu0 %1179
    %1181 = vrot.lane.b32.xlu0 %v957, 100
    %v1182 = vpop.permute.xlu0 %1181
    %1183 = vrot.lane.b32.xlu0 %v959, 100
    %v1184 = vpop.permute.xlu0 %1183
    %1185 = vrot.lane.b32.xlu0 %v1034, 100
    %v1186 = vpop.permute.xlu0 %1185
    %1187 = vrot.lane.b32.xlu0 %v1036, 100
    %v1188 = vpop.permute.xlu0 %1187
    %1189 = vrot.lane.b32.xlu0 %v1110, 100
    %v1190 = vpop.permute.xlu0 %1189
    %v1191 = vsel %vm274, %v1140, %v1142
    %v1192 = vsel %vm274, %v1142, %v1144
    %v1193 = vsel %vm274, %v1144, %v1146
    %v1194 = vsel %vm274, %v1146, %v1148
    %v1195 = vsel %vm274, %v1148, %v1150
    %v1196 = vsel %vm274, %v1150, %v1152
    %v1197 = vsel %vm274, %v1152, %v1154
    %v1198 = vsel %vm274, %v1154, %v1156
    %v1199 = vsel %vm274, %v1156, %v1158
    %v1200 = vsel %vm274, %v1158, %v1160
    %v1201 = vsel %vm274, %v1160, %v1162
    %v1202 = vsel %vm274, %v1162, %v1164
    %v1203 = vsel %vm274, %v1166, %v1168
    %v1204 = vsel %vm274, %v1168, %v1170
    %v1205 = vsel %vm274, %v1170, %v1172
    %v1206 = vsel %vm274, %v1172, %v1174
    %v1207 = vsel %vm274, %v1174, %v1176
    %v1208 = vsel %vm274, %v1176, %v1178
    %v1209 = vsel %vm274, %v1178, %v1180
    %v1210 = vsel %vm274, %v1180, %v1182
    %v1211 = vsel %vm274, %v1182, %v1184
    %v1212 = vsel %vm274, %v1184, %v1186
    %v1213 = vsel %vm274, %v1186, %v1188
    %v1214 = vsel %vm274, %v1188, %v1190
    %v1241 = vmax.f32 %v643, %v1191
    %v1242 = vmax.f32 %v645, %v1192
    %v1243 = vmax.f32 %v720, %v1193
    %v1244 = vmax.f32 %v722, %v1194
    %v1245 = vmax.f32 %v797, %v1195
    %v1246 = vmax.f32 %v799, %v1196
    %v1247 = vmax.f32 %v874, %v1197
    %v1248 = vmax.f32 %v876, %v1198
    %v1249 = vmax.f32 %v951, %v1199
    %v1250 = vmax.f32 %v953, %v1200
    %v1251 = vmax.f32 %v1028, %v1201
    %v1252 = vmax.f32 %v1030, %v1202
    %v1253 = vmax.f32 %v1105, %v1164
    %v1254 = vmax.f32 %v649, %v1203
    %v1255 = vmax.f32 %v651, %v1204
    %v1256 = vmax.f32 %v726, %v1205
    %v1257 = vmax.f32 %v728, %v1206
    %v1258 = vmax.f32 %v803, %v1207
    %v1259 = vmax.f32 %v805, %v1208
    %v1260 = vmax.f32 %v880, %v1209
    %v1261 = vmax.f32 %v882, %v1210
    %v1262 = vmax.f32 %v957, %v1211
    %v1263 = vmax.f32 %v959, %v1212
    %v1264 = vmax.f32 %v1034, %v1213
    %v1265 = vmax.f32 %v1036, %v1214
    %v1266 = vmax.f32 %v1110, %v1190
    %1293 = vrot.lane.b32.xlu0 %v1241, 127
    %v1294 = vpop.permute.xlu0 %1293
    %1295 = vrot.lane.b32.xlu0 %v1242, 127
    %v1296 = vpop.permute.xlu0 %1295
    %1297 = vrot.lane.b32.xlu0 %v1243, 127
    %v1298 = vpop.permute.xlu0 %1297
    %1299 = vrot.lane.b32.xlu0 %v1244, 127
    %v1300 = vpop.permute.xlu0 %1299
    %1301 = vrot.lane.b32.xlu0 %v1245, 127
    %v1302 = vpop.permute.xlu0 %1301
    %1303 = vrot.lane.b32.xlu0 %v1246, 127
    %v1304 = vpop.permute.xlu0 %1303
    %1305 = vrot.lane.b32.xlu0 %v1247, 127
    %v1306 = vpop.permute.xlu0 %1305
    %1307 = vrot.lane.b32.xlu0 %v1248, 127
    %v1308 = vpop.permute.xlu0 %1307
    %1309 = vrot.lane.b32.xlu0 %v1249, 127
    %v1310 = vpop.permute.xlu0 %1309
    %1311 = vrot.lane.b32.xlu0 %v1250, 127
    %v1312 = vpop.permute.xlu0 %1311
    %1313 = vrot.lane.b32.xlu0 %v1251, 127
    %v1314 = vpop.permute.xlu0 %1313
    %1315 = vrot.lane.b32.xlu0 %v1252, 127
    %v1316 = vpop.permute.xlu0 %1315
    %1317 = vrot.lane.b32.xlu0 %v1253, 127
    %v1318 = vpop.permute.xlu0 %1317
    %1319 = vrot.lane.b32.xlu0 %v1254, 127
    %v1320 = vpop.permute.xlu0 %1319
    %1321 = vrot.lane.b32.xlu0 %v1255, 127
    %v1322 = vpop.permute.xlu0 %1321
    %1323 = vrot.lane.b32.xlu0 %v1256, 127
    %v1324 = vpop.permute.xlu0 %1323
    %1325 = vrot.lane.b32.xlu0 %v1257, 127
    %v1326 = vpop.permute.xlu0 %1325
    %1327 = vrot.lane.b32.xlu0 %v1258, 127
    %v1328 = vpop.permute.xlu0 %1327
    %1329 = vrot.lane.b32.xlu0 %v1259, 127
    %v1330 = vpop.permute.xlu0 %1329
    %1331 = vrot.lane.b32.xlu0 %v1260, 127
    %v1332 = vpop.permute.xlu0 %1331
    %1333 = vrot.lane.b32.xlu0 %v1261, 127
    %v1334 = vpop.permute.xlu0 %1333
    %1335 = vrot.lane.b32.xlu0 %v1262, 127
    %v1336 = vpop.permute.xlu0 %1335
    %1337 = vrot.lane.b32.xlu0 %v1263, 127
    %v1338 = vpop.permute.xlu0 %1337
    %1339 = vrot.lane.b32.xlu0 %v1264, 127
    %v1340 = vpop.permute.xlu0 %1339
    %1341 = vrot.lane.b32.xlu0 %v1265, 127
    %v1342 = vpop.permute.xlu0 %1341
    %1343 = vrot.lane.b32.xlu0 %v1266, 127
    %v1344 = vpop.permute.xlu0 %1343
    %v1345 = vsel %vm170, %v1294, %v1296
    %v1346 = vsel %vm170, %v1296, %v1298
    %v1347 = vsel %vm170, %v1298, %v1300
    %v1348 = vsel %vm170, %v1300, %v1302
    %v1349 = vsel %vm170, %v1302, %v1304
    %v1350 = vsel %vm170, %v1304, %v1306
    %v1351 = vsel %vm170, %v1306, %v1308
    %v1352 = vsel %vm170, %v1308, %v1310
    %v1353 = vsel %vm170, %v1310, %v1312
    %v1354 = vsel %vm170, %v1312, %v1314
    %v1355 = vsel %vm170, %v1314, %v1316
    %v1356 = vsel %vm170, %v1316, %v1318
    %v1357 = vsel %vm170, %v1320, %v1322
    %v1358 = vsel %vm170, %v1322, %v1324
    %v1359 = vsel %vm170, %v1324, %v1326
    %v1360 = vsel %vm170, %v1326, %v1328
    %v1361 = vsel %vm170, %v1328, %v1330
    %v1362 = vsel %vm170, %v1330, %v1332
    %v1363 = vsel %vm170, %v1332, %v1334
    %v1364 = vsel %vm170, %v1334, %v1336
    %v1365 = vsel %vm170, %v1336, %v1338
    %v1366 = vsel %vm170, %v1338, %v1340
    %v1367 = vsel %vm170, %v1340, %v1342
    %v1368 = vsel %vm170, %v1342, %v1344
    %v1395 = vmax.f32 %v1241, %v1345
    %v1396 = vmax.f32 %v1242, %v1346
    %v1397 = vmax.f32 %v1243, %v1347
    %v1398 = vmax.f32 %v1244, %v1348
    %v1399 = vmax.f32 %v1245, %v1349
    %v1400 = vmax.f32 %v1246, %v1350
    %v1401 = vmax.f32 %v1247, %v1351
    %v1402 = vmax.f32 %v1248, %v1352
    %v1403 = vmax.f32 %v1249, %v1353
    %v1404 = vmax.f32 %v1250, %v1354
    %v1405 = vmax.f32 %v1251, %v1355
    %v1406 = vmax.f32 %v1252, %v1356
    %v1407 = vmax.f32 %v1253, %v1318
    %v1408 = vmax.f32 %v1254, %v1357
    %v1409 = vmax.f32 %v1255, %v1358
    %v1410 = vmax.f32 %v1256, %v1359
    %v1411 = vmax.f32 %v1257, %v1360
    %v1412 = vmax.f32 %v1258, %v1361
    %v1413 = vmax.f32 %v1259, %v1362
    %v1414 = vmax.f32 %v1260, %v1363
    %v1415 = vmax.f32 %v1261, %v1364
    %v1416 = vmax.f32 %v1262, %v1365
    %v1417 = vmax.f32 %v1263, %v1366
    %v1418 = vmax.f32 %v1264, %v1367
    %v1419 = vmax.f32 %v1265, %v1368
    %v1420 = vmax.f32 %v1266, %v1344
    %v1421 = vld [vmem:[%s1] sm:$0xff]
    %v1422 = vld [vmem:[%s1 + $0x8] sm:$0xff]
    %v1423 = vld [vmem:[%s1 + $0x10] sm:$0xff]
    %v1424 = vld [vmem:[%s1 + $0x18] sm:$0xff]
    %v1425 = vld [vmem:[%s1 + $0x20] sm:$0xff]
    %v1426 = vld [vmem:[%s1 + $0x28] sm:$0xff]
    %v1427 = vld [vmem:[%s1 + $0x30] sm:$0xff]
    %v1428 = vld [vmem:[%s1 + $0x38] sm:$0xff]
    %v1429 = vld [vmem:[%s1 + $0x40] sm:$0xff]
    %v1430 = vld [vmem:[%s1 + $0x48] sm:$0xff]
    %v1431 = vld [vmem:[%s1 + $0x50] sm:$0xff]
    %v1432 = vld [vmem:[%s1 + $0x58] sm:$0xff]
    %v1433 = vld [vmem:[%s1 + $0x60] sm:$0xff]
    %v1434 = vld [vmem:[%s1 + $0x68] sm:$0xff]
    %v1435 = vld [vmem:[%s1 + $0x70] sm:$0xff]
    %v1436 = vld [vmem:[%s1 + $0x78] sm:$0xff]
    %v1437 = vld [vmem:[%s1 + $0x80] sm:$0xff]
    %v1438 = vld [vmem:[%s1 + $0x88] sm:$0xff]
    %v1439 = vld [vmem:[%s1 + $0x90] sm:$0xff]
    %v1440 = vld [vmem:[%s1 + $0x98] sm:$0xff]
    %v1441 = vld [vmem:[%s1 + $0xa0] sm:$0xff]
    %v1442 = vld [vmem:[%s1 + $0xa8] sm:$0xff]
    %v1443 = vld [vmem:[%s1 + $0xb0] sm:$0xff]
    %v1444 = vld [vmem:[%s1 + $0xb8] sm:$0xff]
    %v1445 = vld [vmem:[%s1 + $0xc0] sm:$0xff]
    %v1446 = vld [vmem:[%s1 + $0xc8] sm:$0xff]
    %v1447 = vld [vmem:[%s1 + $0xd0] sm:$0xff]
    %v1448 = vld [vmem:[%s1 + $0xd8] sm:$0xff]
    %v1449 = vld [vmem:[%s1 + $0xe0] sm:$0xff]
    %v1450 = vld [vmem:[%s1 + $0xe8] sm:$0xff]
    %v1451 = vld [vmem:[%s1 + $0xf0] sm:$0xff]
    %v1452 = vld [vmem:[%s1 + $0xf8] sm:$0xff]
    %v1453 = vld [vmem:[%s1 + $0x100] sm:$0xff]
    %v1454 = vld [vmem:[%s1 + $0x108] sm:$0xff]
    %v1455 = vld [vmem:[%s1 + $0x110] sm:$0xff]
    %v1456 = vld [vmem:[%s1 + $0x118] sm:$0xff]
    %v1457 = vld [vmem:[%s1 + $0x120] sm:$0xff]
    %v1458 = vld [vmem:[%s1 + $0x128] sm:$0xff]
    %v1459 = vld [vmem:[%s1 + $0x130] sm:$0xff]
    %v1460 = vld [vmem:[%s1 + $0x138] sm:$0xff]
    %v1461 = vld [vmem:[%s1 + $0x140] sm:$0xff]
    %v1462 = vld [vmem:[%s1 + $0x148] sm:$0xff]
    %v1463 = vld [vmem:[%s1 + $0x150] sm:$0xff]
    %v1464 = vld [vmem:[%s1 + $0x158] sm:$0xff]
    %v1465 = vld [vmem:[%s1 + $0x160] sm:$0xff]
    %v1466 = vld [vmem:[%s1 + $0x168] sm:$0xff]
    %v1467 = vld [vmem:[%s1 + $0x170] sm:$0xff]
    %v1468 = vld [vmem:[%s1 + $0x178] sm:$0xff]
    %v1469 = vld [vmem:[%s1 + $0x180] sm:$0xff]
    %v1470 = vld [vmem:[%s1 + $0x188] sm:$0xff]
    %v1471 = vld [vmem:[%s1 + $0x190] sm:$0xff]
    %v1472 = vld [vmem:[%s1 + $0x198] sm:$0xff]
    %v1473 = vld [vmem:[%s1 + $0x1a0] sm:$0xff]
    %v1474 = vld [vmem:[%s1 + $0x1a8] sm:$0xff]
    %v1475 = vld [vmem:[%s1 + $0x1b0] sm:$0xff]
    %v1476 = vld [vmem:[%s1 + $0x1b8] sm:$0xff]
    %v1477 = vld [vmem:[%s1 + $0x1c0] sm:$0xff]
    %v1478 = vld [vmem:[%s1 + $0x1c8] sm:$0xff]
    %v1479 = vld [vmem:[%s1 + $0x1d0] sm:$0xff]
    %v1480 = vld [vmem:[%s1 + $0x1d8] sm:$0xff]
    %v1481 = vld [vmem:[%s1 + $0x1e0] sm:$0xff]
    %v1482 = vld [vmem:[%s1 + $0x1e8] sm:$0xff]
    %v1483 = vld [vmem:[%s1 + $0x1f0] sm:$0xff]
    %v1484 = vld [vmem:[%s1 + $0x1f8] sm:$0xff]
    %v1485 = vld [vmem:[%s1 + $0x200] sm:$0xff]
    %v1486 = vld [vmem:[%s1 + $0x208] sm:$0xff]
    %v1487 = vld [vmem:[%s1 + $0x210] sm:$0xff]
    %v1488 = vld [vmem:[%s1 + $0x218] sm:$0xff]
    %v1489 = vld [vmem:[%s1 + $0x220] sm:$0xff]
    %v1490 = vld [vmem:[%s1 + $0x228] sm:$0xff]
    %v1491 = vld [vmem:[%s1 + $0x230] sm:$0xff]
    %v1492 = vld [vmem:[%s1 + $0x238] sm:$0xff]
    %v1493 = vld [vmem:[%s1 + $0x240] sm:$0xff]
    %v1494 = vld [vmem:[%s1 + $0x248] sm:$0xff]
    %v1495 = vld [vmem:[%s1 + $0x250] sm:$0xff]
    %v1496 = vld [vmem:[%s1 + $0x258] sm:$0xff]
    %v1497 = vld [vmem:[%s1 + $0x260] sm:$0xff]
    %v1498 = vld [vmem:[%s1 + $0x268] sm:$0xff]
    %v1499 = vld [vmem:[%s1 + $0x270] sm:$0xff]
    %v1500 = vld [vmem:[%s1 + $0x278] sm:$0xff]
    %v1501 = vld [vmem:[%s1 + $0x280] sm:$0xff]
    %v1502 = vld [vmem:[%s1 + $0x288] sm:$0xff]
    %v1503 = vld [vmem:[%s1 + $0x290] sm:$0xff]
    %v1504 = vld [vmem:[%s1 + $0x298] sm:$0xff]
    %v1505 = vld [vmem:[%s1 + $0x2a0] sm:$0xff]
    %v1506 = vld [vmem:[%s1 + $0x2a8] sm:$0xff]
    %v1507 = vld [vmem:[%s1 + $0x2b0] sm:$0xff]
    %v1508 = vld [vmem:[%s1 + $0x2b8] sm:$0xff]
    %v1509 = vld [vmem:[%s1 + $0x2c0] sm:$0xff]
    %v1510 = vld [vmem:[%s1 + $0x2c8] sm:$0xff]
    %v1511 = vld [vmem:[%s1 + $0x2d0] sm:$0xff]
    %v1512 = vld [vmem:[%s1 + $0x2d8] sm:$0xff]
    %v1513 = vld [vmem:[%s1 + $0x2e0] sm:$0xff]
    %v1514 = vld [vmem:[%s1 + $0x2e8] sm:$0xff]
    %v1515 = vld [vmem:[%s1 + $0x2f0] sm:$0xff]
    %v1516 = vld [vmem:[%s1 + $0x2f8] sm:$0xff]
    %v1517 = vld [vmem:[%s1 + $0x300] sm:$0xff]
    %v1518 = vld [vmem:[%s1 + $0x308] sm:$0xff]
    %v1519 = vld [vmem:[%s1 + $0x310] sm:$0xff]
    %v1520 = vld [vmem:[%s1 + $0x318] sm:$0xff]
    %v1521 = vld [vmem:[%s1 + $0x320] sm:$0xff]
    %v1522 = vld [vmem:[%s1 + $0x328] sm:$0xff]
    %v1523 = vld [vmem:[%s1 + $0x330] sm:$0xff]
    %v1524 = vld [vmem:[%s1 + $0x338] sm:$0xff]
    %v1525 = vld [vmem:[%s1 + $0x340] sm:$0xff]
    %v1526 = vld [vmem:[%s1 + $0x348] sm:$0xff]
    %v1527 = vld [vmem:[%s1 + $0x350] sm:$0xff]
    %v1528 = vld [vmem:[%s1 + $0x358] sm:$0xff]
    %v1529 = vld [vmem:[%s1 + $0x360] sm:$0xff]
    %v1530 = vld [vmem:[%s1 + $0x368] sm:$0xff]
    %v1531 = vld [vmem:[%s1 + $0x370] sm:$0xff]
    %v1532 = vld [vmem:[%s1 + $0x378] sm:$0xff]
    %v1533 = vld [vmem:[%s1 + $0x380] sm:$0xff]
    %v1534 = vld [vmem:[%s1 + $0x388] sm:$0xff]
    %v1535 = vld [vmem:[%s1 + $0x390] sm:$0xff]
    %v1536 = vld [vmem:[%s1 + $0x398] sm:$0xff]
    %v1537 = vld [vmem:[%s1 + $0x3a0] sm:$0xff]
    %v1538 = vld [vmem:[%s1 + $0x3a8] sm:$0xff]
    %v1539 = vld [vmem:[%s1 + $0x3b0] sm:$0xff]
    %v1540 = vld [vmem:[%s1 + $0x3b8] sm:$0xff]
    %v1541 = vld [vmem:[%s1 + $0x3c0] sm:$0xff]
    %v1542 = vld [vmem:[%s1 + $0x3c8] sm:$0xff]
    %v1543 = vld [vmem:[%s1 + $0x3d0] sm:$0xff]
    %v1544 = vld [vmem:[%s1 + $0x3d8] sm:$0xff]
    %v1545 = vld [vmem:[%s1 + $0x3e0] sm:$0xff]
    %v1546 = vld [vmem:[%s1 + $0x3e8] sm:$0xff]
    %v1547 = vld [vmem:[%s1 + $0x3f0] sm:$0xff]
    %v1548 = vld [vmem:[%s1 + $0x3f8] sm:$0xff]
    %v1549 = vld [vmem:[%s1 + $0x400] sm:$0xff]
    %v1550 = vld [vmem:[%s1 + $0x408] sm:$0xff]
    %v1551 = vld [vmem:[%s1 + $0x410] sm:$0xff]
    %v1552 = vld [vmem:[%s1 + $0x418] sm:$0xff]
    %v1553 = vld [vmem:[%s1 + $0x420] sm:$0xff]
    %v1554 = vld [vmem:[%s1 + $0x428] sm:$0xff]
    %v1555 = vld [vmem:[%s1 + $0x430] sm:$0xff]
    %v1556 = vld [vmem:[%s1 + $0x438] sm:$0xff]
    %v1557 = vld [vmem:[%s1 + $0x440] sm:$0xff]
    %v1558 = vld [vmem:[%s1 + $0x448] sm:$0xff]
    %v1559 = vld [vmem:[%s1 + $0x450] sm:$0xff]
    %v1560 = vld [vmem:[%s1 + $0x458] sm:$0xff]
    %v1561 = vld [vmem:[%s1 + $0x460] sm:$0xff]
    %v1562 = vld [vmem:[%s1 + $0x468] sm:$0xff]
    %v1563 = vld [vmem:[%s1 + $0x470] sm:$0xff]
    %v1564 = vld [vmem:[%s1 + $0x478] sm:$0xff]
    %v1565 = vld [vmem:[%s1 + $0x480] sm:$0xff]
    %v1566 = vld [vmem:[%s1 + $0x488] sm:$0xff]
    %v1567 = vld [vmem:[%s1 + $0x490] sm:$0xff]
    %v1568 = vld [vmem:[%s1 + $0x498] sm:$0xff]
    %v1569 = vld [vmem:[%s1 + $0x4a0] sm:$0xff]
    %v1570 = vld [vmem:[%s1 + $0x4a8] sm:$0xff]
    %v1571 = vld [vmem:[%s1 + $0x4b0] sm:$0xff]
    %v1572 = vld [vmem:[%s1 + $0x4b8] sm:$0xff]
    %v1573 = vld [vmem:[%s1 + $0x4c0] sm:$0xff]
    %v1574 = vld [vmem:[%s1 + $0x4c8] sm:$0xff]
    %v1575 = vld [vmem:[%s1 + $0x4d0] sm:$0xff]
    %v1576 = vld [vmem:[%s1 + $0x4d8] sm:$0xff]
    %v1577 = vld [vmem:[%s1 + $0x4e0] sm:$0xff]
    %v1578 = vld [vmem:[%s1 + $0x4e8] sm:$0xff]
    %v1579 = vld [vmem:[%s1 + $0x4f0] sm:$0xff]
    %v1580 = vld [vmem:[%s1 + $0x4f8] sm:$0xff]
    %v1581 = vld [vmem:[%s1 + $0x500] sm:$0xff]
    %v1582 = vld [vmem:[%s1 + $0x508] sm:$0xff]
    %v1583 = vld [vmem:[%s1 + $0x510] sm:$0xff]
    %v1584 = vld [vmem:[%s1 + $0x518] sm:$0xff]
    %v1585 = vld [vmem:[%s1 + $0x520] sm:$0xff]
    %v1586 = vld [vmem:[%s1 + $0x528] sm:$0xff]
    %v1587 = vld [vmem:[%s1 + $0x530] sm:$0xff]
    %v1588 = vld [vmem:[%s1 + $0x538] sm:$0xff]
    %v1589 = vld [vmem:[%s1 + $0x540] sm:$0xff]
    %v1590 = vld [vmem:[%s1 + $0x548] sm:$0xff]
    %v1591 = vld [vmem:[%s1 + $0x550] sm:$0xff]
    %v1592 = vld [vmem:[%s1 + $0x558] sm:$0xff]
    %v1593 = vld [vmem:[%s1 + $0x560] sm:$0xff]
    %v1594 = vld [vmem:[%s1 + $0x568] sm:$0xff]
    %v1595 = vld [vmem:[%s1 + $0x570] sm:$0xff]
    %v1596 = vld [vmem:[%s1 + $0x578] sm:$0xff]
    %v1597 = vld [vmem:[%s1 + $0x580] sm:$0xff]
    %v1598 = vld [vmem:[%s1 + $0x588] sm:$0xff]
    %v1599 = vld [vmem:[%s1 + $0x590] sm:$0xff]
    %v1600 = vld [vmem:[%s1 + $0x598] sm:$0xff]
    %v1601 = vld [vmem:[%s1 + $0x5a0] sm:$0xff]
    %v1602 = vld [vmem:[%s1 + $0x5a8] sm:$0xff]
    %v1603 = vld [vmem:[%s1 + $0x5b0] sm:$0xff]
    %v1604 = vld [vmem:[%s1 + $0x5b8] sm:$0xff]
    %v1605 = vld [vmem:[%s1 + $0x5c0] sm:$0xff]
    %v1606 = vld [vmem:[%s1 + $0x5c8] sm:$0xff]
    %v1607 = vld [vmem:[%s1 + $0x5d0] sm:$0xff]
    %v1608 = vld [vmem:[%s1 + $0x5d8] sm:$0xff]
    %v1609 = vld [vmem:[%s1 + $0x5e0] sm:$0xff]
    %v1610 = vld [vmem:[%s1 + $0x5e8] sm:$0xff]
    %v1611 = vld [vmem:[%s1 + $0x5f0] sm:$0xff]
    %v1612 = vld [vmem:[%s1 + $0x5f8] sm:$0xff]
    %v1613 = vld [vmem:[%s1 + $0x600] sm:$0xff]
    %v1614 = vld [vmem:[%s1 + $0x608] sm:$0xff]
    %v1615 = vld [vmem:[%s1 + $0x610] sm:$0xff]
    %v1616 = vld [vmem:[%s1 + $0x618] sm:$0xff]
    %v1617 = vld [vmem:[%s1 + $0x620] sm:$0xff]
    %v1618 = vld [vmem:[%s1 + $0x628] sm:$0xff]
    %v1619 = vld [vmem:[%s1 + $0x630] sm:$0xff]
    %v1620 = vld [vmem:[%s1 + $0x638] sm:$0xff]
    %v1621 = vld [vmem:[%s1 + $0x640] sm:$0xff]
    %v1622 = vld [vmem:[%s1 + $0x648] sm:$0xff]
    %v1623 = vld [vmem:[%s1 + $0x650] sm:$0xff]
    %v1624 = vld [vmem:[%s1 + $0x658] sm:$0xff]
    %v1625 = vld [vmem:[%s1 + $0x660] sm:$0xff]
    %v1626 = vld [vmem:[%s1 + $0x668] sm:$0xff]
    %v1627 = vld [vmem:[%s1 + $0x670] sm:$0xff]
    %v1628 = vld [vmem:[%s1 + $0x678] sm:$0xff]
    %v1629 = vld [vmem:[%s1 + $0x680] sm:$0xff]
    %v1630 = vld [vmem:[%s1 + $0x688] sm:$0xff]
    %v1631 = vld [vmem:[%s1 + $0x690] sm:$0xff]
    %v1632 = vld [vmem:[%s1 + $0x698] sm:$0xff]
    %v1633 = vld [vmem:[%s1 + $0x6a0] sm:$0xff]
    %v1634 = vld [vmem:[%s1 + $0x6a8] sm:$0xff]
    %v1635 = vld [vmem:[%s1 + $0x6b0] sm:$0xff]
    %v1636 = vld [vmem:[%s1 + $0x6b8] sm:$0xff]
    %v1637 = vld [vmem:[%s1 + $0x6c0] sm:$0xff]
    %v1638 = vld [vmem:[%s1 + $0x6c8] sm:$0xff]
    %v1639 = vld [vmem:[%s1 + $0x6d0] sm:$0xff]
    %v1640 = vld [vmem:[%s1 + $0x6d8] sm:$0xff]
    %v1641 = vld [vmem:[%s1 + $0x6e0] sm:$0xff]
    %v1642 = vld [vmem:[%s1 + $0x6e8] sm:$0xff]
    %v1643 = vld [vmem:[%s1 + $0x6f0] sm:$0xff]
    %v1644 = vld [vmem:[%s1 + $0x6f8] sm:$0xff]
    %v1645 = vld [vmem:[%s1 + $0x700] sm:$0xff]
    %v1646 = vld [vmem:[%s1 + $0x708] sm:$0xff]
    %v1647 = vld [vmem:[%s1 + $0x710] sm:$0xff]
    %v1648 = vld [vmem:[%s1 + $0x718] sm:$0xff]
    %v1649 = vld [vmem:[%s1 + $0x720] sm:$0xff]
    %v1650 = vld [vmem:[%s1 + $0x728] sm:$0xff]
    %v1651 = vld [vmem:[%s1 + $0x730] sm:$0xff]
    %v1652 = vld [vmem:[%s1 + $0x738] sm:$0xff]
    %v1653 = vld [vmem:[%s1 + $0x740] sm:$0xff]
    %v1654 = vld [vmem:[%s1 + $0x748] sm:$0xff]
    %v1655 = vld [vmem:[%s1 + $0x750] sm:$0xff]
    %v1656 = vld [vmem:[%s1 + $0x758] sm:$0xff]
    %v1657 = vld [vmem:[%s1 + $0x760] sm:$0xff]
    %v1658 = vld [vmem:[%s1 + $0x768] sm:$0xff]
    %v1659 = vld [vmem:[%s1 + $0x770] sm:$0xff]
    %v1660 = vld [vmem:[%s1 + $0x778] sm:$0xff]
    %v1661 = vld [vmem:[%s1 + $0x780] sm:$0xff]
    %v1662 = vld [vmem:[%s1 + $0x788] sm:$0xff]
    %v1663 = vld [vmem:[%s1 + $0x790] sm:$0xff]
    %v1664 = vld [vmem:[%s1 + $0x798] sm:$0xff]
    %v1665 = vld [vmem:[%s1 + $0x7a0] sm:$0xff]
    %v1666 = vld [vmem:[%s1 + $0x7a8] sm:$0xff]
    %v1667 = vld [vmem:[%s1 + $0x7b0] sm:$0xff]
    %v1668 = vld [vmem:[%s1 + $0x7b8] sm:$0xff]
    %v1669 = vld [vmem:[%s1 + $0x7c0] sm:$0xff]
    %v1670 = vld [vmem:[%s1 + $0x7c8] sm:$0xff]
    %v1671 = vld [vmem:[%s1 + $0x7d0] sm:$0xff]
    %v1672 = vld [vmem:[%s1 + $0x7d8] sm:$0xff]
    %v1673 = vld [vmem:[%s1 + $0x7e0] sm:$0xff]
    %v1674 = vld [vmem:[%s1 + $0x7e8] sm:$0xff]
    %v1675 = vld [vmem:[%s1 + $0x7f0] sm:$0xff]
    %v1676 = vld [vmem:[%s1 + $0x7f8] sm:$0xff]
    %v1677 = vld [vmem:[%s1 + $0x800] sm:$0xff]
    %v1678 = vld [vmem:[%s1 + $0x808] sm:$0xff]
    %v1679 = vld [vmem:[%s1 + $0x810] sm:$0xff]
    %v1680 = vld [vmem:[%s1 + $0x818] sm:$0xff]
    %v1681 = vld [vmem:[%s1 + $0x820] sm:$0xff]
    %v1682 = vld [vmem:[%s1 + $0x828] sm:$0xff]
    %v1683 = vld [vmem:[%s1 + $0x830] sm:$0xff]
    %v1684 = vld [vmem:[%s1 + $0x838] sm:$0xff]
    %v1685 = vld [vmem:[%s1 + $0x840] sm:$0xff]
    %v1686 = vld [vmem:[%s1 + $0x848] sm:$0xff]
    %v1687 = vld [vmem:[%s1 + $0x850] sm:$0xff]
    %v1688 = vld [vmem:[%s1 + $0x858] sm:$0xff]
    %v1689 = vld [vmem:[%s1 + $0x860] sm:$0xff]
    %v1690 = vld [vmem:[%s1 + $0x868] sm:$0xff]
    %v1691 = vld [vmem:[%s1 + $0x870] sm:$0xff]
    %v1692 = vld [vmem:[%s1 + $0x878] sm:$0xff]
    %v1693 = vld [vmem:[%s1 + $0x880] sm:$0xff]
    %v1694 = vld [vmem:[%s1 + $0x888] sm:$0xff]
    %v1695 = vld [vmem:[%s1 + $0x890] sm:$0xff]
    %v1696 = vld [vmem:[%s1 + $0x898] sm:$0xff]
    %v1697 = vld [vmem:[%s1 + $0x8a0] sm:$0xff]
    %v1698 = vld [vmem:[%s1 + $0x8a8] sm:$0xff]
    %v1699 = vld [vmem:[%s1 + $0x8b0] sm:$0xff]
    %v1700 = vld [vmem:[%s1 + $0x8b8] sm:$0xff]
    %v1701 = vld [vmem:[%s1 + $0x8c0] sm:$0xff]
    %v1702 = vld [vmem:[%s1 + $0x8c8] sm:$0xff]
    %v1703 = vld [vmem:[%s1 + $0x8d0] sm:$0xff]
    %v1704 = vld [vmem:[%s1 + $0x8d8] sm:$0xff]
    %v1705 = vld [vmem:[%s1 + $0x8e0] sm:$0xff]
    %v1706 = vld [vmem:[%s1 + $0x8e8] sm:$0xff]
    %v1707 = vld [vmem:[%s1 + $0x8f0] sm:$0xff]
    %v1708 = vld [vmem:[%s1 + $0x8f8] sm:$0xff]
    %v1709 = vld [vmem:[%s1 + $0x900] sm:$0xff]
    %v1710 = vld [vmem:[%s1 + $0x908] sm:$0xff]
    %v1711 = vld [vmem:[%s1 + $0x910] sm:$0xff]
    %v1712 = vld [vmem:[%s1 + $0x918] sm:$0xff]
    %v1713 = vld [vmem:[%s1 + $0x920] sm:$0xff]
    %v1714 = vld [vmem:[%s1 + $0x928] sm:$0xff]
    %v1715 = vld [vmem:[%s1 + $0x930] sm:$0xff]
    %v1716 = vld [vmem:[%s1 + $0x938] sm:$0xff]
    %v1717 = vld [vmem:[%s1 + $0x940] sm:$0xff]
    %v1718 = vld [vmem:[%s1 + $0x948] sm:$0xff]
    %v1719 = vld [vmem:[%s1 + $0x950] sm:$0xff]
    %v1720 = vld [vmem:[%s1 + $0x958] sm:$0xff]
    %v1721 = vld [vmem:[%s1 + $0x960] sm:$0xff]
    %v1722 = vld [vmem:[%s1 + $0x968] sm:$0xff]
    %v1723 = vld [vmem:[%s1 + $0x970] sm:$0xff]
    %v1724 = vld [vmem:[%s1 + $0x978] sm:$0xff]
    %v1725 = vld [vmem:[%s1 + $0x980] sm:$0xff]
    %v1726 = vld [vmem:[%s1 + $0x988] sm:$0xff]
    %v1727 = vld [vmem:[%s1 + $0x990] sm:$0xff]
    %v1728 = vld [vmem:[%s1 + $0x998] sm:$0xff]
    %v1729 = vld [vmem:[%s1 + $0x9a0] sm:$0xff]
    %v1730 = vld [vmem:[%s1 + $0x9a8] sm:$0xff]
    %v1731 = vld [vmem:[%s1 + $0x9b0] sm:$0xff]
    %v1732 = vld [vmem:[%s1 + $0x9b8] sm:$0xff]
    %v1733 = vld [vmem:[%s1 + $0x9c0] sm:$0xff]
    %v1734 = vld [vmem:[%s1 + $0x9c8] sm:$0xff]
    %v1735 = vld [vmem:[%s1 + $0x9d0] sm:$0xff]
    %v1736 = vld [vmem:[%s1 + $0x9d8] sm:$0xff]
    %v1737 = vld [vmem:[%s1 + $0x9e0] sm:$0xff]
    %v1738 = vld [vmem:[%s1 + $0x9e8] sm:$0xff]
    %v1739 = vld [vmem:[%s1 + $0x9f0] sm:$0xff]
    %v1740 = vld [vmem:[%s1 + $0x9f8] sm:$0xff]
    %v1741 = vld [vmem:[%s1 + $0xa00] sm:$0xff]
    %v1742 = vld [vmem:[%s1 + $0xa08] sm:$0xff]
    %v1743 = vld [vmem:[%s1 + $0xa10] sm:$0xff]
    %v1744 = vld [vmem:[%s1 + $0xa18] sm:$0xff]
    %v1745 = vld [vmem:[%s1 + $0xa20] sm:$0xff]
    %v1746 = vld [vmem:[%s1 + $0xa28] sm:$0xff]
    %v1747 = vld [vmem:[%s1 + $0xa30] sm:$0xff]
    %v1748 = vld [vmem:[%s1 + $0xa38] sm:$0xff]
    %v1749 = vld [vmem:[%s1 + $0xa40] sm:$0xff]
    %v1750 = vld [vmem:[%s1 + $0xa48] sm:$0xff]
    %v1751 = vld [vmem:[%s1 + $0xa50] sm:$0xff]
    %v1752 = vld [vmem:[%s1 + $0xa58] sm:$0xff]
    %v1753 = vld [vmem:[%s1 + $0xa60] sm:$0xff]
    %v1754 = vld [vmem:[%s1 + $0xa68] sm:$0xff]
    %v1755 = vld [vmem:[%s1 + $0xa70] sm:$0xff]
    %v1756 = vld [vmem:[%s1 + $0xa78] sm:$0xff]
    %v1757 = vld [vmem:[%s1 + $0xa80] sm:$0xff]
    %v1758 = vld [vmem:[%s1 + $0xa88] sm:$0xff]
    %v1759 = vld [vmem:[%s1 + $0xa90] sm:$0xff]
    %v1760 = vld [vmem:[%s1 + $0xa98] sm:$0xff]
    %v1761 = vld [vmem:[%s1 + $0xaa0] sm:$0xff]
    %v1762 = vld [vmem:[%s1 + $0xaa8] sm:$0xff]
    %v1763 = vld [vmem:[%s1 + $0xab0] sm:$0xff]
    %v1764 = vld [vmem:[%s1 + $0xab8] sm:$0xff]
    %v1765 = vld [vmem:[%s1 + $0xac0] sm:$0xff]
    %v1766 = vld [vmem:[%s1 + $0xac8] sm:$0xff]
    %v1767 = vld [vmem:[%s1 + $0xad0] sm:$0xff]
    %v1768 = vld [vmem:[%s1 + $0xad8] sm:$0xff]
    %v1769 = vld [vmem:[%s1 + $0xae0] sm:$0xff]
    %v1770 = vld [vmem:[%s1 + $0xae8] sm:$0xff]
    %v1771 = vld [vmem:[%s1 + $0xaf0] sm:$0xff]
    %v1772 = vld [vmem:[%s1 + $0xaf8] sm:$0xff]
    %v1773 = vld [vmem:[%s1 + $0xb00] sm:$0xff]
    %v1774 = vld [vmem:[%s1 + $0xb08] sm:$0xff]
    %v1775 = vld [vmem:[%s1 + $0xb10] sm:$0xff]
    %v1776 = vld [vmem:[%s1 + $0xb18] sm:$0xff]
    %v1777 = vld [vmem:[%s1 + $0xb20] sm:$0xff]
    %v1778 = vld [vmem:[%s1 + $0xb28] sm:$0xff]
    %v1779 = vld [vmem:[%s1 + $0xb30] sm:$0xff]
    %v1780 = vld [vmem:[%s1 + $0xb38] sm:$0xff]
    %v1781 = vld [vmem:[%s1 + $0xb40] sm:$0xff]
    %v1782 = vld [vmem:[%s1 + $0xb48] sm:$0xff]
    %v1783 = vld [vmem:[%s1 + $0xb50] sm:$0xff]
    %v1784 = vld [vmem:[%s1 + $0xb58] sm:$0xff]
    %v1785 = vld [vmem:[%s1 + $0xb60] sm:$0xff]
    %v1786 = vld [vmem:[%s1 + $0xb68] sm:$0xff]
    %v1787 = vld [vmem:[%s1 + $0xb70] sm:$0xff]
    %v1788 = vld [vmem:[%s1 + $0xb78] sm:$0xff]
    %v1789 = vld [vmem:[%s1 + $0xb80] sm:$0xff]
    %v1790 = vld [vmem:[%s1 + $0xb88] sm:$0xff]
    %v1791 = vld [vmem:[%s1 + $0xb90] sm:$0xff]
    %v1792 = vld [vmem:[%s1 + $0xb98] sm:$0xff]
    %v1793 = vld [vmem:[%s1 + $0xba0] sm:$0xff]
    %v1794 = vld [vmem:[%s1 + $0xba8] sm:$0xff]
    %v1795 = vld [vmem:[%s1 + $0xbb0] sm:$0xff]
    %v1796 = vld [vmem:[%s1 + $0xbb8] sm:$0xff]
    %v1797 = vld [vmem:[%s1 + $0xbc0] sm:$0xff]
    %v1798 = vld [vmem:[%s1 + $0xbc8] sm:$0xff]
    %v1799 = vld [vmem:[%s1 + $0xbd0] sm:$0xff]
    %v1800 = vld [vmem:[%s1 + $0xbd8] sm:$0xff]
    %v1801 = vld [vmem:[%s1 + $0xbe0] sm:$0xff]
    %v1802 = vld [vmem:[%s1 + $0xbe8] sm:$0xff]
    %v1803 = vld [vmem:[%s1 + $0xbf0] sm:$0xff]
    %v1804 = vld [vmem:[%s1 + $0xbf8] sm:$0xff]
    %v1805 = vld [vmem:[%s1 + $0xc00] sm:$0xff]
    %v1806 = vld [vmem:[%s1 + $0xc08] sm:$0xff]
    %v1807 = vld [vmem:[%s1 + $0xc10] sm:$0xff]
    %v1808 = vld [vmem:[%s1 + $0xc18] sm:$0xff]
    %v1809 = vld [vmem:[%s1 + $0xc20] sm:$0xff]
    %v1810 = vld [vmem:[%s1 + $0xc28] sm:$0xff]
    %v1811 = vld [vmem:[%s1 + $0xc30] sm:$0xff]
    %v1812 = vld [vmem:[%s1 + $0xc38] sm:$0xff]
    %v1813 = vld [vmem:[%s1 + $0xc40] sm:$0xff]
    %v1814 = vld [vmem:[%s1 + $0xc48] sm:$0xff]
    %v1815 = vld [vmem:[%s1 + $0xc50] sm:$0xff]
    %v1816 = vld [vmem:[%s1 + $0xc58] sm:$0xff]
    %v1817 = vld [vmem:[%s1 + $0xc60] sm:$0xff]
    %v1818 = vld [vmem:[%s1 + $0xc68] sm:$0xff]
    %v1819 = vld [vmem:[%s1 + $0xc70] sm:$0xff]
    %v1820 = vld [vmem:[%s1 + $0xc78] sm:$0xff]
    %v1821 = vld [vmem:[%s1 + $0xc80] sm:$0xff]
    %v1822 = vld [vmem:[%s1 + $0xc88] sm:$0xff]
    %v1823 = vld [vmem:[%s1 + $0xc90] sm:$0xff]
    %v1824 = vld [vmem:[%s1 + $0xc98] sm:$0xff]
    %v1825 = vld [vmem:[%s1 + $0xca0] sm:$0xff]
    %v1826 = vld [vmem:[%s1 + $0xca8] sm:$0xff]
    %v1827 = vld [vmem:[%s1 + $0xcb0] sm:$0xff]
    %v1828 = vld [vmem:[%s1 + $0xcb8] sm:$0xff]
    %v1829 = vld [vmem:[%s1 + $0xcc0] sm:$0xff]
    %v1830 = vld [vmem:[%s1 + $0xcc8] sm:$0xff]
    %v1831 = vld [vmem:[%s1 + $0xcd0] sm:$0xff]
    %v1832 = vld [vmem:[%s1 + $0xcd8] sm:$0xff]
    %v1833 = vld [vmem:[%s1 + $0xce0] sm:$0xff]
    %v1834 = vld [vmem:[%s1 + $0xce8] sm:$0xff]
    %v1835 = vld [vmem:[%s1 + $0xcf0] sm:$0xff]
    %v1836 = vld [vmem:[%s1 + $0xcf8] sm:$0xff]
    %v1837 = vld [vmem:[%s1 + $0xd00] sm:$0xff]
    %v1838 = vld [vmem:[%s1 + $0xd08] sm:$0xff]
    %v1839 = vld [vmem:[%s1 + $0xd10] sm:$0xff]
    %v1840 = vld [vmem:[%s1 + $0xd18] sm:$0xff]
    %v1841 = vld [vmem:[%s1 + $0xd20] sm:$0xff]
    %v1842 = vld [vmem:[%s1 + $0xd28] sm:$0xff]
    %v1843 = vld [vmem:[%s1 + $0xd30] sm:$0xff]
    %v1844 = vld [vmem:[%s1 + $0xd38] sm:$0xff]
    %v1845 = vld [vmem:[%s1 + $0xd40] sm:$0xff]
    %v1846 = vld [vmem:[%s1 + $0xd48] sm:$0xff]
    %v1847 = vld [vmem:[%s1 + $0xd50] sm:$0xff]
    %v1848 = vld [vmem:[%s1 + $0xd58] sm:$0xff]
    %v1849 = vld [vmem:[%s1 + $0xd60] sm:$0xff]
    %v1850 = vld [vmem:[%s1 + $0xd68] sm:$0xff]
    %v1851 = vld [vmem:[%s1 + $0xd70] sm:$0xff]
    %v1852 = vld [vmem:[%s1 + $0xd78] sm:$0xff]
    %v1853 = vld [vmem:[%s1 + $0xd80] sm:$0xff]
    %v1854 = vld [vmem:[%s1 + $0xd88] sm:$0xff]
    %v1855 = vld [vmem:[%s1 + $0xd90] sm:$0xff]
    %v1856 = vld [vmem:[%s1 + $0xd98] sm:$0xff]
    %v1857 = vld [vmem:[%s1 + $0xda0] sm:$0xff]
    %v1858 = vld [vmem:[%s1 + $0xda8] sm:$0xff]
    %v1859 = vld [vmem:[%s1 + $0xdb0] sm:$0xff]
    %v1860 = vld [vmem:[%s1 + $0xdb8] sm:$0xff]
    %v1861 = vld [vmem:[%s1 + $0xdc0] sm:$0xff]
    %v1862 = vld [vmem:[%s1 + $0xdc8] sm:$0xff]
    %v1863 = vld [vmem:[%s1 + $0xdd0] sm:$0xff]
    %v1864 = vld [vmem:[%s1 + $0xdd8] sm:$0xff]
    %v1865 = vld [vmem:[%s1 + $0xde0] sm:$0xff]
    %v1866 = vld [vmem:[%s1 + $0xde8] sm:$0xff]
    %v1867 = vld [vmem:[%s1 + $0xdf0] sm:$0xff]
    %v1868 = vld [vmem:[%s1 + $0xdf8] sm:$0xff]
    %v1869 = vld [vmem:[%s1 + $0xe00] sm:$0xff]
    %v1870 = vld [vmem:[%s1 + $0xe08] sm:$0xff]
    %v1871 = vld [vmem:[%s1 + $0xe10] sm:$0xff]
    %v1872 = vld [vmem:[%s1 + $0xe18] sm:$0xff]
    %v1873 = vld [vmem:[%s1 + $0xe20] sm:$0xff]
    %v1874 = vld [vmem:[%s1 + $0xe28] sm:$0xff]
    %v1875 = vld [vmem:[%s1 + $0xe30] sm:$0xff]
    %v1876 = vld [vmem:[%s1 + $0xe38] sm:$0xff]
    %v1877 = vld [vmem:[%s1 + $0xe40] sm:$0xff]
    %v1878 = vld [vmem:[%s1 + $0xe48] sm:$0xff]
    %v1879 = vld [vmem:[%s1 + $0xe50] sm:$0xff]
    %v1880 = vld [vmem:[%s1 + $0xe58] sm:$0xff]
    %v1881 = vld [vmem:[%s1 + $0xe60] sm:$0xff]
    %v1882 = vld [vmem:[%s1 + $0xe68] sm:$0xff]
    %v1883 = vld [vmem:[%s1 + $0xe70] sm:$0xff]
    %v1884 = vld [vmem:[%s1 + $0xe78] sm:$0xff]
    %v1885 = vld [vmem:[%s1 + $0xe80] sm:$0xff]
    %v1886 = vld [vmem:[%s1 + $0xe88] sm:$0xff]
    %v1887 = vld [vmem:[%s1 + $0xe90] sm:$0xff]
    %v1888 = vld [vmem:[%s1 + $0xe98] sm:$0xff]
    %v1889 = vld [vmem:[%s1 + $0xea0] sm:$0xff]
    %v1890 = vld [vmem:[%s1 + $0xea8] sm:$0xff]
    %v1891 = vld [vmem:[%s1 + $0xeb0] sm:$0xff]
    %v1892 = vld [vmem:[%s1 + $0xeb8] sm:$0xff]
    %v1893 = vld [vmem:[%s1 + $0xec0] sm:$0xff]
    %v1894 = vld [vmem:[%s1 + $0xec8] sm:$0xff]
    %v1895 = vld [vmem:[%s1 + $0xed0] sm:$0xff]
    %v1896 = vld [vmem:[%s1 + $0xed8] sm:$0xff]
    %v1897 = vld [vmem:[%s1 + $0xee0] sm:$0xff]
    %v1898 = vld [vmem:[%s1 + $0xee8] sm:$0xff]
    %v1899 = vld [vmem:[%s1 + $0xef0] sm:$0xff]
    %v1900 = vld [vmem:[%s1 + $0xef8] sm:$0xff]
    %v1901 = vld [vmem:[%s1 + $0xf00] sm:$0xff]
    %v1902 = vld [vmem:[%s1 + $0xf08] sm:$0xff]
    %v1903 = vld [vmem:[%s1 + $0xf10] sm:$0xff]
    %v1904 = vld [vmem:[%s1 + $0xf18] sm:$0xff]
    %v1905 = vld [vmem:[%s1 + $0xf20] sm:$0xff]
    %v1906 = vld [vmem:[%s1 + $0xf28] sm:$0xff]
    %v1907 = vld [vmem:[%s1 + $0xf30] sm:$0xff]
    %v1908 = vld [vmem:[%s1 + $0xf38] sm:$0xff]
    %v1909 = vld [vmem:[%s1 + $0xf40] sm:$0xff]
    %v1910 = vld [vmem:[%s1 + $0xf48] sm:$0xff]
    %v1911 = vld [vmem:[%s1 + $0xf50] sm:$0xff]
    %v1912 = vld [vmem:[%s1 + $0xf58] sm:$0xff]
    %v1913 = vld [vmem:[%s1 + $0xf60] sm:$0xff]
    %v1914 = vld [vmem:[%s1 + $0xf68] sm:$0xff]
    %v1915 = vld [vmem:[%s1 + $0xf70] sm:$0xff]
    %v1916 = vld [vmem:[%s1 + $0xf78] sm:$0xff]
    %v1917 = vld [vmem:[%s1 + $0xf80] sm:$0xff]
    %v1918 = vld [vmem:[%s1 + $0xf88] sm:$0xff]
    %v1919 = vld [vmem:[%s1 + $0xf90] sm:$0xff]
    %v1920 = vld [vmem:[%s1 + $0xf98] sm:$0xff]
    %v1921 = vld [vmem:[%s1 + $0xfa0] sm:$0xff]
    %v1922 = vld [vmem:[%s1 + $0xfa8] sm:$0xff]
    %v1923 = vld [vmem:[%s1 + $0xfb0] sm:$0xff]
    %v1924 = vld [vmem:[%s1 + $0xfb8] sm:$0xff]
    %v1925 = vld [vmem:[%s1 + $0xfc0] sm:$0xff]
    %v1926 = vld [vmem:[%s1 + $0xfc8] sm:$0xff]
    %v1927 = vld [vmem:[%s1 + $0xfd0] sm:$0xff]
    %v1928 = vld [vmem:[%s1 + $0xfd8] sm:$0xff]
    %v1929 = vld [vmem:[%s1 + $0xfe0] sm:$0xff]
    %v1930 = vld [vmem:[%s1 + $0xfe8] sm:$0xff]
    %v1931 = vld [vmem:[%s1 + $0xff0] sm:$0xff]
    %v1932 = vld [vmem:[%s1 + $0xff8] sm:$0xff]
    %v1933 = vld [vmem:[%s1 + $0x1000] sm:$0xff]
    %v1934 = vld [vmem:[%s1 + $0x1008] sm:$0xff]
    %v1935 = vld [vmem:[%s1 + $0x1010] sm:$0xff]
    %v1936 = vld [vmem:[%s1 + $0x1018] sm:$0xff]
    %v1937 = vld [vmem:[%s1 + $0x1020] sm:$0xff]
    %v1938 = vld [vmem:[%s1 + $0x1028] sm:$0xff]
    %v1939 = vld [vmem:[%s1 + $0x1030] sm:$0xff]
    %v1940 = vld [vmem:[%s1 + $0x1038] sm:$0xff]
    %v1941 = vld [vmem:[%s1 + $0x1040] sm:$0xff]
    %v1942 = vld [vmem:[%s1 + $0x1048] sm:$0xff]
    %v1943 = vld [vmem:[%s1 + $0x1050] sm:$0xff]
    %v1944 = vld [vmem:[%s1 + $0x1058] sm:$0xff]
    %v1945 = vld [vmem:[%s1 + $0x1060] sm:$0xff]
    %v1946 = vld [vmem:[%s1 + $0x1068] sm:$0xff]
    %v1947 = vld [vmem:[%s1 + $0x1070] sm:$0xff]
    %v1948 = vld [vmem:[%s1 + $0x1078] sm:$0xff]
    %v1949 = vld [vmem:[%s1 + $0x1080] sm:$0xff]
    %v1950 = vld [vmem:[%s1 + $0x1088] sm:$0xff]
    %v1951 = vld [vmem:[%s1 + $0x1090] sm:$0xff]
    %v1952 = vld [vmem:[%s1 + $0x1098] sm:$0xff]
    %v1953 = vld [vmem:[%s1 + $0x10a0] sm:$0xff]
    %v1954 = vld [vmem:[%s1 + $0x10a8] sm:$0xff]
    %v1955 = vld [vmem:[%s1 + $0x10b0] sm:$0xff]
    %v1956 = vld [vmem:[%s1 + $0x10b8] sm:$0xff]
    %v1957 = vld [vmem:[%s1 + $0x10c0] sm:$0xff]
    %v1958 = vld [vmem:[%s1 + $0x10c8] sm:$0xff]
    %v1959 = vld [vmem:[%s1 + $0x10d0] sm:$0xff]
    %v1960 = vld [vmem:[%s1 + $0x10d8] sm:$0xff]
    %v1961 = vld [vmem:[%s1 + $0x10e0] sm:$0xff]
    %v1962 = vld [vmem:[%s1 + $0x10e8] sm:$0xff]
    %v1963 = vld [vmem:[%s1 + $0x10f0] sm:$0xff]
    %v1964 = vld [vmem:[%s1 + $0x10f8] sm:$0xff]
    %v1965 = vld [vmem:[%s1 + $0x1100] sm:$0xff]
    %v1966 = vld [vmem:[%s1 + $0x1108] sm:$0xff]
    %v1967 = vld [vmem:[%s1 + $0x1110] sm:$0xff]
    %v1968 = vld [vmem:[%s1 + $0x1118] sm:$0xff]
    %v1969 = vld [vmem:[%s1 + $0x1120] sm:$0xff]
    %v1970 = vld [vmem:[%s1 + $0x1128] sm:$0xff]
    %v1971 = vld [vmem:[%s1 + $0x1130] sm:$0xff]
    %v1972 = vld [vmem:[%s1 + $0x1138] sm:$0xff]
    %v1973 = vld [vmem:[%s1 + $0x1140] sm:$0xff]
    %v1974 = vld [vmem:[%s1 + $0x1148] sm:$0xff]
    %v1975 = vld [vmem:[%s1 + $0x1150] sm:$0xff]
    %v1976 = vld [vmem:[%s1 + $0x1158] sm:$0xff]
    %v1977 = vld [vmem:[%s1 + $0x1160] sm:$0xff]
    %v1978 = vld [vmem:[%s1 + $0x1168] sm:$0xff]
    %v1979 = vld [vmem:[%s1 + $0x1170] sm:$0xff]
    %v1980 = vld [vmem:[%s1 + $0x1178] sm:$0xff]
    %v1981 = vld [vmem:[%s1 + $0x1180] sm:$0xff]
    %v1982 = vld [vmem:[%s1 + $0x1188] sm:$0xff]
    %v1983 = vld [vmem:[%s1 + $0x1190] sm:$0xff]
    %v1984 = vld [vmem:[%s1 + $0x1198] sm:$0xff]
    %v1985 = vld [vmem:[%s1 + $0x11a0] sm:$0xff]
    %v1986 = vld [vmem:[%s1 + $0x11a8] sm:$0xff]
    %v1987 = vld [vmem:[%s1 + $0x11b0] sm:$0xff]
    %v1988 = vld [vmem:[%s1 + $0x11b8] sm:$0xff]
    %v1989 = vld [vmem:[%s1 + $0x11c0] sm:$0xff]
    %v1990 = vld [vmem:[%s1 + $0x11c8] sm:$0xff]
    %v1991 = vld [vmem:[%s1 + $0x11d0] sm:$0xff]
    %v1992 = vld [vmem:[%s1 + $0x11d8] sm:$0xff]
    %v1993 = vld [vmem:[%s1 + $0x11e0] sm:$0xff]
    %v1994 = vld [vmem:[%s1 + $0x11e8] sm:$0xff]
    %v1995 = vld [vmem:[%s1 + $0x11f0] sm:$0xff]
    %v1996 = vld [vmem:[%s1 + $0x11f8] sm:$0xff]
    %v1997 = vld [vmem:[%s1 + $0x1200] sm:$0x7]
    %v1998 = vld [vmem:[%s1 + $0x1208] sm:$0x7]
    %v1999 = vld [vmem:[%s1 + $0x1210] sm:$0x7]
    %vm2000 = vcmask 23552
    %v2002 = vsel %vm2000, %v1407, 0
    %v2005 = vsel %vm2000, %v1420, 0
    %vm2007 = vcmask 1042432
    %v2009 = vsel %vm2007, %v1997, 0
    %v2012 = vsel %vm2007, %v1998, 0
    %v2015 = vsel %vm2007, %v1999, 0
    %2017 = vmatprep.subr.mxu0 %v1422
    %2018 = vmatpush1.msra.mxu0 %v1421
    %2019 = vmatprep.subr.mxu0 %v1425
    %2020 = vmatpush1.msra.mxu0 %v1424
    %2021 = vmatprep.subr.mxu0 %v1428
    %2022 = vmatpush1.msra.mxu0 %v1427
    %2023 = vmatprep.subr.mxu0 %v1431
    %2024 = vmatpush1.msra.mxu0 %v1430
    %2025 = vmatprep.subr.mxu0 %v1434
    %2026 = vmatpush1.msra.mxu0 %v1433
    %2027 = vmatprep.subr.mxu0 %v1437
    %2028 = vmatpush1.msra.mxu0 %v1436
    %2029 = vmatprep.subr.mxu0 %v1440
    %2030 = vmatpush1.msra.mxu0 %v1439
    %2031 = vmatprep.subr.mxu0 %v1443
    %2032 = vmatpush1.msra.mxu0 %v1442
    %2033 = vmatprep.subr.mxu0 %v1446
    %2034 = vmatpush1.msra.mxu0 %v1445
    %2035 = vmatprep.subr.mxu0 %v1449
    %2036 = vmatpush1.msra.mxu0 %v1448
    %2037 = vmatprep.subr.mxu0 %v1452
    %2038 = vmatpush1.msra.mxu0 %v1451
    %2039 = vmatprep.subr.mxu0 %v1455
    %2040 = vmatpush1.msra.mxu0 %v1454
    %2041 = vmatprep.subr.mxu0 %v1458
    %2042 = vmatpush1.msra.mxu0 %v1457
    %2043 = vmatprep.subr.mxu0 %v1461
    %2044 = vmatpush1.msra.mxu0 %v1460
    %2045 = vmatprep.subr.mxu0 %v1464
    %2046 = vmatpush1.msra.mxu0 %v1463
    %2047 = vmatprep.subr.mxu0 %v1467
    %2048 = vmatpush1.msra.mxu0 %v1466
    %2049 = vmatprep.subr.mxu0 %v1470
    %2050 = vmatpush1.msra.mxu0 %v1469
    %2051 = vmatprep.subr.mxu0 %v1473
    %2052 = vmatpush1.msra.mxu0 %v1472
    %2053 = vmatprep.subr.mxu0 %v1476
    %2054 = vmatpush1.msra.mxu0 %v1475
    %2055 = vmatprep.subr.mxu0 %v1479
    %2056 = vmatpush1.msra.mxu0 %v1478
    %2057 = vmatprep.subr.mxu0 %v1482
    %2058 = vmatpush1.msra.mxu0 %v1481
    %2059 = vmatprep.subr.mxu0 %v1485
    %2060 = vmatpush1.msra.mxu0 %v1484
    %2061 = vmatprep.subr.mxu0 %v1488
    %2062 = vmatpush1.msra.mxu0 %v1487
    %2063 = vmatprep.subr.mxu0 %v1491
    %2064 = vmatpush1.msra.mxu0 %v1490
    %2065 = vmatprep.subr.mxu0 %v1494
    %2066 = vmatpush1.msra.mxu0 %v1493
    %2067 = vmatprep.subr.mxu0 %v1497
    %2068 = vmatpush1.msra.mxu0 %v1496
    %2069 = vmatprep.subr.mxu0 %v1500
    %2070 = vmatpush1.msra.mxu0 %v1499
    %2071 = vmatprep.subr.mxu0 %v1503
    %2072 = vmatpush1.msra.mxu0 %v1502
    %2073 = vmatprep.subr.mxu0 %v1506
    %2074 = vmatpush1.msra.mxu0 %v1505
    %2075 = vmatprep.subr.mxu0 %v1509
    %2076 = vmatpush1.msra.mxu0 %v1508
    %2077 = vmatprep.subr.mxu0 %v1512
    %2078 = vmatpush1.msra.mxu0 %v1511
    %2079 = vmatprep.subr.mxu0 %v1515
    %2080 = vmatpush1.msra.mxu0 %v1514
    %2081 = vmatprep.mubr.f32.mxu0 %v1396
    %2082 = vmatmul.mubr.f32.gmra.mrb[0].mxu0 %v1395
    %v2083 = vpop.f32.mrb[0].mxu0
    %v2084 = vadd.f32 0.0, %v2083
    %v2085 = vpop.f32.mrb[0].mxu0
    %v2086 = vadd.f32 0.0, %v2085
    %2087 = vmatprep.mubr.f32.mxu0 %v1409
    %2088 = vmatmul.mubr.f32.gmra.mrb[0].mxu0 %v1408
    %v2089 = vpop.f32.mrb[0].mxu0
    %v2090 = vadd.f32 0.0, %v2089
    %v2091 = vpop.f32.mrb[0].mxu0
    %v2092 = vadd.f32 0.0, %v2091
    %2093 = vdwg.mxu0
    %2094 = vmatprep.subr.mxu0 %v1518
    %2095 = vmatpush1.msra.mxu0 %v1517
    %2096 = vmatprep.subr.mxu0 %v1521
    %2097 = vmatpush1.msra.mxu0 %v1520
    %2098 = vmatprep.subr.mxu0 %v1524
    %2099 = vmatpush1.msra.mxu0 %v1523
    %2100 = vmatprep.subr.mxu0 %v1527
    %2101 = vmatpush1.msra.mxu0 %v1526
    %2102 = vmatprep.subr.mxu0 %v1530
    %2103 = vmatpush1.msra.mxu0 %v1529
    %2104 = vmatprep.subr.mxu0 %v1533
    %2105 = vmatpush1.msra.mxu0 %v1532
    %2106 = vmatprep.subr.mxu0 %v1536
    %2107 = vmatpush1.msra.mxu0 %v1535
    %2108 = vmatprep.subr.mxu0 %v1539
    %2109 = vmatpush1.msra.mxu0 %v1538
    %2110 = vmatprep.subr.mxu0 %v1542
    %2111 = vmatpush1.msra.mxu0 %v1541
    %2112 = vmatprep.subr.mxu0 %v1545
    %2113 = vmatpush1.msra.mxu0 %v1544
    %2114 = vmatprep.subr.mxu0 %v1548
    %2115 = vmatpush1.msra.mxu0 %v1547
    %2116 = vmatprep.subr.mxu0 %v1551
    %2117 = vmatpush1.msra.mxu0 %v1550
    %2118 = vmatprep.subr.mxu0 %v1554
    %2119 = vmatpush1.msra.mxu0 %v1553
    %2120 = vmatprep.subr.mxu0 %v1557
    %2121 = vmatpush1.msra.mxu0 %v1556
    %2122 = vmatprep.subr.mxu0 %v1560
    %2123 = vmatpush1.msra.mxu0 %v1559
    %2124 = vmatprep.subr.mxu0 %v1563
    %2125 = vmatpush1.msra.mxu0 %v1562
    %2126 = vmatprep.subr.mxu0 %v1566
    %2127 = vmatpush1.msra.mxu0 %v1565
    %2128 = vmatprep.subr.mxu0 %v1569
    %2129 = vmatpush1.msra.mxu0 %v1568
    %2130 = vmatprep.subr.mxu0 %v1572
    %2131 = vmatpush1.msra.mxu0 %v1571
    %2132 = vmatprep.subr.mxu0 %v1575
    %2133 = vmatpush1.msra.mxu0 %v1574
    %2134 = vmatprep.subr.mxu0 %v1578
    %2135 = vmatpush1.msra.mxu0 %v1577
    %2136 = vmatprep.subr.mxu0 %v1581
    %2137 = vmatpush1.msra.mxu0 %v1580
    %2138 = vmatprep.subr.mxu0 %v1584
    %2139 = vmatpush1.msra.mxu0 %v1583
    %2140 = vmatprep.subr.mxu0 %v1587
    %2141 = vmatpush1.msra.mxu0 %v1586
    %2142 = vmatprep.subr.mxu0 %v1590
    %2143 = vmatpush1.msra.mxu0 %v1589
    %2144 = vmatprep.subr.mxu0 %v1593
    %2145 = vmatpush1.msra.mxu0 %v1592
    %2146 = vmatprep.subr.mxu0 %v1596
    %2147 = vmatpush1.msra.mxu0 %v1595
    %2148 = vmatprep.subr.mxu0 %v1599
    %2149 = vmatpush1.msra.mxu0 %v1598
    %2150 = vmatprep.subr.mxu0 %v1602
    %2151 = vmatpush1.msra.mxu0 %v1601
    %2152 = vmatprep.subr.mxu0 %v1605
    %2153 = vmatpush1.msra.mxu0 %v1604
    %2154 = vmatprep.subr.mxu0 %v1608
    %2155 = vmatpush1.msra.mxu0 %v1607
    %2156 = vmatprep.subr.mxu0 %v1611
    %2157 = vmatpush1.msra.mxu0 %v1610
    %2158 = vmatprep.mubr.f32.mxu0 %v1398
    %2159 = vmatmul.mubr.f32.gmra.mrb[0].mxu0 %v1397
    %v2160 = vpop.f32.mrb[0].mxu0
    %v2161 = vadd.f32 %v2084, %v2160
    %v2162 = vpop.f32.mrb[0].mxu0
    %v2163 = vadd.f32 %v2086, %v2162
    %2164 = vmatprep.mubr.f32.mxu0 %v1411
    %2165 = vmatmul.mubr.f32.gmra.mrb[0].mxu0 %v1410
    %v2166 = vpop.f32.mrb[0].mxu0
    %v2167 = vadd.f32 %v2090, %v2166
    %v2168 = vpop.f32.mrb[0].mxu0
    %v2169 = vadd.f32 %v2092, %v2168
    %2170 = vdwg.mxu0
    %2171 = vmatprep.subr.mxu0 %v1614
    %2172 = vmatpush1.msra.mxu0 %v1613
    %2173 = vmatprep.subr.mxu0 %v1617
    %2174 = vmatpush1.msra.mxu0 %v1616
    %2175 = vmatprep.subr.mxu0 %v1620
    %2176 = vmatpush1.msra.mxu0 %v1619
    %2177 = vmatprep.subr.mxu0 %v1623
    %2178 = vmatpush1.msra.mxu0 %v1622
    %2179 = vmatprep.subr.mxu0 %v1626
    %2180 = vmatpush1.msra.mxu0 %v1625
    %2181 = vmatprep.subr.mxu0 %v1629
    %2182 = vmatpush1.msra.mxu0 %v1628
    %2183 = vmatprep.subr.mxu0 %v1632
    %2184 = vmatpush1.msra.mxu0 %v1631
    %2185 = vmatprep.subr.mxu0 %v1635
    %2186 = vmatpush1.msra.mxu0 %v1634
    %2187 = vmatprep.subr.mxu0 %v1638
    %2188 = vmatpush1.msra.mxu0 %v1637
    %2189 = vmatprep.subr.mxu0 %v1641
    %2190 = vmatpush1.msra.mxu0 %v1640
    %2191 = vmatprep.subr.mxu0 %v1644
    %2192 = vmatpush1.msra.mxu0 %v1643
    %2193 = vmatprep.subr.mxu0 %v1647
    %2194 = vmatpush1.msra.mxu0 %v1646
    %2195 = vmatprep.subr.mxu0 %v1650
    %2196 = vmatpush1.msra.mxu0 %v1649
    %2197 = vmatprep.subr.mxu0 %v1653
    %2198 = vmatpush1.msra.mxu0 %v1652
    %2199 = vmatprep.subr.mxu0 %v1656
    %2200 = vmatpush1.msra.mxu0 %v1655
    %2201 = vmatprep.subr.mxu0 %v1659
    %2202 = vmatpush1.msra.mxu0 %v1658
    %2203 = vmatprep.subr.mxu0 %v1662
    %2204 = vmatpush1.msra.mxu0 %v1661
    %2205 = vmatprep.subr.mxu0 %v1665
    %2206 = vmatpush1.msra.mxu0 %v1664
    %2207 = vmatprep.subr.mxu0 %v1668
    %2208 = vmatpush1.msra.mxu0 %v1667
    %2209 = vmatprep.subr.mxu0 %v1671
    %2210 = vmatpush1.msra.mxu0 %v1670
    %2211 = vmatprep.subr.mxu0 %v1674
    %2212 = vmatpush1.msra.mxu0 %v1673
    %2213 = vmatprep.subr.mxu0 %v1677
    %2214 = vmatpush1.msra.mxu0 %v1676
    %2215 = vmatprep.subr.mxu0 %v1680
    %2216 = vmatpush1.msra.mxu0 %v1679
    %2217 = vmatprep.subr.mxu0 %v1683
    %2218 = vmatpush1.msra.mxu0 %v1682
    %2219 = vmatprep.subr.mxu0 %v1686
    %2220 = vmatpush1.msra.mxu0 %v1685
    %2221 = vmatprep.subr.mxu0 %v1689
    %2222 = vmatpush1.msra.mxu0 %v1688
    %2223 = vmatprep.subr.mxu0 %v1692
    %2224 = vmatpush1.msra.mxu0 %v1691
    %2225 = vmatprep.subr.mxu0 %v1695
    %2226 = vmatpush1.msra.mxu0 %v1694
    %2227 = vmatprep.subr.mxu0 %v1698
    %2228 = vmatpush1.msra.mxu0 %v1697
    %2229 = vmatprep.subr.mxu0 %v1701
    %2230 = vmatpush1.msra.mxu0 %v1700
    %2231 = vmatprep.subr.mxu0 %v1704
    %2232 = vmatpush1.msra.mxu0 %v1703
    %2233 = vmatprep.subr.mxu0 %v1707
    %2234 = vmatpush1.msra.mxu0 %v1706
    %2235 = vmatprep.mubr.f32.mxu0 %v1400
    %2236 = vmatmul.mubr.f32.gmra.mrb[0].mxu0 %v1399
    %v2237 = vpop.f32.mrb[0].mxu0
    %v2238 = vadd.f32 %v2161, %v2237
    %v2239 = vpop.f32.mrb[0].mxu0
    %v2240 = vadd.f32 %v2163, %v2239
    %2241 = vmatprep.mubr.f32.mxu0 %v1413
    %2242 = vmatmul.mubr.f32.gmra.mrb[0].mxu0 %v1412
    %v2243 = vpop.f32.mrb[0].mxu0
    %v2244 = vadd.f32 %v2167, %v2243
    %v2245 = vpop.f32.mrb[0].mxu0
    %v2246 = vadd.f32 %v2169, %v2245
    %2247 = vdwg.mxu0
    %2248 = vmatprep.subr.mxu0 %v1710
    %2249 = vmatpush1.msra.mxu0 %v1709
    %2250 = vmatprep.subr.mxu0 %v1713
    %2251 = vmatpush1.msra.mxu0 %v1712
    %2252 = vmatprep.subr.mxu0 %v1716
    %2253 = vmatpush1.msra.mxu0 %v1715
    %2254 = vmatprep.subr.mxu0 %v1719
    %2255 = vmatpush1.msra.mxu0 %v1718
    %2256 = vmatprep.subr.mxu0 %v1722
    %2257 = vmatpush1.msra.mxu0 %v1721
    %2258 = vmatprep.subr.mxu0 %v1725
    %2259 = vmatpush1.msra.mxu0 %v1724
    %2260 = vmatprep.subr.mxu0 %v1728
    %2261 = vmatpush1.msra.mxu0 %v1727
    %2262 = vmatprep.subr.mxu0 %v1731
    %2263 = vmatpush1.msra.mxu0 %v1730
    %2264 = vmatprep.subr.mxu0 %v1734
    %2265 = vmatpush1.msra.mxu0 %v1733
    %2266 = vmatprep.subr.mxu0 %v1737
    %2267 = vmatpush1.msra.mxu0 %v1736
    %2268 = vmatprep.subr.mxu0 %v1740
    %2269 = vmatpush1.msra.mxu0 %v1739
    %2270 = vmatprep.subr.mxu0 %v1743
    %2271 = vmatpush1.msra.mxu0 %v1742
    %2272 = vmatprep.subr.mxu0 %v1746
    %2273 = vmatpush1.msra.mxu0 %v1745
    %2274 = vmatprep.subr.mxu0 %v1749
    %2275 = vmatpush1.msra.mxu0 %v1748
    %2276 = vmatprep.subr.mxu0 %v1752
    %2277 = vmatpush1.msra.mxu0 %v1751
    %2278 = vmatprep.subr.mxu0 %v1755
    %2279 = vmatpush1.msra.mxu0 %v1754
    %2280 = vmatprep.subr.mxu0 %v1758
    %2281 = vmatpush1.msra.mxu0 %v1757
    %2282 = vmatprep.subr.mxu0 %v1761
    %2283 = vmatpush1.msra.mxu0 %v1760
    %2284 = vmatprep.subr.mxu0 %v1764
    %2285 = vmatpush1.msra.mxu0 %v1763
    %2286 = vmatprep.subr.mxu0 %v1767
    %2287 = vmatpush1.msra.mxu0 %v1766
    %2288 = vmatprep.subr.mxu0 %v1770
    %2289 = vmatpush1.msra.mxu0 %v1769
    %2290 = vmatprep.subr.mxu0 %v1773
    %2291 = vmatpush1.msra.mxu0 %v1772
    %2292 = vmatprep.subr.mxu0 %v1776
    %2293 = vmatpush1.msra.mxu0 %v1775
    %2294 = vmatprep.subr.mxu0 %v1779
    %2295 = vmatpush1.msra.mxu0 %v1778
    %2296 = vmatprep.subr.mxu0 %v1782
    %2297 = vmatpush1.msra.mxu0 %v1781
    %2298 = vmatprep.subr.mxu0 %v1785
    %2299 = vmatpush1.msra.mxu0 %v1784
    %2300 = vmatprep.subr.mxu0 %v1788
    %2301 = vmatpush1.msra.mxu0 %v1787
    %2302 = vmatprep.subr.mxu0 %v1791
    %2303 = vmatpush1.msra.mxu0 %v1790
    %2304 = vmatprep.subr.mxu0 %v1794
    %2305 = vmatpush1.msra.mxu0 %v1793
    %2306 = vmatprep.subr.mxu0 %v1797
    %2307 = vmatpush1.msra.mxu0 %v1796
    %2308 = vmatprep.subr.mxu0 %v1800
    %2309 = vmatpush1.msra.mxu0 %v1799
    %2310 = vmatprep.subr.mxu0 %v1803
    %2311 = vmatpush1.msra.mxu0 %v1802
    %2312 = vmatprep.mubr.f32.mxu0 %v1402
    %2313 = vmatmul.mubr.f32.gmra.mrb[0].mxu0 %v1401
    %v2314 = vpop.f32.mrb[0].mxu0
    %v2315 = vadd.f32 %v2238, %v2314
    %v2316 = vpop.f32.mrb[0].mxu0
    %v2317 = vadd.f32 %v2240, %v2316
    %2318 = vmatprep.mubr.f32.mxu0 %v1415
    %2319 = vmatmul.mubr.f32.gmra.mrb[0].mxu0 %v1414
    %v2320 = vpop.f32.mrb[0].mxu0
    %v2321 = vadd.f32 %v2244, %v2320
    %v2322 = vpop.f32.mrb[0].mxu0
    %v2323 = vadd.f32 %v2246, %v2322
    %2324 = vdwg.mxu0
    %2325 = vmatprep.subr.mxu0 %v1806
    %2326 = vmatpush1.msra.mxu0 %v1805
    %2327 = vmatprep.subr.mxu0 %v1809
    %2328 = vmatpush1.msra.mxu0 %v1808
    %2329 = vmatprep.subr.mxu0 %v1812
    %2330 = vmatpush1.msra.mxu0 %v1811
    %2331 = vmatprep.subr.mxu0 %v1815
    %2332 = vmatpush1.msra.mxu0 %v1814
    %2333 = vmatprep.subr.mxu0 %v1818
    %2334 = vmatpush1.msra.mxu0 %v1817
    %2335 = vmatprep.subr.mxu0 %v1821
    %2336 = vmatpush1.msra.mxu0 %v1820
    %2337 = vmatprep.subr.mxu0 %v1824
    %2338 = vmatpush1.msra.mxu0 %v1823
    %2339 = vmatprep.subr.mxu0 %v1827
    %2340 = vmatpush1.msra.mxu0 %v1826
    %2341 = vmatprep.subr.mxu0 %v1830
    %2342 = vmatpush1.msra.mxu0 %v1829
    %2343 = vmatprep.subr.mxu0 %v1833
    %2344 = vmatpush1.msra.mxu0 %v1832
    %2345 = vmatprep.subr.mxu0 %v1836
    %2346 = vmatpush1.msra.mxu0 %v1835
    %2347 = vmatprep.subr.mxu0 %v1839
    %2348 = vmatpush1.msra.mxu0 %v1838
    %2349 = vmatprep.subr.mxu0 %v1842
    %2350 = vmatpush1.msra.mxu0 %v1841
    %2351 = vmatprep.subr.mxu0 %v1845
    %2352 = vmatpush1.msra.mxu0 %v1844
    %2353 = vmatprep.subr.mxu0 %v1848
    %2354 = vmatpush1.msra.mxu0 %v1847
    %2355 = vmatprep.subr.mxu0 %v1851
    %2356 = vmatpush1.msra.mxu0 %v1850
    %2357 = vmatprep.subr.mxu0 %v1854
    %2358 = vmatpush1.msra.mxu0 %v1853
    %2359 = vmatprep.subr.mxu0 %v1857
    %2360 = vmatpush1.msra.mxu0 %v1856
    %2361 = vmatprep.subr.mxu0 %v1860
    %2362 = vmatpush1.msra.mxu0 %v1859
    %2363 = vmatprep.subr.mxu0 %v1863
    %2364 = vmatpush1.msra.mxu0 %v1862
    %2365 = vmatprep.subr.mxu0 %v1866
    %2366 = vmatpush1.msra.mxu0 %v1865
    %2367 = vmatprep.subr.mxu0 %v1869
    %2368 = vmatpush1.msra.mxu0 %v1868
    %2369 = vmatprep.subr.mxu0 %v1872
    %2370 = vmatpush1.msra.mxu0 %v1871
    %2371 = vmatprep.subr.mxu0 %v1875
    %2372 = vmatpush1.msra.mxu0 %v1874
    %2373 = vmatprep.subr.mxu0 %v1878
    %2374 = vmatpush1.msra.mxu0 %v1877
    %2375 = vmatprep.subr.mxu0 %v1881
    %2376 = vmatpush1.msra.mxu0 %v1880
    %2377 = vmatprep.subr.mxu0 %v1884
    %2378 = vmatpush1.msra.mxu0 %v1883
    %2379 = vmatprep.subr.mxu0 %v1887
    %2380 = vmatpush1.msra.mxu0 %v1886
    %2381 = vmatprep.subr.mxu0 %v1890
    %2382 = vmatpush1.msra.mxu0 %v1889
    %2383 = vmatprep.subr.mxu0 %v1893
    %2384 = vmatpush1.msra.mxu0 %v1892
    %2385 = vmatprep.subr.mxu0 %v1896
    %2386 = vmatpush1.msra.mxu0 %v1895
    %2387 = vmatprep.subr.mxu0 %v1899
    %2388 = vmatpush1.msra.mxu0 %v1898
    %2389 = vmatprep.mubr.f32.mxu0 %v1404
    %2390 = vmatmul.mubr.f32.gmra.mrb[0].mxu0 %v1403
    %v2391 = vpop.f32.mrb[0].mxu0
    %v2392 = vadd.f32 %v2315, %v2391
    %v2393 = vpop.f32.mrb[0].mxu0
    %v2394 = vadd.f32 %v2317, %v2393
    %2395 = vmatprep.mubr.f32.mxu0 %v1417
    %2396 = vmatmul.mubr.f32.gmra.mrb[0].mxu0 %v1416
    %v2397 = vpop.f32.mrb[0].mxu0
    %v2398 = vadd.f32 %v2321, %v2397
    %v2399 = vpop.f32.mrb[0].mxu0
    %v2400 = vadd.f32 %v2323, %v2399
    %2401 = vdwg.mxu0
    %2402 = vmatprep.subr.mxu0 %v1902
    %2403 = vmatpush1.msra.mxu0 %v1901
    %2404 = vmatprep.subr.mxu0 %v1905
    %2405 = vmatpush1.msra.mxu0 %v1904
    %2406 = vmatprep.subr.mxu0 %v1908
    %2407 = vmatpush1.msra.mxu0 %v1907
    %2408 = vmatprep.subr.mxu0 %v1911
    %2409 = vmatpush1.msra.mxu0 %v1910
    %2410 = vmatprep.subr.mxu0 %v1914
    %2411 = vmatpush1.msra.mxu0 %v1913
    %2412 = vmatprep.subr.mxu0 %v1917
    %2413 = vmatpush1.msra.mxu0 %v1916
    %2414 = vmatprep.subr.mxu0 %v1920
    %2415 = vmatpush1.msra.mxu0 %v1919
    %2416 = vmatprep.subr.mxu0 %v1923
    %2417 = vmatpush1.msra.mxu0 %v1922
    %2418 = vmatprep.subr.mxu0 %v1926
    %2419 = vmatpush1.msra.mxu0 %v1925
    %2420 = vmatprep.subr.mxu0 %v1929
    %2421 = vmatpush1.msra.mxu0 %v1928
    %2422 = vmatprep.subr.mxu0 %v1932
    %2423 = vmatpush1.msra.mxu0 %v1931
    %2424 = vmatprep.subr.mxu0 %v1935
    %2425 = vmatpush1.msra.mxu0 %v1934
    %2426 = vmatprep.subr.mxu0 %v1938
    %2427 = vmatpush1.msra.mxu0 %v1937
    %2428 = vmatprep.subr.mxu0 %v1941
    %2429 = vmatpush1.msra.mxu0 %v1940
    %2430 = vmatprep.subr.mxu0 %v1944
    %2431 = vmatpush1.msra.mxu0 %v1943
    %2432 = vmatprep.subr.mxu0 %v1947
    %2433 = vmatpush1.msra.mxu0 %v1946
    %2434 = vmatprep.subr.mxu0 %v1950
    %2435 = vmatpush1.msra.mxu0 %v1949
    %2436 = vmatprep.subr.mxu0 %v1953
    %2437 = vmatpush1.msra.mxu0 %v1952
    %2438 = vmatprep.subr.mxu0 %v1956
    %2439 = vmatpush1.msra.mxu0 %v1955
    %2440 = vmatprep.subr.mxu0 %v1959
    %2441 = vmatpush1.msra.mxu0 %v1958
    %2442 = vmatprep.subr.mxu0 %v1962
    %2443 = vmatpush1.msra.mxu0 %v1961
    %2444 = vmatprep.subr.mxu0 %v1965
    %2445 = vmatpush1.msra.mxu0 %v1964
    %2446 = vmatprep.subr.mxu0 %v1968
    %2447 = vmatpush1.msra.mxu0 %v1967
    %2448 = vmatprep.subr.mxu0 %v1971
    %2449 = vmatpush1.msra.mxu0 %v1970
    %2450 = vmatprep.subr.mxu0 %v1974
    %2451 = vmatpush1.msra.mxu0 %v1973
    %2452 = vmatprep.subr.mxu0 %v1977
    %2453 = vmatpush1.msra.mxu0 %v1976
    %2454 = vmatprep.subr.mxu0 %v1980
    %2455 = vmatpush1.msra.mxu0 %v1979
    %2456 = vmatprep.subr.mxu0 %v1983
    %2457 = vmatpush1.msra.mxu0 %v1982
    %2458 = vmatprep.subr.mxu0 %v1986
    %2459 = vmatpush1.msra.mxu0 %v1985
    %2460 = vmatprep.subr.mxu0 %v1989
    %2461 = vmatpush1.msra.mxu0 %v1988
    %2462 = vmatprep.subr.mxu0 %v1992
    %2463 = vmatpush1.msra.mxu0 %v1991
    %2464 = vmatprep.subr.mxu0 %v1995
    %2465 = vmatpush1.msra.mxu0 %v1994
    %2466 = vmatprep.mubr.f32.mxu0 %v1406
    %2467 = vmatmul.mubr.f32.gmra.mrb[0].mxu0 %v1405
    %v2468 = vpop.f32.mrb[0].mxu0
    %v2469 = vadd.f32 %v2392, %v2468
    %v2470 = vpop.f32.mrb[0].mxu0
    %v2471 = vadd.f32 %v2394, %v2470
    %2472 = vmatprep.mubr.f32.mxu0 %v1419
    %2473 = vmatmul.mubr.f32.gmra.mrb[0].mxu0 %v1418
    %v2474 = vpop.f32.mrb[0].mxu0
    %v2475 = vadd.f32 %v2398, %v2474
    %v2476 = vpop.f32.mrb[0].mxu0
    %v2477 = vadd.f32 %v2400, %v2476
    %2478 = vdwg.mxu0
    %2479 = vmatprep.subr.mxu0 %v2012
    %2480 = vmatpush1.msra.mxu0 %v2009
    %2481 = vmatprep.subr.mxu0 0.0
    %2482 = vmatpush1.msra.mxu0 0.0
    %2483 = vmatprep.subr.mxu0 0.0
    %2484 = vmatpush1.msra.mxu0 0.0
    %2485 = vmatprep.subr.mxu0 0.0
    %2486 = vmatpush1.msra.mxu0 0.0
    %2487 = vmatprep.subr.mxu0 0.0
    %2488 = vmatpush1.msra.mxu0 0.0
    %2489 = vmatprep.subr.mxu0 0.0
    %2490 = vmatpush1.msra.mxu0 0.0
    %2491 = vmatprep.subr.mxu0 0.0
    %2492 = vmatpush1.msra.mxu0 0.0
    %2493 = vmatprep.subr.mxu0 0.0
    %2494 = vmatpush1.msra.mxu0 0.0
    %2495 = vmatprep.subr.mxu0 0.0
    %2496 = vmatpush1.msra.mxu0 0.0
    %2497 = vmatprep.subr.mxu0 0.0
    %2498 = vmatpush1.msra.mxu0 0.0
    %2499 = vmatprep.subr.mxu0 0.0
    %2500 = vmatpush1.msra.mxu0 0.0
    %2501 = vmatprep.subr.mxu0 0.0
    %2502 = vmatpush1.msra.mxu0 0.0
    %2503 = vmatprep.subr.mxu0 0.0
    %2504 = vmatpush1.msra.mxu0 0.0
    %2505 = vmatprep.subr.mxu0 0.0
    %2506 = vmatpush1.msra.mxu0 0.0
    %2507 = vmatprep.subr.mxu0 0.0
    %2508 = vmatpush1.msra.mxu0 0.0
    %2509 = vmatprep.subr.mxu0 0.0
    %2510 = vmatpush1.msra.mxu0 0.0
    %2511 = vmatprep.subr.mxu0 0.0
    %2512 = vmatpush1.msra.mxu0 0.0
    %2513 = vmatprep.subr.mxu0 0.0
    %2514 = vmatpush1.msra.mxu0 0.0
    %2515 = vmatprep.subr.mxu0 0.0
    %2516 = vmatpush1.msra.mxu0 0.0
    %2517 = vmatprep.subr.mxu0 0.0
    %2518 = vmatpush1.msra.mxu0 0.0
    %2519 = vmatprep.subr.mxu0 0.0
    %2520 = vmatpush1.msra.mxu0 0.0
    %2521 = vmatprep.subr.mxu0 0.0
    %2522 = vmatpush1.msra.mxu0 0.0
    %2523 = vmatprep.subr.mxu0 0.0
    %2524 = vmatpush1.msra.mxu0 0.0
    %2525 = vmatprep.subr.mxu0 0.0
    %2526 = vmatpush1.msra.mxu0 0.0
    %2527 = vmatprep.subr.mxu0 0.0
    %2528 = vmatpush1.msra.mxu0 0.0
    %2529 = vmatprep.subr.mxu0 0.0
    %2530 = vmatpush1.msra.mxu0 0.0
    %2531 = vmatprep.subr.mxu0 0.0
    %2532 = vmatpush1.msra.mxu0 0.0
    %2533 = vmatprep.subr.mxu0 0.0
    %2534 = vmatpush1.msra.mxu0 0.0
    %2535 = vmatprep.subr.mxu0 0.0
    %2536 = vmatpush1.msra.mxu0 0.0
    %2537 = vmatprep.subr.mxu0 0.0
    %2538 = vmatpush1.msra.mxu0 0.0
    %2539 = vmatprep.subr.mxu0 0.0
    %2540 = vmatpush1.msra.mxu0 0.0
    %2541 = vmatprep.subr.mxu0 0.0
    %2542 = vmatpush1.msra.mxu0 0.0
    %2543 = vmatprep.mubr.f32.mxu0 0.0
    %2544 = vmatmul.mubr.f32.gmra.mrb[0].mxu0 %v2002
    %v2545 = vpop.f32.mrb[0].mxu0
    %v2546 = vadd.f32 %v2469, %v2545
    %v2547 = vpop.f32.mrb[0].mxu0
    %v2548 = vadd.f32 %v2471, %v2547
    %2549 = vmatprep.mubr.f32.mxu0 0.0
    %2550 = vmatmul.mubr.f32.gmra.mrb[0].mxu0 %v2005
    %v2551 = vpop.f32.mrb[0].mxu0
    %v2552 = vadd.f32 %v2475, %v2551
    %v2553 = vpop.f32.mrb[0].mxu0
    %v2554 = vadd.f32 %v2477, %v2553
    %2555 = vdwg.mxu0
    %2556 = vmatprep.subr.mxu0 0.0
    %2557 = vmatpush1.msra.mxu0 %v1423
    %2558 = vmatprep.subr.mxu0 0.0
    %2559 = vmatpush1.msra.mxu0 %v1426
    %2560 = vmatprep.subr.mxu0 0.0
    %2561 = vmatpush1.msra.mxu0 %v1429
    %2562 = vmatprep.subr.mxu0 0.0
    %2563 = vmatpush1.msra.mxu0 %v1432
    %2564 = vmatprep.subr.mxu0 0.0
    %2565 = vmatpush1.msra.mxu0 %v1435
    %2566 = vmatprep.subr.mxu0 0.0
    %2567 = vmatpush1.msra.mxu0 %v1438
    %2568 = vmatprep.subr.mxu0 0.0
    %2569 = vmatpush1.msra.mxu0 %v1441
    %2570 = vmatprep.subr.mxu0 0.0
    %2571 = vmatpush1.msra.mxu0 %v1444
    %2572 = vmatprep.subr.mxu0 0.0
    %2573 = vmatpush1.msra.mxu0 %v1447
    %2574 = vmatprep.subr.mxu0 0.0
    %2575 = vmatpush1.msra.mxu0 %v1450
    %2576 = vmatprep.subr.mxu0 0.0
    %2577 = vmatpush1.msra.mxu0 %v1453
    %2578 = vmatprep.subr.mxu0 0.0
    %2579 = vmatpush1.msra.mxu0 %v1456
    %2580 = vmatprep.subr.mxu0 0.0
    %2581 = vmatpush1.msra.mxu0 %v1459
    %2582 = vmatprep.subr.mxu0 0.0
    %2583 = vmatpush1.msra.mxu0 %v1462
    %2584 = vmatprep.subr.mxu0 0.0
    %2585 = vmatpush1.msra.mxu0 %v1465
    %2586 = vmatprep.subr.mxu0 0.0
    %2587 = vmatpush1.msra.mxu0 %v1468
    %2588 = vmatprep.subr.mxu0 0.0
    %2589 = vmatpush1.msra.mxu0 %v1471
    %2590 = vmatprep.subr.mxu0 0.0
    %2591 = vmatpush1.msra.mxu0 %v1474
    %2592 = vmatprep.subr.mxu0 0.0
    %2593 = vmatpush1.msra.mxu0 %v1477
    %2594 = vmatprep.subr.mxu0 0.0
    %2595 = vmatpush1.msra.mxu0 %v1480
    %2596 = vmatprep.subr.mxu0 0.0
    %2597 = vmatpush1.msra.mxu0 %v1483
    %2598 = vmatprep.subr.mxu0 0.0
    %2599 = vmatpush1.msra.mxu0 %v1486
    %2600 = vmatprep.subr.mxu0 0.0
    %2601 = vmatpush1.msra.mxu0 %v1489
    %2602 = vmatprep.subr.mxu0 0.0
    %2603 = vmatpush1.msra.mxu0 %v1492
    %2604 = vmatprep.subr.mxu0 0.0
    %2605 = vmatpush1.msra.mxu0 %v1495
    %2606 = vmatprep.subr.mxu0 0.0
    %2607 = vmatpush1.msra.mxu0 %v1498
    %2608 = vmatprep.subr.mxu0 0.0
    %2609 = vmatpush1.msra.mxu0 %v1501
    %2610 = vmatprep.subr.mxu0 0.0
    %2611 = vmatpush1.msra.mxu0 %v1504
    %2612 = vmatprep.subr.mxu0 0.0
    %2613 = vmatpush1.msra.mxu0 %v1507
    %2614 = vmatprep.subr.mxu0 0.0
    %2615 = vmatpush1.msra.mxu0 %v1510
    %2616 = vmatprep.subr.mxu0 0.0
    %2617 = vmatpush1.msra.mxu0 %v1513
    %2618 = vmatprep.subr.mxu0 0.0
    %2619 = vmatpush1.msra.mxu0 %v1516
    %2620 = vmatprep.mubr.f32.mxu0 %v1396
    %2621 = vmatmul.mubr.f32.gmra.mrb[0].mxu0 %v1395
    %v2622 = vpop.f32.mrb[0].mxu0
    %v2623 = vadd.f32 0.0, %v2622
    %v2624 = vpop.f32.mrb[0].mxu0
    %2625 = vmatprep.mubr.f32.mxu0 %v1409
    %2626 = vmatmul.mubr.f32.gmra.mrb[0].mxu0 %v1408
    %v2627 = vpop.f32.mrb[0].mxu0
    %v2628 = vadd.f32 0.0, %v2627
    %v2629 = vpop.f32.mrb[0].mxu0
    %2630 = vdwg.mxu0
    %2631 = vmatprep.subr.mxu0 0.0
    %2632 = vmatpush1.msra.mxu0 %v1519
    %2633 = vmatprep.subr.mxu0 0.0
    %2634 = vmatpush1.msra.mxu0 %v1522
    %2635 = vmatprep.subr.mxu0 0.0
    %2636 = vmatpush1.msra.mxu0 %v1525
    %2637 = vmatprep.subr.mxu0 0.0
    %2638 = vmatpush1.msra.mxu0 %v1528
    %2639 = vmatprep.subr.mxu0 0.0
    %2640 = vmatpush1.msra.mxu0 %v1531
    %2641 = vmatprep.subr.mxu0 0.0
    %2642 = vmatpush1.msra.mxu0 %v1534
    %2643 = vmatprep.subr.mxu0 0.0
    %2644 = vmatpush1.msra.mxu0 %v1537
    %2645 = vmatprep.subr.mxu0 0.0
    %2646 = vmatpush1.msra.mxu0 %v1540
    %2647 = vmatprep.subr.mxu0 0.0
    %2648 = vmatpush1.msra.mxu0 %v1543
    %2649 = vmatprep.subr.mxu0 0.0
    %2650 = vmatpush1.msra.mxu0 %v1546
    %2651 = vmatprep.subr.mxu0 0.0
    %2652 = vmatpush1.msra.mxu0 %v1549
    %2653 = vmatprep.subr.mxu0 0.0
    %2654 = vmatpush1.msra.mxu0 %v1552
    %2655 = vmatprep.subr.mxu0 0.0
    %2656 = vmatpush1.msra.mxu0 %v1555
    %2657 = vmatprep.subr.mxu0 0.0
    %2658 = vmatpush1.msra.mxu0 %v1558
    %2659 = vmatprep.subr.mxu0 0.0
    %2660 = vmatpush1.msra.mxu0 %v1561
    %2661 = vmatprep.subr.mxu0 0.0
    %2662 = vmatpush1.msra.mxu0 %v1564
    %2663 = vmatprep.subr.mxu0 0.0
    %2664 = vmatpush1.msra.mxu0 %v1567
    %2665 = vmatprep.subr.mxu0 0.0
    %2666 = vmatpush1.msra.mxu0 %v1570
    %2667 = vmatprep.subr.mxu0 0.0
    %2668 = vmatpush1.msra.mxu0 %v1573
    %2669 = vmatprep.subr.mxu0 0.0
    %2670 = vmatpush1.msra.mxu0 %v1576
    %2671 = vmatprep.subr.mxu0 0.0
    %2672 = vmatpush1.msra.mxu0 %v1579
    %2673 = vmatprep.subr.mxu0 0.0
    %2674 = vmatpush1.msra.mxu0 %v1582
    %2675 = vmatprep.subr.mxu0 0.0
    %2676 = vmatpush1.msra.mxu0 %v1585
    %2677 = vmatprep.subr.mxu0 0.0
    %2678 = vmatpush1.msra.mxu0 %v1588
    %2679 = vmatprep.subr.mxu0 0.0
    %2680 = vmatpush1.msra.mxu0 %v1591
    %2681 = vmatprep.subr.mxu0 0.0
    %2682 = vmatpush1.msra.mxu0 %v1594
    %2683 = vmatprep.subr.mxu0 0.0
    %2684 = vmatpush1.msra.mxu0 %v1597
    %2685 = vmatprep.subr.mxu0 0.0
    %2686 = vmatpush1.msra.mxu0 %v1600
    %2687 = vmatprep.subr.mxu0 0.0
    %2688 = vmatpush1.msra.mxu0 %v1603
    %2689 = vmatprep.subr.mxu0 0.0
    %2690 = vmatpush1.msra.mxu0 %v1606
    %2691 = vmatprep.subr.mxu0 0.0
    %2692 = vmatpush1.msra.mxu0 %v1609
    %2693 = vmatprep.subr.mxu0 0.0
    %2694 = vmatpush1.msra.mxu0 %v1612
    %2695 = vmatprep.mubr.f32.mxu0 %v1398
    %2696 = vmatmul.mubr.f32.gmra.mrb[0].mxu0 %v1397
    %v2697 = vpop.f32.mrb[0].mxu0
    %v2698 = vadd.f32 %v2623, %v2697
    %v2699 = vpop.f32.mrb[0].mxu0
    %2700 = vmatprep.mubr.f32.mxu0 %v1411
    %2701 = vmatmul.mubr.f32.gmra.mrb[0].mxu0 %v1410
    %v2702 = vpop.f32.mrb[0].mxu0
    %v2703 = vadd.f32 %v2628, %v2702
    %v2704 = vpop.f32.mrb[0].mxu0
    %2705 = vdwg.mxu0
    %2706 = vmatprep.subr.mxu0 0.0
    %2707 = vmatpush1.msra.mxu0 %v1615
    %2708 = vmatprep.subr.mxu0 0.0
    %2709 = vmatpush1.msra.mxu0 %v1618
    %2710 = vmatprep.subr.mxu0 0.0
    %2711 = vmatpush1.msra.mxu0 %v1621
    %2712 = vmatprep.subr.mxu0 0.0
    %2713 = vmatpush1.msra.mxu0 %v1624
    %2714 = vmatprep.subr.mxu0 0.0
    %2715 = vmatpush1.msra.mxu0 %v1627
    %2716 = vmatprep.subr.mxu0 0.0
    %2717 = vmatpush1.msra.mxu0 %v1630
    %2718 = vmatprep.subr.mxu0 0.0
    %2719 = vmatpush1.msra.mxu0 %v1633
    %2720 = vmatprep.subr.mxu0 0.0
    %2721 = vmatpush1.msra.mxu0 %v1636
    %2722 = vmatprep.subr.mxu0 0.0
    %2723 = vmatpush1.msra.mxu0 %v1639
    %2724 = vmatprep.subr.mxu0 0.0
    %2725 = vmatpush1.msra.mxu0 %v1642
    %2726 = vmatprep.subr.mxu0 0.0
    %2727 = vmatpush1.msra.mxu0 %v1645
    %2728 = vmatprep.subr.mxu0 0.0
    %2729 = vmatpush1.msra.mxu0 %v1648
    %2730 = vmatprep.subr.mxu0 0.0
    %2731 = vmatpush1.msra.mxu0 %v1651
    %2732 = vmatprep.subr.mxu0 0.0
    %2733 = vmatpush1.msra.mxu0 %v1654
    %2734 = vmatprep.subr.mxu0 0.0
    %2735 = vmatpush1.msra.mxu0 %v1657
    %2736 = vmatprep.subr.mxu0 0.0
    %2737 = vmatpush1.msra.mxu0 %v1660
    %2738 = vmatprep.subr.mxu0 0.0
    %2739 = vmatpush1.msra.mxu0 %v1663
    %2740 = vmatprep.subr.mxu0 0.0
    %2741 = vmatpush1.msra.mxu0 %v1666
    %2742 = vmatprep.subr.mxu0 0.0
    %2743 = vmatpush1.msra.mxu0 %v1669
    %2744 = vmatprep.subr.mxu0 0.0
    %2745 = vmatpush1.msra.mxu0 %v1672
    %2746 = vmatprep.subr.mxu0 0.0
    %2747 = vmatpush1.msra.mxu0 %v1675
    %2748 = vmatprep.subr.mxu0 0.0
    %2749 = vmatpush1.msra.mxu0 %v1678
    %2750 = vmatprep.subr.mxu0 0.0
    %2751 = vmatpush1.msra.mxu0 %v1681
    %2752 = vmatprep.subr.mxu0 0.0
    %2753 = vmatpush1.msra.mxu0 %v1684
    %2754 = vmatprep.subr.mxu0 0.0
    %2755 = vmatpush1.msra.mxu0 %v1687
    %2756 = vmatprep.subr.mxu0 0.0
    %2757 = vmatpush1.msra.mxu0 %v1690
    %2758 = vmatprep.subr.mxu0 0.0
    %2759 = vmatpush1.msra.mxu0 %v1693
    %2760 = vmatprep.subr.mxu0 0.0
    %2761 = vmatpush1.msra.mxu0 %v1696
    %2762 = vmatprep.subr.mxu0 0.0
    %2763 = vmatpush1.msra.mxu0 %v1699
    %2764 = vmatprep.subr.mxu0 0.0
    %2765 = vmatpush1.msra.mxu0 %v1702
    %2766 = vmatprep.subr.mxu0 0.0
    %2767 = vmatpush1.msra.mxu0 %v1705
    %2768 = vmatprep.subr.mxu0 0.0
    %2769 = vmatpush1.msra.mxu0 %v1708
    %2770 = vmatprep.mubr.f32.mxu0 %v1400
    %2771 = vmatmul.mubr.f32.gmra.mrb[0].mxu0 %v1399
    %v2772 = vpop.f32.mrb[0].mxu0
    %v2773 = vadd.f32 %v2698, %v2772
    %v2774 = vpop.f32.mrb[0].mxu0
    %2775 = vmatprep.mubr.f32.mxu0 %v1413
    %2776 = vmatmul.mubr.f32.gmra.mrb[0].mxu0 %v1412
    %v2777 = vpop.f32.mrb[0].mxu0
    %v2778 = vadd.f32 %v2703, %v2777
    %v2779 = vpop.f32.mrb[0].mxu0
    %2780 = vdwg.mxu0
    %2781 = vmatprep.subr.mxu0 0.0
    %2782 = vmatpush1.msra.mxu0 %v1711
    %2783 = vmatprep.subr.mxu0 0.0
    %2784 = vmatpush1.msra.mxu0 %v1714
    %2785 = vmatprep.subr.mxu0 0.0
    %2786 = vmatpush1.msra.mxu0 %v1717
    %2787 = vmatprep.subr.mxu0 0.0
    %2788 = vmatpush1.msra.mxu0 %v1720
    %2789 = vmatprep.subr.mxu0 0.0
    %2790 = vmatpush1.msra.mxu0 %v1723
    %2791 = vmatprep.subr.mxu0 0.0
    %2792 = vmatpush1.msra.mxu0 %v1726
    %2793 = vmatprep.subr.mxu0 0.0
    %2794 = vmatpush1.msra.mxu0 %v1729
    %2795 = vmatprep.subr.mxu0 0.0
    %2796 = vmatpush1.msra.mxu0 %v1732
    %2797 = vmatprep.subr.mxu0 0.0
    %2798 = vmatpush1.msra.mxu0 %v1735
    %2799 = vmatprep.subr.mxu0 0.0
    %2800 = vmatpush1.msra.mxu0 %v1738
    %2801 = vmatprep.subr.mxu0 0.0
    %2802 = vmatpush1.msra.mxu0 %v1741
    %2803 = vmatprep.subr.mxu0 0.0
    %2804 = vmatpush1.msra.mxu0 %v1744
    %2805 = vmatprep.subr.mxu0 0.0
    %2806 = vmatpush1.msra.mxu0 %v1747
    %2807 = vmatprep.subr.mxu0 0.0
    %2808 = vmatpush1.msra.mxu0 %v1750
    %2809 = vmatprep.subr.mxu0 0.0
    %2810 = vmatpush1.msra.mxu0 %v1753
    %2811 = vmatprep.subr.mxu0 0.0
    %2812 = vmatpush1.msra.mxu0 %v1756
    %2813 = vmatprep.subr.mxu0 0.0
    %2814 = vmatpush1.msra.mxu0 %v1759
    %2815 = vmatprep.subr.mxu0 0.0
    %2816 = vmatpush1.msra.mxu0 %v1762
    %2817 = vmatprep.subr.mxu0 0.0
    %2818 = vmatpush1.msra.mxu0 %v1765
    %2819 = vmatprep.subr.mxu0 0.0
    %2820 = vmatpush1.msra.mxu0 %v1768
    %2821 = vmatprep.subr.mxu0 0.0
    %2822 = vmatpush1.msra.mxu0 %v1771
    %2823 = vmatprep.subr.mxu0 0.0
    %2824 = vmatpush1.msra.mxu0 %v1774
    %2825 = vmatprep.subr.mxu0 0.0
    %2826 = vmatpush1.msra.mxu0 %v1777
    %2827 = vmatprep.subr.mxu0 0.0
    %2828 = vmatpush1.msra.mxu0 %v1780
    %2829 = vmatprep.subr.mxu0 0.0
    %2830 = vmatpush1.msra.mxu0 %v1783
    %2831 = vmatprep.subr.mxu0 0.0
    %2832 = vmatpush1.msra.mxu0 %v1786
    %2833 = vmatprep.subr.mxu0 0.0
    %2834 = vmatpush1.msra.mxu0 %v1789
    %2835 = vmatprep.subr.mxu0 0.0
    %2836 = vmatpush1.msra.mxu0 %v1792
    %2837 = vmatprep.subr.mxu0 0.0
    %2838 = vmatpush1.msra.mxu0 %v1795
    %2839 = vmatprep.subr.mxu0 0.0
    %2840 = vmatpush1.msra.mxu0 %v1798
    %2841 = vmatprep.subr.mxu0 0.0
    %2842 = vmatpush1.msra.mxu0 %v1801
    %2843 = vmatprep.subr.mxu0 0.0
    %2844 = vmatpush1.msra.mxu0 %v1804
    %2845 = vmatprep.mubr.f32.mxu0 %v1402
    %2846 = vmatmul.mubr.f32.gmra.mrb[0].mxu0 %v1401
    %v2847 = vpop.f32.mrb[0].mxu0
    %v2848 = vadd.f32 %v2773, %v2847
    %v2849 = vpop.f32.mrb[0].mxu0
    %2850 = vmatprep.mubr.f32.mxu0 %v1415
    %2851 = vmatmul.mubr.f32.gmra.mrb[0].mxu0 %v1414
    %v2852 = vpop.f32.mrb[0].mxu0
    %v2853 = vadd.f32 %v2778, %v2852
    %v2854 = vpop.f32.mrb[0].mxu0
    %2855 = vdwg.mxu0
    %2856 = vmatprep.subr.mxu0 0.0
    %2857 = vmatpush1.msra.mxu0 %v1807
    %2858 = vmatprep.subr.mxu0 0.0
    %2859 = vmatpush1.msra.mxu0 %v1810
    %2860 = vmatprep.subr.mxu0 0.0
    %2861 = vmatpush1.msra.mxu0 %v1813
    %2862 = vmatprep.subr.mxu0 0.0
    %2863 = vmatpush1.msra.mxu0 %v1816
    %2864 = vmatprep.subr.mxu0 0.0
    %2865 = vmatpush1.msra.mxu0 %v1819
    %2866 = vmatprep.subr.mxu0 0.0
    %2867 = vmatpush1.msra.mxu0 %v1822
    %2868 = vmatprep.subr.mxu0 0.0
    %2869 = vmatpush1.msra.mxu0 %v1825
    %2870 = vmatprep.subr.mxu0 0.0
    %2871 = vmatpush1.msra.mxu0 %v1828
    %2872 = vmatprep.subr.mxu0 0.0
    %2873 = vmatpush1.msra.mxu0 %v1831
    %2874 = vmatprep.subr.mxu0 0.0
    %2875 = vmatpush1.msra.mxu0 %v1834
    %2876 = vmatprep.subr.mxu0 0.0
    %2877 = vmatpush1.msra.mxu0 %v1837
    %2878 = vmatprep.subr.mxu0 0.0
    %2879 = vmatpush1.msra.mxu0 %v1840
    %2880 = vmatprep.subr.mxu0 0.0
    %2881 = vmatpush1.msra.mxu0 %v1843
    %2882 = vmatprep.subr.mxu0 0.0
    %2883 = vmatpush1.msra.mxu0 %v1846
    %2884 = vmatprep.subr.mxu0 0.0
    %2885 = vmatpush1.msra.mxu0 %v1849
    %2886 = vmatprep.subr.mxu0 0.0
    %2887 = vmatpush1.msra.mxu0 %v1852
    %2888 = vmatprep.subr.mxu0 0.0
    %2889 = vmatpush1.msra.mxu0 %v1855
    %2890 = vmatprep.subr.mxu0 0.0
    %2891 = vmatpush1.msra.mxu0 %v1858
    %2892 = vmatprep.subr.mxu0 0.0
    %2893 = vmatpush1.msra.mxu0 %v1861
    %2894 = vmatprep.subr.mxu0 0.0
    %2895 = vmatpush1.msra.mxu0 %v1864
    %2896 = vmatprep.subr.mxu0 0.0
    %2897 = vmatpush1.msra.mxu0 %v1867
    %2898 = vmatprep.subr.mxu0 0.0
    %2899 = vmatpush1.msra.mxu0 %v1870
    %2900 = vmatprep.subr.mxu0 0.0
    %2901 = vmatpush1.msra.mxu0 %v1873
    %2902 = vmatprep.subr.mxu0 0.0
    %2903 = vmatpush1.msra.mxu0 %v1876
    %2904 = vmatprep.subr.mxu0 0.0
    %2905 = vmatpush1.msra.mxu0 %v1879
    %2906 = vmatprep.subr.mxu0 0.0
    %2907 = vmatpush1.msra.mxu0 %v1882
    %2908 = vmatprep.subr.mxu0 0.0
    %2909 = vmatpush1.msra.mxu0 %v1885
    %2910 = vmatprep.subr.mxu0 0.0
    %2911 = vmatpush1.msra.mxu0 %v1888
    %2912 = vmatprep.subr.mxu0 0.0
    %2913 = vmatpush1.msra.mxu0 %v1891
    %2914 = vmatprep.subr.mxu0 0.0
    %2915 = vmatpush1.msra.mxu0 %v1894
    %2916 = vmatprep.subr.mxu0 0.0
    %2917 = vmatpush1.msra.mxu0 %v1897
    %2918 = vmatprep.subr.mxu0 0.0
    %2919 = vmatpush1.msra.mxu0 %v1900
    %2920 = vmatprep.mubr.f32.mxu0 %v1404
    %2921 = vmatmul.mubr.f32.gmra.mrb[0].mxu0 %v1403
    %v2922 = vpop.f32.mrb[0].mxu0
    %v2923 = vadd.f32 %v2848, %v2922
    %v2924 = vpop.f32.mrb[0].mxu0
    %2925 = vmatprep.mubr.f32.mxu0 %v1417
    %2926 = vmatmul.mubr.f32.gmra.mrb[0].mxu0 %v1416
    %v2927 = vpop.f32.mrb[0].mxu0
    %v2928 = vadd.f32 %v2853, %v2927
    %v2929 = vpop.f32.mrb[0].mxu0
    %2930 = vdwg.mxu0
    %2931 = vmatprep.subr.mxu0 0.0
    %2932 = vmatpush1.msra.mxu0 %v1903
    %2933 = vmatprep.subr.mxu0 0.0
    %2934 = vmatpush1.msra.mxu0 %v1906
    %2935 = vmatprep.subr.mxu0 0.0
    %2936 = vmatpush1.msra.mxu0 %v1909
    %2937 = vmatprep.subr.mxu0 0.0
    %2938 = vmatpush1.msra.mxu0 %v1912
    %2939 = vmatprep.subr.mxu0 0.0
    %2940 = vmatpush1.msra.mxu0 %v1915
    %2941 = vmatprep.subr.mxu0 0.0
    %2942 = vmatpush1.msra.mxu0 %v1918
    %2943 = vmatprep.subr.mxu0 0.0
    %2944 = vmatpush1.msra.mxu0 %v1921
    %2945 = vmatprep.subr.mxu0 0.0
    %2946 = vmatpush1.msra.mxu0 %v1924
    %2947 = vmatprep.subr.mxu0 0.0
    %2948 = vmatpush1.msra.mxu0 %v1927
    %2949 = vmatprep.subr.mxu0 0.0
    %2950 = vmatpush1.msra.mxu0 %v1930
    %2951 = vmatprep.subr.mxu0 0.0
    %2952 = vmatpush1.msra.mxu0 %v1933
    %2953 = vmatprep.subr.mxu0 0.0
    %2954 = vmatpush1.msra.mxu0 %v1936
    %2955 = vmatprep.subr.mxu0 0.0
    %2956 = vmatpush1.msra.mxu0 %v1939
    %2957 = vmatprep.subr.mxu0 0.0
    %2958 = vmatpush1.msra.mxu0 %v1942
    %2959 = vmatprep.subr.mxu0 0.0
    %2960 = vmatpush1.msra.mxu0 %v1945
    %2961 = vmatprep.subr.mxu0 0.0
    %2962 = vmatpush1.msra.mxu0 %v1948
    %2963 = vmatprep.subr.mxu0 0.0
    %2964 = vmatpush1.msra.mxu0 %v1951
    %2965 = vmatprep.subr.mxu0 0.0
    %2966 = vmatpush1.msra.mxu0 %v1954
    %2967 = vmatprep.subr.mxu0 0.0
    %2968 = vmatpush1.msra.mxu0 %v1957
    %2969 = vmatprep.subr.mxu0 0.0
    %2970 = vmatpush1.msra.mxu0 %v1960
    %2971 = vmatprep.subr.mxu0 0.0
    %2972 = vmatpush1.msra.mxu0 %v1963
    %2973 = vmatprep.subr.mxu0 0.0
    %2974 = vmatpush1.msra.mxu0 %v1966
    %2975 = vmatprep.subr.mxu0 0.0
    %2976 = vmatpush1.msra.mxu0 %v1969
    %2977 = vmatprep.subr.mxu0 0.0
    %2978 = vmatpush1.msra.mxu0 %v1972
    %2979 = vmatprep.subr.mxu0 0.0
    %2980 = vmatpush1.msra.mxu0 %v1975
    %2981 = vmatprep.subr.mxu0 0.0
    %2982 = vmatpush1.msra.mxu0 %v1978
    %2983 = vmatprep.subr.mxu0 0.0
    %2984 = vmatpush1.msra.mxu0 %v1981
    %2985 = vmatprep.subr.mxu0 0.0
    %2986 = vmatpush1.msra.mxu0 %v1984
    %2987 = vmatprep.subr.mxu0 0.0
    %2988 = vmatpush1.msra.mxu0 %v1987
    %2989 = vmatprep.subr.mxu0 0.0
    %2990 = vmatpush1.msra.mxu0 %v1990
    %2991 = vmatprep.subr.mxu0 0.0
    %2992 = vmatpush1.msra.mxu0 %v1993
    %2993 = vmatprep.subr.mxu0 0.0
    %2994 = vmatpush1.msra.mxu0 %v1996
    %2995 = vmatprep.mubr.f32.mxu0 %v1406
    %2996 = vmatmul.mubr.f32.gmra.mrb[0].mxu0 %v1405
    %v2997 = vpop.f32.mrb[0].mxu0
    %v2998 = vadd.f32 %v2923, %v2997
    %v2999 = vpop.f32.mrb[0].mxu0
    %3000 = vmatprep.mubr.f32.mxu0 %v1419
    %3001 = vmatmul.mubr.f32.gmra.mrb[0].mxu0 %v1418
    %v3002 = vpop.f32.mrb[0].mxu0
    %v3003 = vadd.f32 %v2928, %v3002
    %v3004 = vpop.f32.mrb[0].mxu0
    %3005 = vdwg.mxu0
    %3006 = vmatprep.subr.mxu0 0.0
    %3007 = vmatpush1.msra.mxu0 %v2015
    %3008 = vmatprep.subr.mxu0 0.0
    %3009 = vmatpush1.msra.mxu0 0.0
    %3010 = vmatprep.subr.mxu0 0.0
    %3011 = vmatpush1.msra.mxu0 0.0
    %3012 = vmatprep.subr.mxu0 0.0
    %3013 = vmatpush1.msra.mxu0 0.0
    %3014 = vmatprep.subr.mxu0 0.0
    %3015 = vmatpush1.msra.mxu0 0.0
    %3016 = vmatprep.subr.mxu0 0.0
    %3017 = vmatpush1.msra.mxu0 0.0
    %3018 = vmatprep.subr.mxu0 0.0
    %3019 = vmatpush1.msra.mxu0 0.0
    %3020 = vmatprep.subr.mxu0 0.0
    %3021 = vmatpush1.msra.mxu0 0.0
    %3022 = vmatprep.subr.mxu0 0.0
    %3023 = vmatpush1.msra.mxu0 0.0
    %3024 = vmatprep.subr.mxu0 0.0
    %3025 = vmatpush1.msra.mxu0 0.0
    %3026 = vmatprep.subr.mxu0 0.0
    %3027 = vmatpush1.msra.mxu0 0.0
    %3028 = vmatprep.subr.mxu0 0.0
    %3029 = vmatpush1.msra.mxu0 0.0
    %3030 = vmatprep.subr.mxu0 0.0
    %3031 = vmatpush1.msra.mxu0 0.0
    %3032 = vmatprep.subr.mxu0 0.0
    %3033 = vmatpush1.msra.mxu0 0.0
    %3034 = vmatprep.subr.mxu0 0.0
    %3035 = vmatpush1.msra.mxu0 0.0
    %3036 = vmatprep.subr.mxu0 0.0
    %3037 = vmatpush1.msra.mxu0 0.0
    %3038 = vmatprep.subr.mxu0 0.0
    %3039 = vmatpush1.msra.mxu0 0.0
    %3040 = vmatprep.subr.mxu0 0.0
    %3041 = vmatpush1.msra.mxu0 0.0
    %3042 = vmatprep.subr.mxu0 0.0
    %3043 = vmatpush1.msra.mxu0 0.0
    %3044 = vmatprep.subr.mxu0 0.0
    %3045 = vmatpush1.msra.mxu0 0.0
    %3046 = vmatprep.subr.mxu0 0.0
    %3047 = vmatpush1.msra.mxu0 0.0
    %3048 = vmatprep.subr.mxu0 0.0
    %3049 = vmatpush1.msra.mxu0 0.0
    %3050 = vmatprep.subr.mxu0 0.0
    %3051 = vmatpush1.msra.mxu0 0.0
    %3052 = vmatprep.subr.mxu0 0.0
    %3053 = vmatpush1.msra.mxu0 0.0
    %3054 = vmatprep.subr.mxu0 0.0
    %3055 = vmatpush1.msra.mxu0 0.0
    %3056 = vmatprep.subr.mxu0 0.0
    %3057 = vmatpush1.msra.mxu0 0.0
    %3058 = vmatprep.subr.mxu0 0.0
    %3059 = vmatpush1.msra.mxu0 0.0
    %3060 = vmatprep.subr.mxu0 0.0
    %3061 = vmatpush1.msra.mxu0 0.0
    %3062 = vmatprep.subr.mxu0 0.0
    %3063 = vmatpush1.msra.mxu0 0.0
    %3064 = vmatprep.subr.mxu0 0.0
    %3065 = vmatpush1.msra.mxu0 0.0
    %3066 = vmatprep.subr.mxu0 0.0
    %3067 = vmatpush1.msra.mxu0 0.0
    %3068 = vmatprep.subr.mxu0 0.0
    %3069 = vmatpush1.msra.mxu0 0.0
    %3070 = vmatprep.mubr.f32.mxu0 0.0
    %3071 = vmatmul.mubr.f32.gmra.mrb[0].mxu0 %v2002
    %v3072 = vpop.f32.mrb[0].mxu0
    %v3073 = vadd.f32 %v2998, %v3072
    %v3074 = vpop.f32.mrb[0].mxu0
    %3075 = vmatprep.mubr.f32.mxu0 0.0
    %3076 = vmatmul.mubr.f32.gmra.mrb[0].mxu0 %v2005
    %v3077 = vpop.f32.mrb[0].mxu0
    %v3078 = vadd.f32 %v3003, %v3077
    %v3079 = vpop.f32.mrb[0].mxu0
    %3080 = vdwg.mxu0
    %v3081 = vmax.f32 %v2546, 0.0
    %v3082 = vmax.f32 %v2548, 0.0
    %v3083 = vmax.f32 %v3073, 0.0
    %v3084 = vmax.f32 %v2552, 0.0
    %v3085 = vmax.f32 %v2554, 0.0
    %v3086 = vmax.f32 %v3078, 0.0
    %v3087 = vld [vmem:[%s9] sm:$0xff]
    %v3088 = vld [vmem:[%s9 + $0x8] sm:$0xff]
    %v3089 = vld [vmem:[%s10] sm:$0xff]
    %v3090 = vld [vmem:[%s10 + $0x8] sm:$0xff]
    %v3091 = vadd.f32 %v3081, %v3082
    %vm3092 = vcmask 900096
    %v3093 = vsel %vm3092, %v3083, 0.0
    %v3094 = vadd.f32 %v3091, %v3093
    %3095 = vadd.xlane.f32.xlu0 %v3094
    %v3096 = vpop.xlane.xlu0 %3095
    %v3097 = vadd.f32 %v3084, %v3085
    %v3098 = vsel %vm3092, %v3086, 0.0
    %v3099 = vadd.f32 %v3097, %v3098
    %3100 = vadd.xlane.f32.xlu0 %v3099
    %v3101 = vpop.xlane.xlu0 %3100
    %v3102 = vmul.f32 %v3096, 0.00295858
    %v3103 = vmul.f32 %v3101, 0.00295858
    %v3104 = vmul.f32 %v3081, %v3081
    %v3105 = vmul.f32 %v3082, %v3082
    %v3106 = vmul.f32 %v3083, %v3083
    %v3107 = vmul.f32 %v3084, %v3084
    %v3108 = vmul.f32 %v3085, %v3085
    %v3109 = vmul.f32 %v3086, %v3086
    %v3110 = vadd.f32 %v3104, %v3105
    %v3111 = vsel %vm3092, %v3106, 0.0
    %v3112 = vadd.f32 %v3110, %v3111
    %3113 = vadd.xlane.f32.xlu0 %v3112
    %v3114 = vpop.xlane.xlu0 %3113
    %v3115 = vadd.f32 %v3107, %v3108
    %v3116 = vsel %vm3092, %v3109, 0.0
    %v3117 = vadd.f32 %v3115, %v3116
    %3118 = vadd.xlane.f32.xlu0 %v3117
    %v3119 = vpop.xlane.xlu0 %3118
    %v3120 = vmul.f32 %v3114, 0.00295858
    %v3121 = vmul.f32 %v3119, 0.00295858
    %v3122 = vmul.f32 %v3102, %v3102
    %v3123 = vmul.f32 %v3103, %v3103
    %v3124 = vsub.f32 %v3120, %v3122
    %v3125 = vsub.f32 %v3121, %v3123
    %v3126 = vadd.f32 %v3124, 1e-05
    %v3127 = vadd.f32 %v3125, 1e-05
    %v3128 = vrsqrt.pop %v3126
    %v3129 = vrsqrt.pop %v3127
    %v3130 = vmul.f32 %v3087, %v3128
    %v3131 = vmul.f32 %v3088, %v3129
    %3133 = vset.pattern.permute.xlu0 0
    %3134 = vperm.xlu0 %3133, %v3130
    %v3135 = vpop.permute.xlu0 %3134
    %3138 = vset.pattern.permute.xlu0 0
    %3139 = vperm.xlu0 %3138, %v3131
    %v3140 = vpop.permute.xlu0 %3139
    %v3142 = vmul.f32 %v3081, %v3135
    %v3143 = vmul.f32 %v3082, %v3135
    %v3144 = vmul.f32 %v3083, %v3135
    %v3145 = vmul.f32 %v3084, %v3140
    %v3146 = vmul.f32 %v3085, %v3140
    %v3147 = vmul.f32 %v3086, %v3140
    %v3148 = vmul.f32 %v3102, %v3130
    %v3149 = vmul.f32 %v3103, %v3131
    %v3150 = vsub.f32 %v3089, %v3148
    %v3151 = vsub.f32 %v3090, %v3149
    %3153 = vset.pattern.permute.xlu0 0
    %3154 = vperm.xlu0 %3153, %v3150
    %v3155 = vpop.permute.xlu0 %3154
    %3158 = vset.pattern.permute.xlu0 0
    %3159 = vperm.xlu0 %3158, %v3151
    %v3160 = vpop.permute.xlu0 %3159
    %v3162 = vadd.f32 %v3142, %v3155
    %v3163 = vadd.f32 %v3143, %v3155
    %v3164 = vadd.f32 %v3144, %v3155
    %v3165 = vadd.f32 %v3145, %v3160
    %v3166 = vadd.f32 %v3146, %v3160
    %v3167 = vadd.f32 %v3147, %v3160
    %v3168 = vld [vmem:[%s11] sm:$0xff]
    %v3169 = vld [vmem:[%s11 + $0x8] sm:$0xff]
    %v3170 = vld [vmem:[%s11 + $0x10] sm:$0xff]
    %v3171 = vld [vmem:[%s11 + $0x18] sm:$0xff]
    %v3172 = vld [vmem:[%s11 + $0x20] sm:$0xff]
    %v3173 = vld [vmem:[%s11 + $0x28] sm:$0xff]
    %v3174 = vld [vmem:[%s12] sm:$0xff]
    %v3175 = vld [vmem:[%s12 + $0x8] sm:$0xff]
    %v3176 = vld [vmem:[%s12 + $0x10] sm:$0xff]
    %3183 = vrot.lane.b32.xlu0 %v3162, 127
    %v3184 = vpop.permute.xlu0 %3183
    %3185 = vrot.lane.b32.xlu0 %v3163, 127
    %v3186 = vpop.permute.xlu0 %3185
    %3187 = vrot.lane.b32.xlu0 %v3164, 127
    %v3188 = vpop.permute.xlu0 %3187
    %3189 = vrot.lane.b32.xlu0 %v3165, 127
    %v3190 = vpop.permute.xlu0 %3189
    %3191 = vrot.lane.b32.xlu0 %v3166, 127
    %v3192 = vpop.permute.xlu0 %3191
    %3193 = vrot.lane.b32.xlu0 %v3167, 127
    %v3194 = vpop.permute.xlu0 %3193
    %v3195 = vsel %vm170, %v3184, %v3186
    %v3196 = vsel %vm170, %v3186, %v3188
    %v3197 = vsel %vm170, %v3190, %v3192
    %v3198 = vsel %vm170, %v3192, %v3194
    %3205 = vrot.lane.b32.xlu0 %v3162, 126
    %v3206 = vpop.permute.xlu0 %3205
    %3207 = vrot.lane.b32.xlu0 %v3163, 126
    %v3208 = vpop.permute.xlu0 %3207
    %3209 = vrot.lane.b32.xlu0 %v3164, 126
    %v3210 = vpop.permute.xlu0 %3209
    %3211 = vrot.lane.b32.xlu0 %v3165, 126
    %v3212 = vpop.permute.xlu0 %3211
    %3213 = vrot.lane.b32.xlu0 %v3166, 126
    %v3214 = vpop.permute.xlu0 %3213
    %3215 = vrot.lane.b32.xlu0 %v3167, 126
    %v3216 = vpop.permute.xlu0 %3215
    %v3217 = vsel %vm222, %v3206, %v3208
    %v3218 = vsel %vm222, %v3208, %v3210
    %v3219 = vsel %vm222, %v3212, %v3214
    %v3220 = vsel %vm222, %v3214, %v3216
    %3227 = vrot.lane.b32.xlu0 %v3162, 115
    %v3228 = vpop.permute.xlu0 %3227
    %3229 = vrot.lane.b32.xlu0 %v3163, 115
    %v3230 = vpop.permute.xlu0 %3229
    %3231 = vrot.lane.b32.xlu0 %v3164, 115
    %v3232 = vpop.permute.xlu0 %3231
    %3233 = vrot.lane.b32.xlu0 %v3165, 115
    %v3234 = vpop.permute.xlu0 %3233
    %3235 = vrot.lane.b32.xlu0 %v3166, 115
    %v3236 = vpop.permute.xlu0 %3235
    %3237 = vrot.lane.b32.xlu0 %v3167, 115
    %v3238 = vpop.permute.xlu0 %3237
    %vm3239 = vcmask 941056
    %v3240 = vsel %vm3239, %v3228, %v3230
    %v3241 = vsel %vm3239, %v3230, %v3232
    %v3242 = vsel %vm3239, %v3234, %v3236
    %v3243 = vsel %vm3239, %v3236, %v3238
    %3250 = vrot.lane.b32.xlu0 %v3162, 114
    %v3251 = vpop.permute.xlu0 %3250
    %3252 = vrot.lane.b32.xlu0 %v3163, 114
    %v3253 = vpop.permute.xlu0 %3252
    %3254 = vrot.lane.b32.xlu0 %v3164, 114
    %v3255 = vpop.permute.xlu0 %3254
    %3256 = vrot.lane.b32.xlu0 %v3165, 114
    %v3257 = vpop.permute.xlu0 %3256
    %3258 = vrot.lane.b32.xlu0 %v3166, 114
    %v3259 = vpop.permute.xlu0 %3258
    %3260 = vrot.lane.b32.xlu0 %v3167, 114
    %v3261 = vpop.permute.xlu0 %3260
    %vm3262 = vcmask 932864
    %v3263 = vsel %vm3262, %v3251, %v3253
    %v3264 = vsel %vm3262, %v3253, %v3255
    %v3265 = vsel %vm3262, %v3257, %v3259
    %v3266 = vsel %vm3262, %v3259, %v3261
    %3273 = vrot.lane.b32.xlu0 %v3162, 113
    %v3274 = vpop.permute.xlu0 %3273
    %3275 = vrot.lane.b32.xlu0 %v3163, 113
    %v3276 = vpop.permute.xlu0 %3275
    %3277 = vrot.lane.b32.xlu0 %v3164, 113
    %v3278 = vpop.permute.xlu0 %3277
    %3279 = vrot.lane.b32.xlu0 %v3165, 113
    %v3280 = vpop.permute.xlu0 %3279
    %3281 = vrot.lane.b32.xlu0 %v3166, 113
    %v3282 = vpop.permute.xlu0 %3281
    %3283 = vrot.lane.b32.xlu0 %v3167, 113
    %v3284 = vpop.permute.xlu0 %3283
    %vm3285 = vcmask 924672
    %v3286 = vsel %vm3285, %v3274, %v3276
    %v3287 = vsel %vm3285, %v3276, %v3278
    %v3288 = vsel %vm3285, %v3280, %v3282
    %v3289 = vsel %vm3285, %v3282, %v3284
    %3296 = vrot.lane.b32.xlu0 %v3162, 102
    %v3297 = vpop.permute.xlu0 %3296
    %3298 = vrot.lane.b32.xlu0 %v3163, 102
    %v3299 = vpop.permute.xlu0 %3298
    %3300 = vrot.lane.b32.xlu0 %v3164, 102
    %v3301 = vpop.permute.xlu0 %3300
    %3302 = vrot.lane.b32.xlu0 %v3165, 102
    %v3303 = vpop.permute.xlu0 %3302
    %3304 = vrot.lane.b32.xlu0 %v3166, 102
    %v3305 = vpop.permute.xlu0 %3304
    %3306 = vrot.lane.b32.xlu0 %v3167, 102
    %v3307 = vpop.permute.xlu0 %3306
    %vm3308 = vcmask 834560
    %v3309 = vsel %vm3308, %v3297, %v3299
    %v3310 = vsel %vm3308, %v3299, %v3301
    %v3311 = vsel %vm3308, %v3303, %v3305
    %v3312 = vsel %vm3308, %v3305, %v3307
    %3319 = vrot.lane.b32.xlu0 %v3162, 101
    %v3320 = vpop.permute.xlu0 %3319
    %3321 = vrot.lane.b32.xlu0 %v3163, 101
    %v3322 = vpop.permute.xlu0 %3321
    %3323 = vrot.lane.b32.xlu0 %v3164, 101
    %v3324 = vpop.permute.xlu0 %3323
    %3325 = vrot.lane.b32.xlu0 %v3165, 101
    %v3326 = vpop.permute.xlu0 %3325
    %3327 = vrot.lane.b32.xlu0 %v3166, 101
    %v3328 = vpop.permute.xlu0 %3327
    %3329 = vrot.lane.b32.xlu0 %v3167, 101
    %v3330 = vpop.permute.xlu0 %3329
    %vm3331 = vcmask 826368
    %v3332 = vsel %vm3331, %v3320, %v3322
    %v3333 = vsel %vm3331, %v3322, %v3324
    %v3334 = vsel %vm3331, %v3326, %v3328
    %v3335 = vsel %vm3331, %v3328, %v3330
    %3342 = vrot.lane.b32.xlu0 %v3162, 100
    %v3343 = vpop.permute.xlu0 %3342
    %3344 = vrot.lane.b32.xlu0 %v3163, 100
    %v3345 = vpop.permute.xlu0 %3344
    %3346 = vrot.lane.b32.xlu0 %v3164, 100
    %v3347 = vpop.permute.xlu0 %3346
    %3348 = vrot.lane.b32.xlu0 %v3165, 100
    %v3349 = vpop.permute.xlu0 %3348
    %3350 = vrot.lane.b32.xlu0 %v3166, 100
    %v3351 = vpop.permute.xlu0 %3350
    %3352 = vrot.lane.b32.xlu0 %v3167, 100
    %v3353 = vpop.permute.xlu0 %3352
    %v3354 = vsel %vm274, %v3343, %v3345
    %v3355 = vsel %vm274, %v3345, %v3347
    %v3356 = vsel %vm274, %v3349, %v3351
    %v3357 = vsel %vm274, %v3351, %v3353
    %3365 = vset.pattern.permute.xlu0 0
    %3366 = vperm.xlu0 %3365, %v3174
    %v3367 = vpop.permute.xlu0 %3366
    %3370 = vset.pattern.permute.xlu0 0
    %3371 = vperm.xlu0 %3370, %v3175
    %v3372 = vpop.permute.xlu0 %3371
    %3375 = vset.pattern.permute.xlu0 0
    %3376 = vperm.xlu0 %3375, %v3176
    %v3377 = vpop.permute.xlu0 %3376
    %vm3379 = vcmask 130048
    %v3381 = vsel %vm3379, %v3169, 0
    %v3384 = vsel %vm3379, %v3171, 0
    %v3387 = vsel %vm3379, %v3173, 0
    %3389 = vmatprep.subr.mxu0 %v3163
    %3390 = vmatpush1.msra.mxu0 %v3162
    %3391 = vmatprep.subr.mxu0 %v3166
    %3392 = vmatpush1.msra.mxu0 %v3165
    %3393 = vmatprep.subr.mxu0 %v3196
    %3394 = vmatpush1.msra.mxu0 %v3195
    %3395 = vmatprep.subr.mxu0 %v3198
    %3396 = vmatpush1.msra.mxu0 %v3197
    %3397 = vmatprep.subr.mxu0 %v3218
    %3398 = vmatpush1.msra.mxu0 %v3217
    %3399 = vmatprep.subr.mxu0 %v3220
    %3400 = vmatpush1.msra.mxu0 %v3219
    %3401 = vmatprep.subr.mxu0 %v3241
    %3402 = vmatpush1.msra.mxu0 %v3240
    %3403 = vmatprep.subr.mxu0 %v3243
    %3404 = vmatpush1.msra.mxu0 %v3242
    %3405 = vmatprep.subr.mxu0 %v3264
    %3406 = vmatpush1.msra.mxu0 %v3263
    %3407 = vmatprep.subr.mxu0 %v3266
    %3408 = vmatpush1.msra.mxu0 %v3265
    %3409 = vmatprep.subr.mxu0 %v3287
    %3410 = vmatpush1.msra.mxu0 %v3286
    %3411 = vmatprep.subr.mxu0 %v3289
    %3412 = vmatpush1.msra.mxu0 %v3288
    %3413 = vmatprep.subr.mxu0 %v3310
    %3414 = vmatpush1.msra.mxu0 %v3309
    %3415 = vmatprep.subr.mxu0 %v3312
    %3416 = vmatpush1.msra.mxu0 %v3311
    %3417 = vmatprep.subr.mxu0 %v3333
    %3418 = vmatpush1.msra.mxu0 %v3332
    %3419 = vmatprep.subr.mxu0 %v3335
    %3420 = vmatpush1.msra.mxu0 %v3334
    %3421 = vmatprep.subr.mxu0 %v3355
    %3422 = vmatpush1.msra.mxu0 %v3354
    %3423 = vmatprep.subr.mxu0 %v3357
    %3424 = vmatpush1.msra.mxu0 %v3356
    %3425 = vmatprep.subr.mxu0 0.0
    %3426 = vmatpush1.msra.mxu0 0.0
    %3427 = vmatprep.subr.mxu0 0.0
    %3428 = vmatpush1.msra.mxu0 0.0
    %3429 = vmatprep.subr.mxu0 0.0
    %3430 = vmatpush1.msra.mxu0 0.0
    %3431 = vmatprep.subr.mxu0 0.0
    %3432 = vmatpush1.msra.mxu0 0.0
    %3433 = vmatprep.subr.mxu0 0.0
    %3434 = vmatpush1.msra.mxu0 0.0
    %3435 = vmatprep.subr.mxu0 0.0
    %3436 = vmatpush1.msra.mxu0 0.0
    %3437 = vmatprep.subr.mxu0 0.0
    %3438 = vmatpush1.msra.mxu0 0.0
    %3439 = vmatprep.subr.mxu0 0.0
    %3440 = vmatpush1.msra.mxu0 0.0
    %3441 = vmatprep.subr.mxu0 0.0
    %3442 = vmatpush1.msra.mxu0 0.0
    %3443 = vmatprep.subr.mxu0 0.0
    %3444 = vmatpush1.msra.mxu0 0.0
    %3445 = vmatprep.subr.mxu0 0.0
    %3446 = vmatpush1.msra.mxu0 0.0
    %3447 = vmatprep.subr.mxu0 0.0
    %3448 = vmatpush1.msra.mxu0 0.0
    %3449 = vmatprep.subr.mxu0 0.0
    %3450 = vmatpush1.msra.mxu0 0.0
    %3451 = vmatprep.subr.mxu0 0.0
    %3452 = vmatpush1.msra.mxu0 0.0
    %3453 = vmatprep.mubr.f32.mxu0 %v3381
    %3454 = vmatmul.mubr.f32.gmra.mrb[0].mxu0 %v3168
    %v3455 = vpop.f32.mrb[0].mxu0
    %v3456 = vadd.f32 %v3367, %v3455
    %v3457 = vpop.f32.mrb[0].mxu0
    %v3458 = vadd.f32 %v3367, %v3457
    %3459 = vmatprep.mubr.f32.mxu0 %v3384
    %3460 = vmatmul.mubr.f32.gmra.mrb[0].mxu0 %v3170
    %v3461 = vpop.f32.mrb[0].mxu0
    %v3462 = vadd.f32 %v3372, %v3461
    %v3463 = vpop.f32.mrb[0].mxu0
    %v3464 = vadd.f32 %v3372, %v3463
    %3465 = vmatprep.mubr.f32.mxu0 %v3387
    %3466 = vmatmul.mubr.f32.gmra.mrb[0].mxu0 %v3172
    %v3467 = vpop.f32.mrb[0].mxu0
    %v3468 = vadd.f32 %v3377, %v3467
    %v3469 = vpop.f32.mrb[0].mxu0
    %v3470 = vadd.f32 %v3377, %v3469
    %3471 = vdwg.mxu0
    %3472 = vmatprep.subr.mxu0 0.0
    %3473 = vmatpush1.msra.mxu0 %v3164
    %3474 = vmatprep.subr.mxu0 0.0
    %3475 = vmatpush1.msra.mxu0 %v3167
    %3476 = vmatprep.subr.mxu0 0.0
    %3477 = vmatpush1.msra.mxu0 %v3188
    %3478 = vmatprep.subr.mxu0 0.0
    %3479 = vmatpush1.msra.mxu0 %v3194
    %3480 = vmatprep.subr.mxu0 0.0
    %3481 = vmatpush1.msra.mxu0 %v3210
    %3482 = vmatprep.subr.mxu0 0.0
    %3483 = vmatpush1.msra.mxu0 %v3216
    %3484 = vmatprep.subr.mxu0 0.0
    %3485 = vmatpush1.msra.mxu0 %v3232
    %3486 = vmatprep.subr.mxu0 0.0
    %3487 = vmatpush1.msra.mxu0 %v3238
    %3488 = vmatprep.subr.mxu0 0.0
    %3489 = vmatpush1.msra.mxu0 %v3255
    %3490 = vmatprep.subr.mxu0 0.0
    %3491 = vmatpush1.msra.mxu0 %v3261
    %3492 = vmatprep.subr.mxu0 0.0
    %3493 = vmatpush1.msra.mxu0 %v3278
    %3494 = vmatprep.subr.mxu0 0.0
    %3495 = vmatpush1.msra.mxu0 %v3284
    %3496 = vmatprep.subr.mxu0 0.0
    %3497 = vmatpush1.msra.mxu0 %v3301
    %3498 = vmatprep.subr.mxu0 0.0
    %3499 = vmatpush1.msra.mxu0 %v3307
    %3500 = vmatprep.subr.mxu0 0.0
    %3501 = vmatpush1.msra.mxu0 %v3324
    %3502 = vmatprep.subr.mxu0 0.0
    %3503 = vmatpush1.msra.mxu0 %v3330
    %3504 = vmatprep.subr.mxu0 0.0
    %3505 = vmatpush1.msra.mxu0 %v3347
    %3506 = vmatprep.subr.mxu0 0.0
    %3507 = vmatpush1.msra.mxu0 %v3353
    %3508 = vmatprep.subr.mxu0 0.0
    %3509 = vmatpush1.msra.mxu0 0.0
    %3510 = vmatprep.subr.mxu0 0.0
    %3511 = vmatpush1.msra.mxu0 0.0
    %3512 = vmatprep.subr.mxu0 0.0
    %3513 = vmatpush1.msra.mxu0 0.0
    %3514 = vmatprep.subr.mxu0 0.0
    %3515 = vmatpush1.msra.mxu0 0.0
    %3516 = vmatprep.subr.mxu0 0.0
    %3517 = vmatpush1.msra.mxu0 0.0
    %3518 = vmatprep.subr.mxu0 0.0
    %3519 = vmatpush1.msra.mxu0 0.0
    %3520 = vmatprep.subr.mxu0 0.0
    %3521 = vmatpush1.msra.mxu0 0.0
    %3522 = vmatprep.subr.mxu0 0.0
    %3523 = vmatpush1.msra.mxu0 0.0
    %3524 = vmatprep.subr.mxu0 0.0
    %3525 = vmatpush1.msra.mxu0 0.0
    %3526 = vmatprep.subr.mxu0 0.0
    %3527 = vmatpush1.msra.mxu0 0.0
    %3528 = vmatprep.subr.mxu0 0.0
    %3529 = vmatpush1.msra.mxu0 0.0
    %3530 = vmatprep.subr.mxu0 0.0
    %3531 = vmatpush1.msra.mxu0 0.0
    %3532 = vmatprep.subr.mxu0 0.0
    %3533 = vmatpush1.msra.mxu0 0.0
    %3534 = vmatprep.subr.mxu0 0.0
    %3535 = vmatpush1.msra.mxu0 0.0
    %3536 = vmatprep.mubr.f32.mxu0 %v3381
    %3537 = vmatmul.mubr.f32.gmra.mrb[0].mxu0 %v3168
    %v3538 = vpop.f32.mrb[0].mxu0
    %v3539 = vadd.f32 %v3367, %v3538
    %v3540 = vpop.f32.mrb[0].mxu0
    %3541 = vmatprep.mubr.f32.mxu0 %v3384
    %3542 = vmatmul.mubr.f32.gmra.mrb[0].mxu0 %v3170
    %v3543 = vpop.f32.mrb[0].mxu0
    %v3544 = vadd.f32 %v3372, %v3543
    %v3545 = vpop.f32.mrb[0].mxu0
    %3546 = vmatprep.mubr.f32.mxu0 %v3387
    %3547 = vmatmul.mubr.f32.gmra.mrb[0].mxu0 %v3172
    %v3548 = vpop.f32.mrb[0].mxu0
    %v3549 = vadd.f32 %v3377, %v3548
    %v3550 = vpop.f32.mrb[0].mxu0
    %3551 = vdwg.mxu0
    %v3552 = vld [vmem:[%s2] sm:$0xff]
    %v3553 = vld [vmem:[%s2 + $0x8] sm:$0xff]
    %v3554 = vld [vmem:[%s2 + $0x10] sm:$0xff]
    %v3555 = vld [vmem:[%s2 + $0x18] sm:$0xff]
    %v3556 = vld [vmem:[%s2 + $0x20] sm:$0xff]
    %v3557 = vld [vmem:[%s2 + $0x28] sm:$0xff]
    %v3558 = vld [vmem:[%s2 + $0x30] sm:$0xff]
    %v3559 = vld [vmem:[%s2 + $0x38] sm:$0xff]
    %v3560 = vld [vmem:[%s2 + $0x40] sm:$0xff]
    %v3561 = vld [vmem:[%s2 + $0x48] sm:$0xff]
    %v3562 = vld [vmem:[%s2 + $0x50] sm:$0xff]
    %v3563 = vld [vmem:[%s2 + $0x58] sm:$0xff]
    %v3564 = vld [vmem:[%s2 + $0x60] sm:$0xff]
    %v3565 = vld [vmem:[%s2 + $0x68] sm:$0xff]
    %v3566 = vld [vmem:[%s2 + $0x70] sm:$0xff]
    %v3567 = vld [vmem:[%s2 + $0x78] sm:$0xff]
    %v3568 = vld [vmem:[%s2 + $0x80] sm:$0xff]
    %v3569 = vld [vmem:[%s2 + $0x88] sm:$0xff]
    %v3570 = vld [vmem:[%s2 + $0x90] sm:$0xff]
    %v3571 = vld [vmem:[%s2 + $0x98] sm:$0xff]
    %v3572 = vld [vmem:[%s2 + $0xa0] sm:$0xff]
    %v3573 = vld [vmem:[%s2 + $0xa8] sm:$0xff]
    %v3574 = vld [vmem:[%s2 + $0xb0] sm:$0xff]
    %v3575 = vld [vmem:[%s2 + $0xb8] sm:$0xff]
    %v3576 = vld [vmem:[%s2 + $0xc0] sm:$0xff]
    %v3577 = vld [vmem:[%s2 + $0xc8] sm:$0xff]
    %v3578 = vld [vmem:[%s2 + $0xd0] sm:$0xff]
    %v3579 = vld [vmem:[%s2 + $0xd8] sm:$0xff]
    %v3580 = vld [vmem:[%s2 + $0xe0] sm:$0xff]
    %v3581 = vld [vmem:[%s2 + $0xe8] sm:$0xff]
    %v3582 = vld [vmem:[%s2 + $0xf0] sm:$0xff]
    %v3583 = vld [vmem:[%s2 + $0xf8] sm:$0xff]
    %v3584 = vld [vmem:[%s2 + $0x100] sm:$0xff]
    %v3585 = vld [vmem:[%s2 + $0x108] sm:$0xff]
    %v3586 = vld [vmem:[%s2 + $0x110] sm:$0xff]
    %v3587 = vld [vmem:[%s2 + $0x118] sm:$0xff]
    %v3588 = vld [vmem:[%s2 + $0x120] sm:$0xff]
    %v3589 = vld [vmem:[%s2 + $0x128] sm:$0xff]
    %v3590 = vld [vmem:[%s2 + $0x130] sm:$0xff]
    %v3591 = vld [vmem:[%s2 + $0x138] sm:$0xff]
    %v3592 = vld [vmem:[%s2 + $0x140] sm:$0xff]
    %v3593 = vld [vmem:[%s2 + $0x148] sm:$0xff]
    %v3594 = vld [vmem:[%s2 + $0x150] sm:$0xff]
    %v3595 = vld [vmem:[%s2 + $0x158] sm:$0xff]
    %v3596 = vld [vmem:[%s2 + $0x160] sm:$0xff]
    %v3597 = vld [vmem:[%s2 + $0x168] sm:$0xff]
    %v3598 = vld [vmem:[%s2 + $0x170] sm:$0xff]
    %v3599 = vld [vmem:[%s2 + $0x178] sm:$0xff]
    %v3600 = vld [vmem:[%s2 + $0x180] sm:$0xff]
    %v3601 = vld [vmem:[%s2 + $0x188] sm:$0xff]
    %v3602 = vld [vmem:[%s2 + $0x190] sm:$0xff]
    %v3603 = vld [vmem:[%s2 + $0x198] sm:$0xff]
    %v3604 = vld [vmem:[%s2 + $0x1a0] sm:$0xff]
    %v3605 = vld [vmem:[%s2 + $0x1a8] sm:$0xff]
    %v3606 = vld [vmem:[%s2 + $0x1b0] sm:$0xff]
    %v3607 = vld [vmem:[%s2 + $0x1b8] sm:$0xff]
    %v3608 = vld [vmem:[%s2 + $0x1c0] sm:$0xff]
    %v3609 = vld [vmem:[%s2 + $0x1c8] sm:$0xff]
    %v3610 = vld [vmem:[%s2 + $0x1d0] sm:$0xff]
    %v3611 = vld [vmem:[%s2 + $0x1d8] sm:$0xff]
    %v3612 = vld [vmem:[%s2 + $0x1e0] sm:$0xff]
    %v3613 = vld [vmem:[%s2 + $0x1e8] sm:$0xff]
    %v3614 = vld [vmem:[%s2 + $0x1f0] sm:$0xff]
    %v3615 = vld [vmem:[%s2 + $0x1f8] sm:$0xff]
    %v3616 = vld [vmem:[%s2 + $0x200] sm:$0xff]
    %v3617 = vld [vmem:[%s2 + $0x208] sm:$0xff]
    %v3618 = vld [vmem:[%s2 + $0x210] sm:$0xff]
    %v3619 = vld [vmem:[%s2 + $0x218] sm:$0xff]
    %v3620 = vld [vmem:[%s2 + $0x220] sm:$0xff]
    %v3621 = vld [vmem:[%s2 + $0x228] sm:$0xff]
    %v3622 = vld [vmem:[%s2 + $0x230] sm:$0xff]
    %v3623 = vld [vmem:[%s2 + $0x238] sm:$0xff]
    %v3624 = vld [vmem:[%s2 + $0x240] sm:$0xff]
    %v3625 = vld [vmem:[%s2 + $0x248] sm:$0xff]
    %v3626 = vld [vmem:[%s2 + $0x250] sm:$0xff]
    %v3627 = vld [vmem:[%s2 + $0x258] sm:$0xff]
    %v3628 = vld [vmem:[%s2 + $0x260] sm:$0xff]
    %v3629 = vld [vmem:[%s2 + $0x268] sm:$0xff]
    %v3630 = vld [vmem:[%s2 + $0x270] sm:$0xff]
    %v3631 = vld [vmem:[%s2 + $0x278] sm:$0xff]
    %v3632 = vld [vmem:[%s2 + $0x280] sm:$0xff]
    %v3633 = vld [vmem:[%s2 + $0x288] sm:$0xff]
    %v3634 = vld [vmem:[%s2 + $0x290] sm:$0xff]
    %v3635 = vld [vmem:[%s2 + $0x298] sm:$0xff]
    %v3636 = vld [vmem:[%s2 + $0x2a0] sm:$0xff]
    %v3637 = vld [vmem:[%s2 + $0x2a8] sm:$0xff]
    %v3638 = vld [vmem:[%s2 + $0x2b0] sm:$0xff]
    %v3639 = vld [vmem:[%s2 + $0x2b8] sm:$0xff]
    %v3640 = vld [vmem:[%s2 + $0x2c0] sm:$0xff]
    %v3641 = vld [vmem:[%s2 + $0x2c8] sm:$0xff]
    %v3642 = vld [vmem:[%s2 + $0x2d0] sm:$0xff]
    %v3643 = vld [vmem:[%s2 + $0x2d8] sm:$0xff]
    %v3644 = vld [vmem:[%s2 + $0x2e0] sm:$0xff]
    %v3645 = vld [vmem:[%s2 + $0x2e8] sm:$0xff]
    %v3646 = vld [vmem:[%s2 + $0x2f0] sm:$0xff]
    %v3647 = vld [vmem:[%s2 + $0x2f8] sm:$0xff]
    %v3648 = vld [vmem:[%s2 + $0x300] sm:$0xff]
    %v3649 = vld [vmem:[%s2 + $0x308] sm:$0xff]
    %v3650 = vld [vmem:[%s2 + $0x310] sm:$0xff]
    %v3651 = vld [vmem:[%s2 + $0x318] sm:$0xff]
    %v3652 = vld [vmem:[%s2 + $0x320] sm:$0xff]
    %v3653 = vld [vmem:[%s2 + $0x328] sm:$0xff]
    %v3654 = vld [vmem:[%s2 + $0x330] sm:$0xff]
    %v3655 = vld [vmem:[%s2 + $0x338] sm:$0xff]
    %v3656 = vld [vmem:[%s2 + $0x340] sm:$0xff]
    %v3657 = vld [vmem:[%s2 + $0x348] sm:$0xff]
    %v3658 = vld [vmem:[%s2 + $0x350] sm:$0xff]
    %v3659 = vld [vmem:[%s2 + $0x358] sm:$0xff]
    %v3660 = vld [vmem:[%s2 + $0x360] sm:$0xff]
    %v3661 = vld [vmem:[%s2 + $0x368] sm:$0xff]
    %v3662 = vld [vmem:[%s2 + $0x370] sm:$0xff]
    %v3663 = vld [vmem:[%s2 + $0x378] sm:$0xff]
    %v3664 = vld [vmem:[%s2 + $0x380] sm:$0xff]
    %v3665 = vld [vmem:[%s2 + $0x388] sm:$0xff]
    %v3666 = vld [vmem:[%s2 + $0x390] sm:$0xff]
    %v3667 = vld [vmem:[%s2 + $0x398] sm:$0xff]
    %v3668 = vld [vmem:[%s2 + $0x3a0] sm:$0xff]
    %v3669 = vld [vmem:[%s2 + $0x3a8] sm:$0xff]
    %v3670 = vld [vmem:[%s2 + $0x3b0] sm:$0xff]
    %v3671 = vld [vmem:[%s2 + $0x3b8] sm:$0xff]
    %v3672 = vld [vmem:[%s2 + $0x3c0] sm:$0xff]
    %v3673 = vld [vmem:[%s2 + $0x3c8] sm:$0xff]
    %v3674 = vld [vmem:[%s2 + $0x3d0] sm:$0xff]
    %v3675 = vld [vmem:[%s2 + $0x3d8] sm:$0xff]
    %v3676 = vld [vmem:[%s2 + $0x3e0] sm:$0xff]
    %v3677 = vld [vmem:[%s2 + $0x3e8] sm:$0xff]
    %v3678 = vld [vmem:[%s2 + $0x3f0] sm:$0x3]
    %v3679 = vld [vmem:[%s2 + $0x3f8] sm:$0x3]
    %v3680 = vld [vmem:[%s2 + $0x400] sm:$0x3]
    %vm3681 = vcmask 670720
    %v3683 = vsel %vm3681, %v3539, 0
    %v3686 = vsel %vm3681, %v3544, 0
    %v3689 = vsel %vm3681, %v3549, 0
    %vm3691 = vcmask 1041408
    %v3693 = vsel %vm3691, %v3678, 0
    %v3696 = vsel %vm3691, %v3679, 0
    %v3699 = vsel %vm3691, %v3680, 0
    %3701 = vmatprep.subr.mxu0 %v3553
    %3702 = vmatpush1.msra.mxu0 %v3552
    %3703 = vmatprep.subr.mxu0 %v3556
    %3704 = vmatpush1.msra.mxu0 %v3555
    %3705 = vmatprep.subr.mxu0 %v3559
    %3706 = vmatpush1.msra.mxu0 %v3558
    %3707 = vmatprep.subr.mxu0 %v3562
    %3708 = vmatpush1.msra.mxu0 %v3561
    %3709 = vmatprep.subr.mxu0 %v3565
    %3710 = vmatpush1.msra.mxu0 %v3564
    %3711 = vmatprep.subr.mxu0 %v3568
    %3712 = vmatpush1.msra.mxu0 %v3567
    %3713 = vmatprep.subr.mxu0 %v3571
    %3714 = vmatpush1.msra.mxu0 %v3570
    %3715 = vmatprep.subr.mxu0 %v3574
    %3716 = vmatpush1.msra.mxu0 %v3573
    %3717 = vmatprep.subr.mxu0 %v3577
    %3718 = vmatpush1.msra.mxu0 %v3576
    %3719 = vmatprep.subr.mxu0 %v3580
    %3720 = vmatpush1.msra.mxu0 %v3579
    %3721 = vmatprep.subr.mxu0 %v3583
    %3722 = vmatpush1.msra.mxu0 %v3582
    %3723 = vmatprep.subr.mxu0 %v3586
    %3724 = vmatpush1.msra.mxu0 %v3585
    %3725 = vmatprep.subr.mxu0 %v3589
    %3726 = vmatpush1.msra.mxu0 %v3588
    %3727 = vmatprep.subr.mxu0 %v3592
    %3728 = vmatpush1.msra.mxu0 %v3591
    %3729 = vmatprep.subr.mxu0 %v3595
    %3730 = vmatpush1.msra.mxu0 %v3594
    %3731 = vmatprep.subr.mxu0 %v3598
    %3732 = vmatpush1.msra.mxu0 %v3597
    %3733 = vmatprep.subr.mxu0 %v3601
    %3734 = vmatpush1.msra.mxu0 %v3600
    %3735 = vmatprep.subr.mxu0 %v3604
    %3736 = vmatpush1.msra.mxu0 %v3603
    %3737 = vmatprep.subr.mxu0 %v3607
    %3738 = vmatpush1.msra.mxu0 %v3606
    %3739 = vmatprep.subr.mxu0 %v3610
    %3740 = vmatpush1.msra.mxu0 %v3609
    %3741 = vmatprep.subr.mxu0 %v3613
    %3742 = vmatpush1.msra.mxu0 %v3612
    %3743 = vmatprep.subr.mxu0 %v3616
    %3744 = vmatpush1.msra.mxu0 %v3615
    %3745 = vmatprep.subr.mxu0 %v3619
    %3746 = vmatpush1.msra.mxu0 %v3618
    %3747 = vmatprep.subr.mxu0 %v3622
    %3748 = vmatpush1.msra.mxu0 %v3621
    %3749 = vmatprep.subr.mxu0 %v3625
    %3750 = vmatpush1.msra.mxu0 %v3624
    %3751 = vmatprep.subr.mxu0 %v3628
    %3752 = vmatpush1.msra.mxu0 %v3627
    %3753 = vmatprep.subr.mxu0 %v3631
    %3754 = vmatpush1.msra.mxu0 %v3630
    %3755 = vmatprep.subr.mxu0 %v3634
    %3756 = vmatpush1.msra.mxu0 %v3633
    %3757 = vmatprep.subr.mxu0 %v3637
    %3758 = vmatpush1.msra.mxu0 %v3636
    %3759 = vmatprep.subr.mxu0 %v3640
    %3760 = vmatpush1.msra.mxu0 %v3639
    %3761 = vmatprep.subr.mxu0 %v3643
    %3762 = vmatpush1.msra.mxu0 %v3642
    %3763 = vmatprep.subr.mxu0 %v3646
    %3764 = vmatpush1.msra.mxu0 %v3645
    %3765 = vmatprep.mubr.f32.mxu0 %v3458
    %3766 = vmatmul.mubr.f32.gmra.mrb[0].mxu0 %v3456
    %v3767 = vpop.f32.mrb[0].mxu0
    %v3768 = vadd.f32 0.0, %v3767
    %v3769 = vpop.f32.mrb[0].mxu0
    %v3770 = vadd.f32 0.0, %v3769
    %3771 = vmatprep.mubr.f32.mxu0 %v3464
    %3772 = vmatmul.mubr.f32.gmra.mrb[0].mxu0 %v3462
    %v3773 = vpop.f32.mrb[0].mxu0
    %v3774 = vadd.f32 0.0, %v3773
    %v3775 = vpop.f32.mrb[0].mxu0
    %v3776 = vadd.f32 0.0, %v3775
    %3777 = vmatprep.mubr.f32.mxu0 %v3470
    %3778 = vmatmul.mubr.f32.gmra.mrb[0].mxu0 %v3468
    %v3779 = vpop.f32.mrb[0].mxu0
    %v3780 = vadd.f32 0.0, %v3779
    %v3781 = vpop.f32.mrb[0].mxu0
    %v3782 = vadd.f32 0.0, %v3781
    %3783 = vdwg.mxu0
    %3784 = vmatprep.subr.mxu0 %v3649
    %3785 = vmatpush1.msra.mxu0 %v3648
    %3786 = vmatprep.subr.mxu0 %v3652
    %3787 = vmatpush1.msra.mxu0 %v3651
    %3788 = vmatprep.subr.mxu0 %v3655
    %3789 = vmatpush1.msra.mxu0 %v3654
    %3790 = vmatprep.subr.mxu0 %v3658
    %3791 = vmatpush1.msra.mxu0 %v3657
    %3792 = vmatprep.subr.mxu0 %v3661
    %3793 = vmatpush1.msra.mxu0 %v3660
    %3794 = vmatprep.subr.mxu0 %v3664
    %3795 = vmatpush1.msra.mxu0 %v3663
    %3796 = vmatprep.subr.mxu0 %v3667
    %3797 = vmatpush1.msra.mxu0 %v3666
    %3798 = vmatprep.subr.mxu0 %v3670
    %3799 = vmatpush1.msra.mxu0 %v3669
    %3800 = vmatprep.subr.mxu0 %v3673
    %3801 = vmatpush1.msra.mxu0 %v3672
    %3802 = vmatprep.subr.mxu0 %v3676
    %3803 = vmatpush1.msra.mxu0 %v3675
    %3804 = vmatprep.subr.mxu0 %v3696
    %3805 = vmatpush1.msra.mxu0 %v3693
    %3806 = vmatprep.subr.mxu0 0.0
    %3807 = vmatpush1.msra.mxu0 0.0
    %3808 = vmatprep.subr.mxu0 0.0
    %3809 = vmatpush1.msra.mxu0 0.0
    %3810 = vmatprep.subr.mxu0 0.0
    %3811 = vmatpush1.msra.mxu0 0.0
    %3812 = vmatprep.subr.mxu0 0.0
    %3813 = vmatpush1.msra.mxu0 0.0
    %3814 = vmatprep.subr.mxu0 0.0
    %3815 = vmatpush1.msra.mxu0 0.0
    %3816 = vmatprep.subr.mxu0 0.0
    %3817 = vmatpush1.msra.mxu0 0.0
    %3818 = vmatprep.subr.mxu0 0.0
    %3819 = vmatpush1.msra.mxu0 0.0
    %3820 = vmatprep.subr.mxu0 0.0
    %3821 = vmatpush1.msra.mxu0 0.0
    %3822 = vmatprep.subr.mxu0 0.0
    %3823 = vmatpush1.msra.mxu0 0.0
    %3824 = vmatprep.subr.mxu0 0.0
    %3825 = vmatpush1.msra.mxu0 0.0
    %3826 = vmatprep.subr.mxu0 0.0
    %3827 = vmatpush1.msra.mxu0 0.0
    %3828 = vmatprep.subr.mxu0 0.0
    %3829 = vmatpush1.msra.mxu0 0.0
    %3830 = vmatprep.subr.mxu0 0.0
    %3831 = vmatpush1.msra.mxu0 0.0
    %3832 = vmatprep.subr.mxu0 0.0
    %3833 = vmatpush1.msra.mxu0 0.0
    %3834 = vmatprep.subr.mxu0 0.0
    %3835 = vmatpush1.msra.mxu0 0.0
    %3836 = vmatprep.subr.mxu0 0.0
    %3837 = vmatpush1.msra.mxu0 0.0
    %3838 = vmatprep.subr.mxu0 0.0
    %3839 = vmatpush1.msra.mxu0 0.0
    %3840 = vmatprep.subr.mxu0 0.0
    %3841 = vmatpush1.msra.mxu0 0.0
    %3842 = vmatprep.subr.mxu0 0.0
    %3843 = vmatpush1.msra.mxu0 0.0
    %3844 = vmatprep.subr.mxu0 0.0
    %3845 = vmatpush1.msra.mxu0 0.0
    %3846 = vmatprep.subr.mxu0 0.0
    %3847 = vmatpush1.msra.mxu0 0.0
    %3848 = vmatprep.mubr.f32.mxu0 0.0
    %3849 = vmatmul.mubr.f32.gmra.mrb[0].mxu0 %v3683
    %v3850 = vpop.f32.mrb[0].mxu0
    %v3851 = vadd.f32 %v3768, %v3850
    %v3852 = vpop.f32.mrb[0].mxu0
    %v3853 = vadd.f32 %v3770, %v3852
    %3854 = vmatprep.mubr.f32.mxu0 0.0
    %3855 = vmatmul.mubr.f32.gmra.mrb[0].mxu0 %v3686
    %v3856 = vpop.f32.mrb[0].mxu0
    %v3857 = vadd.f32 %v3774, %v3856
    %v3858 = vpop.f32.mrb[0].mxu0
    %v3859 = vadd.f32 %v3776, %v3858
    %3860 = vmatprep.mubr.f32.mxu0 0.0
    %3861 = vmatmul.mubr.f32.gmra.mrb[0].mxu0 %v3689
    %v3862 = vpop.f32.mrb[0].mxu0
    %v3863 = vadd.f32 %v3780, %v3862
    %v3864 = vpop.f32.mrb[0].mxu0
    %v3865 = vadd.f32 %v3782, %v3864
    %3866 = vdwg.mxu0
    %3867 = vmatprep.subr.mxu0 0.0
    %3868 = vmatpush1.msra.mxu0 %v3554
    %3869 = vmatprep.subr.mxu0 0.0
    %3870 = vmatpush1.msra.mxu0 %v3557
    %3871 = vmatprep.subr.mxu0 0.0
    %3872 = vmatpush1.msra.mxu0 %v3560
    %3873 = vmatprep.subr.mxu0 0.0
    %3874 = vmatpush1.msra.mxu0 %v3563
    %3875 = vmatprep.subr.mxu0 0.0
    %3876 = vmatpush1.msra.mxu0 %v3566
    %3877 = vmatprep.subr.mxu0 0.0
    %3878 = vmatpush1.msra.mxu0 %v3569
    %3879 = vmatprep.subr.mxu0 0.0
    %3880 = vmatpush1.msra.mxu0 %v3572
    %3881 = vmatprep.subr.mxu0 0.0
    %3882 = vmatpush1.msra.mxu0 %v3575
    %3883 = vmatprep.subr.mxu0 0.0
    %3884 = vmatpush1.msra.mxu0 %v3578
    %3885 = vmatprep.subr.mxu0 0.0
    %3886 = vmatpush1.msra.mxu0 %v3581
    %3887 = vmatprep.subr.mxu0 0.0
    %3888 = vmatpush1.msra.mxu0 %v3584
    %3889 = vmatprep.subr.mxu0 0.0
    %3890 = vmatpush1.msra.mxu0 %v3587
    %3891 = vmatprep.subr.mxu0 0.0
    %3892 = vmatpush1.msra.mxu0 %v3590
    %3893 = vmatprep.subr.mxu0 0.0
    %3894 = vmatpush1.msra.mxu0 %v3593
    %3895 = vmatprep.subr.mxu0 0.0
    %3896 = vmatpush1.msra.mxu0 %v3596
    %3897 = vmatprep.subr.mxu0 0.0
    %3898 = vmatpush1.msra.mxu0 %v3599
    %3899 = vmatprep.subr.mxu0 0.0
    %3900 = vmatpush1.msra.mxu0 %v3602
    %3901 = vmatprep.subr.mxu0 0.0
    %3902 = vmatpush1.msra.mxu0 %v3605
    %3903 = vmatprep.subr.mxu0 0.0
    %3904 = vmatpush1.msra.mxu0 %v3608
    %3905 = vmatprep.subr.mxu0 0.0
    %3906 = vmatpush1.msra.mxu0 %v3611
    %3907 = vmatprep.subr.mxu0 0.0
    %3908 = vmatpush1.msra.mxu0 %v3614
    %3909 = vmatprep.subr.mxu0 0.0
    %3910 = vmatpush1.msra.mxu0 %v3617
    %3911 = vmatprep.subr.mxu0 0.0
    %3912 = vmatpush1.msra.mxu0 %v3620
    %3913 = vmatprep.subr.mxu0 0.0
    %3914 = vmatpush1.msra.mxu0 %v3623
    %3915 = vmatprep.subr.mxu0 0.0
    %3916 = vmatpush1.msra.mxu0 %v3626
    %3917 = vmatprep.subr.mxu0 0.0
    %3918 = vmatpush1.msra.mxu0 %v3629
    %3919 = vmatprep.subr.mxu0 0.0
    %3920 = vmatpush1.msra.mxu0 %v3632
    %3921 = vmatprep.subr.mxu0 0.0
    %3922 = vmatpush1.msra.mxu0 %v3635
    %3923 = vmatprep.subr.mxu0 0.0
    %3924 = vmatpush1.msra.mxu0 %v3638
    %3925 = vmatprep.subr.mxu0 0.0
    %3926 = vmatpush1.msra.mxu0 %v3641
    %3927 = vmatprep.subr.mxu0 0.0
    %3928 = vmatpush1.msra.mxu0 %v3644
    %3929 = vmatprep.subr.mxu0 0.0
    %3930 = vmatpush1.msra.mxu0 %v3647
    %3931 = vmatprep.mubr.f32.mxu0 %v3458
    %3932 = vmatmul.mubr.f32.gmra.mrb[0].mxu0 %v3456
    %v3933 = vpop.f32.mrb[0].mxu0
    %v3934 = vadd.f32 0.0, %v3933
    %v3935 = vpop.f32.mrb[0].mxu0
    %3936 = vmatprep.mubr.f32.mxu0 %v3464
    %3937 = vmatmul.mubr.f32.gmra.mrb[0].mxu0 %v3462
    %v3938 = vpop.f32.mrb[0].mxu0
    %v3939 = vadd.f32 0.0, %v3938
    %v3940 = vpop.f32.mrb[0].mxu0
    %3941 = vmatprep.mubr.f32.mxu0 %v3470
    %3942 = vmatmul.mubr.f32.gmra.mrb[0].mxu0 %v3468
    %v3943 = vpop.f32.mrb[0].mxu0
    %v3944 = vadd.f32 0.0, %v3943
    %v3945 = vpop.f32.mrb[0].mxu0
    %3946 = vdwg.mxu0
    %3947 = vmatprep.subr.mxu0 0.0
    %3948 = vmatpush1.msra.mxu0 %v3650
    %3949 = vmatprep.subr.mxu0 0.0
    %3950 = vmatpush1.msra.mxu0 %v3653
    %3951 = vmatprep.subr.mxu0 0.0
    %3952 = vmatpush1.msra.mxu0 %v3656
    %3953 = vmatprep.subr.mxu0 0.0
    %3954 = vmatpush1.msra.mxu0 %v3659
    %3955 = vmatprep.subr.mxu0 0.0
    %3956 = vmatpush1.msra.mxu0 %v3662
    %3957 = vmatprep.subr.mxu0 0.0
    %3958 = vmatpush1.msra.mxu0 %v3665
    %3959 = vmatprep.subr.mxu0 0.0
    %3960 = vmatpush1.msra.mxu0 %v3668
    %3961 = vmatprep.subr.mxu0 0.0
    %3962 = vmatpush1.msra.mxu0 %v3671
    %3963 = vmatprep.subr.mxu0 0.0
    %3964 = vmatpush1.msra.mxu0 %v3674
    %3965 = vmatprep.subr.mxu0 0.0
    %3966 = vmatpush1.msra.mxu0 %v3677
    %3967 = vmatprep.subr.mxu0 0.0
    %3968 = vmatpush1.msra.mxu0 %v3699
    %3969 = vmatprep.subr.mxu0 0.0
    %3970 = vmatpush1.msra.mxu0 0.0
    %3971 = vmatprep.subr.mxu0 0.0
    %3972 = vmatpush1.msra.mxu0 0.0
    %3973 = vmatprep.subr.mxu0 0.0
    %3974 = vmatpush1.msra.mxu0 0.0
    %3975 = vmatprep.subr.mxu0 0.0
    %3976 = vmatpush1.msra.mxu0 0.0
    %3977 = vmatprep.subr.mxu0 0.0
    %3978 = vmatpush1.msra.mxu0 0.0
    %3979 = vmatprep.subr.mxu0 0.0
    %3980 = vmatpush1.msra.mxu0 0.0
    %3981 = vmatprep.subr.mxu0 0.0
    %3982 = vmatpush1.msra.mxu0 0.0
    %3983 = vmatprep.subr.mxu0 0.0
    %3984 = vmatpush1.msra.mxu0 0.0
    %3985 = vmatprep.subr.mxu0 0.0
    %3986 = vmatpush1.msra.mxu0 0.0
    %3987 = vmatprep.subr.mxu0 0.0
    %3988 = vmatpush1.msra.mxu0 0.0
    %3989 = vmatprep.subr.mxu0 0.0
    %3990 = vmatpush1.msra.mxu0 0.0
    %3991 = vmatprep.subr.mxu0 0.0
    %3992 = vmatpush1.msra.mxu0 0.0
    %3993 = vmatprep.subr.mxu0 0.0
    %3994 = vmatpush1.msra.mxu0 0.0
    %3995 = vmatprep.subr.mxu0 0.0
    %3996 = vmatpush1.msra.mxu0 0.0
    %3997 = vmatprep.subr.mxu0 0.0
    %3998 = vmatpush1.msra.mxu0 0.0
    %3999 = vmatprep.subr.mxu0 0.0
    %4000 = vmatpush1.msra.mxu0 0.0
    %4001 = vmatprep.subr.mxu0 0.0
    %4002 = vmatpush1.msra.mxu0 0.0
    %4003 = vmatprep.subr.mxu0 0.0
    %4004 = vmatpush1.msra.mxu0 0.0
    %4005 = vmatprep.subr.mxu0 0.0
    %4006 = vmatpush1.msra.mxu0 0.0
    %4007 = vmatprep.subr.mxu0 0.0
    %4008 = vmatpush1.msra.mxu0 0.0
    %4009 = vmatprep.subr.mxu0 0.0
    %4010 = vmatpush1.msra.mxu0 0.0
    %4011 = vmatprep.mubr.f32.mxu0 0.0
    %4012 = vmatmul.mubr.f32.gmra.mrb[0].mxu0 %v3683
    %v4013 = vpop.f32.mrb[0].mxu0
    %v4014 = vadd.f32 %v3934, %v4013
    %v4015 = vpop.f32.mrb[0].mxu0
    %4016 = vmatprep.mubr.f32.mxu0 0.0
    %4017 = vmatmul.mubr.f32.gmra.mrb[0].mxu0 %v3686
    %v4018 = vpop.f32.mrb[0].mxu0
    %v4019 = vadd.f32 %v3939, %v4018
    %v4020 = vpop.f32.mrb[0].mxu0
    %4021 = vmatprep.mubr.f32.mxu0 0.0
    %4022 = vmatmul.mubr.f32.gmra.mrb[0].mxu0 %v3689
    %v4023 = vpop.f32.mrb[0].mxu0
    %v4024 = vadd.f32 %v3944, %v4023
    %v4025 = vpop.f32.mrb[0].mxu0
    %4026 = vdwg.mxu0
    %v4027 = vmax.f32 %v3851, 0.0
    %v4028 = vmax.f32 %v3853, 0.0
    %v4029 = vmax.f32 %v4014, 0.0
    %v4030 = vmax.f32 %v3857, 0.0
    %v4031 = vmax.f32 %v3859, 0.0
    %v4032 = vmax.f32 %v4019, 0.0
    %v4033 = vmax.f32 %v3863, 0.0
    %v4034 = vmax.f32 %v3865, 0.0
    %v4035 = vmax.f32 %v4024, 0.0
    %v4036 = vld [vmem:[%s13] sm:$0xff]
    %v4037 = vld [vmem:[%s13 + $0x8] sm:$0xff]
    %v4038 = vld [vmem:[%s13 + $0x10] sm:$0xff]
    %v4039 = vld [vmem:[%s14] sm:$0xff]
    %v4040 = vld [vmem:[%s14 + $0x8] sm:$0xff]
    %v4041 = vld [vmem:[%s14 + $0x10] sm:$0xff]
    %v4042 = vadd.f32 %v4027, %v4028
    %vm4043 = vcmask 80896
    %v4044 = vsel %vm4043, %v4029, 0.0
    %v4045 = vadd.f32 %v4042, %v4044
    %4046 = vadd.xlane.f32.xlu0 %v4045
    %v4047 = vpop.xlane.xlu0 %4046
    %v4048 = vadd.f32 %v4030, %v4031
    %v4049 = vsel %vm4043, %v4032, 0.0
    %v4050 = vadd.f32 %v4048, %v4049
    %4051 = vadd.xlane.f32.xlu0 %v4050
    %v4052 = vpop.xlane.xlu0 %4051
    %v4053 = vadd.f32 %v4033, %v4034
    %v4054 = vsel %vm4043, %v4035, 0.0
    %v4055 = vadd.f32 %v4053, %v4054
    %4056 = vadd.xlane.f32.xlu0 %v4055
    %v4057 = vpop.xlane.xlu0 %4056
    %v4058 = vmul.f32 %v4047, 0.004132231
    %v4059 = vmul.f32 %v4052, 0.004132231
    %v4060 = vmul.f32 %v4057, 0.004132231
    %v4061 = vmul.f32 %v4027, %v4027
    %v4062 = vmul.f32 %v4028, %v4028
    %v4063 = vmul.f32 %v4029, %v4029
    %v4064 = vmul.f32 %v4030, %v4030
    %v4065 = vmul.f32 %v4031, %v4031
    %v4066 = vmul.f32 %v4032, %v4032
    %v4067 = vmul.f32 %v4033, %v4033
    %v4068 = vmul.f32 %v4034, %v4034
    %v4069 = vmul.f32 %v4035, %v4035
    %v4070 = vadd.f32 %v4061, %v4062
    %v4071 = vsel %vm4043, %v4063, 0.0
    %v4072 = vadd.f32 %v4070, %v4071
    %4073 = vadd.xlane.f32.xlu0 %v4072
    %v4074 = vpop.xlane.xlu0 %4073
    %v4075 = vadd.f32 %v4064, %v4065
    %v4076 = vsel %vm4043, %v4066, 0.0
    %v4077 = vadd.f32 %v4075, %v4076
    %4078 = vadd.xlane.f32.xlu0 %v4077
    %v4079 = vpop.xlane.xlu0 %4078
    %v4080 = vadd.f32 %v4067, %v4068
    %v4081 = vsel %vm4043, %v4069, 0.0
    %v4082 = vadd.f32 %v4080, %v4081
    %4083 = vadd.xlane.f32.xlu0 %v4082
    %v4084 = vpop.xlane.xlu0 %4083
    %v4085 = vmul.f32 %v4074, 0.004132231
    %v4086 = vmul.f32 %v4079, 0.004132231
    %v4087 = vmul.f32 %v4084, 0.004132231
    %v4088 = vmul.f32 %v4058, %v4058
    %v4089 = vmul.f32 %v4059, %v4059
    %v4090 = vmul.f32 %v4060, %v4060
    %v4091 = vsub.f32 %v4085, %v4088
    %v4092 = vsub.f32 %v4086, %v4089
    %v4093 = vsub.f32 %v4087, %v4090
    %v4094 = vadd.f32 %v4091, 1e-05
    %v4095 = vadd.f32 %v4092, 1e-05
    %v4096 = vadd.f32 %v4093, 1e-05
    %v4097 = vrsqrt.pop %v4094
    %v4098 = vrsqrt.pop %v4095
    %v4099 = vrsqrt.pop %v4096
    %v4100 = vmul.f32 %v4036, %v4097
    %v4101 = vmul.f32 %v4037, %v4098
    %v4102 = vmul.f32 %v4038, %v4099
    %4104 = vset.pattern.permute.xlu0 0
    %4105 = vperm.xlu0 %4104, %v4100
    %v4106 = vpop.permute.xlu0 %4105
    %4109 = vset.pattern.permute.xlu0 0
    %4110 = vperm.xlu0 %4109, %v4101
    %v4111 = vpop.permute.xlu0 %4110
    %4114 = vset.pattern.permute.xlu0 0
    %4115 = vperm.xlu0 %4114, %v4102
    %v4116 = vpop.permute.xlu0 %4115
    %v4118 = vmul.f32 %v4027, %v4106
    %v4119 = vmul.f32 %v4028, %v4106
    %v4120 = vmul.f32 %v4029, %v4106
    %v4121 = vmul.f32 %v4030, %v4111
    %v4122 = vmul.f32 %v4031, %v4111
    %v4123 = vmul.f32 %v4032, %v4111
    %v4124 = vmul.f32 %v4033, %v4116
    %v4125 = vmul.f32 %v4034, %v4116
    %v4126 = vmul.f32 %v4035, %v4116
    %v4127 = vmul.f32 %v4058, %v4100
    %v4128 = vmul.f32 %v4059, %v4101
    %v4129 = vmul.f32 %v4060, %v4102
    %v4130 = vsub.f32 %v4039, %v4127
    %v4131 = vsub.f32 %v4040, %v4128
    %v4132 = vsub.f32 %v4041, %v4129
    %4134 = vset.pattern.permute.xlu0 0
    %4135 = vperm.xlu0 %4134, %v4130
    %v4136 = vpop.permute.xlu0 %4135
    %4139 = vset.pattern.permute.xlu0 0
    %4140 = vperm.xlu0 %4139, %v4131
    %v4141 = vpop.permute.xlu0 %4140
    %4144 = vset.pattern.permute.xlu0 0
    %4145 = vperm.xlu0 %4144, %v4132
    %v4146 = vpop.permute.xlu0 %4145
    %v4148 = vadd.f32 %v4118, %v4136
    %v4149 = vadd.f32 %v4119, %v4136
    %v4150 = vadd.f32 %v4120, %v4136
    %v4151 = vadd.f32 %v4121, %v4141
    %v4152 = vadd.f32 %v4122, %v4141
    %v4153 = vadd.f32 %v4123, %v4141
    %v4154 = vadd.f32 %v4124, %v4146
    %v4155 = vadd.f32 %v4125, %v4146
    %v4156 = vadd.f32 %v4126, %v4146
    %v4157 = vld [vmem:[%s15] sm:$0xff]
    %v4158 = vld [vmem:[%s15 + $0x8] sm:$0xff]
    %v4159 = vld [vmem:[%s15 + $0x10] sm:$0xff]
    %v4160 = vld [vmem:[%s15 + $0x18] sm:$0xff]
    %v4161 = vld [vmem:[%s15 + $0x20] sm:$0xff]
    %v4162 = vld [vmem:[%s15 + $0x28] sm:$0xff]
    %v4163 = vld [vmem:[%s16] sm:$0xff]
    %v4164 = vld [vmem:[%s16 + $0x8] sm:$0xff]
    %v4165 = vld [vmem:[%s16 + $0x10] sm:$0xff]
    %4172 = vrot.lane.b32.xlu0 %v4148, 127
    %v4173 = vpop.permute.xlu0 %4172
    %4174 = vrot.lane.b32.xlu0 %v4149, 127
    %v4175 = vpop.permute.xlu0 %4174
    %4176 = vrot.lane.b32.xlu0 %v4151, 127
    %v4177 = vpop.permute.xlu0 %4176
    %4178 = vrot.lane.b32.xlu0 %v4152, 127
    %v4179 = vpop.permute.xlu0 %4178
    %4180 = vrot.lane.b32.xlu0 %v4154, 127
    %v4181 = vpop.permute.xlu0 %4180
    %4182 = vrot.lane.b32.xlu0 %v4155, 127
    %v4183 = vpop.permute.xlu0 %4182
    %v4184 = vsel %vm170, %v4173, %v4175
    %v4185 = vsel %vm170, %v4177, %v4179
    %v4186 = vsel %vm170, %v4181, %v4183
    %4193 = vrot.lane.b32.xlu0 %v4148, 126
    %v4194 = vpop.permute.xlu0 %4193
    %4195 = vrot.lane.b32.xlu0 %v4149, 126
    %v4196 = vpop.permute.xlu0 %4195
    %4197 = vrot.lane.b32.xlu0 %v4151, 126
    %v4198 = vpop.permute.xlu0 %4197
    %4199 = vrot.lane.b32.xlu0 %v4152, 126
    %v4200 = vpop.permute.xlu0 %4199
    %4201 = vrot.lane.b32.xlu0 %v4154, 126
    %v4202 = vpop.permute.xlu0 %4201
    %4203 = vrot.lane.b32.xlu0 %v4155, 126
    %v4204 = vpop.permute.xlu0 %4203
    %v4205 = vsel %vm222, %v4194, %v4196
    %v4206 = vsel %vm222, %v4198, %v4200
    %v4207 = vsel %vm222, %v4202, %v4204
    %4214 = vrot.lane.b32.xlu0 %v4148, 117
    %v4215 = vpop.permute.xlu0 %4214
    %4216 = vrot.lane.b32.xlu0 %v4149, 117
    %v4217 = vpop.permute.xlu0 %4216
    %4218 = vrot.lane.b32.xlu0 %v4151, 117
    %v4219 = vpop.permute.xlu0 %4218
    %4220 = vrot.lane.b32.xlu0 %v4152, 117
    %v4221 = vpop.permute.xlu0 %4220
    %4222 = vrot.lane.b32.xlu0 %v4154, 117
    %v4223 = vpop.permute.xlu0 %4222
    %4224 = vrot.lane.b32.xlu0 %v4155, 117
    %v4225 = vpop.permute.xlu0 %4224
    %vm4226 = vcmask 957440
    %v4227 = vsel %vm4226, %v4215, %v4217
    %v4228 = vsel %vm4226, %v4219, %v4221
    %v4229 = vsel %vm4226, %v4223, %v4225
    %4236 = vrot.lane.b32.xlu0 %v4148, 116
    %v4237 = vpop.permute.xlu0 %4236
    %4238 = vrot.lane.b32.xlu0 %v4149, 116
    %v4239 = vpop.permute.xlu0 %4238
    %4240 = vrot.lane.b32.xlu0 %v4151, 116
    %v4241 = vpop.permute.xlu0 %4240
    %4242 = vrot.lane.b32.xlu0 %v4152, 116
    %v4243 = vpop.permute.xlu0 %4242
    %4244 = vrot.lane.b32.xlu0 %v4154, 116
    %v4245 = vpop.permute.xlu0 %4244
    %4246 = vrot.lane.b32.xlu0 %v4155, 116
    %v4247 = vpop.permute.xlu0 %4246
    %vm4248 = vcmask 949248
    %v4249 = vsel %vm4248, %v4237, %v4239
    %v4250 = vsel %vm4248, %v4241, %v4243
    %v4251 = vsel %vm4248, %v4245, %v4247
    %4258 = vrot.lane.b32.xlu0 %v4148, 115
    %v4259 = vpop.permute.xlu0 %4258
    %4260 = vrot.lane.b32.xlu0 %v4149, 115
    %v4261 = vpop.permute.xlu0 %4260
    %4262 = vrot.lane.b32.xlu0 %v4151, 115
    %v4263 = vpop.permute.xlu0 %4262
    %4264 = vrot.lane.b32.xlu0 %v4152, 115
    %v4265 = vpop.permute.xlu0 %4264
    %4266 = vrot.lane.b32.xlu0 %v4154, 115
    %v4267 = vpop.permute.xlu0 %4266
    %4268 = vrot.lane.b32.xlu0 %v4155, 115
    %v4269 = vpop.permute.xlu0 %4268
    %v4270 = vsel %vm3239, %v4259, %v4261
    %v4271 = vsel %vm3239, %v4263, %v4265
    %v4272 = vsel %vm3239, %v4267, %v4269
    %4282 = vrot.lane.b32.xlu0 %v4148, 106
    %v4283 = vpop.permute.xlu0 %4282
    %4284 = vrot.lane.b32.xlu0 %v4149, 106
    %v4285 = vpop.permute.xlu0 %4284
    %4286 = vrot.lane.b32.xlu0 %v4150, 106
    %v4287 = vpop.permute.xlu0 %4286
    %4288 = vrot.lane.b32.xlu0 %v4151, 106
    %v4289 = vpop.permute.xlu0 %4288
    %4290 = vrot.lane.b32.xlu0 %v4152, 106
    %v4291 = vpop.permute.xlu0 %4290
    %4292 = vrot.lane.b32.xlu0 %v4153, 106
    %v4293 = vpop.permute.xlu0 %4292
    %4294 = vrot.lane.b32.xlu0 %v4154, 106
    %v4295 = vpop.permute.xlu0 %4294
    %4296 = vrot.lane.b32.xlu0 %v4155, 106
    %v4297 = vpop.permute.xlu0 %4296
    %4298 = vrot.lane.b32.xlu0 %v4156, 106
    %v4299 = vpop.permute.xlu0 %4298
    %vm4300 = vcmask 867328
    %v4301 = vsel %vm4300, %v4283, %v4285
    %v4302 = vsel %vm4300, %v4285, %v4287
    %v4303 = vsel %vm4300, %v4289, %v4291
    %v4304 = vsel %vm4300, %v4291, %v4293
    %v4305 = vsel %vm4300, %v4295, %v4297
    %v4306 = vsel %vm4300, %v4297, %v4299
    %4313 = vrot.lane.b32.xlu0 %v4148, 105
    %v4314 = vpop.permute.xlu0 %4313
    %4315 = vrot.lane.b32.xlu0 %v4149, 105
    %v4316 = vpop.permute.xlu0 %4315
    %4317 = vrot.lane.b32.xlu0 %v4150, 105
    %v4318 = vpop.permute.xlu0 %4317
    %4319 = vrot.lane.b32.xlu0 %v4151, 105
    %v4320 = vpop.permute.xlu0 %4319
    %4321 = vrot.lane.b32.xlu0 %v4152, 105
    %v4322 = vpop.permute.xlu0 %4321
    %4323 = vrot.lane.b32.xlu0 %v4153, 105
    %v4324 = vpop.permute.xlu0 %4323
    %4325 = vrot.lane.b32.xlu0 %v4154, 105
    %v4326 = vpop.permute.xlu0 %4325
    %4327 = vrot.lane.b32.xlu0 %v4155, 105
    %v4328 = vpop.permute.xlu0 %4327
    %4329 = vrot.lane.b32.xlu0 %v4156, 105
    %v4330 = vpop.permute.xlu0 %4329
    %vm4331 = vcmask 859136
    %v4332 = vsel %vm4331, %v4314, %v4316
    %v4333 = vsel %vm4331, %v4316, %v4318
    %v4334 = vsel %vm4331, %v4320, %v4322
    %v4335 = vsel %vm4331, %v4322, %v4324
    %v4336 = vsel %vm4331, %v4326, %v4328
    %v4337 = vsel %vm4331, %v4328, %v4330
    %4344 = vrot.lane.b32.xlu0 %v4148, 104
    %v4345 = vpop.permute.xlu0 %4344
    %4346 = vrot.lane.b32.xlu0 %v4149, 104
    %v4347 = vpop.permute.xlu0 %4346
    %4348 = vrot.lane.b32.xlu0 %v4150, 104
    %v4349 = vpop.permute.xlu0 %4348
    %4350 = vrot.lane.b32.xlu0 %v4151, 104
    %v4351 = vpop.permute.xlu0 %4350
    %4352 = vrot.lane.b32.xlu0 %v4152, 104
    %v4353 = vpop.permute.xlu0 %4352
    %4354 = vrot.lane.b32.xlu0 %v4153, 104
    %v4355 = vpop.permute.xlu0 %4354
    %4356 = vrot.lane.b32.xlu0 %v4154, 104
    %v4357 = vpop.permute.xlu0 %4356
    %4358 = vrot.lane.b32.xlu0 %v4155, 104
    %v4359 = vpop.permute.xlu0 %4358
    %4360 = vrot.lane.b32.xlu0 %v4156, 104
    %v4361 = vpop.permute.xlu0 %4360
    %vm4362 = vcmask 850944
    %v4363 = vsel %vm4362, %v4345, %v4347
    %v4364 = vsel %vm4362, %v4347, %v4349
    %v4365 = vsel %vm4362, %v4351, %v4353
    %v4366 = vsel %vm4362, %v4353, %v4355
    %v4367 = vsel %vm4362, %v4357, %v4359
    %v4368 = vsel %vm4362, %v4359, %v4361
    %4376 = vset.pattern.permute.xlu0 0
    %4377 = vperm.xlu0 %4376, %v4163
    %v4378 = vpop.permute.xlu0 %4377
    %4381 = vset.pattern.permute.xlu0 0
    %4382 = vperm.xlu0 %4381, %v4164
    %v4383 = vpop.permute.xlu0 %4382
    %4386 = vset.pattern.permute.xlu0 0
    %4387 = vperm.xlu0 %4386, %v4165
    %v4388 = vpop.permute.xlu0 %4387
    %vm4390 = vcmask 719872
    %v4392 = vsel %vm4390, %v4158, 0
    %v4395 = vsel %vm4390, %v4160, 0
    %v4398 = vsel %vm4390, %v4162, 0
    %4400 = vmatprep.subr.mxu0 %v4149
    %4401 = vmatpush1.msra.mxu0 %v4148
    %4402 = vmatprep.subr.mxu0 %v4152
    %4403 = vmatpush1.msra.mxu0 %v4151
    %4404 = vmatprep.subr.mxu0 %v4155
    %4405 = vmatpush1.msra.mxu0 %v4154
    %4406 = vmatprep.subr.mxu0 %v4175
    %4407 = vmatpush1.msra.mxu0 %v4184
    %4408 = vmatprep.subr.mxu0 %v4179
    %4409 = vmatpush1.msra.mxu0 %v4185
    %4410 = vmatprep.subr.mxu0 %v4183
    %4411 = vmatpush1.msra.mxu0 %v4186
    %4412 = vmatprep.subr.mxu0 %v4196
    %4413 = vmatpush1.msra.mxu0 %v4205
    %4414 = vmatprep.subr.mxu0 %v4200
    %4415 = vmatpush1.msra.mxu0 %v4206
    %4416 = vmatprep.subr.mxu0 %v4204
    %4417 = vmatpush1.msra.mxu0 %v4207
    %4418 = vmatprep.subr.mxu0 %v4217
    %4419 = vmatpush1.msra.mxu0 %v4227
    %4420 = vmatprep.subr.mxu0 %v4221
    %4421 = vmatpush1.msra.mxu0 %v4228
    %4422 = vmatprep.subr.mxu0 %v4225
    %4423 = vmatpush1.msra.mxu0 %v4229
    %4424 = vmatprep.subr.mxu0 %v4239
    %4425 = vmatpush1.msra.mxu0 %v4249
    %4426 = vmatprep.subr.mxu0 %v4243
    %4427 = vmatpush1.msra.mxu0 %v4250
    %4428 = vmatprep.subr.mxu0 %v4247
    %4429 = vmatpush1.msra.mxu0 %v4251
    %4430 = vmatprep.subr.mxu0 %v4261
    %4431 = vmatpush1.msra.mxu0 %v4270
    %4432 = vmatprep.subr.mxu0 %v4265
    %4433 = vmatpush1.msra.mxu0 %v4271
    %4434 = vmatprep.subr.mxu0 %v4269
    %4435 = vmatpush1.msra.mxu0 %v4272
    %4436 = vmatprep.subr.mxu0 %v4302
    %4437 = vmatpush1.msra.mxu0 %v4301
    %4438 = vmatprep.subr.mxu0 %v4304
    %4439 = vmatpush1.msra.mxu0 %v4303
    %4440 = vmatprep.subr.mxu0 %v4306
    %4441 = vmatpush1.msra.mxu0 %v4305
    %4442 = vmatprep.subr.mxu0 %v4333
    %4443 = vmatpush1.msra.mxu0 %v4332
    %4444 = vmatprep.subr.mxu0 %v4335
    %4445 = vmatpush1.msra.mxu0 %v4334
    %4446 = vmatprep.subr.mxu0 %v4337
    %4447 = vmatpush1.msra.mxu0 %v4336
    %4448 = vmatprep.subr.mxu0 %v4364
    %4449 = vmatpush1.msra.mxu0 %v4363
    %4450 = vmatprep.subr.mxu0 %v4366
    %4451 = vmatpush1.msra.mxu0 %v4365
    %4452 = vmatprep.subr.mxu0 %v4368
    %4453 = vmatpush1.msra.mxu0 %v4367
    %4454 = vmatprep.subr.mxu0 0.0
    %4455 = vmatpush1.msra.mxu0 0.0
    %4456 = vmatprep.subr.mxu0 0.0
    %4457 = vmatpush1.msra.mxu0 0.0
    %4458 = vmatprep.subr.mxu0 0.0
    %4459 = vmatpush1.msra.mxu0 0.0
    %4460 = vmatprep.subr.mxu0 0.0
    %4461 = vmatpush1.msra.mxu0 0.0
    %4462 = vmatprep.subr.mxu0 0.0
    %4463 = vmatpush1.msra.mxu0 0.0
    %4464 = vmatprep.mubr.f32.mxu0 %v4392
    %4465 = vmatmul.mubr.f32.gmra.mrb[0].mxu0 %v4157
    %v4466 = vpop.f32.mrb[0].mxu0
    %v4467 = vadd.f32 %v4378, %v4466
    %v4468 = vpop.f32.mrb[0].mxu0
    %v4469 = vadd.f32 %v4378, %v4468
    %4470 = vmatprep.mubr.f32.mxu0 %v4395
    %4471 = vmatmul.mubr.f32.gmra.mrb[0].mxu0 %v4159
    %v4472 = vpop.f32.mrb[0].mxu0
    %v4473 = vadd.f32 %v4383, %v4472
    %v4474 = vpop.f32.mrb[0].mxu0
    %v4475 = vadd.f32 %v4383, %v4474
    %4476 = vmatprep.mubr.f32.mxu0 %v4398
    %4477 = vmatmul.mubr.f32.gmra.mrb[0].mxu0 %v4161
    %v4478 = vpop.f32.mrb[0].mxu0
    %v4479 = vadd.f32 %v4388, %v4478
    %v4480 = vpop.f32.mrb[0].mxu0
    %v4481 = vadd.f32 %v4388, %v4480
    %4482 = vdwg.mxu0
    %v4483 = vld [vmem:[%s3] sm:$0xff]
    %v4484 = vld [vmem:[%s3 + $0x8] sm:$0xff]
    %v4485 = vld [vmem:[%s3 + $0x10] sm:$0xff]
    %v4486 = vld [vmem:[%s3 + $0x18] sm:$0xff]
    %v4487 = vld [vmem:[%s3 + $0x20] sm:$0xff]
    %v4488 = vld [vmem:[%s3 + $0x28] sm:$0xff]
    %v4489 = vld [vmem:[%s3 + $0x30] sm:$0xff]
    %v4490 = vld [vmem:[%s3 + $0x38] sm:$0xff]
    %v4491 = vld [vmem:[%s3 + $0x40] sm:$0xff]
    %v4492 = vld [vmem:[%s3 + $0x48] sm:$0xff]
    %v4493 = vld [vmem:[%s3 + $0x50] sm:$0xff]
    %v4494 = vld [vmem:[%s3 + $0x58] sm:$0xff]
    %v4495 = vld [vmem:[%s3 + $0x60] sm:$0xff]
    %v4496 = vld [vmem:[%s3 + $0x68] sm:$0xff]
    %v4497 = vld [vmem:[%s3 + $0x70] sm:$0xff]
    %v4498 = vld [vmem:[%s3 + $0x78] sm:$0xff]
    %v4499 = vld [vmem:[%s3 + $0x80] sm:$0xff]
    %v4500 = vld [vmem:[%s3 + $0x88] sm:$0xff]
    %v4501 = vld [vmem:[%s3 + $0x90] sm:$0xff]
    %v4502 = vld [vmem:[%s3 + $0x98] sm:$0xff]
    %v4503 = vld [vmem:[%s3 + $0xa0] sm:$0xff]
    %v4504 = vld [vmem:[%s3 + $0xa8] sm:$0xff]
    %v4505 = vld [vmem:[%s3 + $0xb0] sm:$0xff]
    %v4506 = vld [vmem:[%s3 + $0xb8] sm:$0xff]
    %v4507 = vld [vmem:[%s3 + $0xc0] sm:$0xff]
    %v4508 = vld [vmem:[%s3 + $0xc8] sm:$0xff]
    %v4509 = vld [vmem:[%s3 + $0xd0] sm:$0xff]
    %v4510 = vld [vmem:[%s3 + $0xd8] sm:$0xff]
    %v4511 = vld [vmem:[%s3 + $0xe0] sm:$0xff]
    %v4512 = vld [vmem:[%s3 + $0xe8] sm:$0xff]
    %v4513 = vld [vmem:[%s3 + $0xf0] sm:$0xff]
    %v4514 = vld [vmem:[%s3 + $0xf8] sm:$0xff]
    %v4515 = vld [vmem:[%s3 + $0x100] sm:$0xff]
    %v4516 = vld [vmem:[%s3 + $0x108] sm:$0xff]
    %v4517 = vld [vmem:[%s3 + $0x110] sm:$0xff]
    %v4518 = vld [vmem:[%s3 + $0x118] sm:$0xff]
    %v4519 = vld [vmem:[%s3 + $0x120] sm:$0xff]
    %v4520 = vld [vmem:[%s3 + $0x128] sm:$0xff]
    %v4521 = vld [vmem:[%s3 + $0x130] sm:$0xff]
    %v4522 = vld [vmem:[%s3 + $0x138] sm:$0xff]
    %v4523 = vld [vmem:[%s3 + $0x140] sm:$0xff]
    %v4524 = vld [vmem:[%s3 + $0x148] sm:$0xff]
    %v4525 = vld [vmem:[%s3 + $0x150] sm:$0xff]
    %v4526 = vld [vmem:[%s3 + $0x158] sm:$0xff]
    %v4527 = vld [vmem:[%s3 + $0x160] sm:$0xff]
    %v4528 = vld [vmem:[%s3 + $0x168] sm:$0xff]
    %v4529 = vld [vmem:[%s3 + $0x170] sm:$0xff]
    %v4530 = vld [vmem:[%s3 + $0x178] sm:$0xff]
    %v4531 = vld [vmem:[%s3 + $0x180] sm:$0xff]
    %v4532 = vld [vmem:[%s3 + $0x188] sm:$0xff]
    %v4533 = vld [vmem:[%s3 + $0x190] sm:$0xff]
    %v4534 = vld [vmem:[%s3 + $0x198] sm:$0xff]
    %v4535 = vld [vmem:[%s3 + $0x1a0] sm:$0xff]
    %v4536 = vld [vmem:[%s3 + $0x1a8] sm:$0xff]
    %v4537 = vld [vmem:[%s3 + $0x1b0] sm:$0xff]
    %v4538 = vld [vmem:[%s3 + $0x1b8] sm:$0xff]
    %v4539 = vld [vmem:[%s3 + $0x1c0] sm:$0xff]
    %v4540 = vld [vmem:[%s3 + $0x1c8] sm:$0xff]
    %v4541 = vld [vmem:[%s3 + $0x1d0] sm:$0xff]
    %v4542 = vld [vmem:[%s3 + $0x1d8] sm:$0xff]
    %v4543 = vld [vmem:[%s3 + $0x1e0] sm:$0x3]
    %v4544 = vld [vmem:[%s3 + $0x1e8] sm:$0x3]
    %v4546 = vsel %vm3262, %v4469, 0
    %v4549 = vsel %vm3262, %v4475, 0
    %v4552 = vsel %vm3262, %v4481, 0
    %v4555 = vsel %vm3691, %v4543, 0
    %v4558 = vsel %vm3691, %v4544, 0
    %4560 = vmatprep.subr.mxu0 %v4484
    %4561 = vmatpush1.msra.mxu0 %v4483
    %4562 = vmatprep.subr.mxu0 %v4486
    %4563 = vmatpush1.msra.mxu0 %v4485
    %4564 = vmatprep.subr.mxu0 %v4488
    %4565 = vmatpush1.msra.mxu0 %v4487
    %4566 = vmatprep.subr.mxu0 %v4490
    %4567 = vmatpush1.msra.mxu0 %v4489
    %4568 = vmatprep.subr.mxu0 %v4492
    %4569 = vmatpush1.msra.mxu0 %v4491
    %4570 = vmatprep.subr.mxu0 %v4494
    %4571 = vmatpush1.msra.mxu0 %v4493
    %4572 = vmatprep.subr.mxu0 %v4496
    %4573 = vmatpush1.msra.mxu0 %v4495
    %4574 = vmatprep.subr.mxu0 %v4498
    %4575 = vmatpush1.msra.mxu0 %v4497
    %4576 = vmatprep.subr.mxu0 %v4500
    %4577 = vmatpush1.msra.mxu0 %v4499
    %4578 = vmatprep.subr.mxu0 %v4502
    %4579 = vmatpush1.msra.mxu0 %v4501
    %4580 = vmatprep.subr.mxu0 %v4504
    %4581 = vmatpush1.msra.mxu0 %v4503
    %4582 = vmatprep.subr.mxu0 %v4506
    %4583 = vmatpush1.msra.mxu0 %v4505
    %4584 = vmatprep.subr.mxu0 %v4508
    %4585 = vmatpush1.msra.mxu0 %v4507
    %4586 = vmatprep.subr.mxu0 %v4510
    %4587 = vmatpush1.msra.mxu0 %v4509
    %4588 = vmatprep.subr.mxu0 %v4512
    %4589 = vmatpush1.msra.mxu0 %v4511
    %4590 = vmatprep.subr.mxu0 %v4514
    %4591 = vmatpush1.msra.mxu0 %v4513
    %4592 = vmatprep.subr.mxu0 %v4516
    %4593 = vmatpush1.msra.mxu0 %v4515
    %4594 = vmatprep.subr.mxu0 %v4518
    %4595 = vmatpush1.msra.mxu0 %v4517
    %4596 = vmatprep.subr.mxu0 %v4520
    %4597 = vmatpush1.msra.mxu0 %v4519
    %4598 = vmatprep.subr.mxu0 %v4522
    %4599 = vmatpush1.msra.mxu0 %v4521
    %4600 = vmatprep.subr.mxu0 %v4524
    %4601 = vmatpush1.msra.mxu0 %v4523
    %4602 = vmatprep.subr.mxu0 %v4526
    %4603 = vmatpush1.msra.mxu0 %v4525
    %4604 = vmatprep.subr.mxu0 %v4528
    %4605 = vmatpush1.msra.mxu0 %v4527
    %4606 = vmatprep.subr.mxu0 %v4530
    %4607 = vmatpush1.msra.mxu0 %v4529
    %4608 = vmatprep.subr.mxu0 %v4532
    %4609 = vmatpush1.msra.mxu0 %v4531
    %4610 = vmatprep.subr.mxu0 %v4534
    %4611 = vmatpush1.msra.mxu0 %v4533
    %4612 = vmatprep.subr.mxu0 %v4536
    %4613 = vmatpush1.msra.mxu0 %v4535
    %4614 = vmatprep.subr.mxu0 %v4538
    %4615 = vmatpush1.msra.mxu0 %v4537
    %4616 = vmatprep.subr.mxu0 %v4540
    %4617 = vmatpush1.msra.mxu0 %v4539
    %4618 = vmatprep.subr.mxu0 %v4542
    %4619 = vmatpush1.msra.mxu0 %v4541
    %4620 = vmatprep.subr.mxu0 %v4558
    %4621 = vmatpush1.msra.mxu0 %v4555
    %4622 = vmatprep.subr.mxu0 0.0
    %4623 = vmatpush1.msra.mxu0 0.0
    %4624 = vmatprep.mubr.f32.mxu0 %v4546
    %4625 = vmatmul.mubr.f32.gmra.mrb[0].mxu0 %v4467
    %v4626 = vpop.f32.mrb[0].mxu0
    %v4627 = vadd.f32 0.0, %v4626
    %v4628 = vpop.f32.mrb[0].mxu0
    %v4629 = vadd.f32 0.0, %v4628
    %4630 = vmatprep.mubr.f32.mxu0 %v4549
    %4631 = vmatmul.mubr.f32.gmra.mrb[0].mxu0 %v4473
    %v4632 = vpop.f32.mrb[0].mxu0
    %v4633 = vadd.f32 0.0, %v4632
    %v4634 = vpop.f32.mrb[0].mxu0
    %v4635 = vadd.f32 0.0, %v4634
    %4636 = vmatprep.mubr.f32.mxu0 %v4552
    %4637 = vmatmul.mubr.f32.gmra.mrb[0].mxu0 %v4479
    %v4638 = vpop.f32.mrb[0].mxu0
    %v4639 = vadd.f32 0.0, %v4638
    %v4640 = vpop.f32.mrb[0].mxu0
    %v4641 = vadd.f32 0.0, %v4640
    %4642 = vdwg.mxu0
    %v4643 = vmax.f32 %v4627, 0.0
    %v4644 = vmax.f32 %v4629, 0.0
    %v4645 = vmax.f32 %v4633, 0.0
    %v4646 = vmax.f32 %v4635, 0.0
    %v4647 = vmax.f32 %v4639, 0.0
    %v4648 = vmax.f32 %v4641, 0.0
    %v4649 = vld [vmem:[%s17] sm:$0xff]
    %v4650 = vld [vmem:[%s17 + $0x8] sm:$0xff]
    %v4651 = vld [vmem:[%s17 + $0x10] sm:$0xff]
    %v4652 = vld [vmem:[%s18] sm:$0xff]
    %v4653 = vld [vmem:[%s18 + $0x8] sm:$0xff]
    %v4654 = vld [vmem:[%s18 + $0x10] sm:$0xff]
    %vm4655 = vcmask 441344
    %v4656 = vsel %vm4655, %v4644, 0.0
    %v4657 = vadd.f32 %v4643, %v4656
    %4658 = vadd.xlane.f32.xlu0 %v4657
    %v4659 = vpop.xlane.xlu0 %4658
    %v4660 = vsel %vm4655, %v4646, 0.0
    %v4661 = vadd.f32 %v4645, %v4660
    %4662 = vadd.xlane.f32.xlu0 %v4661
    %v4663 = vpop.xlane.xlu0 %4662
    %v4664 = vsel %vm4655, %v4648, 0.0
    %v4665 = vadd.f32 %v4647, %v4664
    %4666 = vadd.xlane.f32.xlu0 %v4665
    %v4667 = vpop.xlane.xlu0 %4666
    %v4668 = vmul.f32 %v4659, 0.0061728396
    %v4669 = vmul.f32 %v4663, 0.0061728396
    %v4670 = vmul.f32 %v4667, 0.0061728396
    %v4671 = vmul.f32 %v4643, %v4643
    %v4672 = vmul.f32 %v4644, %v4644
    %v4673 = vmul.f32 %v4645, %v4645
    %v4674 = vmul.f32 %v4646, %v4646
    %v4675 = vmul.f32 %v4647, %v4647
    %v4676 = vmul.f32 %v4648, %v4648
    %v4677 = vsel %vm4655, %v4672, 0.0
    %v4678 = vadd.f32 %v4671, %v4677
    %4679 = vadd.xlane.f32.xlu0 %v4678
    %v4680 = vpop.xlane.xlu0 %4679
    %v4681 = vsel %vm4655, %v4674, 0.0
    %v4682 = vadd.f32 %v4673, %v4681
    %4683 = vadd.xlane.f32.xlu0 %v4682
    %v4684 = vpop.xlane.xlu0 %4683
    %v4685 = vsel %vm4655, %v4676, 0.0
    %v4686 = vadd.f32 %v4675, %v4685
    %4687 = vadd.xlane.f32.xlu0 %v4686
    %v4688 = vpop.xlane.xlu0 %4687
    %v4689 = vmul.f32 %v4680, 0.0061728396
    %v4690 = vmul.f32 %v4684, 0.0061728396
    %v4691 = vmul.f32 %v4688, 0.0061728396
    %v4692 = vmul.f32 %v4668, %v4668
    %v4693 = vmul.f32 %v4669, %v4669
    %v4694 = vmul.f32 %v4670, %v4670
    %v4695 = vsub.f32 %v4689, %v4692
    %v4696 = vsub.f32 %v4690, %v4693
    %v4697 = vsub.f32 %v4691, %v4694
    %v4698 = vadd.f32 %v4695, 1e-05
    %v4699 = vadd.f32 %v4696, 1e-05
    %v4700 = vadd.f32 %v4697, 1e-05
    %v4701 = vrsqrt.pop %v4698
    %v4702 = vrsqrt.pop %v4699
    %v4703 = vrsqrt.pop %v4700
    %v4704 = vmul.f32 %v4649, %v4701
    %v4705 = vmul.f32 %v4650, %v4702
    %v4706 = vmul.f32 %v4651, %v4703
    %4708 = vset.pattern.permute.xlu0 0
    %4709 = vperm.xlu0 %4708, %v4704
    %v4710 = vpop.permute.xlu0 %4709
    %4713 = vset.pattern.permute.xlu0 0
    %4714 = vperm.xlu0 %4713, %v4705
    %v4715 = vpop.permute.xlu0 %4714
    %4718 = vset.pattern.permute.xlu0 0
    %4719 = vperm.xlu0 %4718, %v4706
    %v4720 = vpop.permute.xlu0 %4719
    %v4722 = vmul.f32 %v4643, %v4710
    %v4723 = vmul.f32 %v4644, %v4710
    %v4724 = vmul.f32 %v4645, %v4715
    %v4725 = vmul.f32 %v4646, %v4715
    %v4726 = vmul.f32 %v4647, %v4720
    %v4727 = vmul.f32 %v4648, %v4720
    %v4728 = vmul.f32 %v4668, %v4704
    %v4729 = vmul.f32 %v4669, %v4705
    %v4730 = vmul.f32 %v4670, %v4706
    %v4731 = vsub.f32 %v4652, %v4728
    %v4732 = vsub.f32 %v4653, %v4729
    %v4733 = vsub.f32 %v4654, %v4730
    %4735 = vset.pattern.permute.xlu0 0
    %4736 = vperm.xlu0 %4735, %v4731
    %v4737 = vpop.permute.xlu0 %4736
    %4740 = vset.pattern.permute.xlu0 0
    %4741 = vperm.xlu0 %4740, %v4732
    %v4742 = vpop.permute.xlu0 %4741
    %4745 = vset.pattern.permute.xlu0 0
    %4746 = vperm.xlu0 %4745, %v4733
    %v4747 = vpop.permute.xlu0 %4746
    %v4749 = vadd.f32 %v4722, %v4737
    %v4750 = vadd.f32 %v4723, %v4737
    %v4751 = vadd.f32 %v4724, %v4742
    %v4752 = vadd.f32 %v4725, %v4742
    %v4753 = vadd.f32 %v4726, %v4747
    %v4754 = vadd.f32 %v4727, %v4747
    %v4755 = vld [vmem:[%s19] sm:$0xff]
    %v4756 = vld [vmem:[%s19 + $0x8] sm:$0xff]
    %v4757 = vld [vmem:[%s19 + $0x10] sm:$0xff]
    %v4758 = vld [vmem:[%s19 + $0x18] sm:$0xff]
    %v4759 = vld [vmem:[%s19 + $0x20] sm:$0xff]
    %v4760 = vld [vmem:[%s19 + $0x28] sm:$0xff]
    %v4761 = vld [vmem:[%s20] sm:$0xff]
    %v4762 = vld [vmem:[%s20 + $0x8] sm:$0xff]
    %v4763 = vld [vmem:[%s20 + $0x10] sm:$0xff]
    %4770 = vrot.lane.b32.xlu0 %v4749, 127
    %v4771 = vpop.permute.xlu0 %4770
    %4772 = vrot.lane.b32.xlu0 %v4750, 127
    %v4773 = vpop.permute.xlu0 %4772
    %4774 = vrot.lane.b32.xlu0 %v4751, 127
    %v4775 = vpop.permute.xlu0 %4774
    %4776 = vrot.lane.b32.xlu0 %v4752, 127
    %v4777 = vpop.permute.xlu0 %4776
    %4778 = vrot.lane.b32.xlu0 %v4753, 127
    %v4779 = vpop.permute.xlu0 %4778
    %4780 = vrot.lane.b32.xlu0 %v4754, 127
    %v4781 = vpop.permute.xlu0 %4780
    %v4782 = vsel %vm170, %v4771, %v4773
    %v4783 = vsel %vm170, %v4775, %v4777
    %v4784 = vsel %vm170, %v4779, %v4781
    %4791 = vrot.lane.b32.xlu0 %v4749, 126
    %v4792 = vpop.permute.xlu0 %4791
    %4793 = vrot.lane.b32.xlu0 %v4750, 126
    %v4794 = vpop.permute.xlu0 %4793
    %4795 = vrot.lane.b32.xlu0 %v4751, 126
    %v4796 = vpop.permute.xlu0 %4795
    %4797 = vrot.lane.b32.xlu0 %v4752, 126
    %v4798 = vpop.permute.xlu0 %4797
    %4799 = vrot.lane.b32.xlu0 %v4753, 126
    %v4800 = vpop.permute.xlu0 %4799
    %4801 = vrot.lane.b32.xlu0 %v4754, 126
    %v4802 = vpop.permute.xlu0 %4801
    %v4803 = vsel %vm222, %v4792, %v4794
    %v4804 = vsel %vm222, %v4796, %v4798
    %v4805 = vsel %vm222, %v4800, %v4802
    %4812 = vrot.lane.b32.xlu0 %v4749, 119
    %v4813 = vpop.permute.xlu0 %4812
    %4814 = vrot.lane.b32.xlu0 %v4750, 119
    %v4815 = vpop.permute.xlu0 %4814
    %4816 = vrot.lane.b32.xlu0 %v4751, 119
    %v4817 = vpop.permute.xlu0 %4816
    %4818 = vrot.lane.b32.xlu0 %v4752, 119
    %v4819 = vpop.permute.xlu0 %4818
    %4820 = vrot.lane.b32.xlu0 %v4753, 119
    %v4821 = vpop.permute.xlu0 %4820
    %4822 = vrot.lane.b32.xlu0 %v4754, 119
    %v4823 = vpop.permute.xlu0 %4822
    %vm4824 = vcmask 973824
    %v4825 = vsel %vm4824, %v4813, %v4815
    %v4826 = vsel %vm4824, %v4817, %v4819
    %v4827 = vsel %vm4824, %v4821, %v4823
    %4834 = vrot.lane.b32.xlu0 %v4749, 118
    %v4835 = vpop.permute.xlu0 %4834
    %4836 = vrot.lane.b32.xlu0 %v4750, 118
    %v4837 = vpop.permute.xlu0 %4836
    %4838 = vrot.lane.b32.xlu0 %v4751, 118
    %v4839 = vpop.permute.xlu0 %4838
    %4840 = vrot.lane.b32.xlu0 %v4752, 118
    %v4841 = vpop.permute.xlu0 %4840
    %4842 = vrot.lane.b32.xlu0 %v4753, 118
    %v4843 = vpop.permute.xlu0 %4842
    %4844 = vrot.lane.b32.xlu0 %v4754, 118
    %v4845 = vpop.permute.xlu0 %4844
    %vm4846 = vcmask 965632
    %v4847 = vsel %vm4846, %v4835, %v4837
    %v4848 = vsel %vm4846, %v4839, %v4841
    %v4849 = vsel %vm4846, %v4843, %v4845
    %4856 = vrot.lane.b32.xlu0 %v4749, 117
    %v4857 = vpop.permute.xlu0 %4856
    %4858 = vrot.lane.b32.xlu0 %v4750, 117
    %v4859 = vpop.permute.xlu0 %4858
    %4860 = vrot.lane.b32.xlu0 %v4751, 117
    %v4861 = vpop.permute.xlu0 %4860
    %4862 = vrot.lane.b32.xlu0 %v4752, 117
    %v4863 = vpop.permute.xlu0 %4862
    %4864 = vrot.lane.b32.xlu0 %v4753, 117
    %v4865 = vpop.permute.xlu0 %4864
    %4866 = vrot.lane.b32.xlu0 %v4754, 117
    %v4867 = vpop.permute.xlu0 %4866
    %v4868 = vsel %vm4226, %v4857, %v4859
    %v4869 = vsel %vm4226, %v4861, %v4863
    %v4870 = vsel %vm4226, %v4865, %v4867
    %4877 = vrot.lane.b32.xlu0 %v4749, 110
    %v4878 = vpop.permute.xlu0 %4877
    %4879 = vrot.lane.b32.xlu0 %v4750, 110
    %v4880 = vpop.permute.xlu0 %4879
    %4881 = vrot.lane.b32.xlu0 %v4751, 110
    %v4882 = vpop.permute.xlu0 %4881
    %4883 = vrot.lane.b32.xlu0 %v4752, 110
    %v4884 = vpop.permute.xlu0 %4883
    %4885 = vrot.lane.b32.xlu0 %v4753, 110
    %v4886 = vpop.permute.xlu0 %4885
    %4887 = vrot.lane.b32.xlu0 %v4754, 110
    %v4888 = vpop.permute.xlu0 %4887
    %v4889 = vsel %vm3092, %v4878, %v4880
    %v4890 = vsel %vm3092, %v4882, %v4884
    %v4891 = vsel %vm3092, %v4886, %v4888
    %4898 = vrot.lane.b32.xlu0 %v4749, 109
    %v4899 = vpop.permute.xlu0 %4898
    %4900 = vrot.lane.b32.xlu0 %v4750, 109
    %v4901 = vpop.permute.xlu0 %4900
    %4902 = vrot.lane.b32.xlu0 %v4751, 109
    %v4903 = vpop.permute.xlu0 %4902
    %4904 = vrot.lane.b32.xlu0 %v4752, 109
    %v4905 = vpop.permute.xlu0 %4904
    %4906 = vrot.lane.b32.xlu0 %v4753, 109
    %v4907 = vpop.permute.xlu0 %4906
    %4908 = vrot.lane.b32.xlu0 %v4754, 109
    %v4909 = vpop.permute.xlu0 %4908
    %vm4910 = vcmask 891904
    %v4911 = vsel %vm4910, %v4899, %v4901
    %v4912 = vsel %vm4910, %v4903, %v4905
    %v4913 = vsel %vm4910, %v4907, %v4909
    %4920 = vrot.lane.b32.xlu0 %v4749, 108
    %v4921 = vpop.permute.xlu0 %4920
    %4922 = vrot.lane.b32.xlu0 %v4750, 108
    %v4923 = vpop.permute.xlu0 %4922
    %4924 = vrot.lane.b32.xlu0 %v4751, 108
    %v4925 = vpop.permute.xlu0 %4924
    %4926 = vrot.lane.b32.xlu0 %v4752, 108
    %v4927 = vpop.permute.xlu0 %4926
    %4928 = vrot.lane.b32.xlu0 %v4753, 108
    %v4929 = vpop.permute.xlu0 %4928
    %4930 = vrot.lane.b32.xlu0 %v4754, 108
    %v4931 = vpop.permute.xlu0 %4930
    %vm4932 = vcmask 883712
    %v4933 = vsel %vm4932, %v4921, %v4923
    %v4934 = vsel %vm4932, %v4925, %v4927
    %v4935 = vsel %vm4932, %v4929, %v4931
    %4943 = vset.pattern.permute.xlu0 0
    %4944 = vperm.xlu0 %4943, %v4761
    %v4945 = vpop.permute.xlu0 %4944
    %4948 = vset.pattern.permute.xlu0 0
    %4949 = vperm.xlu0 %4948, %v4762
    %v4950 = vpop.permute.xlu0 %4949
    %4953 = vset.pattern.permute.xlu0 0
    %4954 = vperm.xlu0 %4953, %v4763
    %v4955 = vpop.permute.xlu0 %4954
    %v4958 = vsel %vm4390, %v4756, 0
    %v4961 = vsel %vm4390, %v4758, 0
    %v4964 = vsel %vm4390, %v4760, 0
    %4966 = vmatprep.subr.mxu0 %v4750
    %4967 = vmatpush1.msra.mxu0 %v4749
    %4968 = vmatprep.subr.mxu0 %v4752
    %4969 = vmatpush1.msra.mxu0 %v4751
    %4970 = vmatprep.subr.mxu0 %v4754
    %4971 = vmatpush1.msra.mxu0 %v4753
    %4972 = vmatprep.subr.mxu0 %v4773
    %4973 = vmatpush1.msra.mxu0 %v4782
    %4974 = vmatprep.subr.mxu0 %v4777
    %4975 = vmatpush1.msra.mxu0 %v4783
    %4976 = vmatprep.subr.mxu0 %v4781
    %4977 = vmatpush1.msra.mxu0 %v4784
    %4978 = vmatprep.subr.mxu0 %v4794
    %4979 = vmatpush1.msra.mxu0 %v4803
    %4980 = vmatprep.subr.mxu0 %v4798
    %4981 = vmatpush1.msra.mxu0 %v4804
    %4982 = vmatprep.subr.mxu0 %v4802
    %4983 = vmatpush1.msra.mxu0 %v4805
    %4984 = vmatprep.subr.mxu0 %v4815
    %4985 = vmatpush1.msra.mxu0 %v4825
    %4986 = vmatprep.subr.mxu0 %v4819
    %4987 = vmatpush1.msra.mxu0 %v4826
    %4988 = vmatprep.subr.mxu0 %v4823
    %4989 = vmatpush1.msra.mxu0 %v4827
    %4990 = vmatprep.subr.mxu0 %v4837
    %4991 = vmatpush1.msra.mxu0 %v4847
    %4992 = vmatprep.subr.mxu0 %v4841
    %4993 = vmatpush1.msra.mxu0 %v4848
    %4994 = vmatprep.subr.mxu0 %v4845
    %4995 = vmatpush1.msra.mxu0 %v4849
    %4996 = vmatprep.subr.mxu0 %v4859
    %4997 = vmatpush1.msra.mxu0 %v4868
    %4998 = vmatprep.subr.mxu0 %v4863
    %4999 = vmatpush1.msra.mxu0 %v4869
    %5000 = vmatprep.subr.mxu0 %v4867
    %5001 = vmatpush1.msra.mxu0 %v4870
    %5002 = vmatprep.subr.mxu0 %v4880
    %5003 = vmatpush1.msra.mxu0 %v4889
    %5004 = vmatprep.subr.mxu0 %v4884
    %5005 = vmatpush1.msra.mxu0 %v4890
    %5006 = vmatprep.subr.mxu0 %v4888
    %5007 = vmatpush1.msra.mxu0 %v4891
    %5008 = vmatprep.subr.mxu0 %v4901
    %5009 = vmatpush1.msra.mxu0 %v4911
    %5010 = vmatprep.subr.mxu0 %v4905
    %5011 = vmatpush1.msra.mxu0 %v4912
    %5012 = vmatprep.subr.mxu0 %v4909
    %5013 = vmatpush1.msra.mxu0 %v4913
    %5014 = vmatprep.subr.mxu0 %v4923
    %5015 = vmatpush1.msra.mxu0 %v4933
    %5016 = vmatprep.subr.mxu0 %v4927
    %5017 = vmatpush1.msra.mxu0 %v4934
    %5018 = vmatprep.subr.mxu0 %v4931
    %5019 = vmatpush1.msra.mxu0 %v4935
    %5020 = vmatprep.subr.mxu0 0.0
    %5021 = vmatpush1.msra.mxu0 0.0
    %5022 = vmatprep.subr.mxu0 0.0
    %5023 = vmatpush1.msra.mxu0 0.0
    %5024 = vmatprep.subr.mxu0 0.0
    %5025 = vmatpush1.msra.mxu0 0.0
    %5026 = vmatprep.subr.mxu0 0.0
    %5027 = vmatpush1.msra.mxu0 0.0
    %5028 = vmatprep.subr.mxu0 0.0
    %5029 = vmatpush1.msra.mxu0 0.0
    %5030 = vmatprep.mubr.f32.mxu0 %v4958
    %5031 = vmatmul.mubr.f32.gmra.mrb[0].mxu0 %v4755
    %v5032 = vpop.f32.mrb[0].mxu0
    %v5033 = vadd.f32 %v4945, %v5032
    %v5034 = vpop.f32.mrb[0].mxu0
    %v5035 = vadd.f32 %v4945, %v5034
    %5036 = vmatprep.mubr.f32.mxu0 %v4961
    %5037 = vmatmul.mubr.f32.gmra.mrb[0].mxu0 %v4757
    %v5038 = vpop.f32.mrb[0].mxu0
    %v5039 = vadd.f32 %v4950, %v5038
    %v5040 = vpop.f32.mrb[0].mxu0
    %v5041 = vadd.f32 %v4950, %v5040
    %5042 = vmatprep.mubr.f32.mxu0 %v4964
    %5043 = vmatmul.mubr.f32.gmra.mrb[0].mxu0 %v4759
    %v5044 = vpop.f32.mrb[0].mxu0
    %v5045 = vadd.f32 %v4955, %v5044
    %v5046 = vpop.f32.mrb[0].mxu0
    %v5047 = vadd.f32 %v4955, %v5046
    %5048 = vdwg.mxu0
    %5055 = vrot.lane.b32.xlu0 %v5033, 119
    %v5056 = vpop.permute.xlu0 %5055
    %5057 = vrot.lane.b32.xlu0 %v5035, 119
    %v5058 = vpop.permute.xlu0 %5057
    %5059 = vrot.lane.b32.xlu0 %v5039, 119
    %v5060 = vpop.permute.xlu0 %5059
    %5061 = vrot.lane.b32.xlu0 %v5041, 119
    %v5062 = vpop.permute.xlu0 %5061
    %5063 = vrot.lane.b32.xlu0 %v5045, 119
    %v5064 = vpop.permute.xlu0 %5063
    %5065 = vrot.lane.b32.xlu0 %v5047, 119
    %v5066 = vpop.permute.xlu0 %5065
    %v5067 = vsel %vm4824, %v5056, %v5058
    %v5068 = vsel %vm4824, %v5060, %v5062
    %v5069 = vsel %vm4824, %v5064, %v5066
    %v5076 = vmax.f32 %v5033, %v5067
    %v5077 = vmax.f32 %v5035, %v5058
    %v5078 = vmax.f32 %v5039, %v5068
    %v5079 = vmax.f32 %v5041, %v5062
    %v5080 = vmax.f32 %v5045, %v5069
    %v5081 = vmax.f32 %v5047, %v5066
    %5088 = vrot.lane.b32.xlu0 %v5076, 127
    %v5089 = vpop.permute.xlu0 %5088
    %5090 = vrot.lane.b32.xlu0 %v5077, 127
    %v5091 = vpop.permute.xlu0 %5090
    %5092 = vrot.lane.b32.xlu0 %v5078, 127
    %v5093 = vpop.permute.xlu0 %5092
    %5094 = vrot.lane.b32.xlu0 %v5079, 127
    %v5095 = vpop.permute.xlu0 %5094
    %5096 = vrot.lane.b32.xlu0 %v5080, 127
    %v5097 = vpop.permute.xlu0 %5096
    %5098 = vrot.lane.b32.xlu0 %v5081, 127
    %v5099 = vpop.permute.xlu0 %5098
    %v5100 = vsel %vm170, %v5089, %v5091
    %v5101 = vsel %vm170, %v5093, %v5095
    %v5102 = vsel %vm170, %v5097, %v5099
    %v5109 = vmax.f32 %v5076, %v5100
    %v5110 = vmax.f32 %v5077, %v5091
    %v5111 = vmax.f32 %v5078, %v5101
    %v5112 = vmax.f32 %v5079, %v5095
    %v5113 = vmax.f32 %v5080, %v5102
    %v5114 = vmax.f32 %v5081, %v5099
    %v5115 = vld [vmem:[#allocation2] sm:$0xff]
    %v5116 = vld [vmem:[#allocation2 + $0x8] sm:$0xff]
    %v5117 = vld [vmem:[#allocation2 + $0x10] sm:$0xff]
    %v5118 = vld [vmem:[#allocation2 + $0x18] sm:$0xff]
    %v5119 = vld [vmem:[#allocation2 + $0x20] sm:$0xff]
    %v5120 = vld [vmem:[#allocation2 + $0x28] sm:$0xff]
    %v5121 = vld [vmem:[#allocation2 + $0x30] sm:$0xff]
    %v5122 = vld [vmem:[#allocation2 + $0x38] sm:$0xff]
    %v5123 = vld [vmem:[#allocation2 + $0x40] sm:$0xff]
    %v5124 = vld [vmem:[#allocation2 + $0x48] sm:$0xff]
    %v5125 = vld [vmem:[#allocation2 + $0x50] sm:$0xff]
    %v5126 = vld [vmem:[#allocation2 + $0x58] sm:$0xff]
    %v5127 = vld [vmem:[#allocation2 + $0x60] sm:$0xff]
    %v5128 = vld [vmem:[#allocation2 + $0x68] sm:$0xff]
    %v5129 = vld [vmem:[#allocation2 + $0x70] sm:$0xff]
    %v5130 = vld [vmem:[#allocation2 + $0x78] sm:$0xff]
    %v5131 = vld [vmem:[#allocation2 + $0x80] sm:$0xff]
    %v5132 = vld [vmem:[#allocation2 + $0x88] sm:$0xff]
    %v5133 = vld [vmem:[#allocation2 + $0x90] sm:$0xff]
    %vm5134 = vcmask 195584
    %v5136 = vsel %vm5134, %v5110, 0
    %v5139 = vsel %vm5134, %v5112, 0
    %v5142 = vsel %vm5134, %v5114, 0
    %5144 = vmatprep.subr.mxu0 0.0
    %5145 = vmatpush1.msra.mxu0 %v5115
    %5146 = vmatprep.subr.mxu0 0.0
    %5147 = vmatpush1.msra.mxu0 %v5116
    %5148 = vmatprep.subr.mxu0 0.0
    %5149 = vmatpush1.msra.mxu0 %v5117
    %5150 = vmatprep.subr.mxu0 0.0
    %5151 = vmatpush1.msra.mxu0 %v5118
    %5152 = vmatprep.subr.mxu0 0.0
    %5153 = vmatpush1.msra.mxu0 %v5119
    %5154 = vmatprep.subr.mxu0 0.0
    %5155 = vmatpush1.msra.mxu0 %v5120
    %5156 = vmatprep.subr.mxu0 0.0
    %5157 = vmatpush1.msra.mxu0 %v5121
    %5158 = vmatprep.subr.mxu0 0.0
    %5159 = vmatpush1.msra.mxu0 %v5122
    %5160 = vmatprep.subr.mxu0 0.0
    %5161 = vmatpush1.msra.mxu0 %v5123
    %5162 = vmatprep.subr.mxu0 0.0
    %5163 = vmatpush1.msra.mxu0 %v5124
    %5164 = vmatprep.subr.mxu0 0.0
    %5165 = vmatpush1.msra.mxu0 %v5125
    %5166 = vmatprep.subr.mxu0 0.0
    %5167 = vmatpush1.msra.mxu0 %v5126
    %5168 = vmatprep.subr.mxu0 0.0
    %5169 = vmatpush1.msra.mxu0 %v5127
    %5170 = vmatprep.subr.mxu0 0.0
    %5171 = vmatpush1.msra.mxu0 %v5128
    %5172 = vmatprep.subr.mxu0 0.0
    %5173 = vmatpush1.msra.mxu0 %v5129
    %5174 = vmatprep.subr.mxu0 0.0
    %5175 = vmatpush1.msra.mxu0 %v5130
    %5176 = vmatprep.subr.mxu0 0.0
    %5177 = vmatpush1.msra.mxu0 %v5131
    %5178 = vmatprep.subr.mxu0 0.0
    %5179 = vmatpush1.msra.mxu0 %v5132
    %5180 = vmatprep.subr.mxu0 0.0
    %5181 = vmatpush1.msra.mxu0 %v5133
    %5182 = vmatprep.subr.mxu0 0.0
    %5183 = vmatpush1.msra.mxu0 0.0
    %5184 = vmatprep.subr.mxu0 0.0
    %5185 = vmatpush1.msra.mxu0 0.0
    %5186 = vmatprep.subr.mxu0 0.0
    %5187 = vmatpush1.msra.mxu0 0.0
    %5188 = vmatprep.subr.mxu0 0.0
    %5189 = vmatpush1.msra.mxu0 0.0
    %5190 = vmatprep.subr.mxu0 0.0
    %5191 = vmatpush1.msra.mxu0 0.0
    %5192 = vmatprep.subr.mxu0 0.0
    %5193 = vmatpush1.msra.mxu0 0.0
    %5194 = vmatprep.subr.mxu0 0.0
    %5195 = vmatpush1.msra.mxu0 0.0
    %5196 = vmatprep.subr.mxu0 0.0
    %5197 = vmatpush1.msra.mxu0 0.0
    %5198 = vmatprep.subr.mxu0 0.0
    %5199 = vmatpush1.msra.mxu0 0.0
    %5200 = vmatprep.subr.mxu0 0.0
    %5201 = vmatpush1.msra.mxu0 0.0
    %5202 = vmatprep.subr.mxu0 0.0
    %5203 = vmatpush1.msra.mxu0 0.0
    %5204 = vmatprep.subr.mxu0 0.0
    %5205 = vmatpush1.msra.mxu0 0.0
    %5206 = vmatprep.subr.mxu0 0.0
    %5207 = vmatpush1.msra.mxu0 0.0
    %5208 = vmatprep.mubr.f32.mxu0 %v5136
    %5209 = vmatmul.mubr.f32.gmra.mrb[0].mxu0 %v5109
    %v5210 = vpop.f32.mrb[0].mxu0
    %v5211 = vadd.f32 0.0, %v5210
    %v5212 = vpop.f32.mrb[0].mxu0
    %5213 = vmatprep.mubr.f32.mxu0 %v5139
    %5214 = vmatmul.mubr.f32.gmra.mrb[0].mxu0 %v5111
    %v5215 = vpop.f32.mrb[0].mxu0
    %v5216 = vadd.f32 0.0, %v5215
    %v5217 = vpop.f32.mrb[0].mxu0
    %5218 = vmatprep.mubr.f32.mxu0 %v5142
    %5219 = vmatmul.mubr.f32.gmra.mrb[0].mxu0 %v5113
    %v5220 = vpop.f32.mrb[0].mxu0
    %v5221 = vadd.f32 0.0, %v5220
    %v5222 = vpop.f32.mrb[0].mxu0
    %5223 = vdwg.mxu0
    %v5224 = vmax.f32 %v5211, 0.0
    %v5225 = vmax.f32 %v5216, 0.0
    %v5226 = vmax.f32 %v5221, 0.0
    %v5227 = vld [vmem:[%s21] sm:$0xff]
    %v5228 = vld [vmem:[%s21 + $0x8] sm:$0xff]
    %v5229 = vld [vmem:[%s21 + $0x10] sm:$0xff]
    %v5230 = vld [vmem:[%s22] sm:$0xff]
    %v5231 = vld [vmem:[%s22 + $0x8] sm:$0xff]
    %v5232 = vld [vmem:[%s22 + $0x10] sm:$0xff]
    %vm5233 = vcmask 146432
    %v5234 = vsel %vm5233, %v5224, 0.0
    %5235 = vadd.xlane.f32.xlu0 %v5234
    %v5236 = vpop.xlane.xlu0 %5235
    %v5237 = vsel %vm5233, %v5225, 0.0
    %5238 = vadd.xlane.f32.xlu0 %v5237
    %v5239 = vpop.xlane.xlu0 %5238
    %v5240 = vsel %vm5233, %v5226, 0.0
    %5241 = vadd.xlane.f32.xlu0 %v5240
    %v5242 = vpop.xlane.xlu0 %5241
    %v5243 = vmul.f32 %v5236, 0.055555556
    %v5244 = vmul.f32 %v5239, 0.055555556
    %v5245 = vmul.f32 %v5242, 0.055555556
    %v5246 = vmul.f32 %v5224, %v5224
    %v5247 = vmul.f32 %v5225, %v5225
    %v5248 = vmul.f32 %v5226, %v5226
    %v5249 = vsel %vm5233, %v5246, 0.0
    %5250 = vadd.xlane.f32.xlu0 %v5249
    %v5251 = vpop.xlane.xlu0 %5250
    %v5252 = vsel %vm5233, %v5247, 0.0
    %5253 = vadd.xlane.f32.xlu0 %v5252
    %v5254 = vpop.xlane.xlu0 %5253
    %v5255 = vsel %vm5233, %v5248, 0.0
    %5256 = vadd.xlane.f32.xlu0 %v5255
    %v5257 = vpop.xlane.xlu0 %5256
    %v5258 = vmul.f32 %v5251, 0.055555556
    %v5259 = vmul.f32 %v5254, 0.055555556
    %v5260 = vmul.f32 %v5257, 0.055555556
    %v5261 = vmul.f32 %v5243, %v5243
    %v5262 = vmul.f32 %v5244, %v5244
    %v5263 = vmul.f32 %v5245, %v5245
    %v5264 = vsub.f32 %v5258, %v5261
    %v5265 = vsub.f32 %v5259, %v5262
    %v5266 = vsub.f32 %v5260, %v5263
    %v5267 = vadd.f32 %v5264, 1e-05
    %v5268 = vadd.f32 %v5265, 1e-05
    %v5269 = vadd.f32 %v5266, 1e-05
    %v5270 = vrsqrt.pop %v5267
    %v5271 = vrsqrt.pop %v5268
    %v5272 = vrsqrt.pop %v5269
    %v5273 = vmul.f32 %v5227, %v5270
    %v5274 = vmul.f32 %v5228, %v5271
    %v5275 = vmul.f32 %v5229, %v5272
    %5277 = vset.pattern.permute.xlu0 0
    %5278 = vperm.xlu0 %5277, %v5273
    %v5279 = vpop.permute.xlu0 %5278
    %5282 = vset.pattern.permute.xlu0 0
    %5283 = vperm.xlu0 %5282, %v5274
    %v5284 = vpop.permute.xlu0 %5283
    %5287 = vset.pattern.permute.xlu0 0
    %5288 = vperm.xlu0 %5287, %v5275
    %v5289 = vpop.permute.xlu0 %5288
    %v5291 = vmul.f32 %v5224, %v5279
    %v5292 = vmul.f32 %v5225, %v5284
    %v5293 = vmul.f32 %v5226, %v5289
    %v5294 = vmul.f32 %v5243, %v5273
    %v5295 = vmul.f32 %v5244, %v5274
    %v5296 = vmul.f32 %v5245, %v5275
    %v5297 = vsub.f32 %v5230, %v5294
    %v5298 = vsub.f32 %v5231, %v5295
    %v5299 = vsub.f32 %v5232, %v5296
    %5301 = vset.pattern.permute.xlu0 0
    %5302 = vperm.xlu0 %5301, %v5297
    %v5303 = vpop.permute.xlu0 %5302
    %5306 = vset.pattern.permute.xlu0 0
    %5307 = vperm.xlu0 %5306, %v5298
    %v5308 = vpop.permute.xlu0 %5307
    %5311 = vset.pattern.permute.xlu0 0
    %5312 = vperm.xlu0 %5311, %v5299
    %v5313 = vpop.permute.xlu0 %5312
    %v5315 = vadd.f32 %v5291, %v5303
    %v5316 = vadd.f32 %v5292, %v5308
    %v5317 = vadd.f32 %v5293, %v5313
    %v5318 = vld [vmem:[%s5] sm:$0xff]
    %v5319 = vld [vmem:[%s5 + $0x8] sm:$0xff]
    %v5320 = vld [vmem:[%s5 + $0x10] sm:$0xff]
    %v5321 = vld [vmem:[%s5 + $0x18] sm:$0xff]
    %v5322 = vld [vmem:[%s5 + $0x20] sm:$0xff]
    %v5323 = vld [vmem:[%s5 + $0x28] sm:$0xff]
    %v5324 = vld [vmem:[%s5 + $0x30] sm:$0xff]
    %v5325 = vld [vmem:[%s5 + $0x38] sm:$0xff]
    %v5326 = vld [vmem:[%s5 + $0x40] sm:$0xff]
    %v5327 = vld [vmem:[%s5 + $0x48] sm:$0xff]
    %v5328 = vld [vmem:[%s5 + $0x50] sm:$0xff]
    %v5329 = vld [vmem:[%s5 + $0x58] sm:$0xff]
    %v5330 = vld [vmem:[%s5 + $0x60] sm:$0xff]
    %v5331 = vld [vmem:[%s5 + $0x68] sm:$0xff]
    %v5332 = vld [vmem:[%s5 + $0x70] sm:$0xff]
    %v5333 = vld [vmem:[%s5 + $0x78] sm:$0xff]
    %v5334 = vld [vmem:[%s5 + $0x80] sm:$0xff]
    %v5335 = vld [vmem:[%s5 + $0x88] sm:$0xff]
    %v5336 = vld [vmem:[%s5 + $0x90] sm:$0xff]
    %v5337 = vld [vmem:[%s5 + $0x98] sm:$0xff]
    %v5338 = vld [vmem:[%s5 + $0xa0] sm:$0xff]
    %v5339 = vld [vmem:[%s5 + $0xa8] sm:$0xff]
    %v5340 = vld [vmem:[%s5 + $0xb0] sm:$0xff]
    %v5341 = vld [vmem:[%s5 + $0xb8] sm:$0xff]
    %v5342 = vld [vmem:[%s5 + $0xc0] sm:$0xff]
    %v5343 = vld [vmem:[%s5 + $0xc8] sm:$0xff]
    %v5344 = vld [vmem:[%s5 + $0xd0] sm:$0xff]
    %v5345 = vmul.f32 %v5315, %v5318
    %v5346 = vmul.f32 %v5316, %v5319
    %v5347 = vmul.f32 %v5317, %v5320
    %v5348 = vmul.f32 %v5315, %v5321
    %v5349 = vmul.f32 %v5316, %v5322
    %v5350 = vmul.f32 %v5317, %v5323
    %v5351 = vmul.f32 %v5315, %v5324
    %v5352 = vmul.f32 %v5316, %v5325
    %v5353 = vmul.f32 %v5317, %v5326
    %v5354 = vmul.f32 %v5315, %v5327
    %v5355 = vmul.f32 %v5316, %v5328
    %v5356 = vmul.f32 %v5317, %v5329
    %v5357 = vmul.f32 %v5315, %v5330
    %v5358 = vmul.f32 %v5316, %v5331
    %v5359 = vmul.f32 %v5317, %v5332
    %v5360 = vmul.f32 %v5315, %v5333
    %v5361 = vmul.f32 %v5316, %v5334
    %v5362 = vmul.f32 %v5317, %v5335
    %v5363 = vmul.f32 %v5315, %v5336
    %v5364 = vmul.f32 %v5316, %v5337
    %v5365 = vmul.f32 %v5317, %v5338
    %v5366 = vmul.f32 %v5315, %v5339
    %v5367 = vmul.f32 %v5316, %v5340
    %v5368 = vmul.f32 %v5317, %v5341
    %v5369 = vmul.f32 %v5315, %v5342
    %v5370 = vmul.f32 %v5316, %v5343
    %v5371 = vmul.f32 %v5317, %v5344
    %v5372 = vld [vmem:[#allocation4] sm:$0xff]
    %v5373 = vld [vmem:[#allocation4 + $0x8] sm:$0xff]
    %v5374 = vld [vmem:[#allocation4 + $0x10] sm:$0x3]
    %v5376 = vsel %vm5233, %v5345, 0
    %v5379 = vsel %vm5233, %v5346, 0
    %v5382 = vsel %vm5233, %v5347, 0
    %v5385 = vsel %vm5233, %v5348, 0
    %v5388 = vsel %vm5233, %v5349, 0
    %v5391 = vsel %vm5233, %v5350, 0
    %v5394 = vsel %vm5233, %v5351, 0
    %v5397 = vsel %vm5233, %v5352, 0
    %v5400 = vsel %vm5233, %v5353, 0
    %v5403 = vsel %vm5233, %v5354, 0
    %v5406 = vsel %vm5233, %v5355, 0
    %v5409 = vsel %vm5233, %v5356, 0
    %v5412 = vsel %vm5233, %v5357, 0
    %v5415 = vsel %vm5233, %v5358, 0
    %v5418 = vsel %vm5233, %v5359, 0
    %v5421 = vsel %vm5233, %v5360, 0
    %v5424 = vsel %vm5233, %v5361, 0
    %v5427 = vsel %vm5233, %v5362, 0
    %v5430 = vsel %vm5233, %v5363, 0
    %v5433 = vsel %vm5233, %v5364, 0
    %v5436 = vsel %vm5233, %v5365, 0
    %v5439 = vsel %vm5233, %v5366, 0
    %v5442 = vsel %vm5233, %v5367, 0
    %v5445 = vsel %vm5233, %v5368, 0
    %v5448 = vsel %vm5233, %v5369, 0
    %v5451 = vsel %vm5233, %v5370, 0
    %v5454 = vsel %vm5233, %v5371, 0
    %v5457 = vsel %vm3691, %v5374, 0
    %5459 = vmatprep.subr.mxu0 0.0
    %5460 = vmatpush1.msra.mxu0 %v5372
    %5461 = vmatprep.subr.mxu0 0.0
    %5462 = vmatpush1.msra.mxu0 %v5373
    %5463 = vmatprep.subr.mxu0 0.0
    %5464 = vmatpush1.msra.mxu0 %v5457
    %5465 = vmatprep.subr.mxu0 0.0
    %5466 = vmatpush1.msra.mxu0 0.0
    %5467 = vmatprep.subr.mxu0 0.0
    %5468 = vmatpush1.msra.mxu0 0.0
    %5469 = vmatprep.subr.mxu0 0.0
    %5470 = vmatpush1.msra.mxu0 0.0
    %5471 = vmatprep.subr.mxu0 0.0
    %5472 = vmatpush1.msra.mxu0 0.0
    %5473 = vmatprep.subr.mxu0 0.0
    %5474 = vmatpush1.msra.mxu0 0.0
    %5475 = vmatprep.subr.mxu0 0.0
    %5476 = vmatpush1.msra.mxu0 0.0
    %5477 = vmatprep.subr.mxu0 0.0
    %5478 = vmatpush1.msra.mxu0 0.0
    %5479 = vmatprep.subr.mxu0 0.0
    %5480 = vmatpush1.msra.mxu0 0.0
    %5481 = vmatprep.subr.mxu0 0.0
    %5482 = vmatpush1.msra.mxu0 0.0
    %5483 = vmatprep.subr.mxu0 0.0
    %5484 = vmatpush1.msra.mxu0 0.0
    %5485 = vmatprep.subr.mxu0 0.0
    %5486 = vmatpush1.msra.mxu0 0.0
    %5487 = vmatprep.subr.mxu0 0.0
    %5488 = vmatpush1.msra.mxu0 0.0
    %5489 = vmatprep.subr.mxu0 0.0
    %5490 = vmatpush1.msra.mxu0 0.0
    %5491 = vmatprep.subr.mxu0 0.0
    %5492 = vmatpush1.msra.mxu0 0.0
    %5493 = vmatprep.subr.mxu0 0.0
    %5494 = vmatpush1.msra.mxu0 0.0
    %5495 = vmatprep.subr.mxu0 0.0
    %5496 = vmatpush1.msra.mxu0 0.0
    %5497 = vmatprep.subr.mxu0 0.0
    %5498 = vmatpush1.msra.mxu0 0.0
    %5499 = vmatprep.subr.mxu0 0.0
    %5500 = vmatpush1.msra.mxu0 0.0
    %5501 = vmatprep.subr.mxu0 0.0
    %5502 = vmatpush1.msra.mxu0 0.0
    %5503 = vmatprep.subr.mxu0 0.0
    %5504 = vmatpush1.msra.mxu0 0.0
    %5505 = vmatprep.subr.mxu0 0.0
    %5506 = vmatpush1.msra.mxu0 0.0
    %5507 = vmatprep.subr.mxu0 0.0
    %5508 = vmatpush1.msra.mxu0 0.0
    %5509 = vmatprep.subr.mxu0 0.0
    %5510 = vmatpush1.msra.mxu0 0.0
    %5511 = vmatprep.subr.mxu0 0.0
    %5512 = vmatpush1.msra.mxu0 0.0
    %5513 = vmatprep.subr.mxu0 0.0
    %5514 = vmatpush1.msra.mxu0 0.0
    %5515 = vmatprep.subr.mxu0 0.0
    %5516 = vmatpush1.msra.mxu0 0.0
    %5517 = vmatprep.subr.mxu0 0.0
    %5518 = vmatpush1.msra.mxu0 0.0
    %5519 = vmatprep.subr.mxu0 0.0
    %5520 = vmatpush1.msra.mxu0 0.0
    %5521 = vmatprep.subr.mxu0 0.0
    %5522 = vmatpush1.msra.mxu0 0.0
    %5523 = vmatprep.mubr.f32.mxu0 0.0
    %5524 = vmatmul.mubr.f32.gmra.mrb[0].mxu0 %v5376
    %v5525 = vpop.f32.mrb[0].mxu0
    %v5526 = vadd.f32 0.0, %v5525
    %v5527 = vpop.f32.mrb[0].mxu0
    %5528 = vmatprep.mubr.f32.mxu0 0.0
    %5529 = vmatmul.mubr.f32.gmra.mrb[0].mxu0 %v5379
    %v5530 = vpop.f32.mrb[0].mxu0
    %v5531 = vadd.f32 0.0, %v5530
    %v5532 = vpop.f32.mrb[0].mxu0
    %5533 = vmatprep.mubr.f32.mxu0 0.0
    %5534 = vmatmul.mubr.f32.gmra.mrb[0].mxu0 %v5382
    %v5535 = vpop.f32.mrb[0].mxu0
    %v5536 = vadd.f32 0.0, %v5535
    %v5537 = vpop.f32.mrb[0].mxu0
    %5538 = vmatprep.mubr.f32.mxu0 0.0
    %5539 = vmatmul.mubr.f32.gmra.mrb[0].mxu0 %v5385
    %v5540 = vpop.f32.mrb[0].mxu0
    %v5541 = vadd.f32 0.0, %v5540
    %v5542 = vpop.f32.mrb[0].mxu0
    %5543 = vmatprep.mubr.f32.mxu0 0.0
    %5544 = vmatmul.mubr.f32.gmra.mrb[0].mxu0 %v5388
    %v5545 = vpop.f32.mrb[0].mxu0
    %v5546 = vadd.f32 0.0, %v5545
    %v5547 = vpop.f32.mrb[0].mxu0
    %5548 = vmatprep.mubr.f32.mxu0 0.0
    %5549 = vmatmul.mubr.f32.gmra.mrb[0].mxu0 %v5391
    %v5550 = vpop.f32.mrb[0].mxu0
    %v5551 = vadd.f32 0.0, %v5550
    %v5552 = vpop.f32.mrb[0].mxu0
    %5553 = vmatprep.mubr.f32.mxu0 0.0
    %5554 = vmatmul.mubr.f32.gmra.mrb[0].mxu0 %v5394
    %v5555 = vpop.f32.mrb[0].mxu0
    %v5556 = vadd.f32 0.0, %v5555
    %v5557 = vpop.f32.mrb[0].mxu0
    %5558 = vmatprep.mubr.f32.mxu0 0.0
    %5559 = vmatmul.mubr.f32.gmra.mrb[0].mxu0 %v5397
    %v5560 = vpop.f32.mrb[0].mxu0
    %v5561 = vadd.f32 0.0, %v5560
    %v5562 = vpop.f32.mrb[0].mxu0
    %5563 = vmatprep.mubr.f32.mxu0 0.0
    %5564 = vmatmul.mubr.f32.gmra.mrb[0].mxu0 %v5400
    %v5565 = vpop.f32.mrb[0].mxu0
    %v5566 = vadd.f32 0.0, %v5565
    %v5567 = vpop.f32.mrb[0].mxu0
    %5568 = vmatprep.mubr.f32.mxu0 0.0
    %5569 = vmatmul.mubr.f32.gmra.mrb[0].mxu0 %v5403
    %v5570 = vpop.f32.mrb[0].mxu0
    %v5571 = vadd.f32 0.0, %v5570
    %v5572 = vpop.f32.mrb[0].mxu0
    %5573 = vmatprep.mubr.f32.mxu0 0.0
    %5574 = vmatmul.mubr.f32.gmra.mrb[0].mxu0 %v5406
    %v5575 = vpop.f32.mrb[0].mxu0
    %v5576 = vadd.f32 0.0, %v5575
    %v5577 = vpop.f32.mrb[0].mxu0
    %5578 = vmatprep.mubr.f32.mxu0 0.0
    %5579 = vmatmul.mubr.f32.gmra.mrb[0].mxu0 %v5409
    %v5580 = vpop.f32.mrb[0].mxu0
    %v5581 = vadd.f32 0.0, %v5580
    %v5582 = vpop.f32.mrb[0].mxu0
    %5583 = vmatprep.mubr.f32.mxu0 0.0
    %5584 = vmatmul.mubr.f32.gmra.mrb[0].mxu0 %v5412
    %v5585 = vpop.f32.mrb[0].mxu0
    %v5586 = vadd.f32 0.0, %v5585
    %v5587 = vpop.f32.mrb[0].mxu0
    %5588 = vmatprep.mubr.f32.mxu0 0.0
    %5589 = vmatmul.mubr.f32.gmra.mrb[0].mxu0 %v5415
    %v5590 = vpop.f32.mrb[0].mxu0
    %v5591 = vadd.f32 0.0, %v5590
    %v5592 = vpop.f32.mrb[0].mxu0
    %5593 = vmatprep.mubr.f32.mxu0 0.0
    %5594 = vmatmul.mubr.f32.gmra.mrb[0].mxu0 %v5418
    %v5595 = vpop.f32.mrb[0].mxu0
    %v5596 = vadd.f32 0.0, %v5595
    %v5597 = vpop.f32.mrb[0].mxu0
    %5598 = vmatprep.mubr.f32.mxu0 0.0
    %5599 = vmatmul.mubr.f32.gmra.mrb[0].mxu0 %v5421
    %v5600 = vpop.f32.mrb[0].mxu0
    %v5601 = vadd.f32 0.0, %v5600
    %v5602 = vpop.f32.mrb[0].mxu0
    %5603 = vmatprep.mubr.f32.mxu0 0.0
    %5604 = vmatmul.mubr.f32.gmra.mrb[0].mxu0 %v5424
    %v5605 = vpop.f32.mrb[0].mxu0
    %v5606 = vadd.f32 0.0, %v5605
    %v5607 = vpop.f32.mrb[0].mxu0
    %5608 = vmatprep.mubr.f32.mxu0 0.0
    %5609 = vmatmul.mubr.f32.gmra.mrb[0].mxu0 %v5427
    %v5610 = vpop.f32.mrb[0].mxu0
    %v5611 = vadd.f32 0.0, %v5610
    %v5612 = vpop.f32.mrb[0].mxu0
    %5613 = vmatprep.mubr.f32.mxu0 0.0
    %5614 = vmatmul.mubr.f32.gmra.mrb[0].mxu0 %v5430
    %v5615 = vpop.f32.mrb[0].mxu0
    %v5616 = vadd.f32 0.0, %v5615
    %v5617 = vpop.f32.mrb[0].mxu0
    %5618 = vmatprep.mubr.f32.mxu0 0.0
    %5619 = vmatmul.mubr.f32.gmra.mrb[0].mxu0 %v5433
    %v5620 = vpop.f32.mrb[0].mxu0
    %v5621 = vadd.f32 0.0, %v5620
    %v5622 = vpop.f32.mrb[0].mxu0
    %5623 = vmatprep.mubr.f32.mxu0 0.0
    %5624 = vmatmul.mubr.f32.gmra.mrb[0].mxu0 %v5436
    %v5625 = vpop.f32.mrb[0].mxu0
    %v5626 = vadd.f32 0.0, %v5625
    %v5627 = vpop.f32.mrb[0].mxu0
    %5628 = vmatprep.mubr.f32.mxu0 0.0
    %5629 = vmatmul.mubr.f32.gmra.mrb[0].mxu0 %v5439
    %v5630 = vpop.f32.mrb[0].mxu0
    %v5631 = vadd.f32 0.0, %v5630
    %v5632 = vpop.f32.mrb[0].mxu0
    %5633 = vmatprep.mubr.f32.mxu0 0.0
    %5634 = vmatmul.mubr.f32.gmra.mrb[0].mxu0 %v5442
    %v5635 = vpop.f32.mrb[0].mxu0
    %v5636 = vadd.f32 0.0, %v5635
    %v5637 = vpop.f32.mrb[0].mxu0
    %5638 = vmatprep.mubr.f32.mxu0 0.0
    %5639 = vmatmul.mubr.f32.gmra.mrb[0].mxu0 %v5445
    %v5640 = vpop.f32.mrb[0].mxu0
    %v5641 = vadd.f32 0.0, %v5640
    %v5642 = vpop.f32.mrb[0].mxu0
    %5643 = vmatprep.mubr.f32.mxu0 0.0
    %5644 = vmatmul.mubr.f32.gmra.mrb[0].mxu0 %v5448
    %v5645 = vpop.f32.mrb[0].mxu0
    %v5646 = vadd.f32 0.0, %v5645
    %v5647 = vpop.f32.mrb[0].mxu0
    %5648 = vmatprep.mubr.f32.mxu0 0.0
    %5649 = vmatmul.mubr.f32.gmra.mrb[0].mxu0 %v5451
    %v5650 = vpop.f32.mrb[0].mxu0
    %v5651 = vadd.f32 0.0, %v5650
    %v5652 = vpop.f32.mrb[0].mxu0
    %5653 = vmatprep.mubr.f32.mxu0 0.0
    %5654 = vmatmul.mubr.f32.gmra.mrb[0].mxu0 %v5454
    %v5655 = vpop.f32.mrb[0].mxu0
    %v5656 = vadd.f32 0.0, %v5655
    %v5657 = vpop.f32.mrb[0].mxu0
    %5658 = vdwg.mxu0
    %v5659 = vld [vmem:[%s23] sm:$0xff]
    %v5660 = vld [vmem:[%s23 + $0x8] sm:$0xff]
    %v5661 = vld [vmem:[%s23 + $0x10] sm:$0xff]
    %v5662 = vld [vmem:[%s23 + $0x18] sm:$0xff]
    %v5663 = vld [vmem:[%s23 + $0x20] sm:$0xff]
    %v5664 = vld [vmem:[%s23 + $0x28] sm:$0xff]
    %v5665 = vld [vmem:[%s23 + $0x30] sm:$0xff]
    %v5666 = vld [vmem:[%s23 + $0x38] sm:$0xff]
    %v5667 = vld [vmem:[%s23 + $0x40] sm:$0xff]
    %v5668 = vld [vmem:[%s23 + $0x48] sm:$0xff]
    %v5669 = vld [vmem:[%s23 + $0x50] sm:$0xff]
    %v5670 = vld [vmem:[%s23 + $0x58] sm:$0xff]
    %v5671 = vld [vmem:[%s23 + $0x60] sm:$0x3]
    %v5672 = vld [vmem:[%s23 + $0x68] sm:$0x3]
    %v5673 = vld [vmem:[%s24] sm:$0xff]
    %v5674 = vld [vmem:[%s24 + $0x8] sm:$0xff]
    %v5675 = vld [vmem:[%s24 + $0x10] sm:$0xff]
    %v5676 = vld [vmem:[%s24 + $0x18] sm:$0xff]
    %v5677 = vld [vmem:[%s24 + $0x20] sm:$0xff]
    %v5678 = vld [vmem:[%s24 + $0x28] sm:$0xff]
    %v5679 = vld [vmem:[%s24 + $0x30] sm:$0x3]
    %5681 = vset.pattern.permute.xlu0 0
    %5682 = vperm.xlu0 %5681, %v5673
    %v5683 = vpop.permute.xlu0 %5682
    %5686 = vset.pattern.permute.xlu0 0
    %5687 = vperm.xlu0 %5686, %v5674
    %v5688 = vpop.permute.xlu0 %5687
    %5691 = vset.pattern.permute.xlu0 0
    %5692 = vperm.xlu0 %5691, %v5675
    %v5693 = vpop.permute.xlu0 %5692
    %5696 = vset.pattern.permute.xlu0 0
    %5697 = vperm.xlu0 %5696, %v5676
    %v5698 = vpop.permute.xlu0 %5697
    %5701 = vset.pattern.permute.xlu0 0
    %5702 = vperm.xlu0 %5701, %v5677
    %v5703 = vpop.permute.xlu0 %5702
    %5706 = vset.pattern.permute.xlu0 0
    %5707 = vperm.xlu0 %5706, %v5678
    %v5708 = vpop.permute.xlu0 %5707
    %5711 = vset.pattern.permute.xlu0 0
    %5712 = vperm.xlu0 %5711, %v5679
    %v5713 = vpop.permute.xlu0 %5712
    %v5716 = vsel %vm4390, %v5660, 0
    %v5719 = vsel %vm4390, %v5662, 0
    %v5722 = vsel %vm4390, %v5664, 0
    %v5725 = vsel %vm4390, %v5666, 0
    %v5728 = vsel %vm4390, %v5668, 0
    %v5731 = vsel %vm4390, %v5670, 0
    %v5734 = vsel %vm4390, %v5672, 0
    %5736 = vmatprep.subr.mxu0 0.0
    %5737 = vmatpush1.msra.mxu0 %v5526
    %5738 = vmatprep.subr.mxu0 0.0
    %5739 = vmatpush1.msra.mxu0 %v5531
    %5740 = vmatprep.subr.mxu0 0.0
    %5741 = vmatpush1.msra.mxu0 %v5536
    %5742 = vmatprep.subr.mxu0 0.0
    %5743 = vmatpush1.msra.mxu0 %v5541
    %5744 = vmatprep.subr.mxu0 0.0
    %5745 = vmatpush1.msra.mxu0 %v5546
    %5746 = vmatprep.subr.mxu0 0.0
    %5747 = vmatpush1.msra.mxu0 %v5551
    %5748 = vmatprep.subr.mxu0 0.0
    %5749 = vmatpush1.msra.mxu0 %v5556
    %5750 = vmatprep.subr.mxu0 0.0
    %5751 = vmatpush1.msra.mxu0 %v5561
    %5752 = vmatprep.subr.mxu0 0.0
    %5753 = vmatpush1.msra.mxu0 %v5566
    %5754 = vmatprep.subr.mxu0 0.0
    %5755 = vmatpush1.msra.mxu0 %v5571
    %5756 = vmatprep.subr.mxu0 0.0
    %5757 = vmatpush1.msra.mxu0 %v5576
    %5758 = vmatprep.subr.mxu0 0.0
    %5759 = vmatpush1.msra.mxu0 %v5581
    %5760 = vmatprep.subr.mxu0 0.0
    %5761 = vmatpush1.msra.mxu0 %v5586
    %5762 = vmatprep.subr.mxu0 0.0
    %5763 = vmatpush1.msra.mxu0 %v5591
    %5764 = vmatprep.subr.mxu0 0.0
    %5765 = vmatpush1.msra.mxu0 %v5596
    %5766 = vmatprep.subr.mxu0 0.0
    %5767 = vmatpush1.msra.mxu0 %v5601
    %5768 = vmatprep.subr.mxu0 0.0
    %5769 = vmatpush1.msra.mxu0 %v5606
    %5770 = vmatprep.subr.mxu0 0.0
    %5771 = vmatpush1.msra.mxu0 %v5611
    %5772 = vmatprep.subr.mxu0 0.0
    %5773 = vmatpush1.msra.mxu0 %v5616
    %5774 = vmatprep.subr.mxu0 0.0
    %5775 = vmatpush1.msra.mxu0 %v5621
    %5776 = vmatprep.subr.mxu0 0.0
    %5777 = vmatpush1.msra.mxu0 %v5626
    %5778 = vmatprep.subr.mxu0 0.0
    %5779 = vmatpush1.msra.mxu0 %v5631
    %5780 = vmatprep.subr.mxu0 0.0
    %5781 = vmatpush1.msra.mxu0 %v5636
    %5782 = vmatprep.subr.mxu0 0.0
    %5783 = vmatpush1.msra.mxu0 %v5641
    %5784 = vmatprep.subr.mxu0 0.0
    %5785 = vmatpush1.msra.mxu0 %v5646
    %5786 = vmatprep.subr.mxu0 0.0
    %5787 = vmatpush1.msra.mxu0 %v5651
    %5788 = vmatprep.subr.mxu0 0.0
    %5789 = vmatpush1.msra.mxu0 %v5656
    %5790 = vmatprep.subr.mxu0 0.0
    %5791 = vmatpush1.msra.mxu0 0.0
    %5792 = vmatprep.subr.mxu0 0.0
    %5793 = vmatpush1.msra.mxu0 0.0
    %5794 = vmatprep.subr.mxu0 0.0
    %5795 = vmatpush1.msra.mxu0 0.0
    %5796 = vmatprep.subr.mxu0 0.0
    %5797 = vmatpush1.msra.mxu0 0.0
    %5798 = vmatprep.subr.mxu0 0.0
    %5799 = vmatpush1.msra.mxu0 0.0
    %5800 = vmatprep.mubr.f32.mxu0 %v5716
    %5801 = vmatmul.mubr.f32.gmra.mrb[0].mxu0 %v5659
    %v5802 = vpop.f32.mrb[0].mxu0
    %v5803 = vadd.f32 %v5683, %v5802
    %v5804 = vpop.f32.mrb[0].mxu0
    %5805 = vmatprep.mubr.f32.mxu0 %v5719
    %5806 = vmatmul.mubr.f32.gmra.mrb[0].mxu0 %v5661
    %v5807 = vpop.f32.mrb[0].mxu0
    %v5808 = vadd.f32 %v5688, %v5807
    %v5809 = vpop.f32.mrb[0].mxu0
    %5810 = vmatprep.mubr.f32.mxu0 %v5722
    %5811 = vmatmul.mubr.f32.gmra.mrb[0].mxu0 %v5663
    %v5812 = vpop.f32.mrb[0].mxu0
    %v5813 = vadd.f32 %v5693, %v5812
    %v5814 = vpop.f32.mrb[0].mxu0
    %5815 = vmatprep.mubr.f32.mxu0 %v5725
    %5816 = vmatmul.mubr.f32.gmra.mrb[0].mxu0 %v5665
    %v5817 = vpop.f32.mrb[0].mxu0
    %v5818 = vadd.f32 %v5698, %v5817
    %v5819 = vpop.f32.mrb[0].mxu0
    %5820 = vmatprep.mubr.f32.mxu0 %v5728
    %5821 = vmatmul.mubr.f32.gmra.mrb[0].mxu0 %v5667
    %v5822 = vpop.f32.mrb[0].mxu0
    %v5823 = vadd.f32 %v5703, %v5822
    %v5824 = vpop.f32.mrb[0].mxu0
    %5825 = vmatprep.mubr.f32.mxu0 %v5731
    %5826 = vmatmul.mubr.f32.gmra.mrb[0].mxu0 %v5669
    %v5827 = vpop.f32.mrb[0].mxu0
    %v5828 = vadd.f32 %v5708, %v5827
    %v5829 = vpop.f32.mrb[0].mxu0
    %5830 = vmatprep.mubr.f32.mxu0 %v5734
    %5831 = vmatmul.mubr.f32.gmra.mrb[0].mxu0 %v5671
    %v5832 = vpop.f32.mrb[0].mxu0
    %v5833 = vadd.f32 %v5713, %v5832
    %v5834 = vpop.f32.mrb[0].mxu0
    %5835 = vdwg.mxu0
    %v5836 = vmax.f32 %v5803, 0.0
    %v5837 = vmax.f32 %v5808, 0.0
    %v5838 = vmax.f32 %v5813, 0.0
    %v5839 = vmax.f32 %v5818, 0.0
    %v5840 = vmax.f32 %v5823, 0.0
    %v5841 = vmax.f32 %v5828, 0.0
    %v5842 = vmax.f32 %v5833, 0.0
    %v5843 = vld [vmem:[%s25] sm:$0xff]
    %v5844 = vld [vmem:[%s25 + $0x8] sm:$0x3]
    %v5845 = vld [vmem:[%s26] sm:$0xff]
    %v5846 = vld [vmem:[%s26 + $0x8] sm:$0x3]
    %5848 = vset.pattern.permute.xlu0 0
    %5849 = vperm.xlu0 %5848, %v5845
    %v5850 = vpop.permute.xlu0 %5849
    %5853 = vset.pattern.permute.xlu0 0
    %5854 = vperm.xlu0 %5853, %v5846
    %v5855 = vpop.permute.xlu0 %5854
    %vm5857 = vcmask 408576
    %v5859 = vsel %vm5857, %v5843, 0
    %v5862 = vsel %vm5857, %v5844, 0
    %v5865 = vsel %vm3691, %v5842, 0
    %5867 = vmatprep.subr.mxu0 0.0
    %5868 = vmatpush1.msra.mxu0 %v5836
    %5869 = vmatprep.subr.mxu0 0.0
    %5870 = vmatpush1.msra.mxu0 %v5837
    %5871 = vmatprep.subr.mxu0 0.0
    %5872 = vmatpush1.msra.mxu0 %v5838
    %5873 = vmatprep.subr.mxu0 0.0
    %5874 = vmatpush1.msra.mxu0 %v5839
    %5875 = vmatprep.subr.mxu0 0.0
    %5876 = vmatpush1.msra.mxu0 %v5840
    %5877 = vmatprep.subr.mxu0 0.0
    %5878 = vmatpush1.msra.mxu0 %v5841
    %5879 = vmatprep.subr.mxu0 0.0
    %5880 = vmatpush1.msra.mxu0 %v5865
    %5881 = vmatprep.subr.mxu0 0.0
    %5882 = vmatpush1.msra.mxu0 0.0
    %5883 = vmatprep.subr.mxu0 0.0
    %5884 = vmatpush1.msra.mxu0 0.0
    %5885 = vmatprep.subr.mxu0 0.0
    %5886 = vmatpush1.msra.mxu0 0.0
    %5887 = vmatprep.subr.mxu0 0.0
    %5888 = vmatpush1.msra.mxu0 0.0
    %5889 = vmatprep.subr.mxu0 0.0
    %5890 = vmatpush1.msra.mxu0 0.0
    %5891 = vmatprep.subr.mxu0 0.0
    %5892 = vmatpush1.msra.mxu0 0.0
    %5893 = vmatprep.subr.mxu0 0.0
    %5894 = vmatpush1.msra.mxu0 0.0
    %5895 = vmatprep.subr.mxu0 0.0
    %5896 = vmatpush1.msra.mxu0 0.0
    %5897 = vmatprep.subr.mxu0 0.0
    %5898 = vmatpush1.msra.mxu0 0.0
    %5899 = vmatprep.subr.mxu0 0.0
    %5900 = vmatpush1.msra.mxu0 0.0
    %5901 = vmatprep.subr.mxu0 0.0
    %5902 = vmatpush1.msra.mxu0 0.0
    %5903 = vmatprep.subr.mxu0 0.0
    %5904 = vmatpush1.msra.mxu0 0.0
    %5905 = vmatprep.subr.mxu0 0.0
    %5906 = vmatpush1.msra.mxu0 0.0
    %5907 = vmatprep.subr.mxu0 0.0
    %5908 = vmatpush1.msra.mxu0 0.0
    %5909 = vmatprep.subr.mxu0 0.0
    %5910 = vmatpush1.msra.mxu0 0.0
    %5911 = vmatprep.subr.mxu0 0.0
    %5912 = vmatpush1.msra.mxu0 0.0
    %5913 = vmatprep.subr.mxu0 0.0
    %5914 = vmatpush1.msra.mxu0 0.0
    %5915 = vmatprep.subr.mxu0 0.0
    %5916 = vmatpush1.msra.mxu0 0.0
    %5917 = vmatprep.subr.mxu0 0.0
    %5918 = vmatpush1.msra.mxu0 0.0
    %5919 = vmatprep.subr.mxu0 0.0
    %5920 = vmatpush1.msra.mxu0 0.0
    %5921 = vmatprep.subr.mxu0 0.0
    %5922 = vmatpush1.msra.mxu0 0.0
    %5923 = vmatprep.subr.mxu0 0.0
    %5924 = vmatpush1.msra.mxu0 0.0
    %5925 = vmatprep.subr.mxu0 0.0
    %5926 = vmatpush1.msra.mxu0 0.0
    %5927 = vmatprep.subr.mxu0 0.0
    %5928 = vmatpush1.msra.mxu0 0.0
    %5929 = vmatprep.subr.mxu0 0.0
    %5930 = vmatpush1.msra.mxu0 0.0
    %5931 = vmatprep.mubr.f32.mxu0 0.0
    %5932 = vmatmul.mubr.f32.gmra.mrb[0].mxu0 %v5859
    %v5933 = vpop.f32.mrb[0].mxu0
    %v5934 = vadd.f32 %v5850, %v5933
    %v5935 = vpop.f32.mrb[0].mxu0
    %5936 = vmatprep.mubr.f32.mxu0 0.0
    %5937 = vmatmul.mubr.f32.gmra.mrb[0].mxu0 %v5862
    %v5938 = vpop.f32.mrb[0].mxu0
    %v5939 = vadd.f32 %v5855, %v5938
    %v5940 = vpop.f32.mrb[0].mxu0
    %5941 = vdwg.mxu0
    %vm5942 = vcmask 15360
    %v5943 = vsel %vm5942, %v5934, -inf
    %vm5944 = vcmask 9216
    %v5945 = vsel %vm5944, %v5939, -inf
    %v5946 = vmax.f32 %v5943, %v5945
    %v5947 = vrot.slane %v5946, 4
    %v5948 = vmax.f32 %v5946, %v5947
    %v5949 = vrot.slane %v5948, 2
    %v5950 = vmax.f32 %v5948, %v5949
    %v5951 = vrot.slane %v5950, 1
    %v5952 = vmax.f32 %v5950, %v5951
    %v5953 = vsub.f32 %v5934, %v5952
    %v5954 = vsub.f32 %v5939, %v5952
    %v5955 = vmul.f32 %v5953, 1.442695
    %v5956 = vpow.pop %v5955
    %v5957 = vmul.f32 %v5954, 1.442695
    %v5958 = vpow.pop %v5957
    %v5959 = vsel %vm5942, %v5956, 0.0
    %v5960 = vsel %vm5944, %v5958, 0.0
    %v5961 = vadd.f32 %v5959, %v5960
    %v5962 = vrot.slane %v5961, 4
    %v5963 = vadd.f32 %v5961, %v5962
    %v5964 = vrot.slane %v5963, 2
    %v5965 = vadd.f32 %v5963, %v5964
    %v5966 = vrot.slane %v5965, 1
    %v5967 = vadd.f32 %v5965, %v5966
    %v5968 = vlog2.pop %v5967
    %v5969 = vmul.f32 %v5968, 0.6931472
    %v5970 = vsub.f32 %v5953, %v5969
    %v5971 = vsub.f32 %v5954, %v5969
    %5972 = vst.msk [vmem:[%s27] sm:$0xff] %vm5942, %v5970
    %5973 = vst.msk [vmem:[%s27 + $0x8] sm:$0x3] %vm5944, %v5971
    // Predicated region
    $region118: #{batch_norm_net_forward.1} parent=1 // pred_check
      _
    $region119: #{batch_norm_net_forward.1} parent=1 // pred_check_branch
      %5975 = sbr.rel (0) target = $region121
    $region120: #{batch_norm_net_forward.1} parent=1 // pred_region
      _
    $region121: #{batch_norm_net_forward.1} parent=1 // pred_fallthru
      _
    // Predicated region
    $region122: #{batch_norm_net_forward.1} parent=1 // pred_check
      _
    $region123: #{batch_norm_net_forward.1} parent=1 // pred_check_branch
      %5977 = sbr.rel (0) target = $region125
    $region124: #{batch_norm_net_forward.1} parent=1 // pred_region
      _
    $region125: #{batch_norm_net_forward.1} parent=1 // pred_fallthru
      _
    %5978 = vsyncpa [#allocation3], 1
    %5979 = vsyncpa [#allocation5], 1

</llo_original>
